<compile_context>
chip_gen: v7x
topology: tpu7x:2x2x1
jax: 0.10.0
libtpu: 0.0.40
codegen_flags: <defaults>
</compile_context>

<pallas_src>
import functools

import jax
import jax.numpy as jnp
from jax import lax
from jax.experimental import pallas as pl
from jax.experimental.pallas import tpu as pltpu


# ----------------------------------------------------------------------------
# Fused Conv2d(3x3, pad=1) + bias + ReLU + MaxPool(2,2), one image per grid
# step, one MXU matmul per 8-conv-row block.
#
# x_ref  : (1, Cin, H+2, W+2)        zero-padded input               (VMEM)
# w_ref  : (2*RPB*Cout, Cin*3*E)     stacked/shifted conv weights    (VMEM)
# b_ref  : (RPB*Cout, 1)             bias tiled over the row pairs   (VMEM)
# se_ref : (W, W//2)                 one-hot "even column" selector  (VMEM)
# so_ref : (W, W//2)                 one-hot "odd column" selector   (VMEM)
# out_ref: (1, Cout, H//2, W//2)     pooled output                   (VMEM)
# q_ref  : (Cin*3*E, W)              im2col scratch, E = 2*RPB+2     (VMEM)
# ----------------------------------------------------------------------------
def _conv_relu_pool_kernel(x_ref, w_ref, b_ref, se_ref, so_ref, out_ref, q_ref,
                           *, cin, cout, H, W, rpb):
    Ho = H // 2
    E = 2 * rpb + 2            # padded input rows consumed per row block
    half = rpb * cout          # rows of `res` holding the even conv rows

    def body(it, carry):
        r0 = pl.multiple_of(it * (2 * rpb), 2 * rpb)   # first padded input row
        ro0 = it * rpb                                 # first pooled output row

        # Q[(ci, dx, e), c] = x_pad[ci, r0 + e, c + dx]
        for ci in range(cin):
            for dx in range(3):
                q_ref[pl.ds((ci * 3 + dx) * E, E), :] = \
                    x_ref[0, ci, pl.ds(r0, E), pl.ds(dx, W)]

        # 2*rpb conv output rows in one MXU call: row (j*cout + co) of `res`
        # (with j re-ordered even-rows-first) is conv row r0+j of channel co.
        res = jnp.dot(w_ref[...], q_ref[...],
                      preferred_element_type=jnp.float32)   # (2*rpb*cout, W)

        # relu(max(row_2p, row_2p+1) + b) == max over the row pair of
        # relu(conv + b)   (relu is monotone).
        m = jnp.maximum(jnp.maximum(res[:half], res[half:]) + b_ref[...], 0.0)

        # Column-pair max via one-hot selection matmuls (MXU, no strided
        # lane reads):  (m @ S_even)[.., q] = m[.., 2q],  etc.
        pooled = jnp.maximum(
            jnp.dot(m, se_ref[...], preferred_element_type=jnp.float32),
            jnp.dot(m, so_ref[...], preferred_element_type=jnp.float32))

        for p in range(rpb):
            out_ref[0, :, ro0 + p, :] = pooled[p * cout:(p + 1) * cout, :]
        return carry

    lax.fori_loop(0, Ho // rpb, body, 0)


def _stack_conv_weights(w, rpb):
    """(Cout, Cin, 3, 3) torch layout -> (2*rpb*Cout, Cin*3*(2*rpb+2)).

    Row block order: conv rows j = 0,2,..,2*rpb-2 (even) then 1,3,..,2*rpb-1.
    Column index (ci*3 + dx)*E + e holds w[co, ci, e-j, dx] (zero outside
    0 <= e-j < 3), matching the in-kernel Q layout.
    """
    cout, cin = w.shape[0], w.shape[1]
    E = 2 * rpb + 2
    w_t = jnp.transpose(w, (0, 1, 3, 2))          # (co, ci, dx, dy)

    def block(j):
        wj = jnp.zeros((cout, cin, 3, E), w.dtype).at[:, :, :, j:j + 3].set(w_t)
        return wj.reshape(cout, cin * 3 * E)

    rows = [block(2 * p) for p in range(rpb)] + \
           [block(2 * p + 1) for p in range(rpb)]
    return jnp.concatenate(rows, axis=0)


def _pool_select_mats(W):
    Wo = W // 2
    c = jnp.arange(W)[:, None]
    q = jnp.arange(Wo)[None, :]
    return ((c == 2 * q).astype(jnp.float32),
            (c == 2 * q + 1).astype(jnp.float32))


def conv_relu_pool(x_padded, w, b, *, cin, cout, H, W, rpb=4):
    N = x_padded.shape[0]
    Ho, Wo = H // 2, W // 2
    assert H % (2 * rpb) == 0 and W % 2 == 0
    E = 2 * rpb + 2
    w_stack = _stack_conv_weights(w, rpb)                   # (2*rpb*cout, cin*3*E)
    b_tiled = jnp.tile(b, rpb).reshape(rpb * cout, 1)
    s_even, s_odd = _pool_select_mats(W)                    # (W, Wo) each
    kernel = functools.partial(_conv_relu_pool_kernel,
                               cin=cin, cout=cout, H=H, W=W, rpb=rpb)
    return pl.pallas_call(
        kernel,
        out_shape=jax.ShapeDtypeStruct((N, cout, Ho, Wo), jnp.float32),
        grid=(N,),
        in_specs=[
            pl.BlockSpec((1, cin, H + 2, W + 2), lambda n: (n, 0, 0, 0)),
            pl.BlockSpec((2 * rpb * cout, cin * 3 * E), lambda n: (0, 0)),
            pl.BlockSpec((rpb * cout, 1), lambda n: (0, 0)),
            pl.BlockSpec((W, Wo), lambda n: (0, 0)),
            pl.BlockSpec((W, Wo), lambda n: (0, 0)),
        ],
        out_specs=pl.BlockSpec((1, cout, Ho, Wo), lambda n: (n, 0, 0, 0)),
        scratch_shapes=[pltpu.VMEM((cin * 3 * E, W), jnp.float32)],
        compiler_params=pltpu.CompilerParams(
            dimension_semantics=("parallel",)),
    )(x_padded, w_stack, b_tiled, s_even, s_odd)


# ----------------------------------------------------------------------------
# FC head: out = relu(x @ W1^T + b1) @ W2^T + b2, fused, K-tiled on the MXU.
# Weights stay in the PyTorch (out_features, in_features) layout; both dots
# contract on the last axis of both operands (NT matmul, no wrapper transpose).
# Grid: (K // tk,)  -- reduction axis.
# ----------------------------------------------------------------------------
def _fc_head_kernel(x_ref, w1_ref, b1_ref, w2_ref, b2_ref, out_ref, acc_ref):
    k = pl.program_id(0)

    @pl.when(k == 0)
    def _():
        acc_ref[...] = jnp.zeros_like(acc_ref)

    acc_ref[...] += lax.dot_general(
        x_ref[...], w1_ref[...],
        dimension_numbers=(((1,), (1,)), ((), ())),
        preferred_element_type=jnp.float32)

    @pl.when(k == pl.num_programs(0) - 1)
    def _():
        h = jnp.maximum(acc_ref[...] + b1_ref[...], 0.0)
        out_ref[...] = lax.dot_general(
            h, w2_ref[...],
            dimension_numbers=(((1,), (1,)), ((), ())),
            preferred_element_type=jnp.float32) + b2_ref[...]


def fc_head(x, w1, b1, w2, b2, *, tk=7168):
    N, K = x.shape
    H1 = w1.shape[0]
    C = w2.shape[0]
    assert K % tk == 0 and tk % 128 == 0
    return pl.pallas_call(
        _fc_head_kernel,
        out_shape=jax.ShapeDtypeStruct((N, C), jnp.float32),
        grid=(K // tk,),
        in_specs=[
            pl.BlockSpec((N, tk), lambda k: (0, k)),
            pl.BlockSpec((H1, tk), lambda k: (0, k)),
            pl.BlockSpec((1, H1), lambda k: (0, 0)),
            pl.BlockSpec((C, H1), lambda k: (0, 0)),
            pl.BlockSpec((1, C), lambda k: (0, 0)),
        ],
        out_specs=pl.BlockSpec((N, C), lambda k: (0, 0)),
        scratch_shapes=[pltpu.VMEM((N, H1), jnp.float32)],
        compiler_params=pltpu.CompilerParams(
            dimension_semantics=("arbitrary",)),
    )(x, w1, b1.reshape(1, -1), w2, b2.reshape(1, -1))


# ----------------------------------------------------------------------------
# Full forward pass (glue: padding / flattening in plain JAX).
# ----------------------------------------------------------------------------
def simple_cnn_forward(x, params):
    # x: (N, 3, 224, 224) float32, NCHW (matches PyTorch)
    N = x.shape[0]
    xp = jnp.pad(x, ((0, 0), (0, 0), (1, 1), (1, 1)))
    h1 = conv_relu_pool(xp, params["conv1_w"], params["conv1_b"],
                        cin=3, cout=16, H=224, W=224)          # (N,16,112,112)
    h1p = jnp.pad(h1, ((0, 0), (0, 0), (1, 1), (1, 1)))
    h2 = conv_relu_pool(h1p, params["conv2_w"], params["conv2_b"],
                        cin=16, cout=32, H=112, W=112)         # (N,32,56,56)
    flat = h2.reshape(N, 32 * 56 * 56)   # NCHW flatten == torch .view order
    return fc_head(flat,
                   params["fc1_w"], params["fc1_b"],
                   params["fc2_w"], params["fc2_b"])           # (N, 10)


def init_params(key):
    ks = jax.random.split(key, 8)
    return {
        "conv1_w": 0.05 * jax.random.normal(ks[0], (16, 3, 3, 3), jnp.float32),
        "conv1_b": 0.05 * jax.random.normal(ks[1], (16,), jnp.float32),
        "conv2_w": 0.05 * jax.random.normal(ks[2], (32, 16, 3, 3), jnp.float32),
        "conv2_b": 0.05 * jax.random.normal(ks[3], (32,), jnp.float32),
        # PyTorch Linear convention: weight (out_features, in_features)
        "fc1_w": 0.003 * jax.random.normal(ks[4], (128, 32 * 56 * 56), jnp.float32),
        "fc1_b": 0.05 * jax.random.normal(ks[5], (128,), jnp.float32),
        "fc2_w": 0.05 * jax.random.normal(ks[6], (10, 128), jnp.float32),
        "fc2_b": 0.05 * jax.random.normal(ks[7], (10,), jnp.float32),
    }


if __name__ == "__main__":
    key = jax.random.PRNGKey(0)
    pkey, xkey = jax.random.split(key)
    params = init_params(pkey)
    # Input shape implied by the module: fc1 expects 32*56*56 => 224x224 images.
    x = jax.random.normal(xkey, (2, 3, 224, 224), jnp.float32)

    fwd = jax.jit(simple_cnn_forward)
    out = jax.block_until_ready(fwd(x, params))
    assert out.shape == (2, 10) and out.dtype == jnp.float32
    print("KERNEL_OK")
</pallas_src>

<mosaic_0001>
module attributes {stable_mosaic.version = 11 : i64} {
  func.func @_conv_relu_pool_kernel(%arg0: i32, %arg1: memref<1x3x226x226xf32, #tpu.memory_space<vmem>>, %arg2: memref<128x90xf32, #tpu.memory_space<vmem>>, %arg3: memref<64x1xf32, #tpu.memory_space<vmem>>, %arg4: memref<224x112xf32, #tpu.memory_space<vmem>>, %arg5: memref<224x112xf32, #tpu.memory_space<vmem>>, %arg6: memref<1x16x112x112xf32, #tpu.memory_space<vmem>>, %arg7: memref<90x224xf32, #tpu.memory_space<vmem>>) attributes {dimension_semantics = [#tpu.dimension_semantics<parallel>], iteration_bounds = array<i64: 2>, scalar_prefetch = 0 : i64, scratch_operands = 1 : i64, tpu.core_type = #tpu.core_type<tc>, window_params = [{transform_indices = @transform_0, window_bounds = array<i64: 1, 3, 226, 226>}, {pipeline_mode = #tpu.pipeline_mode<synchronous>, transform_indices = @transform_1, window_bounds = array<i64: 128, 90>}, {pipeline_mode = #tpu.pipeline_mode<synchronous>, transform_indices = @transform_2, window_bounds = array<i64: 64, 1>}, {pipeline_mode = #tpu.pipeline_mode<synchronous>, transform_indices = @transform_3, window_bounds = array<i64: 224, 112>}, {pipeline_mode = #tpu.pipeline_mode<synchronous>, transform_indices = @transform_4, window_bounds = array<i64: 224, 112>}, {transform_indices = @transform_5, window_bounds = array<i64: 1, 16, 112, 112>}]} {
    %c0_i32 = arith.constant 0 : i32
    %c28_i32 = arith.constant 28 : i32
    %0 = arith.addi %c0_i32, %c28_i32 : i32
    %c1_i32 = arith.constant 1 : i32
    scf.for %arg8 = %c0_i32 to %0 step %c1_i32  : i32 {
      %c8_i32 = arith.constant 8 : i32
      %1 = arith.muli %arg8, %c8_i32 : i32
      %2 = tpu.assume_multiple %1, 8 : i32
      %c4_i32 = arith.constant 4 : i32
      %3 = arith.muli %arg8, %c4_i32 : i32
      %c0 = arith.constant 0 : index
      %c0_1 = arith.constant 0 : index
      %4 = arith.index_cast %2 : i32 to index
      %c0_2 = arith.constant 0 : index
      %5 = vector.load %arg1[%c0, %c0_1, %4, %c0_2] : memref<1x3x226x226xf32, #tpu.memory_space<vmem>>, vector<1x1x10x224xf32>
      %6 = vector.shape_cast %5 : vector<1x1x10x224xf32> to vector<10x224xf32>
      %c0_3 = arith.constant 0 : index
      %c0_4 = arith.constant 0 : index
      %7 = vector.load %arg7[%c0_3, %c0_4] : memref<90x224xf32, #tpu.memory_space<vmem>>, vector<10x224xf32>
      tpu.vector_store %arg7[%c0_3, %c0_4], %6 {strides = array<i32>} : memref<90x224xf32, #tpu.memory_space<vmem>>, vector<10x224xf32>,
      %c0_5 = arith.constant 0 : index
      %c0_6 = arith.constant 0 : index
      %8 = arith.index_cast %2 : i32 to index
      %c1 = arith.constant 1 : index
      %9 = vector.load %arg1[%c0_5, %c0_6, %8, %c1] : memref<1x3x226x226xf32, #tpu.memory_space<vmem>>, vector<1x1x10x224xf32>
      %10 = vector.shape_cast %9 : vector<1x1x10x224xf32> to vector<10x224xf32>
      %c10 = arith.constant 10 : index
      %c0_7 = arith.constant 0 : index
      %11 = vector.load %arg7[%c10, %c0_7] : memref<90x224xf32, #tpu.memory_space<vmem>>, vector<10x224xf32>
      tpu.vector_store %arg7[%c10, %c0_7], %10 {strides = array<i32>} : memref<90x224xf32, #tpu.memory_space<vmem>>, vector<10x224xf32>,
      %c0_8 = arith.constant 0 : index
      %c0_9 = arith.constant 0 : index
      %12 = arith.index_cast %2 : i32 to index
      %c2 = arith.constant 2 : index
      %13 = vector.load %arg1[%c0_8, %c0_9, %12, %c2] : memref<1x3x226x226xf32, #tpu.memory_space<vmem>>, vector<1x1x10x224xf32>
      %14 = vector.shape_cast %13 : vector<1x1x10x224xf32> to vector<10x224xf32>
      %c20 = arith.constant 20 : index
      %c0_10 = arith.constant 0 : index
      %15 = vector.load %arg7[%c20, %c0_10] : memref<90x224xf32, #tpu.memory_space<vmem>>, vector<10x224xf32>
      tpu.vector_store %arg7[%c20, %c0_10], %14 {strides = array<i32>} : memref<90x224xf32, #tpu.memory_space<vmem>>, vector<10x224xf32>,
      %c0_11 = arith.constant 0 : index
      %c1_12 = arith.constant 1 : index
      %16 = arith.index_cast %2 : i32 to index
      %c0_13 = arith.constant 0 : index
      %17 = vector.load %arg1[%c0_11, %c1_12, %16, %c0_13] : memref<1x3x226x226xf32, #tpu.memory_space<vmem>>, vector<1x1x10x224xf32>
      %18 = vector.shape_cast %17 : vector<1x1x10x224xf32> to vector<10x224xf32>
      %c30 = arith.constant 30 : index
      %c0_14 = arith.constant 0 : index
      %19 = vector.load %arg7[%c30, %c0_14] : memref<90x224xf32, #tpu.memory_space<vmem>>, vector<10x224xf32>
      tpu.vector_store %arg7[%c30, %c0_14], %18 {strides = array<i32>} : memref<90x224xf32, #tpu.memory_space<vmem>>, vector<10x224xf32>,
      %c0_15 = arith.constant 0 : index
      %c1_16 = arith.constant 1 : index
      %20 = arith.index_cast %2 : i32 to index
      %c1_17 = arith.constant 1 : index
      %21 = vector.load %arg1[%c0_15, %c1_16, %20, %c1_17] : memref<1x3x226x226xf32, #tpu.memory_space<vmem>>, vector<1x1x10x224xf32>
      %22 = vector.shape_cast %21 : vector<1x1x10x224xf32> to vector<10x224xf32>
      %c40 = arith.constant 40 : index
      %c0_18 = arith.constant 0 : index
      %23 = vector.load %arg7[%c40, %c0_18] : memref<90x224xf32, #tpu.memory_space<vmem>>, vector<10x224xf32>
      tpu.vector_store %arg7[%c40, %c0_18], %22 {strides = array<i32>} : memref<90x224xf32, #tpu.memory_space<vmem>>, vector<10x224xf32>,
      %c0_19 = arith.constant 0 : index
      %c1_20 = arith.constant 1 : index
      %24 = arith.index_cast %2 : i32 to index
      %c2_21 = arith.constant 2 : index
      %25 = vector.load %arg1[%c0_19, %c1_20, %24, %c2_21] : memref<1x3x226x226xf32, #tpu.memory_space<vmem>>, vector<1x1x10x224xf32>
      %26 = vector.shape_cast %25 : vector<1x1x10x224xf32> to vector<10x224xf32>
      %c50 = arith.constant 50 : index
      %c0_22 = arith.constant 0 : index
      %27 = vector.load %arg7[%c50, %c0_22] : memref<90x224xf32, #tpu.memory_space<vmem>>, vector<10x224xf32>
      tpu.vector_store %arg7[%c50, %c0_22], %26 {strides = array<i32>} : memref<90x224xf32, #tpu.memory_space<vmem>>, vector<10x224xf32>,
      %c0_23 = arith.constant 0 : index
      %c2_24 = arith.constant 2 : index
      %28 = arith.index_cast %2 : i32 to index
      %c0_25 = arith.constant 0 : index
      %29 = vector.load %arg1[%c0_23, %c2_24, %28, %c0_25] : memref<1x3x226x226xf32, #tpu.memory_space<vmem>>, vector<1x1x10x224xf32>
      %30 = vector.shape_cast %29 : vector<1x1x10x224xf32> to vector<10x224xf32>
      %c60 = arith.constant 60 : index
      %c0_26 = arith.constant 0 : index
      %31 = vector.load %arg7[%c60, %c0_26] : memref<90x224xf32, #tpu.memory_space<vmem>>, vector<10x224xf32>
      tpu.vector_store %arg7[%c60, %c0_26], %30 {strides = array<i32>} : memref<90x224xf32, #tpu.memory_space<vmem>>, vector<10x224xf32>,
      %c0_27 = arith.constant 0 : index
      %c2_28 = arith.constant 2 : index
      %32 = arith.index_cast %2 : i32 to index
      %c1_29 = arith.constant 1 : index
      %33 = vector.load %arg1[%c0_27, %c2_28, %32, %c1_29] : memref<1x3x226x226xf32, #tpu.memory_space<vmem>>, vector<1x1x10x224xf32>
      %34 = vector.shape_cast %33 : vector<1x1x10x224xf32> to vector<10x224xf32>
      %c70 = arith.constant 70 : index
      %c0_30 = arith.constant 0 : index
      %35 = vector.load %arg7[%c70, %c0_30] : memref<90x224xf32, #tpu.memory_space<vmem>>, vector<10x224xf32>
      tpu.vector_store %arg7[%c70, %c0_30], %34 {strides = array<i32>} : memref<90x224xf32, #tpu.memory_space<vmem>>, vector<10x224xf32>,
      %c0_31 = arith.constant 0 : index
      %c2_32 = arith.constant 2 : index
      %36 = arith.index_cast %2 : i32 to index
      %c2_33 = arith.constant 2 : index
      %37 = vector.load %arg1[%c0_31, %c2_32, %36, %c2_33] : memref<1x3x226x226xf32, #tpu.memory_space<vmem>>, vector<1x1x10x224xf32>
      %38 = vector.shape_cast %37 : vector<1x1x10x224xf32> to vector<10x224xf32>
      %c80 = arith.constant 80 : index
      %c0_34 = arith.constant 0 : index
      %39 = vector.load %arg7[%c80, %c0_34] : memref<90x224xf32, #tpu.memory_space<vmem>>, vector<10x224xf32>
      tpu.vector_store %arg7[%c80, %c0_34], %38 {strides = array<i32>} : memref<90x224xf32, #tpu.memory_space<vmem>>, vector<10x224xf32>,
      %c0_35 = arith.constant 0 : index
      %c0_36 = arith.constant 0 : index
      %40 = vector.load %arg2[%c0_35, %c0_36] : memref<128x90xf32, #tpu.memory_space<vmem>>, vector<128x90xf32>
      %c0_37 = arith.constant 0 : index
      %c0_38 = arith.constant 0 : index
      %41 = vector.load %arg7[%c0_37, %c0_38] : memref<90x224xf32, #tpu.memory_space<vmem>>, vector<90x224xf32>
      %cst = arith.constant dense<0.000000e+00> : vector<128x224xf32>
      %42 = tpu.matmul %40, %41, %cst {dimension_numbers = #tpu.dot_dimension_numbers<[1], [0], [0], [1], [0, 0, 1, 1], [], []>} : vector<128x90xf32>, vector<90x224xf32>, vector<128x224xf32> -> vector<128x224xf32>
      %43 = vector.extract_strided_slice %42 {offsets = [0, 0], sizes = [64, 224], strides = [1, 1]} : vector<128x224xf32> to vector<64x224xf32>
      %44 = vector.extract_strided_slice %42 {offsets = [64, 0], sizes = [64, 224], strides = [1, 1]} : vector<128x224xf32> to vector<64x224xf32>
      %45 = arith.maximumf %43, %44 : vector<64x224xf32>
      %c0_39 = arith.constant 0 : index
      %c0_40 = arith.constant 0 : index
      %46 = vector.load %arg3[%c0_39, %c0_40] : memref<64x1xf32, #tpu.memory_space<vmem>>, vector<64x1xf32>
      %47 = vector.broadcast %46 : vector<64x1xf32> to vector<64x224xf32>
      %48 = arith.addf %45, %47 : vector<64x224xf32>
      %cst_41 = arith.constant 0.000000e+00 : f32
      %49 = vector.broadcast %cst_41 : f32 to vector<64x224xf32>
      %50 = arith.maximumf %48, %49 : vector<64x224xf32>
      %c0_42 = arith.constant 0 : index
      %c0_43 = arith.constant 0 : index
      %51 = vector.load %arg4[%c0_42, %c0_43] : memref<224x112xf32, #tpu.memory_space<vmem>>, vector<224x112xf32>
      %cst_44 = arith.constant dense<0.000000e+00> : vector<64x112xf32>
      %52 = tpu.matmul %50, %51, %cst_44 {dimension_numbers = #tpu.dot_dimension_numbers<[1], [0], [0], [1], [0, 0, 1, 1], [], []>} : vector<64x224xf32>, vector<224x112xf32>, vector<64x112xf32> -> vector<64x112xf32>
      %c0_45 = arith.constant 0 : index
      %c0_46 = arith.constant 0 : index
      %53 = vector.load %arg5[%c0_45, %c0_46] : memref<224x112xf32, #tpu.memory_space<vmem>>, vector<224x112xf32>
      %cst_47 = arith.constant dense<0.000000e+00> : vector<64x112xf32>
      %54 = tpu.matmul %50, %53, %cst_47 {dimension_numbers = #tpu.dot_dimension_numbers<[1], [0], [0], [1], [0, 0, 1, 1], [], []>} : vector<64x224xf32>, vector<224x112xf32>, vector<64x112xf32> -> vector<64x112xf32>
      %55 = arith.maximumf %52, %54 : vector<64x112xf32>
      %56 = vector.extract_strided_slice %55 {offsets = [0, 0], sizes = [16, 112], strides = [1, 1]} : vector<64x112xf32> to vector<16x112xf32>
      %c0_i32_48 = arith.constant 0 : i32
      %57 = arith.addi %3, %c0_i32_48 : i32
      %c0_49 = arith.constant 0 : index
      %c0_50 = arith.constant 0 : index
      %58 = arith.index_cast %57 : i32 to index
      %c0_51 = arith.constant 0 : index
      %59 = vector.load %arg6[%c0_49, %c0_50, %58, %c0_51] : memref<1x16x112x112xf32, #tpu.memory_space<vmem>>, vector<1x16x1x112xf32>
      %60 = vector.shape_cast %59 : vector<1x16x1x112xf32> to vector<16x112xf32>
      %61 = vector.shape_cast %56 : vector<16x112xf32> to vector<1x16x1x112xf32>
      tpu.vector_store %arg6[%c0_49, %c0_50, %58, %c0_51], %61 {strides = array<i32>} : memref<1x16x112x112xf32, #tpu.memory_space<vmem>>, vector<1x16x1x112xf32>,
      %62 = vector.extract_strided_slice %55 {offsets = [16, 0], sizes = [16, 112], strides = [1, 1]} : vector<64x112xf32> to vector<16x112xf32>
      %c1_i32_52 = arith.constant 1 : i32
      %63 = arith.addi %3, %c1_i32_52 : i32
      %c0_53 = arith.constant 0 : index
      %c0_54 = arith.constant 0 : index
      %64 = arith.index_cast %63 : i32 to index
      %c0_55 = arith.constant 0 : index
      %65 = vector.load %arg6[%c0_53, %c0_54, %64, %c0_55] : memref<1x16x112x112xf32, #tpu.memory_space<vmem>>, vector<1x16x1x112xf32>
      %66 = vector.shape_cast %65 : vector<1x16x1x112xf32> to vector<16x112xf32>
      %67 = vector.shape_cast %62 : vector<16x112xf32> to vector<1x16x1x112xf32>
      tpu.vector_store %arg6[%c0_53, %c0_54, %64, %c0_55], %67 {strides = array<i32>} : memref<1x16x112x112xf32, #tpu.memory_space<vmem>>, vector<1x16x1x112xf32>,
      %68 = vector.extract_strided_slice %55 {offsets = [32, 0], sizes = [16, 112], strides = [1, 1]} : vector<64x112xf32> to vector<16x112xf32>
      %c2_i32 = arith.constant 2 : i32
      %69 = arith.addi %3, %c2_i32 : i32
      %c0_56 = arith.constant 0 : index
      %c0_57 = arith.constant 0 : index
      %70 = arith.index_cast %69 : i32 to index
      %c0_58 = arith.constant 0 : index
      %71 = vector.load %arg6[%c0_56, %c0_57, %70, %c0_58] : memref<1x16x112x112xf32, #tpu.memory_space<vmem>>, vector<1x16x1x112xf32>
      %72 = vector.shape_cast %71 : vector<1x16x1x112xf32> to vector<16x112xf32>
      %73 = vector.shape_cast %68 : vector<16x112xf32> to vector<1x16x1x112xf32>
      tpu.vector_store %arg6[%c0_56, %c0_57, %70, %c0_58], %73 {strides = array<i32>} : memref<1x16x112x112xf32, #tpu.memory_space<vmem>>, vector<1x16x1x112xf32>,
      %74 = vector.extract_strided_slice %55 {offsets = [48, 0], sizes = [16, 112], strides = [1, 1]} : vector<64x112xf32> to vector<16x112xf32>
      %c3_i32 = arith.constant 3 : i32
      %75 = arith.addi %3, %c3_i32 : i32
      %c0_59 = arith.constant 0 : index
      %c0_60 = arith.constant 0 : index
      %76 = arith.index_cast %75 : i32 to index
      %c0_61 = arith.constant 0 : index
      %77 = vector.load %arg6[%c0_59, %c0_60, %76, %c0_61] : memref<1x16x112x112xf32, #tpu.memory_space<vmem>>, vector<1x16x1x112xf32>
      %78 = vector.shape_cast %77 : vector<1x16x1x112xf32> to vector<16x112xf32>
      %79 = vector.shape_cast %74 : vector<16x112xf32> to vector<1x16x1x112xf32>
      tpu.vector_store %arg6[%c0_59, %c0_60, %76, %c0_61], %79 {strides = array<i32>} : memref<1x16x112x112xf32, #tpu.memory_space<vmem>>, vector<1x16x1x112xf32>,
    }
    %c28_i32_0 = arith.constant 28 : i32
    return
  }
  func.func @transform_0(%arg0: i32) -> (i32, i32, i32, i32) {
    %c0_i32 = arith.constant 0 : i32
    %c0_i32_0 = arith.constant 0 : i32
    %c0_i32_1 = arith.constant 0 : i32
    %c0_i32_2 = arith.constant 0 : i32
    return %arg0, %c0_i32, %c0_i32_0, %c0_i32_1 : i32, i32, i32, i32
  }
  func.func @transform_1(%arg0: i32) -> (i32, i32) {
    %c0_i32 = arith.constant 0 : i32
    %c0_i32_0 = arith.constant 0 : i32
    %c0_i32_1 = arith.constant 0 : i32
    return %c0_i32, %c0_i32_0 : i32, i32
  }
  func.func @transform_2(%arg0: i32) -> (i32, i32) {
    %c0_i32 = arith.constant 0 : i32
    %c0_i32_0 = arith.constant 0 : i32
    %c0_i32_1 = arith.constant 0 : i32
    return %c0_i32, %c0_i32_0 : i32, i32
  }
  func.func @transform_3(%arg0: i32) -> (i32, i32) {
    %c0_i32 = arith.constant 0 : i32
    %c0_i32_0 = arith.constant 0 : i32
    %c0_i32_1 = arith.constant 0 : i32
    return %c0_i32, %c0_i32_0 : i32, i32
  }
  func.func @transform_4(%arg0: i32) -> (i32, i32) {
    %c0_i32 = arith.constant 0 : i32
    %c0_i32_0 = arith.constant 0 : i32
    %c0_i32_1 = arith.constant 0 : i32
    return %c0_i32, %c0_i32_0 : i32, i32
  }
  func.func @transform_5(%arg0: i32) -> (i32, i32, i32, i32) {
    %c0_i32 = arith.constant 0 : i32
    %c0_i32_0 = arith.constant 0 : i32
    %c0_i32_1 = arith.constant 0 : i32
    %c0_i32_2 = arith.constant 0 : i32
    return %arg0, %c0_i32, %c0_i32_0, %c0_i32_1 : i32, i32, i32, i32
  }
}

module attributes {stable_mosaic.version = 11 : i64} {
  func.func @_conv_relu_pool_kernel(%arg0: i32, %arg1: memref<1x16x114x114xf32, #tpu.memory_space<vmem>>, %arg2: memref<256x480xf32, #tpu.memory_space<vmem>>, %arg3: memref<128x1xf32, #tpu.memory_space<vmem>>, %arg4: memref<112x56xf32, #tpu.memory_space<vmem>>, %arg5: memref<112x56xf32, #tpu.memory_space<vmem>>, %arg6: memref<1x32x56x56xf32, #tpu.memory_space<vmem>>, %arg7: memref<480x112xf32, #tpu.memory_space<vmem>>) attributes {dimension_semantics = [#tpu.dimension_semantics<parallel>], iteration_bounds = array<i64: 2>, scalar_prefetch = 0 : i64, scratch_operands = 1 : i64, tpu.core_type = #tpu.core_type<tc>, window_params = [{transform_indices = @transform_0, window_bounds = array<i64: 1, 16, 114, 114>}, {pipeline_mode = #tpu.pipeline_mode<synchronous>, transform_indices = @transform_1, window_bounds = array<i64: 256, 480>}, {pipeline_mode = #tpu.pipeline_mode<synchronous>, transform_indices = @transform_2, window_bounds = array<i64: 128, 1>}, {pipeline_mode = #tpu.pipeline_mode<synchronous>, transform_indices = @transform_3, window_bounds = array<i64: 112, 56>}, {pipeline_mode = #tpu.pipeline_mode<synchronous>, transform_indices = @transform_4, window_bounds = array<i64: 112, 56>}, {transform_indices = @transform_5, window_bounds = array<i64: 1, 32, 56, 56>}]} {
    %c0_i32 = arith.constant 0 : i32
    %c14_i32 = arith.constant 14 : i32
    %0 = arith.addi %c0_i32, %c14_i32 : i32
    %c1_i32 = arith.constant 1 : i32
    scf.for %arg8 = %c0_i32 to %0 step %c1_i32  : i32 {
      %c8_i32 = arith.constant 8 : i32
      %1 = arith.muli %arg8, %c8_i32 : i32
      %2 = tpu.assume_multiple %1, 8 : i32
      %c4_i32 = arith.constant 4 : i32
      %3 = arith.muli %arg8, %c4_i32 : i32
      %c0 = arith.constant 0 : index
      %c0_1 = arith.constant 0 : index
      %4 = arith.index_cast %2 : i32 to index
      %c0_2 = arith.constant 0 : index
      %5 = vector.load %arg1[%c0, %c0_1, %4, %c0_2] : memref<1x16x114x114xf32, #tpu.memory_space<vmem>>, vector<1x1x10x112xf32>
      %6 = vector.shape_cast %5 : vector<1x1x10x112xf32> to vector<10x112xf32>
      %c0_3 = arith.constant 0 : index
      %c0_4 = arith.constant 0 : index
      %7 = vector.load %arg7[%c0_3, %c0_4] : memref<480x112xf32, #tpu.memory_space<vmem>>, vector<10x112xf32>
      tpu.vector_store %arg7[%c0_3, %c0_4], %6 {strides = array<i32>} : memref<480x112xf32, #tpu.memory_space<vmem>>, vector<10x112xf32>,
      %c0_5 = arith.constant 0 : index
      %c0_6 = arith.constant 0 : index
      %8 = arith.index_cast %2 : i32 to index
      %c1 = arith.constant 1 : index
      %9 = vector.load %arg1[%c0_5, %c0_6, %8, %c1] : memref<1x16x114x114xf32, #tpu.memory_space<vmem>>, vector<1x1x10x112xf32>
      %10 = vector.shape_cast %9 : vector<1x1x10x112xf32> to vector<10x112xf32>
      %c10 = arith.constant 10 : index
      %c0_7 = arith.constant 0 : index
      %11 = vector.load %arg7[%c10, %c0_7] : memref<480x112xf32, #tpu.memory_space<vmem>>, vector<10x112xf32>
      tpu.vector_store %arg7[%c10, %c0_7], %10 {strides = array<i32>} : memref<480x112xf32, #tpu.memory_space<vmem>>, vector<10x112xf32>,
      %c0_8 = arith.constant 0 : index
      %c0_9 = arith.constant 0 : index
      %12 = arith.index_cast %2 : i32 to index
      %c2 = arith.constant 2 : index
      %13 = vector.load %arg1[%c0_8, %c0_9, %12, %c2] : memref<1x16x114x114xf32, #tpu.memory_space<vmem>>, vector<1x1x10x112xf32>
      %14 = vector.shape_cast %13 : vector<1x1x10x112xf32> to vector<10x112xf32>
      %c20 = arith.constant 20 : index
      %c0_10 = arith.constant 0 : index
      %15 = vector.load %arg7[%c20, %c0_10] : memref<480x112xf32, #tpu.memory_space<vmem>>, vector<10x112xf32>
      tpu.vector_store %arg7[%c20, %c0_10], %14 {strides = array<i32>} : memref<480x112xf32, #tpu.memory_space<vmem>>, vector<10x112xf32>,
      %c0_11 = arith.constant 0 : index
      %c1_12 = arith.constant 1 : index
      %16 = arith.index_cast %2 : i32 to index
      %c0_13 = arith.constant 0 : index
      %17 = vector.load %arg1[%c0_11, %c1_12, %16, %c0_13] : memref<1x16x114x114xf32, #tpu.memory_space<vmem>>, vector<1x1x10x112xf32>
      %18 = vector.shape_cast %17 : vector<1x1x10x112xf32> to vector<10x112xf32>
      %c30 = arith.constant 30 : index
      %c0_14 = arith.constant 0 : index
      %19 = vector.load %arg7[%c30, %c0_14] : memref<480x112xf32, #tpu.memory_space<vmem>>, vector<10x112xf32>
      tpu.vector_store %arg7[%c30, %c0_14], %18 {strides = array<i32>} : memref<480x112xf32, #tpu.memory_space<vmem>>, vector<10x112xf32>,
      %c0_15 = arith.constant 0 : index
      %c1_16 = arith.constant 1 : index
      %20 = arith.index_cast %2 : i32 to index
      %c1_17 = arith.constant 1 : index
      %21 = vector.load %arg1[%c0_15, %c1_16, %20, %c1_17] : memref<1x16x114x114xf32, #tpu.memory_space<vmem>>, vector<1x1x10x112xf32>
      %22 = vector.shape_cast %21 : vector<1x1x10x112xf32> to vector<10x112xf32>
      %c40 = arith.constant 40 : index
      %c0_18 = arith.constant 0 : index
      %23 = vector.load %arg7[%c40, %c0_18] : memref<480x112xf32, #tpu.memory_space<vmem>>, vector<10x112xf32>
      tpu.vector_store %arg7[%c40, %c0_18], %22 {strides = array<i32>} : memref<480x112xf32, #tpu.memory_space<vmem>>, vector<10x112xf32>,
      %c0_19 = arith.constant 0 : index
      %c1_20 = arith.constant 1 : index
      %24 = arith.index_cast %2 : i32 to index
      %c2_21 = arith.constant 2 : index
      %25 = vector.load %arg1[%c0_19, %c1_20, %24, %c2_21] : memref<1x16x114x114xf32, #tpu.memory_space<vmem>>, vector<1x1x10x112xf32>
      %26 = vector.shape_cast %25 : vector<1x1x10x112xf32> to vector<10x112xf32>
      %c50 = arith.constant 50 : index
      %c0_22 = arith.constant 0 : index
      %27 = vector.load %arg7[%c50, %c0_22] : memref<480x112xf32, #tpu.memory_space<vmem>>, vector<10x112xf32>
      tpu.vector_store %arg7[%c50, %c0_22], %26 {strides = array<i32>} : memref<480x112xf32, #tpu.memory_space<vmem>>, vector<10x112xf32>,
      %c0_23 = arith.constant 0 : index
      %c2_24 = arith.constant 2 : index
      %28 = arith.index_cast %2 : i32 to index
      %c0_25 = arith.constant 0 : index
      %29 = vector.load %arg1[%c0_23, %c2_24, %28, %c0_25] : memref<1x16x114x114xf32, #tpu.memory_space<vmem>>, vector<1x1x10x112xf32>
      %30 = vector.shape_cast %29 : vector<1x1x10x112xf32> to vector<10x112xf32>
      %c60 = arith.constant 60 : index
      %c0_26 = arith.constant 0 : index
      %31 = vector.load %arg7[%c60, %c0_26] : memref<480x112xf32, #tpu.memory_space<vmem>>, vector<10x112xf32>
      tpu.vector_store %arg7[%c60, %c0_26], %30 {strides = array<i32>} : memref<480x112xf32, #tpu.memory_space<vmem>>, vector<10x112xf32>,
      %c0_27 = arith.constant 0 : index
      %c2_28 = arith.constant 2 : index
      %32 = arith.index_cast %2 : i32 to index
      %c1_29 = arith.constant 1 : index
      %33 = vector.load %arg1[%c0_27, %c2_28, %32, %c1_29] : memref<1x16x114x114xf32, #tpu.memory_space<vmem>>, vector<1x1x10x112xf32>
      %34 = vector.shape_cast %33 : vector<1x1x10x112xf32> to vector<10x112xf32>
      %c70 = arith.constant 70 : index
      %c0_30 = arith.constant 0 : index
      %35 = vector.load %arg7[%c70, %c0_30] : memref<480x112xf32, #tpu.memory_space<vmem>>, vector<10x112xf32>
      tpu.vector_store %arg7[%c70, %c0_30], %34 {strides = array<i32>} : memref<480x112xf32, #tpu.memory_space<vmem>>, vector<10x112xf32>,
      %c0_31 = arith.constant 0 : index
      %c2_32 = arith.constant 2 : index
      %36 = arith.index_cast %2 : i32 to index
      %c2_33 = arith.constant 2 : index
      %37 = vector.load %arg1[%c0_31, %c2_32, %36, %c2_33] : memref<1x16x114x114xf32, #tpu.memory_space<vmem>>, vector<1x1x10x112xf32>
      %38 = vector.shape_cast %37 : vector<1x1x10x112xf32> to vector<10x112xf32>
      %c80 = arith.constant 80 : index
      %c0_34 = arith.constant 0 : index
      %39 = vector.load %arg7[%c80, %c0_34] : memref<480x112xf32, #tpu.memory_space<vmem>>, vector<10x112xf32>
      tpu.vector_store %arg7[%c80, %c0_34], %38 {strides = array<i32>} : memref<480x112xf32, #tpu.memory_space<vmem>>, vector<10x112xf32>,
      %c0_35 = arith.constant 0 : index
      %c3 = arith.constant 3 : index
      %40 = arith.index_cast %2 : i32 to index
      %c0_36 = arith.constant 0 : index
      %41 = vector.load %arg1[%c0_35, %c3, %40, %c0_36] : memref<1x16x114x114xf32, #tpu.memory_space<vmem>>, vector<1x1x10x112xf32>
      %42 = vector.shape_cast %41 : vector<1x1x10x112xf32> to vector<10x112xf32>
      %c90 = arith.constant 90 : index
      %c0_37 = arith.constant 0 : index
      %43 = vector.load %arg7[%c90, %c0_37] : memref<480x112xf32, #tpu.memory_space<vmem>>, vector<10x112xf32>
      tpu.vector_store %arg7[%c90, %c0_37], %42 {strides = array<i32>} : memref<480x112xf32, #tpu.memory_space<vmem>>, vector<10x112xf32>,
      %c0_38 = arith.constant 0 : index
      %c3_39 = arith.constant 3 : index
      %44 = arith.index_cast %2 : i32 to index
      %c1_40 = arith.constant 1 : index
      %45 = vector.load %arg1[%c0_38, %c3_39, %44, %c1_40] : memref<1x16x114x114xf32, #tpu.memory_space<vmem>>, vector<1x1x10x112xf32>
      %46 = vector.shape_cast %45 : vector<1x1x10x112xf32> to vector<10x112xf32>
      %c100 = arith.constant 100 : index
      %c0_41 = arith.constant 0 : index
      %47 = vector.load %arg7[%c100, %c0_41] : memref<480x112xf32, #tpu.memory_space<vmem>>, vector<10x112xf32>
      tpu.vector_store %arg7[%c100, %c0_41], %46 {strides = array<i32>} : memref<480x112xf32, #tpu.memory_space<vmem>>, vector<10x112xf32>,
      %c0_42 = arith.constant 0 : index
      %c3_43 = arith.constant 3 : index
      %48 = arith.index_cast %2 : i32 to index
      %c2_44 = arith.constant 2 : index
      %49 = vector.load %arg1[%c0_42, %c3_43, %48, %c2_44] : memref<1x16x114x114xf32, #tpu.memory_space<vmem>>, vector<1x1x10x112xf32>
      %50 = vector.shape_cast %49 : vector<1x1x10x112xf32> to vector<10x112xf32>
      %c110 = arith.constant 110 : index
      %c0_45 = arith.constant 0 : index
      %51 = vector.load %arg7[%c110, %c0_45] : memref<480x112xf32, #tpu.memory_space<vmem>>, vector<10x112xf32>
      tpu.vector_store %arg7[%c110, %c0_45], %50 {strides = array<i32>} : memref<480x112xf32, #tpu.memory_space<vmem>>, vector<10x112xf32>,
      %c0_46 = arith.constant 0 : index
      %c4 = arith.constant 4 : index
      %52 = arith.index_cast %2 : i32 to index
      %c0_47 = arith.constant 0 : index
      %53 = vector.load %arg1[%c0_46, %c4, %52, %c0_47] : memref<1x16x114x114xf32, #tpu.memory_space<vmem>>, vector<1x1x10x112xf32>
      %54 = vector.shape_cast %53 : vector<1x1x10x112xf32> to vector<10x112xf32>
      %c120 = arith.constant 120 : index
      %c0_48 = arith.constant 0 : index
      %55 = vector.load %arg7[%c120, %c0_48] : memref<480x112xf32, #tpu.memory_space<vmem>>, vector<10x112xf32>
      tpu.vector_store %arg7[%c120, %c0_48], %54 {strides = array<i32>} : memref<480x112xf32, #tpu.memory_space<vmem>>, vector<10x112xf32>,
      %c0_49 = arith.constant 0 : index
      %c4_50 = arith.constant 4 : index
      %56 = arith.index_cast %2 : i32 to index
      %c1_51 = arith.constant 1 : index
      %57 = vector.load %arg1[%c0_49, %c4_50, %56, %c1_51] : memref<1x16x114x114xf32, #tpu.memory_space<vmem>>, vector<1x1x10x112xf32>
      %58 = vector.shape_cast %57 : vector<1x1x10x112xf32> to vector<10x112xf32>
      %c130 = arith.constant 130 : index
      %c0_52 = arith.constant 0 : index
      %59 = vector.load %arg7[%c130, %c0_52] : memref<480x112xf32, #tpu.memory_space<vmem>>, vector<10x112xf32>
      tpu.vector_store %arg7[%c130, %c0_52], %58 {strides = array<i32>} : memref<480x112xf32, #tpu.memory_space<vmem>>, vector<10x112xf32>,
      %c0_53 = arith.constant 0 : index
      %c4_54 = arith.constant 4 : index
      %60 = arith.index_cast %2 : i32 to index
      %c2_55 = arith.constant 2 : index
      %61 = vector.load %arg1[%c0_53, %c4_54, %60, %c2_55] : memref<1x16x114x114xf32, #tpu.memory_space<vmem>>, vector<1x1x10x112xf32>
      %62 = vector.shape_cast %61 : vector<1x1x10x112xf32> to vector<10x112xf32>
      %c140 = arith.constant 140 : index
      %c0_56 = arith.constant 0 : index
      %63 = vector.load %arg7[%c140, %c0_56] : memref<480x112xf32, #tpu.memory_space<vmem>>, vector<10x112xf32>
      tpu.vector_store %arg7[%c140, %c0_56], %62 {strides = array<i32>} : memref<480x112xf32, #tpu.memory_space<vmem>>, vector<10x112xf32>,
      %c0_57 = arith.constant 0 : index
      %c5 = arith.constant 5 : index
      %64 = arith.index_cast %2 : i32 to index
      %c0_58 = arith.constant 0 : index
      %65 = vector.load %arg1[%c0_57, %c5, %64, %c0_58] : memref<1x16x114x114xf32, #tpu.memory_space<vmem>>, vector<1x1x10x112xf32>
      %66 = vector.shape_cast %65 : vector<1x1x10x112xf32> to vector<10x112xf32>
      %c150 = arith.constant 150 : index
      %c0_59 = arith.constant 0 : index
      %67 = vector.load %arg7[%c150, %c0_59] : memref<480x112xf32, #tpu.memory_space<vmem>>, vector<10x112xf32>
      tpu.vector_store %arg7[%c150, %c0_59], %66 {strides = array<i32>} : memref<480x112xf32, #tpu.memory_space<vmem>>, vector<10x112xf32>,
      %c0_60 = arith.constant 0 : index
      %c5_61 = arith.constant 5 : index
      %68 = arith.index_cast %2 : i32 to index
      %c1_62 = arith.constant 1 : index
      %69 = vector.load %arg1[%c0_60, %c5_61, %68, %c1_62] : memref<1x16x114x114xf32, #tpu.memory_space<vmem>>, vector<1x1x10x112xf32>
      %70 = vector.shape_cast %69 : vector<1x1x10x112xf32> to vector<10x112xf32>
      %c160 = arith.constant 160 : index
      %c0_63 = arith.constant 0 : index
      %71 = vector.load %arg7[%c160, %c0_63] : memref<480x112xf32, #tpu.memory_space<vmem>>, vector<10x112xf32>
      tpu.vector_store %arg7[%c160, %c0_63], %70 {strides = array<i32>} : memref<480x112xf32, #tpu.memory_space<vmem>>, vector<10x112xf32>,
      %c0_64 = arith.constant 0 : index
      %c5_65 = arith.constant 5 : index
      %72 = arith.index_cast %2 : i32 to index
      %c2_66 = arith.constant 2 : index
      %73 = vector.load %arg1[%c0_64, %c5_65, %72, %c2_66] : memref<1x16x114x114xf32, #tpu.memory_space<vmem>>, vector<1x1x10x112xf32>
      %74 = vector.shape_cast %73 : vector<1x1x10x112xf32> to vector<10x112xf32>
      %c170 = arith.constant 170 : index
      %c0_67 = arith.constant 0 : index
      %75 = vector.load %arg7[%c170, %c0_67] : memref<480x112xf32, #tpu.memory_space<vmem>>, vector<10x112xf32>
      tpu.vector_store %arg7[%c170, %c0_67], %74 {strides = array<i32>} : memref<480x112xf32, #tpu.memory_space<vmem>>, vector<10x112xf32>,
      %c0_68 = arith.constant 0 : index
      %c6 = arith.constant 6 : index
      %76 = arith.index_cast %2 : i32 to index
      %c0_69 = arith.constant 0 : index
      %77 = vector.load %arg1[%c0_68, %c6, %76, %c0_69] : memref<1x16x114x114xf32, #tpu.memory_space<vmem>>, vector<1x1x10x112xf32>
      %78 = vector.shape_cast %77 : vector<1x1x10x112xf32> to vector<10x112xf32>
      %c180 = arith.constant 180 : index
      %c0_70 = arith.constant 0 : index
      %79 = vector.load %arg7[%c180, %c0_70] : memref<480x112xf32, #tpu.memory_space<vmem>>, vector<10x112xf32>
      tpu.vector_store %arg7[%c180, %c0_70], %78 {strides = array<i32>} : memref<480x112xf32, #tpu.memory_space<vmem>>, vector<10x112xf32>,
      %c0_71 = arith.constant 0 : index
      %c6_72 = arith.constant 6 : index
      %80 = arith.index_cast %2 : i32 to index
      %c1_73 = arith.constant 1 : index
      %81 = vector.load %arg1[%c0_71, %c6_72, %80, %c1_73] : memref<1x16x114x114xf32, #tpu.memory_space<vmem>>, vector<1x1x10x112xf32>
      %82 = vector.shape_cast %81 : vector<1x1x10x112xf32> to vector<10x112xf32>
      %c190 = arith.constant 190 : index
      %c0_74 = arith.constant 0 : index
      %83 = vector.load %arg7[%c190, %c0_74] : memref<480x112xf32, #tpu.memory_space<vmem>>, vector<10x112xf32>
      tpu.vector_store %arg7[%c190, %c0_74], %82 {strides = array<i32>} : memref<480x112xf32, #tpu.memory_space<vmem>>, vector<10x112xf32>,
      %c0_75 = arith.constant 0 : index
      %c6_76 = arith.constant 6 : index
      %84 = arith.index_cast %2 : i32 to index
      %c2_77 = arith.constant 2 : index
      %85 = vector.load %arg1[%c0_75, %c6_76, %84, %c2_77] : memref<1x16x114x114xf32, #tpu.memory_space<vmem>>, vector<1x1x10x112xf32>
      %86 = vector.shape_cast %85 : vector<1x1x10x112xf32> to vector<10x112xf32>
      %c200 = arith.constant 200 : index
      %c0_78 = arith.constant 0 : index
      %87 = vector.load %arg7[%c200, %c0_78] : memref<480x112xf32, #tpu.memory_space<vmem>>, vector<10x112xf32>
      tpu.vector_store %arg7[%c200, %c0_78], %86 {strides = array<i32>} : memref<480x112xf32, #tpu.memory_space<vmem>>, vector<10x112xf32>,
      %c0_79 = arith.constant 0 : index
      %c7 = arith.constant 7 : index
      %88 = arith.index_cast %2 : i32 to index
      %c0_80 = arith.constant 0 : index
      %89 = vector.load %arg1[%c0_79, %c7, %88, %c0_80] : memref<1x16x114x114xf32, #tpu.memory_space<vmem>>, vector<1x1x10x112xf32>
      %90 = vector.shape_cast %89 : vector<1x1x10x112xf32> to vector<10x112xf32>
      %c210 = arith.constant 210 : index
      %c0_81 = arith.constant 0 : index
      %91 = vector.load %arg7[%c210, %c0_81] : memref<480x112xf32, #tpu.memory_space<vmem>>, vector<10x112xf32>
      tpu.vector_store %arg7[%c210, %c0_81], %90 {strides = array<i32>} : memref<480x112xf32, #tpu.memory_space<vmem>>, vector<10x112xf32>,
      %c0_82 = arith.constant 0 : index
      %c7_83 = arith.constant 7 : index
      %92 = arith.index_cast %2 : i32 to index
      %c1_84 = arith.constant 1 : index
      %93 = vector.load %arg1[%c0_82, %c7_83, %92, %c1_84] : memref<1x16x114x114xf32, #tpu.memory_space<vmem>>, vector<1x1x10x112xf32>
      %94 = vector.shape_cast %93 : vector<1x1x10x112xf32> to vector<10x112xf32>
      %c220 = arith.constant 220 : index
      %c0_85 = arith.constant 0 : index
      %95 = vector.load %arg7[%c220, %c0_85] : memref<480x112xf32, #tpu.memory_space<vmem>>, vector<10x112xf32>
      tpu.vector_store %arg7[%c220, %c0_85], %94 {strides = array<i32>} : memref<480x112xf32, #tpu.memory_space<vmem>>, vector<10x112xf32>,
      %c0_86 = arith.constant 0 : index
      %c7_87 = arith.constant 7 : index
      %96 = arith.index_cast %2 : i32 to index
      %c2_88 = arith.constant 2 : index
      %97 = vector.load %arg1[%c0_86, %c7_87, %96, %c2_88] : memref<1x16x114x114xf32, #tpu.memory_space<vmem>>, vector<1x1x10x112xf32>
      %98 = vector.shape_cast %97 : vector<1x1x10x112xf32> to vector<10x112xf32>
      %c230 = arith.constant 230 : index
      %c0_89 = arith.constant 0 : index
      %99 = vector.load %arg7[%c230, %c0_89] : memref<480x112xf32, #tpu.memory_space<vmem>>, vector<10x112xf32>
      tpu.vector_store %arg7[%c230, %c0_89], %98 {strides = array<i32>} : memref<480x112xf32, #tpu.memory_space<vmem>>, vector<10x112xf32>,
      %c0_90 = arith.constant 0 : index
      %c8 = arith.constant 8 : index
      %100 = arith.index_cast %2 : i32 to index
      %c0_91 = arith.constant 0 : index
      %101 = vector.load %arg1[%c0_90, %c8, %100, %c0_91] : memref<1x16x114x114xf32, #tpu.memory_space<vmem>>, vector<1x1x10x112xf32>
      %102 = vector.shape_cast %101 : vector<1x1x10x112xf32> to vector<10x112xf32>
      %c240 = arith.constant 240 : index
      %c0_92 = arith.constant 0 : index
      %103 = vector.load %arg7[%c240, %c0_92] : memref<480x112xf32, #tpu.memory_space<vmem>>, vector<10x112xf32>
      tpu.vector_store %arg7[%c240, %c0_92], %102 {strides = array<i32>} : memref<480x112xf32, #tpu.memory_space<vmem>>, vector<10x112xf32>,
      %c0_93 = arith.constant 0 : index
      %c8_94 = arith.constant 8 : index
      %104 = arith.index_cast %2 : i32 to index
      %c1_95 = arith.constant 1 : index
      %105 = vector.load %arg1[%c0_93, %c8_94, %104, %c1_95] : memref<1x16x114x114xf32, #tpu.memory_space<vmem>>, vector<1x1x10x112xf32>
      %106 = vector.shape_cast %105 : vector<1x1x10x112xf32> to vector<10x112xf32>
      %c250 = arith.constant 250 : index
      %c0_96 = arith.constant 0 : index
      %107 = vector.load %arg7[%c250, %c0_96] : memref<480x112xf32, #tpu.memory_space<vmem>>, vector<10x112xf32>
      tpu.vector_store %arg7[%c250, %c0_96], %106 {strides = array<i32>} : memref<480x112xf32, #tpu.memory_space<vmem>>, vector<10x112xf32>,
      %c0_97 = arith.constant 0 : index
      %c8_98 = arith.constant 8 : index
      %108 = arith.index_cast %2 : i32 to index
      %c2_99 = arith.constant 2 : index
      %109 = vector.load %arg1[%c0_97, %c8_98, %108, %c2_99] : memref<1x16x114x114xf32, #tpu.memory_space<vmem>>, vector<1x1x10x112xf32>
      %110 = vector.shape_cast %109 : vector<1x1x10x112xf32> to vector<10x112xf32>
      %c260 = arith.constant 260 : index
      %c0_100 = arith.constant 0 : index
      %111 = vector.load %arg7[%c260, %c0_100] : memref<480x112xf32, #tpu.memory_space<vmem>>, vector<10x112xf32>
      tpu.vector_store %arg7[%c260, %c0_100], %110 {strides = array<i32>} : memref<480x112xf32, #tpu.memory_space<vmem>>, vector<10x112xf32>,
      %c0_101 = arith.constant 0 : index
      %c9 = arith.constant 9 : index
      %112 = arith.index_cast %2 : i32 to index
      %c0_102 = arith.constant 0 : index
      %113 = vector.load %arg1[%c0_101, %c9, %112, %c0_102] : memref<1x16x114x114xf32, #tpu.memory_space<vmem>>, vector<1x1x10x112xf32>
      %114 = vector.shape_cast %113 : vector<1x1x10x112xf32> to vector<10x112xf32>
      %c270 = arith.constant 270 : index
      %c0_103 = arith.constant 0 : index
      %115 = vector.load %arg7[%c270, %c0_103] : memref<480x112xf32, #tpu.memory_space<vmem>>, vector<10x112xf32>
      tpu.vector_store %arg7[%c270, %c0_103], %114 {strides = array<i32>} : memref<480x112xf32, #tpu.memory_space<vmem>>, vector<10x112xf32>,
      %c0_104 = arith.constant 0 : index
      %c9_105 = arith.constant 9 : index
      %116 = arith.index_cast %2 : i32 to index
      %c1_106 = arith.constant 1 : index
      %117 = vector.load %arg1[%c0_104, %c9_105, %116, %c1_106] : memref<1x16x114x114xf32, #tpu.memory_space<vmem>>, vector<1x1x10x112xf32>
      %118 = vector.shape_cast %117 : vector<1x1x10x112xf32> to vector<10x112xf32>
      %c280 = arith.constant 280 : index
      %c0_107 = arith.constant 0 : index
      %119 = vector.load %arg7[%c280, %c0_107] : memref<480x112xf32, #tpu.memory_space<vmem>>, vector<10x112xf32>
      tpu.vector_store %arg7[%c280, %c0_107], %118 {strides = array<i32>} : memref<480x112xf32, #tpu.memory_space<vmem>>, vector<10x112xf32>,
      %c0_108 = arith.constant 0 : index
      %c9_109 = arith.constant 9 : index
      %120 = arith.index_cast %2 : i32 to index
      %c2_110 = arith.constant 2 : index
      %121 = vector.load %arg1[%c0_108, %c9_109, %120, %c2_110] : memref<1x16x114x114xf32, #tpu.memory_space<vmem>>, vector<1x1x10x112xf32>
      %122 = vector.shape_cast %121 : vector<1x1x10x112xf32> to vector<10x112xf32>
      %c290 = arith.constant 290 : index
      %c0_111 = arith.constant 0 : index
      %123 = vector.load %arg7[%c290, %c0_111] : memref<480x112xf32, #tpu.memory_space<vmem>>, vector<10x112xf32>
      tpu.vector_store %arg7[%c290, %c0_111], %122 {strides = array<i32>} : memref<480x112xf32, #tpu.memory_space<vmem>>, vector<10x112xf32>,
      %c0_112 = arith.constant 0 : index
      %c10_113 = arith.constant 10 : index
      %124 = arith.index_cast %2 : i32 to index
      %c0_114 = arith.constant 0 : index
      %125 = vector.load %arg1[%c0_112, %c10_113, %124, %c0_114] : memref<1x16x114x114xf32, #tpu.memory_space<vmem>>, vector<1x1x10x112xf32>
      %126 = vector.shape_cast %125 : vector<1x1x10x112xf32> to vector<10x112xf32>
      %c300 = arith.constant 300 : index
      %c0_115 = arith.constant 0 : index
      %127 = vector.load %arg7[%c300, %c0_115] : memref<480x112xf32, #tpu.memory_space<vmem>>, vector<10x112xf32>
      tpu.vector_store %arg7[%c300, %c0_115], %126 {strides = array<i32>} : memref<480x112xf32, #tpu.memory_space<vmem>>, vector<10x112xf32>,
      %c0_116 = arith.constant 0 : index
      %c10_117 = arith.constant 10 : index
      %128 = arith.index_cast %2 : i32 to index
      %c1_118 = arith.constant 1 : index
      %129 = vector.load %arg1[%c0_116, %c10_117, %128, %c1_118] : memref<1x16x114x114xf32, #tpu.memory_space<vmem>>, vector<1x1x10x112xf32>
      %130 = vector.shape_cast %129 : vector<1x1x10x112xf32> to vector<10x112xf32>
      %c310 = arith.constant 310 : index
      %c0_119 = arith.constant 0 : index
      %131 = vector.load %arg7[%c310, %c0_119] : memref<480x112xf32, #tpu.memory_space<vmem>>, vector<10x112xf32>
      tpu.vector_store %arg7[%c310, %c0_119], %130 {strides = array<i32>} : memref<480x112xf32, #tpu.memory_space<vmem>>, vector<10x112xf32>,
      %c0_120 = arith.constant 0 : index
      %c10_121 = arith.constant 10 : index
      %132 = arith.index_cast %2 : i32 to index
      %c2_122 = arith.constant 2 : index
      %133 = vector.load %arg1[%c0_120, %c10_121, %132, %c2_122] : memref<1x16x114x114xf32, #tpu.memory_space<vmem>>, vector<1x1x10x112xf32>
      %134 = vector.shape_cast %133 : vector<1x1x10x112xf32> to vector<10x112xf32>
      %c320 = arith.constant 320 : index
      %c0_123 = arith.constant 0 : index
      %135 = vector.load %arg7[%c320, %c0_123] : memref<480x112xf32, #tpu.memory_space<vmem>>, vector<10x112xf32>
      tpu.vector_store %arg7[%c320, %c0_123], %134 {strides = array<i32>} : memref<480x112xf32, #tpu.memory_space<vmem>>, vector<10x112xf32>,
      %c0_124 = arith.constant 0 : index
      %c11 = arith.constant 11 : index
      %136 = arith.index_cast %2 : i32 to index
      %c0_125 = arith.constant 0 : index
      %137 = vector.load %arg1[%c0_124, %c11, %136, %c0_125] : memref<1x16x114x114xf32, #tpu.memory_space<vmem>>, vector<1x1x10x112xf32>
      %138 = vector.shape_cast %137 : vector<1x1x10x112xf32> to vector<10x112xf32>
      %c330 = arith.constant 330 : index
      %c0_126 = arith.constant 0 : index
      %139 = vector.load %arg7[%c330, %c0_126] : memref<480x112xf32, #tpu.memory_space<vmem>>, vector<10x112xf32>
      tpu.vector_store %arg7[%c330, %c0_126], %138 {strides = array<i32>} : memref<480x112xf32, #tpu.memory_space<vmem>>, vector<10x112xf32>,
      %c0_127 = arith.constant 0 : index
      %c11_128 = arith.constant 11 : index
      %140 = arith.index_cast %2 : i32 to index
      %c1_129 = arith.constant 1 : index
      %141 = vector.load %arg1[%c0_127, %c11_128, %140, %c1_129] : memref<1x16x114x114xf32, #tpu.memory_space<vmem>>, vector<1x1x10x112xf32>
      %142 = vector.shape_cast %141 : vector<1x1x10x112xf32> to vector<10x112xf32>
      %c340 = arith.constant 340 : index
      %c0_130 = arith.constant 0 : index
      %143 = vector.load %arg7[%c340, %c0_130] : memref<480x112xf32, #tpu.memory_space<vmem>>, vector<10x112xf32>
      tpu.vector_store %arg7[%c340, %c0_130], %142 {strides = array<i32>} : memref<480x112xf32, #tpu.memory_space<vmem>>, vector<10x112xf32>,
      %c0_131 = arith.constant 0 : index
      %c11_132 = arith.constant 11 : index
      %144 = arith.index_cast %2 : i32 to index
      %c2_133 = arith.constant 2 : index
      %145 = vector.load %arg1[%c0_131, %c11_132, %144, %c2_133] : memref<1x16x114x114xf32, #tpu.memory_space<vmem>>, vector<1x1x10x112xf32>
      %146 = vector.shape_cast %145 : vector<1x1x10x112xf32> to vector<10x112xf32>
      %c350 = arith.constant 350 : index
      %c0_134 = arith.constant 0 : index
      %147 = vector.load %arg7[%c350, %c0_134] : memref<480x112xf32, #tpu.memory_space<vmem>>, vector<10x112xf32>
      tpu.vector_store %arg7[%c350, %c0_134], %146 {strides = array<i32>} : memref<480x112xf32, #tpu.memory_space<vmem>>, vector<10x112xf32>,
      %c0_135 = arith.constant 0 : index
      %c12 = arith.constant 12 : index
      %148 = arith.index_cast %2 : i32 to index
      %c0_136 = arith.constant 0 : index
      %149 = vector.load %arg1[%c0_135, %c12, %148, %c0_136] : memref<1x16x114x114xf32, #tpu.memory_space<vmem>>, vector<1x1x10x112xf32>
      %150 = vector.shape_cast %149 : vector<1x1x10x112xf32> to vector<10x112xf32>
      %c360 = arith.constant 360 : index
      %c0_137 = arith.constant 0 : index
      %151 = vector.load %arg7[%c360, %c0_137] : memref<480x112xf32, #tpu.memory_space<vmem>>, vector<10x112xf32>
      tpu.vector_store %arg7[%c360, %c0_137], %150 {strides = array<i32>} : memref<480x112xf32, #tpu.memory_space<vmem>>, vector<10x112xf32>,
      %c0_138 = arith.constant 0 : index
      %c12_139 = arith.constant 12 : index
      %152 = arith.index_cast %2 : i32 to index
      %c1_140 = arith.constant 1 : index
      %153 = vector.load %arg1[%c0_138, %c12_139, %152, %c1_140] : memref<1x16x114x114xf32, #tpu.memory_space<vmem>>, vector<1x1x10x112xf32>
      %154 = vector.shape_cast %153 : vector<1x1x10x112xf32> to vector<10x112xf32>
      %c370 = arith.constant 370 : index
      %c0_141 = arith.constant 0 : index
      %155 = vector.load %arg7[%c370, %c0_141] : memref<480x112xf32, #tpu.memory_space<vmem>>, vector<10x112xf32>
      tpu.vector_store %arg7[%c370, %c0_141], %154 {strides = array<i32>} : memref<480x112xf32, #tpu.memory_space<vmem>>, vector<10x112xf32>,
      %c0_142 = arith.constant 0 : index
      %c12_143 = arith.constant 12 : index
      %156 = arith.index_cast %2 : i32 to index
      %c2_144 = arith.constant 2 : index
      %157 = vector.load %arg1[%c0_142, %c12_143, %156, %c2_144] : memref<1x16x114x114xf32, #tpu.memory_space<vmem>>, vector<1x1x10x112xf32>
      %158 = vector.shape_cast %157 : vector<1x1x10x112xf32> to vector<10x112xf32>
      %c380 = arith.constant 380 : index
      %c0_145 = arith.constant 0 : index
      %159 = vector.load %arg7[%c380, %c0_145] : memref<480x112xf32, #tpu.memory_space<vmem>>, vector<10x112xf32>
      tpu.vector_store %arg7[%c380, %c0_145], %158 {strides = array<i32>} : memref<480x112xf32, #tpu.memory_space<vmem>>, vector<10x112xf32>,
      %c0_146 = arith.constant 0 : index
      %c13 = arith.constant 13 : index
      %160 = arith.index_cast %2 : i32 to index
      %c0_147 = arith.constant 0 : index
      %161 = vector.load %arg1[%c0_146, %c13, %160, %c0_147] : memref<1x16x114x114xf32, #tpu.memory_space<vmem>>, vector<1x1x10x112xf32>
      %162 = vector.shape_cast %161 : vector<1x1x10x112xf32> to vector<10x112xf32>
      %c390 = arith.constant 390 : index
      %c0_148 = arith.constant 0 : index
      %163 = vector.load %arg7[%c390, %c0_148] : memref<480x112xf32, #tpu.memory_space<vmem>>, vector<10x112xf32>
      tpu.vector_store %arg7[%c390, %c0_148], %162 {strides = array<i32>} : memref<480x112xf32, #tpu.memory_space<vmem>>, vector<10x112xf32>,
      %c0_149 = arith.constant 0 : index
      %c13_150 = arith.constant 13 : index
      %164 = arith.index_cast %2 : i32 to index
      %c1_151 = arith.constant 1 : index
      %165 = vector.load %arg1[%c0_149, %c13_150, %164, %c1_151] : memref<1x16x114x114xf32, #tpu.memory_space<vmem>>, vector<1x1x10x112xf32>
      %166 = vector.shape_cast %165 : vector<1x1x10x112xf32> to vector<10x112xf32>
      %c400 = arith.constant 400 : index
      %c0_152 = arith.constant 0 : index
      %167 = vector.load %arg7[%c400, %c0_152] : memref<480x112xf32, #tpu.memory_space<vmem>>, vector<10x112xf32>
      tpu.vector_store %arg7[%c400, %c0_152], %166 {strides = array<i32>} : memref<480x112xf32, #tpu.memory_space<vmem>>, vector<10x112xf32>,
      %c0_153 = arith.constant 0 : index
      %c13_154 = arith.constant 13 : index
      %168 = arith.index_cast %2 : i32 to index
      %c2_155 = arith.constant 2 : index
      %169 = vector.load %arg1[%c0_153, %c13_154, %168, %c2_155] : memref<1x16x114x114xf32, #tpu.memory_space<vmem>>, vector<1x1x10x112xf32>
      %170 = vector.shape_cast %169 : vector<1x1x10x112xf32> to vector<10x112xf32>
      %c410 = arith.constant 410 : index
      %c0_156 = arith.constant 0 : index
      %171 = vector.load %arg7[%c410, %c0_156] : memref<480x112xf32, #tpu.memory_space<vmem>>, vector<10x112xf32>
      tpu.vector_store %arg7[%c410, %c0_156], %170 {strides = array<i32>} : memref<480x112xf32, #tpu.memory_space<vmem>>, vector<10x112xf32>,
      %c0_157 = arith.constant 0 : index
      %c14 = arith.constant 14 : index
      %172 = arith.index_cast %2 : i32 to index
      %c0_158 = arith.constant 0 : index
      %173 = vector.load %arg1[%c0_157, %c14, %172, %c0_158] : memref<1x16x114x114xf32, #tpu.memory_space<vmem>>, vector<1x1x10x112xf32>
      %174 = vector.shape_cast %173 : vector<1x1x10x112xf32> to vector<10x112xf32>
      %c420 = arith.constant 420 : index
      %c0_159 = arith.constant 0 : index
      %175 = vector.load %arg7[%c420, %c0_159] : memref<480x112xf32, #tpu.memory_space<vmem>>, vector<10x112xf32>
      tpu.vector_store %arg7[%c420, %c0_159], %174 {strides = array<i32>} : memref<480x112xf32, #tpu.memory_space<vmem>>, vector<10x112xf32>,
      %c0_160 = arith.constant 0 : index
      %c14_161 = arith.constant 14 : index
      %176 = arith.index_cast %2 : i32 to index
      %c1_162 = arith.constant 1 : index
      %177 = vector.load %arg1[%c0_160, %c14_161, %176, %c1_162] : memref<1x16x114x114xf32, #tpu.memory_space<vmem>>, vector<1x1x10x112xf32>
      %178 = vector.shape_cast %177 : vector<1x1x10x112xf32> to vector<10x112xf32>
      %c430 = arith.constant 430 : index
      %c0_163 = arith.constant 0 : index
      %179 = vector.load %arg7[%c430, %c0_163] : memref<480x112xf32, #tpu.memory_space<vmem>>, vector<10x112xf32>
      tpu.vector_store %arg7[%c430, %c0_163], %178 {strides = array<i32>} : memref<480x112xf32, #tpu.memory_space<vmem>>, vector<10x112xf32>,
      %c0_164 = arith.constant 0 : index
      %c14_165 = arith.constant 14 : index
      %180 = arith.index_cast %2 : i32 to index
      %c2_166 = arith.constant 2 : index
      %181 = vector.load %arg1[%c0_164, %c14_165, %180, %c2_166] : memref<1x16x114x114xf32, #tpu.memory_space<vmem>>, vector<1x1x10x112xf32>
      %182 = vector.shape_cast %181 : vector<1x1x10x112xf32> to vector<10x112xf32>
      %c440 = arith.constant 440 : index
      %c0_167 = arith.constant 0 : index
      %183 = vector.load %arg7[%c440, %c0_167] : memref<480x112xf32, #tpu.memory_space<vmem>>, vector<10x112xf32>
      tpu.vector_store %arg7[%c440, %c0_167], %182 {strides = array<i32>} : memref<480x112xf32, #tpu.memory_space<vmem>>, vector<10x112xf32>,
      %c0_168 = arith.constant 0 : index
      %c15 = arith.constant 15 : index
      %184 = arith.index_cast %2 : i32 to index
      %c0_169 = arith.constant 0 : index
      %185 = vector.load %arg1[%c0_168, %c15, %184, %c0_169] : memref<1x16x114x114xf32, #tpu.memory_space<vmem>>, vector<1x1x10x112xf32>
      %186 = vector.shape_cast %185 : vector<1x1x10x112xf32> to vector<10x112xf32>
      %c450 = arith.constant 450 : index
      %c0_170 = arith.constant 0 : index
      %187 = vector.load %arg7[%c450, %c0_170] : memref<480x112xf32, #tpu.memory_space<vmem>>, vector<10x112xf32>
      tpu.vector_store %arg7[%c450, %c0_170], %186 {strides = array<i32>} : memref<480x112xf32, #tpu.memory_space<vmem>>, vector<10x112xf32>,
      %c0_171 = arith.constant 0 : index
      %c15_172 = arith.constant 15 : index
      %188 = arith.index_cast %2 : i32 to index
      %c1_173 = arith.constant 1 : index
      %189 = vector.load %arg1[%c0_171, %c15_172, %188, %c1_173] : memref<1x16x114x114xf32, #tpu.memory_space<vmem>>, vector<1x1x10x112xf32>
      %190 = vector.shape_cast %189 : vector<1x1x10x112xf32> to vector<10x112xf32>
      %c460 = arith.constant 460 : index
      %c0_174 = arith.constant 0 : index
      %191 = vector.load %arg7[%c460, %c0_174] : memref<480x112xf32, #tpu.memory_space<vmem>>, vector<10x112xf32>
      tpu.vector_store %arg7[%c460, %c0_174], %190 {strides = array<i32>} : memref<480x112xf32, #tpu.memory_space<vmem>>, vector<10x112xf32>,
      %c0_175 = arith.constant 0 : index
      %c15_176 = arith.constant 15 : index
      %192 = arith.index_cast %2 : i32 to index
      %c2_177 = arith.constant 2 : index
      %193 = vector.load %arg1[%c0_175, %c15_176, %192, %c2_177] : memref<1x16x114x114xf32, #tpu.memory_space<vmem>>, vector<1x1x10x112xf32>
      %194 = vector.shape_cast %193 : vector<1x1x10x112xf32> to vector<10x112xf32>
      %c470 = arith.constant 470 : index
      %c0_178 = arith.constant 0 : index
      %195 = vector.load %arg7[%c470, %c0_178] : memref<480x112xf32, #tpu.memory_space<vmem>>, vector<10x112xf32>
      tpu.vector_store %arg7[%c470, %c0_178], %194 {strides = array<i32>} : memref<480x112xf32, #tpu.memory_space<vmem>>, vector<10x112xf32>,
      %c0_179 = arith.constant 0 : index
      %c0_180 = arith.constant 0 : index
      %196 = vector.load %arg2[%c0_179, %c0_180] : memref<256x480xf32, #tpu.memory_space<vmem>>, vector<256x480xf32>
      %c0_181 = arith.constant 0 : index
      %c0_182 = arith.constant 0 : index
      %197 = vector.load %arg7[%c0_181, %c0_182] : memref<480x112xf32, #tpu.memory_space<vmem>>, vector<480x112xf32>
      %cst = arith.constant dense<0.000000e+00> : vector<256x112xf32>
      %198 = tpu.matmul %196, %197, %cst {dimension_numbers = #tpu.dot_dimension_numbers<[1], [0], [0], [1], [0, 0, 1, 1], [], []>} : vector<256x480xf32>, vector<480x112xf32>, vector<256x112xf32> -> vector<256x112xf32>
      %199 = vector.extract_strided_slice %198 {offsets = [0, 0], sizes = [128, 112], strides = [1, 1]} : vector<256x112xf32> to vector<128x112xf32>
      %200 = vector.extract_strided_slice %198 {offsets = [128, 0], sizes = [128, 112], strides = [1, 1]} : vector<256x112xf32> to vector<128x112xf32>
      %201 = arith.maximumf %199, %200 : vector<128x112xf32>
      %c0_183 = arith.constant 0 : index
      %c0_184 = arith.constant 0 : index
      %202 = vector.load %arg3[%c0_183, %c0_184] : memref<128x1xf32, #tpu.memory_space<vmem>>, vector<128x1xf32>
      %203 = vector.broadcast %202 : vector<128x1xf32> to vector<128x112xf32>
      %204 = arith.addf %201, %203 : vector<128x112xf32>
      %cst_185 = arith.constant 0.000000e+00 : f32
      %205 = vector.broadcast %cst_185 : f32 to vector<128x112xf32>
      %206 = arith.maximumf %204, %205 : vector<128x112xf32>
      %c0_186 = arith.constant 0 : index
      %c0_187 = arith.constant 0 : index
      %207 = vector.load %arg4[%c0_186, %c0_187] : memref<112x56xf32, #tpu.memory_space<vmem>>, vector<112x56xf32>
      %cst_188 = arith.constant dense<0.000000e+00> : vector<128x56xf32>
      %208 = tpu.matmul %206, %207, %cst_188 {dimension_numbers = #tpu.dot_dimension_numbers<[1], [0], [0], [1], [0, 0, 1, 1], [], []>} : vector<128x112xf32>, vector<112x56xf32>, vector<128x56xf32> -> vector<128x56xf32>
      %c0_189 = arith.constant 0 : index
      %c0_190 = arith.constant 0 : index
      %209 = vector.load %arg5[%c0_189, %c0_190] : memref<112x56xf32, #tpu.memory_space<vmem>>, vector<112x56xf32>
      %cst_191 = arith.constant dense<0.000000e+00> : vector<128x56xf32>
      %210 = tpu.matmul %206, %209, %cst_191 {dimension_numbers = #tpu.dot_dimension_numbers<[1], [0], [0], [1], [0, 0, 1, 1], [], []>} : vector<128x112xf32>, vector<112x56xf32>, vector<128x56xf32> -> vector<128x56xf32>
      %211 = arith.maximumf %208, %210 : vector<128x56xf32>
      %212 = vector.extract_strided_slice %211 {offsets = [0, 0], sizes = [32, 56], strides = [1, 1]} : vector<128x56xf32> to vector<32x56xf32>
      %c0_i32_192 = arith.constant 0 : i32
      %213 = arith.addi %3, %c0_i32_192 : i32
      %c0_193 = arith.constant 0 : index
      %c0_194 = arith.constant 0 : index
      %214 = arith.index_cast %213 : i32 to index
      %c0_195 = arith.constant 0 : index
      %215 = vector.load %arg6[%c0_193, %c0_194, %214, %c0_195] : memref<1x32x56x56xf32, #tpu.memory_space<vmem>>, vector<1x32x1x56xf32>
      %216 = vector.shape_cast %215 : vector<1x32x1x56xf32> to vector<32x56xf32>
      %217 = vector.shape_cast %212 : vector<32x56xf32> to vector<1x32x1x56xf32>
      tpu.vector_store %arg6[%c0_193, %c0_194, %214, %c0_195], %217 {strides = array<i32>} : memref<1x32x56x56xf32, #tpu.memory_space<vmem>>, vector<1x32x1x56xf32>,
      %218 = vector.extract_strided_slice %211 {offsets = [32, 0], sizes = [32, 56], strides = [1, 1]} : vector<128x56xf32> to vector<32x56xf32>
      %c1_i32_196 = arith.constant 1 : i32
      %219 = arith.addi %3, %c1_i32_196 : i32
      %c0_197 = arith.constant 0 : index
      %c0_198 = arith.constant 0 : index
      %220 = arith.index_cast %219 : i32 to index
      %c0_199 = arith.constant 0 : index
      %221 = vector.load %arg6[%c0_197, %c0_198, %220, %c0_199] : memref<1x32x56x56xf32, #tpu.memory_space<vmem>>, vector<1x32x1x56xf32>
      %222 = vector.shape_cast %221 : vector<1x32x1x56xf32> to vector<32x56xf32>
      %223 = vector.shape_cast %218 : vector<32x56xf32> to vector<1x32x1x56xf32>
      tpu.vector_store %arg6[%c0_197, %c0_198, %220, %c0_199], %223 {strides = array<i32>} : memref<1x32x56x56xf32, #tpu.memory_space<vmem>>, vector<1x32x1x56xf32>,
      %224 = vector.extract_strided_slice %211 {offsets = [64, 0], sizes = [32, 56], strides = [1, 1]} : vector<128x56xf32> to vector<32x56xf32>
      %c2_i32 = arith.constant 2 : i32
      %225 = arith.addi %3, %c2_i32 : i32
      %c0_200 = arith.constant 0 : index
      %c0_201 = arith.constant 0 : index
      %226 = arith.index_cast %225 : i32 to index
      %c0_202 = arith.constant 0 : index
      %227 = vector.load %arg6[%c0_200, %c0_201, %226, %c0_202] : memref<1x32x56x56xf32, #tpu.memory_space<vmem>>, vector<1x32x1x56xf32>
      %228 = vector.shape_cast %227 : vector<1x32x1x56xf32> to vector<32x56xf32>
      %229 = vector.shape_cast %224 : vector<32x56xf32> to vector<1x32x1x56xf32>
      tpu.vector_store %arg6[%c0_200, %c0_201, %226, %c0_202], %229 {strides = array<i32>} : memref<1x32x56x56xf32, #tpu.memory_space<vmem>>, vector<1x32x1x56xf32>,
      %230 = vector.extract_strided_slice %211 {offsets = [96, 0], sizes = [32, 56], strides = [1, 1]} : vector<128x56xf32> to vector<32x56xf32>
      %c3_i32 = arith.constant 3 : i32
      %231 = arith.addi %3, %c3_i32 : i32
      %c0_203 = arith.constant 0 : index
      %c0_204 = arith.constant 0 : index
      %232 = arith.index_cast %231 : i32 to index
      %c0_205 = arith.constant 0 : index
      %233 = vector.load %arg6[%c0_203, %c0_204, %232, %c0_205] : memref<1x32x56x56xf32, #tpu.memory_space<vmem>>, vector<1x32x1x56xf32>
      %234 = vector.shape_cast %233 : vector<1x32x1x56xf32> to vector<32x56xf32>
      %235 = vector.shape_cast %230 : vector<32x56xf32> to vector<1x32x1x56xf32>
      tpu.vector_store %arg6[%c0_203, %c0_204, %232, %c0_205], %235 {strides = array<i32>} : memref<1x32x56x56xf32, #tpu.memory_space<vmem>>, vector<1x32x1x56xf32>,
    }
    %c14_i32_0 = arith.constant 14 : i32
    return
  }
  func.func @transform_0(%arg0: i32) -> (i32, i32, i32, i32) {
    %c0_i32 = arith.constant 0 : i32
    %c0_i32_0 = arith.constant 0 : i32
    %c0_i32_1 = arith.constant 0 : i32
    %c0_i32_2 = arith.constant 0 : i32
    return %arg0, %c0_i32, %c0_i32_0, %c0_i32_1 : i32, i32, i32, i32
  }
  func.func @transform_1(%arg0: i32) -> (i32, i32) {
    %c0_i32 = arith.constant 0 : i32
    %c0_i32_0 = arith.constant 0 : i32
    %c0_i32_1 = arith.constant 0 : i32
    return %c0_i32, %c0_i32_0 : i32, i32
  }
  func.func @transform_2(%arg0: i32) -> (i32, i32) {
    %c0_i32 = arith.constant 0 : i32
    %c0_i32_0 = arith.constant 0 : i32
    %c0_i32_1 = arith.constant 0 : i32
    return %c0_i32, %c0_i32_0 : i32, i32
  }
  func.func @transform_3(%arg0: i32) -> (i32, i32) {
    %c0_i32 = arith.constant 0 : i32
    %c0_i32_0 = arith.constant 0 : i32
    %c0_i32_1 = arith.constant 0 : i32
    return %c0_i32, %c0_i32_0 : i32, i32
  }
  func.func @transform_4(%arg0: i32) -> (i32, i32) {
    %c0_i32 = arith.constant 0 : i32
    %c0_i32_0 = arith.constant 0 : i32
    %c0_i32_1 = arith.constant 0 : i32
    return %c0_i32, %c0_i32_0 : i32, i32
  }
  func.func @transform_5(%arg0: i32) -> (i32, i32, i32, i32) {
    %c0_i32 = arith.constant 0 : i32
    %c0_i32_0 = arith.constant 0 : i32
    %c0_i32_1 = arith.constant 0 : i32
    %c0_i32_2 = arith.constant 0 : i32
    return %arg0, %c0_i32, %c0_i32_0, %c0_i32_1 : i32, i32, i32, i32
  }
}

module attributes {stable_mosaic.version = 11 : i64} {
  func.func @_fc_head_kernel(%arg0: i32, %arg1: memref<2x7168xf32, #tpu.memory_space<vmem>>, %arg2: memref<128x7168xf32, #tpu.memory_space<vmem>>, %arg3: memref<1x128xf32, #tpu.memory_space<vmem>>, %arg4: memref<10x128xf32, #tpu.memory_space<vmem>>, %arg5: memref<1x10xf32, #tpu.memory_space<vmem>>, %arg6: memref<2x10xf32, #tpu.memory_space<vmem>>, %arg7: memref<2x128xf32, #tpu.memory_space<vmem>>) attributes {dimension_semantics = [#tpu.dimension_semantics<arbitrary>], iteration_bounds = array<i64: 14>, scalar_prefetch = 0 : i64, scratch_operands = 1 : i64, tpu.core_type = #tpu.core_type<tc>, window_params = [{transform_indices = @transform_0, window_bounds = array<i64: 2, 7168>}, {transform_indices = @transform_1, window_bounds = array<i64: 128, 7168>}, {pipeline_mode = #tpu.pipeline_mode<synchronous>, transform_indices = @transform_2, window_bounds = array<i64: 1, 128>}, {pipeline_mode = #tpu.pipeline_mode<synchronous>, transform_indices = @transform_3, window_bounds = array<i64: 10, 128>}, {pipeline_mode = #tpu.pipeline_mode<synchronous>, transform_indices = @transform_4, window_bounds = array<i64: 1, 10>}, {pipeline_mode = #tpu.pipeline_mode<synchronous>, transform_indices = @transform_5, window_bounds = array<i64: 2, 10>}]} {
    %c0_i32 = arith.constant 0 : i32
    %0 = arith.cmpi eq, %arg0, %c0_i32 : i32
    %1 = arith.extui %0 : i1 to i32
    %c0_i32_0 = arith.constant 0 : i32
    %2 = arith.cmpi ne, %1, %c0_i32_0 : i32
    scf.if %2 {
      %cst_9 = arith.constant 0.000000e+00 : f32
      %12 = vector.broadcast %cst_9 : f32 to vector<2x128xf32>
      %c0_10 = arith.constant 0 : index
      %c0_11 = arith.constant 0 : index
      %13 = vector.load %arg7[%c0_10, %c0_11] : memref<2x128xf32, #tpu.memory_space<vmem>>, vector<2x128xf32>
      tpu.vector_store %arg7[%c0_10, %c0_11], %12 {strides = array<i32>} : memref<2x128xf32, #tpu.memory_space<vmem>>, vector<2x128xf32>,
    } else {
    }
    %c0 = arith.constant 0 : index
    %c0_1 = arith.constant 0 : index
    %3 = vector.load %arg7[%c0, %c0_1] : memref<2x128xf32, #tpu.memory_space<vmem>>, vector<2x128xf32>
    %c0_2 = arith.constant 0 : index
    %c0_3 = arith.constant 0 : index
    %4 = vector.load %arg1[%c0_2, %c0_3] : memref<2x7168xf32, #tpu.memory_space<vmem>>, vector<2x7168xf32>
    %c0_4 = arith.constant 0 : index
    %c0_5 = arith.constant 0 : index
    %5 = vector.load %arg2[%c0_4, %c0_5] : memref<128x7168xf32, #tpu.memory_space<vmem>>, vector<128x7168xf32>
    %cst = arith.constant dense<0.000000e+00> : vector<2x128xf32>
    %6 = tpu.matmul %4, %5, %cst {dimension_numbers = #tpu.dot_dimension_numbers<[1], [1], [0], [0], [0, 0, 1, 0], [], []>} : vector<2x7168xf32>, vector<128x7168xf32>, vector<2x128xf32> -> vector<2x128xf32>
    %7 = arith.addf %3, %6 : vector<2x128xf32>
    %c0_6 = arith.constant 0 : index
    %c0_7 = arith.constant 0 : index
    %8 = vector.load %arg7[%c0_6, %c0_7] : memref<2x128xf32, #tpu.memory_space<vmem>>, vector<2x128xf32>
    tpu.vector_store %arg7[%c0_6, %c0_7], %7 {strides = array<i32>} : memref<2x128xf32, #tpu.memory_space<vmem>>, vector<2x128xf32>,
    %c13_i32 = arith.constant 13 : i32
    %9 = arith.cmpi eq, %arg0, %c13_i32 : i32
    %10 = arith.extui %9 : i1 to i32
    %c0_i32_8 = arith.constant 0 : i32
    %11 = arith.cmpi ne, %10, %c0_i32_8 : i32
    scf.if %11 {
      %c0_9 = arith.constant 0 : index
      %c0_10 = arith.constant 0 : index
      %12 = vector.load %arg7[%c0_9, %c0_10] : memref<2x128xf32, #tpu.memory_space<vmem>>, vector<2x128xf32>
      %c0_11 = arith.constant 0 : index
      %c0_12 = arith.constant 0 : index
      %13 = vector.load %arg3[%c0_11, %c0_12] : memref<1x128xf32, #tpu.memory_space<vmem>>, vector<1x128xf32>
      %14 = vector.broadcast %13 : vector<1x128xf32> to vector<2x128xf32>
      %15 = arith.addf %12, %14 : vector<2x128xf32>
      %cst_13 = arith.constant 0.000000e+00 : f32
      %16 = vector.broadcast %cst_13 : f32 to vector<2x128xf32>
      %17 = arith.maximumf %15, %16 : vector<2x128xf32>
      %c0_14 = arith.constant 0 : index
      %c0_15 = arith.constant 0 : index
      %18 = vector.load %arg4[%c0_14, %c0_15] : memref<10x128xf32, #tpu.memory_space<vmem>>, vector<10x128xf32>
      %cst_16 = arith.constant dense<0.000000e+00> : vector<2x10xf32>
      %19 = tpu.matmul %17, %18, %cst_16 {dimension_numbers = #tpu.dot_dimension_numbers<[1], [1], [0], [0], [0, 0, 1, 0], [], []>} : vector<2x128xf32>, vector<10x128xf32>, vector<2x10xf32> -> vector<2x10xf32>
      %c0_17 = arith.constant 0 : index
      %c0_18 = arith.constant 0 : index
      %20 = vector.load %arg5[%c0_17, %c0_18] : memref<1x10xf32, #tpu.memory_space<vmem>>, vector<1x10xf32>
      %21 = vector.broadcast %20 : vector<1x10xf32> to vector<2x10xf32>
      %22 = arith.addf %19, %21 : vector<2x10xf32>
      %c0_19 = arith.constant 0 : index
      %c0_20 = arith.constant 0 : index
      %23 = vector.load %arg6[%c0_19, %c0_20] : memref<2x10xf32, #tpu.memory_space<vmem>>, vector<2x10xf32>
      tpu.vector_store %arg6[%c0_19, %c0_20], %22 {strides = array<i32>} : memref<2x10xf32, #tpu.memory_space<vmem>>, vector<2x10xf32>,
    } else {
    }
    return
  }
  func.func @transform_0(%arg0: i32) -> (i32, i32) {
    %c0_i32 = arith.constant 0 : i32
    %c0_i32_0 = arith.constant 0 : i32
    return %c0_i32, %arg0 : i32, i32
  }
  func.func @transform_1(%arg0: i32) -> (i32, i32) {
    %c0_i32 = arith.constant 0 : i32
    %c0_i32_0 = arith.constant 0 : i32
    return %c0_i32, %arg0 : i32, i32
  }
  func.func @transform_2(%arg0: i32) -> (i32, i32) {
    %c0_i32 = arith.constant 0 : i32
    %c0_i32_0 = arith.constant 0 : i32
    %c0_i32_1 = arith.constant 0 : i32
    return %c0_i32, %c0_i32_0 : i32, i32
  }
  func.func @transform_3(%arg0: i32) -> (i32, i32) {
    %c0_i32 = arith.constant 0 : i32
    %c0_i32_0 = arith.constant 0 : i32
    %c0_i32_1 = arith.constant 0 : i32
    return %c0_i32, %c0_i32_0 : i32, i32
  }
  func.func @transform_4(%arg0: i32) -> (i32, i32) {
    %c0_i32 = arith.constant 0 : i32
    %c0_i32_0 = arith.constant 0 : i32
    %c0_i32_1 = arith.constant 0 : i32
    return %c0_i32, %c0_i32_0 : i32, i32
  }
  func.func @transform_5(%arg0: i32) -> (i32, i32) {
    %c0_i32 = arith.constant 0 : i32
    %c0_i32_0 = arith.constant 0 : i32
    %c0_i32_1 = arith.constant 0 : i32
    return %c0_i32, %c0_i32_0 : i32, i32
  }
}

</mosaic_0001>

<llo_original>
// kernel: tile.13
$region0: #{tile.13}
  #allocation0 [shape = 's32[1]{0}', space=sflag, size = 0x4, scoped, tag = 'scoped memory for tile.13']
  %s0 = inlined_call_operand.vmem [shape: f32[16], index: 0, kind: input, shape index: {}]
  %s1 = inlined_call_operand.vmem [shape: f32[4,16], index: 1, kind: output, shape index: {}]
  // Predicated region
  $region2: #{tile.13} parent=0 // pred_check
    _
  $region3: #{tile.13} parent=0 // pred_check_branch
    %3 = sbr.rel (0) target = $region5
  $region4: #{tile.13} parent=0 // pred_region
    _
  $region5: #{tile.13} parent=0 // pred_fallthru
    _
  %v4 = vld [vmem:[%s0] ss:$0 sm:$0xff]
  %5 = vst [vmem:[%s1] sm:$0xf] %v4

// kernel: tile.0
$region0: #{tile.0}
  %s0 = inlined_call_operand.vmem [shape: f32[4,16], index: 0, kind: input, shape index: {}]
  %s1 = inlined_call_operand.vmem [shape: f32[64,1], index: 1, kind: output, shape index: {}]
  $region1: #{tile.0} parent=0
    #allocation0 [shape = 'u8[4096]{0}', space=vmem, size = 0x1000, scoped, tag = 'scoped mem for input reshape']
    %s3 = sshllo.u32 0, 4
    %v4 = vld [vmem:[%s0] sm:%s3]
    %5 = vst [vmem:[#allocation0] sm:%s3] %v4
    %v6 = vld [vmem:[#allocation0] sm:$0xf]
    %vm7 = vcmask 7168
    %8 = vst.msk [vmem:[%s1] ss:$16 sm:$0x3] %vm7, %v6
    %9 = vst.msk [vmem:[%s1] ss:$16 sm:$0xc] %vm7, %v6
    %v10 = vld [vmem:[#allocation0] sm:$0xf]
    %11 = vrot.lane.b32.xlu0 %v10, 127
    %v12 = vpop.permute.xlu0 %11
    %vm13 = vcmask 7168
    %s14 = scalar_lea.vmem %s1, 1
    %15 = vst.msk [vmem:[%s14] ss:$16 sm:$0x3] %vm13, %v12
    %s16 = scalar_lea.vmem %s1, 1
    %17 = vst.msk [vmem:[%s16] ss:$16 sm:$0xc] %vm13, %v12
    %v18 = vld [vmem:[#allocation0] sm:$0xf]
    %19 = vrot.lane.b32.xlu0 %v18, 126
    %v20 = vpop.permute.xlu0 %19
    %vm21 = vcmask 7168
    %s22 = scalar_lea.vmem %s1, 2
    %23 = vst.msk [vmem:[%s22] ss:$16 sm:$0x3] %vm21, %v20
    %s24 = scalar_lea.vmem %s1, 2
    %25 = vst.msk [vmem:[%s24] ss:$16 sm:$0xc] %vm21, %v20
    %v26 = vld [vmem:[#allocation0] sm:$0xf]
    %27 = vrot.lane.b32.xlu0 %v26, 125
    %v28 = vpop.permute.xlu0 %27
    %vm29 = vcmask 7168
    %s30 = scalar_lea.vmem %s1, 3
    %31 = vst.msk [vmem:[%s30] ss:$16 sm:$0x3] %vm29, %v28
    %s32 = scalar_lea.vmem %s1, 3
    %33 = vst.msk [vmem:[%s32] ss:$16 sm:$0xc] %vm29, %v28
    %v34 = vld [vmem:[#allocation0] sm:$0xf]
    %35 = vrot.lane.b32.xlu0 %v34, 124
    %v36 = vpop.permute.xlu0 %35
    %vm37 = vcmask 7168
    %s38 = scalar_lea.vmem %s1, 4
    %39 = vst.msk [vmem:[%s38] ss:$16 sm:$0x3] %vm37, %v36
    %s40 = scalar_lea.vmem %s1, 4
    %41 = vst.msk [vmem:[%s40] ss:$16 sm:$0xc] %vm37, %v36
    %v42 = vld [vmem:[#allocation0] sm:$0xf]
    %43 = vrot.lane.b32.xlu0 %v42, 123
    %v44 = vpop.permute.xlu0 %43
    %vm45 = vcmask 7168
    %s46 = scalar_lea.vmem %s1, 5
    %47 = vst.msk [vmem:[%s46] ss:$16 sm:$0x3] %vm45, %v44
    %s48 = scalar_lea.vmem %s1, 5
    %49 = vst.msk [vmem:[%s48] ss:$16 sm:$0xc] %vm45, %v44
    %v50 = vld [vmem:[#allocation0] sm:$0xf]
    %51 = vrot.lane.b32.xlu0 %v50, 122
    %v52 = vpop.permute.xlu0 %51
    %vm53 = vcmask 7168
    %s54 = scalar_lea.vmem %s1, 6
    %55 = vst.msk [vmem:[%s54] ss:$16 sm:$0x3] %vm53, %v52
    %s56 = scalar_lea.vmem %s1, 6
    %57 = vst.msk [vmem:[%s56] ss:$16 sm:$0xc] %vm53, %v52
    %v58 = vld [vmem:[#allocation0] sm:$0xf]
    %59 = vrot.lane.b32.xlu0 %v58, 121
    %v60 = vpop.permute.xlu0 %59
    %vm61 = vcmask 7168
    %s62 = scalar_lea.vmem %s1, 7
    %63 = vst.msk [vmem:[%s62] ss:$16 sm:$0x3] %vm61, %v60
    %s64 = scalar_lea.vmem %s1, 7
    %65 = vst.msk [vmem:[%s64] ss:$16 sm:$0xc] %vm61, %v60
    %v66 = vld [vmem:[#allocation0] sm:$0xf]
    %67 = vrot.lane.b32.xlu0 %v66, 120
    %v68 = vpop.permute.xlu0 %67
    %vm69 = vcmask 7168
    %s70 = scalar_lea.vmem %s1, 8
    %71 = vst.msk [vmem:[%s70] ss:$16 sm:$0x3] %vm69, %v68
    %s72 = scalar_lea.vmem %s1, 8
    %73 = vst.msk [vmem:[%s72] ss:$16 sm:$0xc] %vm69, %v68
    %v74 = vld [vmem:[#allocation0] sm:$0xf]
    %75 = vrot.lane.b32.xlu0 %v74, 119
    %v76 = vpop.permute.xlu0 %75
    %vm77 = vcmask 7168
    %s78 = scalar_lea.vmem %s1, 9
    %79 = vst.msk [vmem:[%s78] ss:$16 sm:$0x3] %vm77, %v76
    %s80 = scalar_lea.vmem %s1, 9
    %81 = vst.msk [vmem:[%s80] ss:$16 sm:$0xc] %vm77, %v76
    %v82 = vld [vmem:[#allocation0] sm:$0xf]
    %83 = vrot.lane.b32.xlu0 %v82, 118
    %v84 = vpop.permute.xlu0 %83
    %vm85 = vcmask 7168
    %s86 = scalar_lea.vmem %s1, 10
    %87 = vst.msk [vmem:[%s86] ss:$16 sm:$0x3] %vm85, %v84
    %s88 = scalar_lea.vmem %s1, 10
    %89 = vst.msk [vmem:[%s88] ss:$16 sm:$0xc] %vm85, %v84
    %v90 = vld [vmem:[#allocation0] sm:$0xf]
    %91 = vrot.lane.b32.xlu0 %v90, 117
    %v92 = vpop.permute.xlu0 %91
    %vm93 = vcmask 7168
    %s94 = scalar_lea.vmem %s1, 11
    %95 = vst.msk [vmem:[%s94] ss:$16 sm:$0x3] %vm93, %v92
    %s96 = scalar_lea.vmem %s1, 11
    %97 = vst.msk [vmem:[%s96] ss:$16 sm:$0xc] %vm93, %v92
    %v98 = vld [vmem:[#allocation0] sm:$0xf]
    %99 = vrot.lane.b32.xlu0 %v98, 116
    %v100 = vpop.permute.xlu0 %99
    %vm101 = vcmask 7168
    %s102 = scalar_lea.vmem %s1, 12
    %103 = vst.msk [vmem:[%s102] ss:$16 sm:$0x3] %vm101, %v100
    %s104 = scalar_lea.vmem %s1, 12
    %105 = vst.msk [vmem:[%s104] ss:$16 sm:$0xc] %vm101, %v100
    %v106 = vld [vmem:[#allocation0] sm:$0xf]
    %107 = vrot.lane.b32.xlu0 %v106, 115
    %v108 = vpop.permute.xlu0 %107
    %vm109 = vcmask 7168
    %s110 = scalar_lea.vmem %s1, 13
    %111 = vst.msk [vmem:[%s110] ss:$16 sm:$0x3] %vm109, %v108
    %s112 = scalar_lea.vmem %s1, 13
    %113 = vst.msk [vmem:[%s112] ss:$16 sm:$0xc] %vm109, %v108
    %v114 = vld [vmem:[#allocation0] sm:$0xf]
    %115 = vrot.lane.b32.xlu0 %v114, 114
    %v116 = vpop.permute.xlu0 %115
    %vm117 = vcmask 7168
    %s118 = scalar_lea.vmem %s1, 14
    %119 = vst.msk [vmem:[%s118] ss:$16 sm:$0x3] %vm117, %v116
    %s120 = scalar_lea.vmem %s1, 14
    %121 = vst.msk [vmem:[%s120] ss:$16 sm:$0xc] %vm117, %v116
    %v122 = vld [vmem:[#allocation0] sm:$0xf]
    %123 = vrot.lane.b32.xlu0 %v122, 113
    %v124 = vpop.permute.xlu0 %123
    %vm125 = vcmask 7168
    %s126 = scalar_lea.vmem %s1, 15
    %127 = vst.msk [vmem:[%s126] ss:$16 sm:$0x3] %vm125, %v124
    %s128 = scalar_lea.vmem %s1, 15
    %129 = vst.msk [vmem:[%s128] ss:$16 sm:$0xc] %vm125, %v124

// kernel: simple_cnn_forward.3
$region0: #{simple_cnn_forward.3}
  #allocation0 [shape = 'u32[]', space=smem, size = 0x4, offset = 0x4, fixed_abs, tag = 'smem constant byte address 0x4 - core index']
  #allocation1 [shape = 'u32[144,128]{1,0:T(1,128)}', space=vmem, size = 0x12000, scoped, tag = 'internal scratch']
  #allocation2 [shape = 'f32[90,224]{1,0:T(8,128)}', space=vmem, size = 0x18000, scoped, tag = 'scratch operand']
  %s0 = inlined_call_operand.vmem [shape: f32[2,3,226,226], index: 0, kind: input, shape index: {}]
  %s1 = inlined_call_operand.vmem [shape: f32[128,90], index: 1, kind: input, shape index: {}]
  %s2 = inlined_call_operand.vmem [shape: f32[64,1], index: 2, kind: input, shape index: {}]
  %s3 = inlined_call_operand.vmem [shape: f32[224,112], index: 3, kind: input, shape index: {}]
  %s4 = inlined_call_operand.vmem [shape: f32[224,112], index: 4, kind: input, shape index: {}]
  %s5 = inlined_call_operand.vmem [shape: f32[2,16,112,112], index: 5, kind: output, shape index: {}]
  %s6 = sld [smem:[#allocation0]]
  $region60: #{simple_cnn_forward.3} parent=0
    _
  %s8 = ssub.s32 1, %s6
  %s9 = scalar_select 0, %s8, %s6
  loop: start=0, step=1, limit=4
  $region2: #{simple_cnn_forward.3} parent=0 // loop_pre_header
    _
  $region3: #{simple_cnn_forward.3} parent=0 // loop_header
    %s11 = sphi 0, %s15
    %p12 = scmp.ge.s32.totalorder %s11, 4
    %s21 = sphi 0, %s23
    %s24 = sphi 0, %s21
    %s25 = sphi 0, %s24
    %s41 = sphi 0, %s25
    %s45 = sphi 0, %s45
    %s47 = sphi 0, %s45
    %s48 = sphi 0, %s47
    %s62 = sphi 0, %s48
    %s66 = sphi 0, %s66
    %s68 = sphi 0, %s66
    %s69 = sphi 0, %s68
    %s83 = sphi 0, %s69
    %s87 = sphi 0, %s87
    %s89 = sphi 0, %s87
    %s90 = sphi 0, %s89
    %s104 = sphi 0, %s90
    %s108 = sphi 0, %s108
    %s110 = sphi 0, %s108
    %s111 = sphi 0, %s110
    %s125 = sphi 0, %s111
    %s131 = sphi 0, %s133
    %s134 = sphi 0, %s131
    %s135 = sphi 0, %s134
    %s151 = sphi 0, %s135
  $region4: #{simple_cnn_forward.3} parent=0 // loop_header_branch
    %14 = sbr.rel (%p12) target = $region8
  $region5: #{simple_cnn_forward.3} parent=0 // loop_body
    %s16 = ssub.s32 %s11, 1
    %s17 = ssub.s32 %s11, 2
    %s18 = sadd.s32 %s11, 1
    %s19 = ssub.s32 %s11, %s18
    %p20 = scmp.eq.s32.totalorder %s19, 0
    %s22 = sadd.s32 %s21, 1
    %s23 = scalar_select %p20, %s21, %s22
    %p26 = pneg %p20
    %p27 = scmp.eq.s32.totalorder %s11, 1
    %p28 = por %p26, %p27
    %p29 = scmp.ne.s32.totalorder %s21, %s24
    %p30 = scmp.eq.s32.totalorder %s11, 0
    %p31 = por %p29, %p30
    %p32 = scmp.ne.s32.totalorder %s21, %s24
    %p33 = scmp.eq.s32.totalorder %s16, 1
    %p34 = por %p32, %p33
    %p35 = scmp.ne.s32.totalorder %s24, %s25
    %p36 = scmp.eq.s32.totalorder %s16, 0
    %p37 = por %p35, %p36
    %p38 = scmp.ne.s32.totalorder %s24, %s25
    %p39 = scmp.eq.s32.totalorder %s17, 1
    %p40 = por %p38, %p39
    %p42 = scmp.ne.s32.totalorder %s25, %s41
    %p43 = scmp.eq.s32.totalorder %s17, 0
    %p44 = por %p42, %p43
    %s46 = sadd.s32 %s45, 1
    %p49 = scmp.eq.s32.totalorder %s11, 1
    %p50 = scmp.ne.s32.totalorder %s45, %s47
    %p51 = scmp.eq.s32.totalorder %s11, 0
    %p52 = por %p50, %p51
    %p53 = scmp.ne.s32.totalorder %s45, %s47
    %p54 = scmp.eq.s32.totalorder %s16, 1
    %p55 = por %p53, %p54
    %p56 = scmp.ne.s32.totalorder %s47, %s48
    %p57 = scmp.eq.s32.totalorder %s16, 0
    %p58 = por %p56, %p57
    %p59 = scmp.ne.s32.totalorder %s47, %s48
    %p60 = scmp.eq.s32.totalorder %s17, 1
    %p61 = por %p59, %p60
    %p63 = scmp.ne.s32.totalorder %s48, %s62
    %p64 = scmp.eq.s32.totalorder %s17, 0
    %p65 = por %p63, %p64
    %s67 = sadd.s32 %s66, 1
    %p70 = scmp.eq.s32.totalorder %s11, 1
    %p71 = scmp.ne.s32.totalorder %s66, %s68
    %p72 = scmp.eq.s32.totalorder %s11, 0
    %p73 = por %p71, %p72
    %p74 = scmp.ne.s32.totalorder %s66, %s68
    %p75 = scmp.eq.s32.totalorder %s16, 1
    %p76 = por %p74, %p75
    %p77 = scmp.ne.s32.totalorder %s68, %s69
    %p78 = scmp.eq.s32.totalorder %s16, 0
    %p79 = por %p77, %p78
    %p80 = scmp.ne.s32.totalorder %s68, %s69
    %p81 = scmp.eq.s32.totalorder %s17, 1
    %p82 = por %p80, %p81
    %p84 = scmp.ne.s32.totalorder %s69, %s83
    %p85 = scmp.eq.s32.totalorder %s17, 0
    %p86 = por %p84, %p85
    %s88 = sadd.s32 %s87, 1
    %p91 = scmp.eq.s32.totalorder %s11, 1
    %p92 = scmp.ne.s32.totalorder %s87, %s89
    %p93 = scmp.eq.s32.totalorder %s11, 0
    %p94 = por %p92, %p93
    %p95 = scmp.ne.s32.totalorder %s87, %s89
    %p96 = scmp.eq.s32.totalorder %s16, 1
    %p97 = por %p95, %p96
    %p98 = scmp.ne.s32.totalorder %s89, %s90
    %p99 = scmp.eq.s32.totalorder %s16, 0
    %p100 = por %p98, %p99
    %p101 = scmp.ne.s32.totalorder %s89, %s90
    %p102 = scmp.eq.s32.totalorder %s17, 1
    %p103 = por %p101, %p102
    %p105 = scmp.ne.s32.totalorder %s90, %s104
    %p106 = scmp.eq.s32.totalorder %s17, 0
    %p107 = por %p105, %p106
    %s109 = sadd.s32 %s108, 1
    %p112 = scmp.eq.s32.totalorder %s11, 1
    %p113 = scmp.ne.s32.totalorder %s108, %s110
    %p114 = scmp.eq.s32.totalorder %s11, 0
    %p115 = por %p113, %p114
    %p116 = scmp.ne.s32.totalorder %s108, %s110
    %p117 = scmp.eq.s32.totalorder %s16, 1
    %p118 = por %p116, %p117
    %p119 = scmp.ne.s32.totalorder %s110, %s111
    %p120 = scmp.eq.s32.totalorder %s16, 0
    %p121 = por %p119, %p120
    %p122 = scmp.ne.s32.totalorder %s110, %s111
    %p123 = scmp.eq.s32.totalorder %s17, 1
    %p124 = por %p122, %p123
    %p126 = scmp.ne.s32.totalorder %s111, %s125
    %p127 = scmp.eq.s32.totalorder %s17, 0
    %p128 = por %p126, %p127
    %s129 = ssub.s32 %s11, %s18
    %p130 = scmp.eq.s32.totalorder %s129, 0
    %s132 = sadd.s32 %s131, 1
    %s133 = scalar_select %p130, %s131, %s132
    %p136 = pneg %p130
    %p137 = scmp.eq.s32.totalorder %s11, 1
    %p138 = por %p136, %p137
    %p139 = scmp.ne.s32.totalorder %s131, %s134
    %p140 = scmp.eq.s32.totalorder %s11, 0
    %p141 = por %p139, %p140
    %p142 = scmp.ne.s32.totalorder %s131, %s134
    %p143 = scmp.eq.s32.totalorder %s16, 1
    %p144 = por %p142, %p143
    %p145 = scmp.ne.s32.totalorder %s134, %s135
    %p146 = scmp.eq.s32.totalorder %s16, 0
    %p147 = por %p145, %p146
    %p148 = scmp.ne.s32.totalorder %s134, %s135
    %p149 = scmp.eq.s32.totalorder %s17, 1
    %p150 = por %p148, %p149
    %p152 = scmp.ne.s32.totalorder %s135, %s151
    %p153 = scmp.eq.s32.totalorder %s17, 0
    %p154 = por %p152, %p153
    %p155 = scmp.le.s32.totalorder 1, %s11
    %p156 = scmp.lt.s32.totalorder %s11, 3
    %p157 = pnand %p155, %p156
    %p158 = pneg %p157
    // Predicated region
    $region9: #{simple_cnn_forward.3} parent=5 // pred_check
      _
    $region10: #{simple_cnn_forward.3} parent=5 // pred_check_branch
      %160 = sbr.rel (%p157) target = $region12
    $region11: #{simple_cnn_forward.3} parent=5 // pred_region
      %s161 = ssub.s32 %s11, 1
      // Predicated region
      $region13: #{simple_cnn_forward.3} parent=11 // pred_check
        %p162 = pneg %p58
      $region14: #{simple_cnn_forward.3} parent=11 // pred_check_branch
        %164 = sbr.rel (%p162) target = $region16
      $region15: #{simple_cnn_forward.3} parent=11 // pred_region
        _
      $region16: #{simple_cnn_forward.3} parent=11 // pred_fallthru
        _
      // Predicated region
      $region17: #{simple_cnn_forward.3} parent=11 // pred_check
        %p165 = pneg %p79
      $region18: #{simple_cnn_forward.3} parent=11 // pred_check_branch
        %167 = sbr.rel (%p165) target = $region20
      $region19: #{simple_cnn_forward.3} parent=11 // pred_region
        _
      $region20: #{simple_cnn_forward.3} parent=11 // pred_fallthru
        _
      // Predicated region
      $region21: #{simple_cnn_forward.3} parent=11 // pred_check
        %p168 = pneg %p100
      $region22: #{simple_cnn_forward.3} parent=11 // pred_check_branch
        %170 = sbr.rel (%p168) target = $region24
      $region23: #{simple_cnn_forward.3} parent=11 // pred_region
        _
      $region24: #{simple_cnn_forward.3} parent=11 // pred_fallthru
        _
      // Predicated region
      $region25: #{simple_cnn_forward.3} parent=11 // pred_check
        %p171 = pneg %p121
      $region26: #{simple_cnn_forward.3} parent=11 // pred_check_branch
        %173 = sbr.rel (%p171) target = $region28
      $region27: #{simple_cnn_forward.3} parent=11 // pred_region
        _
      $region28: #{simple_cnn_forward.3} parent=11 // pred_fallthru
        _
    $region12: #{simple_cnn_forward.3} parent=5 // pred_fallthru
      _
    %p174 = scmp.lt.s32.totalorder %s11, 2
    // Predicated region
    $region29: #{simple_cnn_forward.3} parent=5 // pred_check
      %p175 = pneg %p174
    $region30: #{simple_cnn_forward.3} parent=5 // pred_check_branch
      %177 = sbr.rel (%p175) target = $region32
    $region31: #{simple_cnn_forward.3} parent=5 // pred_region
      // Predicated region
      $region33: #{simple_cnn_forward.3} parent=31 // pred_check
        %p178 = pneg %p31
      $region34: #{simple_cnn_forward.3} parent=31 // pred_check_branch
        %180 = sbr.rel (%p178) target = $region36
      $region35: #{simple_cnn_forward.3} parent=31 // pred_region
        %p181 = scmp.lt.s32.totalorder %s11, 1
        %s182 = scalar_select %p181, %s11, 1
        %s183 = smul.addr %s182, 174
        %s184 = smul.addr %s183, 8
        %s185 = scalar_lea.vmem %s0, %s184
      $region36: #{simple_cnn_forward.3} parent=31 // pred_fallthru
        _
    $region32: #{simple_cnn_forward.3} parent=5 // pred_fallthru
      _
    %p186 = scmp.le.s32.totalorder 1, %s11
    %p187 = scmp.lt.s32.totalorder %s11, 3
    %p188 = pnand %p186, %p187
    %p189 = pneg %p188
    // Predicated region
    $region37: #{simple_cnn_forward.3} parent=5 // pred_check
      _
    $region38: #{simple_cnn_forward.3} parent=5 // pred_check_branch
      %191 = sbr.rel (%p188) target = $region40
    $region39: #{simple_cnn_forward.3} parent=5 // pred_region
      %s192 = ssub.s32 %s11, 1
      %p193 = scmp.lt.s32.totalorder %s16, 1
      %s194 = scalar_select %p193, %s16, 1
      %s195 = smul.addr %s194, 174
      %s196 = smul.addr %s195, 8
      %s197 = scalar_lea.vmem %s0, %s196
      %p198 = pneg %p37
      %p199 = pneg %p34
      %p200 = pneg %p58
      %p201 = pneg %p55
      %p202 = pneg %p79
      %p203 = pneg %p76
      %p204 = pneg %p100
      %p205 = pneg %p97
      %p206 = pneg %p121
      %p207 = pneg %p118
      %p208 = pneg %p147
      %p209 = pneg %p144
      %p210 = scmp.lt.s32.totalorder %s16, 1
      %s211 = scalar_select %p210, %s16, 1
      %s212 = smul.addr %s211, 224
      %s213 = smul.addr %s212, 8
      %s214 = scalar_lea.vmem %s5, %s213
      %p215 = scmp.lt.s32.totalorder %s16, 1
      %s216 = scalar_select %p215, %s16, 1
      %s217 = smul.addr %s216, 174
      %s218 = smul.addr %s217, 8
      %s219 = scalar_lea.vmem %s0, %s218
      %p220 = scmp.lt.s32.totalorder %s16, 1
      %s221 = scalar_select %p220, %s16, 1
      %s222 = smul.addr %s221, 224
      %s223 = smul.addr %s222, 8
      %s224 = scalar_lea.vmem %s5, %s223
      loop: start=0, step=1, limit=28
      $region41: #{simple_cnn_forward.3} parent=39 // loop_pre_header
        _
      $region42: #{simple_cnn_forward.3} parent=39 // loop_header
        %s226 = sphi 0, %s230
        %p227 = scmp.ge.s32.totalorder %s226, 28
      $region43: #{simple_cnn_forward.3} parent=39 // loop_header_branch
        %229 = sbr.rel (%p227) target = $region47
      $region44: #{simple_cnn_forward.3} parent=39 // loop_body
        %s231 = smul.u32 %s226, 8
        %s232 = smul.u32 %s226, 4
        %s233 = sshra.s32 %s231, 3
        %s234 = sand.u32 %s231, 7
        %s235 = smul.u32 %s233, 2
        %s236 = smul.addr %s235, 8
        %s237 = scalar_lea.vmem %s219, %s236
        %v238 = vld [vmem:[%s237] sm:$0xff]
        %v239 = vld [vmem:[%s237 + $0x8] sm:$0xff]
        %v240 = vld [vmem:[%s237 + $0x10] sm:$0x3]
        %v241 = vld [vmem:[%s237 + $0x18] sm:$0x3]
        %242 = vst [vmem:[#allocation2] sm:$0xff] %v238
        %vm243 = vcmask 785408
        %244 = vst.msk [vmem:[#allocation2 + $0x8] sm:$0xff] %vm243, %v239
        %245 = vst [vmem:[#allocation2 + $0x10] sm:$0x3] %v240
        %vm246 = vcmask 779264
        %247 = vst.msk [vmem:[#allocation2 + $0x18] sm:$0x3] %vm246, %v241
        %v248 = vld [vmem:[%s237] sm:$0xff]
        %v249 = vld [vmem:[%s237 + $0x8] sm:$0xff]
        %v250 = vld [vmem:[%s237 + $0x10] sm:$0x3]
        %v251 = vld [vmem:[%s237 + $0x18] sm:$0x3]
        %vm256 = vcmask 1041408
        %v257 = vrot.slane %v248, 6
        %v258 = vrot.slane %v249, 6
        %v259 = vrot.slane %v250, 6
        %v260 = vsel %vm256, %v257, %v259
        %v261 = vrot.slane %v251, 6
        %v262 = vsel %vm256, %v258, %v261
        %263 = vrot.lane.b32.xlu0 %v257, 127
        %v264 = vpop.permute.xlu0 %263
        %265 = vrot.lane.b32.xlu0 %v258, 127
        %v266 = vpop.permute.xlu0 %265
        %267 = vrot.lane.b32.xlu0 %v260, 127
        %v268 = vpop.permute.xlu0 %267
        %269 = vrot.lane.b32.xlu0 %v262, 127
        %v270 = vpop.permute.xlu0 %269
        %vm271 = vcmask 1039360
        %v272 = vsel %vm271, %v264, %v266
        %v273 = vsel %vm271, %v268, %v270
        %278 = vst [vmem:[#allocation2 + $0x10] sm:$0xfc] %v272
        %vm279 = vcmask 785410
        %280 = vst.msk [vmem:[#allocation2 + $0x18] sm:$0xfc] %vm279, %v266
        %281 = vst [vmem:[#allocation2 + $0x20] sm:$0xf] %v273
        %vm282 = vcmask 781312
        %283 = vst.msk [vmem:[#allocation2 + $0x28] sm:$0xf] %vm282, %v270
        %v284 = vld [vmem:[%s237] sm:$0xff]
        %v285 = vld [vmem:[%s237 + $0x8] sm:$0xff]
        %v286 = vld [vmem:[%s237 + $0x10] sm:$0x3]
        %v287 = vld [vmem:[%s237 + $0x18] sm:$0x3]
        %vm292 = vcmask 1043456
        %v293 = vrot.slane %v284, 4
        %v294 = vrot.slane %v285, 4
        %v295 = vrot.slane %v286, 4
        %v296 = vsel %vm292, %v293, %v295
        %v297 = vrot.slane %v287, 4
        %v298 = vsel %vm292, %v294, %v297
        %299 = vrot.lane.b32.xlu0 %v293, 126
        %v300 = vpop.permute.xlu0 %299
        %301 = vrot.lane.b32.xlu0 %v294, 126
        %v302 = vpop.permute.xlu0 %301
        %303 = vrot.lane.b32.xlu0 %v296, 126
        %v304 = vpop.permute.xlu0 %303
        %305 = vrot.lane.b32.xlu0 %v298, 126
        %v306 = vpop.permute.xlu0 %305
        %vm307 = vcmask 1031168
        %v308 = vsel %vm307, %v300, %v302
        %v309 = vsel %vm307, %v304, %v306
        %314 = vst [vmem:[#allocation2 + $0x20] sm:$0xf0] %v308
        %vm315 = vcmask 785412
        %316 = vst.msk [vmem:[#allocation2 + $0x28] sm:$0xf0] %vm315, %v302
        %317 = vst [vmem:[#allocation2 + $0x30] sm:$0x3f] %v309
        %vm318 = vcmask 783360
        %319 = vst.msk [vmem:[#allocation2 + $0x38] sm:$0x3f] %vm318, %v306
        %s320 = sadd.s32 %s235, 58
        %s321 = smul.addr %s320, 8
        %s322 = scalar_lea.vmem %s219, %s321
        %v323 = vld [vmem:[%s322] sm:$0xff]
        %v324 = vld [vmem:[%s322 + $0x8] sm:$0xff]
        %v325 = vld [vmem:[%s322 + $0x10] sm:$0x3]
        %v326 = vld [vmem:[%s322 + $0x18] sm:$0x3]
        %vm331 = vcmask 1045504
        %v332 = vrot.slane %v323, 2
        %v333 = vrot.slane %v324, 2
        %v334 = vrot.slane %v325, 2
        %v335 = vsel %vm331, %v332, %v334
        %v336 = vrot.slane %v326, 2
        %v337 = vsel %vm331, %v333, %v336
        %342 = vst [vmem:[#allocation2 + $0x30] sm:$0xc0] %v332
        %vm343 = vcmask 785414
        %344 = vst.msk [vmem:[#allocation2 + $0x38] sm:$0xc0] %vm343, %v333
        %345 = vst [vmem:[#allocation2 + $0x40] sm:$0xff] %v335
        %346 = vst.msk [vmem:[#allocation2 + $0x48] sm:$0xff] %vm243, %v337
        %v347 = vld [vmem:[%s322] sm:$0xff]
        %v348 = vld [vmem:[%s322 + $0x8] sm:$0xff]
        %v349 = vld [vmem:[%s322 + $0x10] sm:$0x3]
        %v350 = vld [vmem:[%s322 + $0x18] sm:$0x3]
        %355 = vrot.lane.b32.xlu0 %v347, 127
        %v356 = vpop.permute.xlu0 %355
        %357 = vrot.lane.b32.xlu0 %v348, 127
        %v358 = vpop.permute.xlu0 %357
        %359 = vrot.lane.b32.xlu0 %v349, 127
        %v360 = vpop.permute.xlu0 %359
        %361 = vrot.lane.b32.xlu0 %v350, 127
        %v362 = vpop.permute.xlu0 %361
        %v363 = vsel %vm271, %v356, %v358
        %v364 = vsel %vm271, %v360, %v362
        %369 = vst [vmem:[#allocation2 + $0x50] sm:$0xff] %v363
        %370 = vst.msk [vmem:[#allocation2 + $0x58] sm:$0xff] %vm243, %v358
        %371 = vst [vmem:[#allocation2 + $0x60] sm:$0x3] %v364
        %372 = vst.msk [vmem:[#allocation2 + $0x68] sm:$0x3] %vm246, %v362
        %v373 = vld [vmem:[%s322] sm:$0xff]
        %v374 = vld [vmem:[%s322 + $0x8] sm:$0xff]
        %v375 = vld [vmem:[%s322 + $0x10] sm:$0x3]
        %v376 = vld [vmem:[%s322 + $0x18] sm:$0x3]
        %v381 = vrot.slane %v373, 6
        %v382 = vrot.slane %v374, 6
        %v383 = vrot.slane %v375, 6
        %v384 = vsel %vm256, %v381, %v383
        %v385 = vrot.slane %v376, 6
        %v386 = vsel %vm256, %v382, %v385
        %387 = vrot.lane.b32.xlu0 %v381, 126
        %v388 = vpop.permute.xlu0 %387
        %389 = vrot.lane.b32.xlu0 %v382, 126
        %v390 = vpop.permute.xlu0 %389
        %391 = vrot.lane.b32.xlu0 %v384, 126
        %v392 = vpop.permute.xlu0 %391
        %393 = vrot.lane.b32.xlu0 %v386, 126
        %v394 = vpop.permute.xlu0 %393
        %v395 = vsel %vm307, %v388, %v390
        %v396 = vsel %vm307, %v392, %v394
        %401 = vst [vmem:[#allocation2 + $0x60] sm:$0xfc] %v395
        %402 = vst.msk [vmem:[#allocation2 + $0x68] sm:$0xfc] %vm279, %v390
        %403 = vst [vmem:[#allocation2 + $0x70] sm:$0xf] %v396
        %404 = vst.msk [vmem:[#allocation2 + $0x78] sm:$0xf] %vm282, %v394
        %s405 = sadd.s32 %s235, 116
        %s406 = smul.addr %s405, 8
        %s407 = scalar_lea.vmem %s219, %s406
        %v408 = vld [vmem:[%s407] sm:$0xff]
        %v409 = vld [vmem:[%s407 + $0x8] sm:$0xff]
        %v410 = vld [vmem:[%s407 + $0x10] sm:$0x3]
        %v411 = vld [vmem:[%s407 + $0x18] sm:$0x3]
        %v416 = vrot.slane %v408, 4
        %v417 = vrot.slane %v409, 4
        %v418 = vrot.slane %v410, 4
        %v419 = vsel %vm292, %v416, %v418
        %v420 = vrot.slane %v411, 4
        %v421 = vsel %vm292, %v417, %v420
        %426 = vst [vmem:[#allocation2 + $0x70] sm:$0xf0] %v416
        %427 = vst.msk [vmem:[#allocation2 + $0x78] sm:$0xf0] %vm315, %v417
        %428 = vst [vmem:[#allocation2 + $0x80] sm:$0x3f] %v419
        %429 = vst.msk [vmem:[#allocation2 + $0x88] sm:$0x3f] %vm318, %v421
        %v430 = vld [vmem:[%s407] sm:$0xff]
        %v431 = vld [vmem:[%s407 + $0x8] sm:$0xff]
        %v432 = vld [vmem:[%s407 + $0x10] sm:$0x3]
        %v433 = vld [vmem:[%s407 + $0x18] sm:$0x3]
        %v438 = vrot.slane %v430, 2
        %v439 = vrot.slane %v431, 2
        %v440 = vrot.slane %v432, 2
        %v441 = vsel %vm331, %v438, %v440
        %v442 = vrot.slane %v433, 2
        %v443 = vsel %vm331, %v439, %v442
        %444 = vrot.lane.b32.xlu0 %v438, 127
        %v445 = vpop.permute.xlu0 %444
        %446 = vrot.lane.b32.xlu0 %v439, 127
        %v447 = vpop.permute.xlu0 %446
        %448 = vrot.lane.b32.xlu0 %v441, 127
        %v449 = vpop.permute.xlu0 %448
        %450 = vrot.lane.b32.xlu0 %v443, 127
        %v451 = vpop.permute.xlu0 %450
        %v452 = vsel %vm271, %v445, %v447
        %v453 = vsel %vm271, %v449, %v451
        %458 = vst [vmem:[#allocation2 + $0x80] sm:$0xc0] %v452
        %459 = vst.msk [vmem:[#allocation2 + $0x88] sm:$0xc0] %vm343, %v447
        %460 = vst [vmem:[#allocation2 + $0x90] sm:$0xff] %v453
        %461 = vst.msk [vmem:[#allocation2 + $0x98] sm:$0xff] %vm243, %v451
        %v462 = vld [vmem:[%s407] sm:$0xff]
        %v463 = vld [vmem:[%s407 + $0x8] sm:$0xff]
        %v464 = vld [vmem:[%s407 + $0x10] sm:$0x3]
        %v465 = vld [vmem:[%s407 + $0x18] sm:$0x3]
        %470 = vrot.lane.b32.xlu0 %v462, 126
        %v471 = vpop.permute.xlu0 %470
        %472 = vrot.lane.b32.xlu0 %v463, 126
        %v473 = vpop.permute.xlu0 %472
        %474 = vrot.lane.b32.xlu0 %v464, 126
        %v475 = vpop.permute.xlu0 %474
        %476 = vrot.lane.b32.xlu0 %v465, 126
        %v477 = vpop.permute.xlu0 %476
        %v478 = vsel %vm307, %v471, %v473
        %v479 = vsel %vm307, %v475, %v477
        %484 = vst [vmem:[#allocation2 + $0xa0] sm:$0xff] %v478
        %485 = vst.msk [vmem:[#allocation2 + $0xa8] sm:$0xff] %vm243, %v473
        %486 = vst [vmem:[#allocation2 + $0xb0] sm:$0x3] %v479
        %487 = vst.msk [vmem:[#allocation2 + $0xb8] sm:$0x3] %vm246, %v477
        %v488 = vld [vmem:[%s1] sm:$0xff]
        %v489 = vld [vmem:[%s1 + $0x8] sm:$0xff]
        %v490 = vld [vmem:[%s1 + $0x10] sm:$0xff]
        %v491 = vld [vmem:[%s1 + $0x18] sm:$0xff]
        %v492 = vld [vmem:[%s1 + $0x20] sm:$0xff]
        %v493 = vld [vmem:[%s1 + $0x28] sm:$0xff]
        %v494 = vld [vmem:[%s1 + $0x30] sm:$0xff]
        %v495 = vld [vmem:[%s1 + $0x38] sm:$0xff]
        %v496 = vld [vmem:[%s1 + $0x40] sm:$0xff]
        %v497 = vld [vmem:[%s1 + $0x48] sm:$0xff]
        %v498 = vld [vmem:[%s1 + $0x50] sm:$0xff]
        %v499 = vld [vmem:[%s1 + $0x58] sm:$0xff]
        %v500 = vld [vmem:[%s1 + $0x60] sm:$0xff]
        %v501 = vld [vmem:[%s1 + $0x68] sm:$0xff]
        %v502 = vld [vmem:[%s1 + $0x70] sm:$0xff]
        %v503 = vld [vmem:[%s1 + $0x78] sm:$0xff]
        %v504 = vld [vmem:[#allocation2] sm:$0xff]
        %v505 = vld [vmem:[#allocation2 + $0x8] sm:$0xff]
        %v506 = vld [vmem:[#allocation2 + $0x10] sm:$0xff]
        %v507 = vld [vmem:[#allocation2 + $0x18] sm:$0xff]
        %v508 = vld [vmem:[#allocation2 + $0x20] sm:$0xff]
        %v509 = vld [vmem:[#allocation2 + $0x28] sm:$0xff]
        %v510 = vld [vmem:[#allocation2 + $0x30] sm:$0xff]
        %v511 = vld [vmem:[#allocation2 + $0x38] sm:$0xff]
        %v512 = vld [vmem:[#allocation2 + $0x40] sm:$0xff]
        %v513 = vld [vmem:[#allocation2 + $0x48] sm:$0xff]
        %v514 = vld [vmem:[#allocation2 + $0x50] sm:$0xff]
        %v515 = vld [vmem:[#allocation2 + $0x58] sm:$0xff]
        %v516 = vld [vmem:[#allocation2 + $0x60] sm:$0xff]
        %v517 = vld [vmem:[#allocation2 + $0x68] sm:$0xff]
        %v518 = vld [vmem:[#allocation2 + $0x70] sm:$0xff]
        %v519 = vld [vmem:[#allocation2 + $0x78] sm:$0xff]
        %v520 = vld [vmem:[#allocation2 + $0x80] sm:$0xff]
        %v521 = vld [vmem:[#allocation2 + $0x88] sm:$0xff]
        %v522 = vld [vmem:[#allocation2 + $0x90] sm:$0xff]
        %v523 = vld [vmem:[#allocation2 + $0x98] sm:$0xff]
        %v524 = vld [vmem:[#allocation2 + $0xa0] sm:$0xff]
        %v525 = vld [vmem:[#allocation2 + $0xa8] sm:$0xff]
        %v526 = vld [vmem:[#allocation2 + $0xb0] sm:$0x3]
        %v527 = vld [vmem:[#allocation2 + $0xb8] sm:$0x3]
        %vm528 = vcmask 736256
        %v530 = vsel %vm528, %v488, 0
        %v533 = vsel %vm528, %v489, 0
        %v536 = vsel %vm528, %v490, 0
        %v539 = vsel %vm528, %v491, 0
        %v542 = vsel %vm528, %v492, 0
        %v545 = vsel %vm528, %v493, 0
        %v548 = vsel %vm528, %v494, 0
        %v551 = vsel %vm528, %v495, 0
        %v554 = vsel %vm528, %v496, 0
        %v557 = vsel %vm528, %v497, 0
        %v560 = vsel %vm528, %v498, 0
        %v563 = vsel %vm528, %v499, 0
        %v566 = vsel %vm528, %v500, 0
        %v569 = vsel %vm528, %v501, 0
        %v572 = vsel %vm528, %v502, 0
        %v575 = vsel %vm528, %v503, 0
        %v578 = vsel %vm256, %v526, 0
        %v581 = vsel %vm256, %v527, 0
        %583 = vmatprep.subr.mxu0 %v505
        %584 = vmatpush1.msra.mxu0 %v504
        %585 = vmatprep.subr.mxu0 %v507
        %586 = vmatpush1.msra.mxu0 %v506
        %587 = vmatprep.subr.mxu0 %v509
        %588 = vmatpush1.msra.mxu0 %v508
        %589 = vmatprep.subr.mxu0 %v511
        %590 = vmatpush1.msra.mxu0 %v510
        %591 = vmatprep.subr.mxu0 %v513
        %592 = vmatpush1.msra.mxu0 %v512
        %593 = vmatprep.subr.mxu0 %v515
        %594 = vmatpush1.msra.mxu0 %v514
        %595 = vmatprep.subr.mxu0 %v517
        %596 = vmatpush1.msra.mxu0 %v516
        %597 = vmatprep.subr.mxu0 %v519
        %598 = vmatpush1.msra.mxu0 %v518
        %599 = vmatprep.subr.mxu0 %v521
        %600 = vmatpush1.msra.mxu0 %v520
        %601 = vmatprep.subr.mxu0 %v523
        %602 = vmatpush1.msra.mxu0 %v522
        %603 = vmatprep.subr.mxu0 %v525
        %604 = vmatpush1.msra.mxu0 %v524
        %605 = vmatprep.subr.mxu0 %v581
        %606 = vmatpush1.msra.mxu0 %v578
        %607 = vmatprep.subr.mxu0 0.0
        %608 = vmatpush1.msra.mxu0 0.0
        %609 = vmatprep.subr.mxu0 0.0
        %610 = vmatpush1.msra.mxu0 0.0
        %611 = vmatprep.subr.mxu0 0.0
        %612 = vmatpush1.msra.mxu0 0.0
        %613 = vmatprep.subr.mxu0 0.0
        %614 = vmatpush1.msra.mxu0 0.0
        %615 = vmatprep.subr.mxu0 0.0
        %616 = vmatpush1.msra.mxu0 0.0
        %617 = vmatprep.subr.mxu0 0.0
        %618 = vmatpush1.msra.mxu0 0.0
        %619 = vmatprep.subr.mxu0 0.0
        %620 = vmatpush1.msra.mxu0 0.0
        %621 = vmatprep.subr.mxu0 0.0
        %622 = vmatpush1.msra.mxu0 0.0
        %623 = vmatprep.subr.mxu0 0.0
        %624 = vmatpush1.msra.mxu0 0.0
        %625 = vmatprep.subr.mxu0 0.0
        %626 = vmatpush1.msra.mxu0 0.0
        %627 = vmatprep.subr.mxu0 0.0
        %628 = vmatpush1.msra.mxu0 0.0
        %629 = vmatprep.subr.mxu0 0.0
        %630 = vmatpush1.msra.mxu0 0.0
        %631 = vmatprep.subr.mxu0 0.0
        %632 = vmatpush1.msra.mxu0 0.0
        %633 = vmatprep.subr.mxu0 0.0
        %634 = vmatpush1.msra.mxu0 0.0
        %635 = vmatprep.subr.mxu0 0.0
        %636 = vmatpush1.msra.mxu0 0.0
        %637 = vmatprep.subr.mxu0 0.0
        %638 = vmatpush1.msra.mxu0 0.0
        %639 = vmatprep.subr.mxu0 0.0
        %640 = vmatpush1.msra.mxu0 0.0
        %641 = vmatprep.subr.mxu0 0.0
        %642 = vmatpush1.msra.mxu0 0.0
        %643 = vmatprep.subr.mxu0 0.0
        %644 = vmatpush1.msra.mxu0 0.0
        %645 = vmatprep.subr.mxu0 0.0
        %646 = vmatpush1.msra.mxu0 0.0
        %647 = vmatprep.mubr.f32.mxu0 0.0
        %648 = vmatmul.mubr.f32.gmra.mrb[0].mxu0 %v530
        %v649 = vpop.f32.mrb[0].mxu0
        %v650 = vadd.f32 0.0, %v649
        %v651 = vpop.f32.mrb[0].mxu0
        %v652 = vadd.f32 0.0, %v651
        %653 = vmatprep.mubr.f32.mxu0 0.0
        %654 = vmatmul.mubr.f32.gmra.mrb[0].mxu0 %v533
        %v655 = vpop.f32.mrb[0].mxu0
        %v656 = vadd.f32 0.0, %v655
        %v657 = vpop.f32.mrb[0].mxu0
        %v658 = vadd.f32 0.0, %v657
        %659 = vmatprep.mubr.f32.mxu0 0.0
        %660 = vmatmul.mubr.f32.gmra.mrb[0].mxu0 %v536
        %v661 = vpop.f32.mrb[0].mxu0
        %v662 = vadd.f32 0.0, %v661
        %v663 = vpop.f32.mrb[0].mxu0
        %v664 = vadd.f32 0.0, %v663
        %665 = vmatprep.mubr.f32.mxu0 0.0
        %666 = vmatmul.mubr.f32.gmra.mrb[0].mxu0 %v539
        %v667 = vpop.f32.mrb[0].mxu0
        %v668 = vadd.f32 0.0, %v667
        %v669 = vpop.f32.mrb[0].mxu0
        %v670 = vadd.f32 0.0, %v669
        %671 = vmatprep.mubr.f32.mxu0 0.0
        %672 = vmatmul.mubr.f32.gmra.mrb[0].mxu0 %v542
        %v673 = vpop.f32.mrb[0].mxu0
        %v674 = vadd.f32 0.0, %v673
        %v675 = vpop.f32.mrb[0].mxu0
        %v676 = vadd.f32 0.0, %v675
        %677 = vmatprep.mubr.f32.mxu0 0.0
        %678 = vmatmul.mubr.f32.gmra.mrb[0].mxu0 %v545
        %v679 = vpop.f32.mrb[0].mxu0
        %v680 = vadd.f32 0.0, %v679
        %v681 = vpop.f32.mrb[0].mxu0
        %v682 = vadd.f32 0.0, %v681
        %683 = vmatprep.mubr.f32.mxu0 0.0
        %684 = vmatmul.mubr.f32.gmra.mrb[0].mxu0 %v548
        %v685 = vpop.f32.mrb[0].mxu0
        %v686 = vadd.f32 0.0, %v685
        %v687 = vpop.f32.mrb[0].mxu0
        %v688 = vadd.f32 0.0, %v687
        %689 = vmatprep.mubr.f32.mxu0 0.0
        %690 = vmatmul.mubr.f32.gmra.mrb[0].mxu0 %v551
        %v691 = vpop.f32.mrb[0].mxu0
        %v692 = vadd.f32 0.0, %v691
        %v693 = vpop.f32.mrb[0].mxu0
        %v694 = vadd.f32 0.0, %v693
        %695 = vmatprep.mubr.f32.mxu0 0.0
        %696 = vmatmul.mubr.f32.gmra.mrb[0].mxu0 %v554
        %v697 = vpop.f32.mrb[0].mxu0
        %v698 = vadd.f32 0.0, %v697
        %v699 = vpop.f32.mrb[0].mxu0
        %v700 = vadd.f32 0.0, %v699
        %701 = vmatprep.mubr.f32.mxu0 0.0
        %702 = vmatmul.mubr.f32.gmra.mrb[0].mxu0 %v557
        %v703 = vpop.f32.mrb[0].mxu0
        %v704 = vadd.f32 0.0, %v703
        %v705 = vpop.f32.mrb[0].mxu0
        %v706 = vadd.f32 0.0, %v705
        %707 = vmatprep.mubr.f32.mxu0 0.0
        %708 = vmatmul.mubr.f32.gmra.mrb[0].mxu0 %v560
        %v709 = vpop.f32.mrb[0].mxu0
        %v710 = vadd.f32 0.0, %v709
        %v711 = vpop.f32.mrb[0].mxu0
        %v712 = vadd.f32 0.0, %v711
        %713 = vmatprep.mubr.f32.mxu0 0.0
        %714 = vmatmul.mubr.f32.gmra.mrb[0].mxu0 %v563
        %v715 = vpop.f32.mrb[0].mxu0
        %v716 = vadd.f32 0.0, %v715
        %v717 = vpop.f32.mrb[0].mxu0
        %v718 = vadd.f32 0.0, %v717
        %719 = vmatprep.mubr.f32.mxu0 0.0
        %720 = vmatmul.mubr.f32.gmra.mrb[0].mxu0 %v566
        %v721 = vpop.f32.mrb[0].mxu0
        %v722 = vadd.f32 0.0, %v721
        %v723 = vpop.f32.mrb[0].mxu0
        %v724 = vadd.f32 0.0, %v723
        %725 = vmatprep.mubr.f32.mxu0 0.0
        %726 = vmatmul.mubr.f32.gmra.mrb[0].mxu0 %v569
        %v727 = vpop.f32.mrb[0].mxu0
        %v728 = vadd.f32 0.0, %v727
        %v729 = vpop.f32.mrb[0].mxu0
        %v730 = vadd.f32 0.0, %v729
        %731 = vmatprep.mubr.f32.mxu0 0.0
        %732 = vmatmul.mubr.f32.gmra.mrb[0].mxu0 %v572
        %v733 = vpop.f32.mrb[0].mxu0
        %v734 = vadd.f32 0.0, %v733
        %v735 = vpop.f32.mrb[0].mxu0
        %v736 = vadd.f32 0.0, %v735
        %737 = vmatprep.mubr.f32.mxu0 0.0
        %738 = vmatmul.mubr.f32.gmra.mrb[0].mxu0 %v575
        %v739 = vpop.f32.mrb[0].mxu0
        %v740 = vadd.f32 0.0, %v739
        %v741 = vpop.f32.mrb[0].mxu0
        %v742 = vadd.f32 0.0, %v741
        %743 = vdwg.mxu0
        %v744 = vmax.f32 %v650, %v698
        %v745 = vmax.f32 %v652, %v700
        %v746 = vmax.f32 %v656, %v704
        %v747 = vmax.f32 %v658, %v706
        %v748 = vmax.f32 %v662, %v710
        %v749 = vmax.f32 %v664, %v712
        %v750 = vmax.f32 %v668, %v716
        %v751 = vmax.f32 %v670, %v718
        %v752 = vmax.f32 %v674, %v722
        %v753 = vmax.f32 %v676, %v724
        %v754 = vmax.f32 %v680, %v728
        %v755 = vmax.f32 %v682, %v730
        %v756 = vmax.f32 %v686, %v734
        %v757 = vmax.f32 %v688, %v736
        %v758 = vmax.f32 %v692, %v740
        %v759 = vmax.f32 %v694, %v742
        %v760 = vld [vmem:[%s2] sm:$0xff]
        %v761 = vld [vmem:[%s2 + $0x8] sm:$0xff]
        %v762 = vld [vmem:[%s2 + $0x10] sm:$0xff]
        %v763 = vld [vmem:[%s2 + $0x18] sm:$0xff]
        %v764 = vld [vmem:[%s2 + $0x20] sm:$0xff]
        %v765 = vld [vmem:[%s2 + $0x28] sm:$0xff]
        %v766 = vld [vmem:[%s2 + $0x30] sm:$0xff]
        %v767 = vld [vmem:[%s2 + $0x38] sm:$0xff]
        %769 = vset.pattern.permute.xlu0 0
        %770 = vperm.xlu0 %769, %v760
        %v771 = vpop.permute.xlu0 %770
        %774 = vset.pattern.permute.xlu0 0
        %775 = vperm.xlu0 %774, %v761
        %v776 = vpop.permute.xlu0 %775
        %779 = vset.pattern.permute.xlu0 0
        %780 = vperm.xlu0 %779, %v762
        %v781 = vpop.permute.xlu0 %780
        %784 = vset.pattern.permute.xlu0 0
        %785 = vperm.xlu0 %784, %v763
        %v786 = vpop.permute.xlu0 %785
        %789 = vset.pattern.permute.xlu0 0
        %790 = vperm.xlu0 %789, %v764
        %v791 = vpop.permute.xlu0 %790
        %794 = vset.pattern.permute.xlu0 0
        %795 = vperm.xlu0 %794, %v765
        %v796 = vpop.permute.xlu0 %795
        %799 = vset.pattern.permute.xlu0 0
        %800 = vperm.xlu0 %799, %v766
        %v801 = vpop.permute.xlu0 %800
        %804 = vset.pattern.permute.xlu0 0
        %805 = vperm.xlu0 %804, %v767
        %v806 = vpop.permute.xlu0 %805
        %v808 = vadd.f32 %v744, %v771
        %v809 = vadd.f32 %v745, %v771
        %v810 = vadd.f32 %v746, %v776
        %v811 = vadd.f32 %v747, %v776
        %v812 = vadd.f32 %v748, %v781
        %v813 = vadd.f32 %v749, %v781
        %v814 = vadd.f32 %v750, %v786
        %v815 = vadd.f32 %v751, %v786
        %v816 = vadd.f32 %v752, %v791
        %v817 = vadd.f32 %v753, %v791
        %v818 = vadd.f32 %v754, %v796
        %v819 = vadd.f32 %v755, %v796
        %v820 = vadd.f32 %v756, %v801
        %v821 = vadd.f32 %v757, %v801
        %v822 = vadd.f32 %v758, %v806
        %v823 = vadd.f32 %v759, %v806
        %v824 = vmax.f32 %v808, 0.0
        %v825 = vmax.f32 %v809, 0.0
        %v826 = vmax.f32 %v810, 0.0
        %v827 = vmax.f32 %v811, 0.0
        %v828 = vmax.f32 %v812, 0.0
        %v829 = vmax.f32 %v813, 0.0
        %v830 = vmax.f32 %v814, 0.0
        %v831 = vmax.f32 %v815, 0.0
        %v832 = vmax.f32 %v816, 0.0
        %v833 = vmax.f32 %v817, 0.0
        %v834 = vmax.f32 %v818, 0.0
        %v835 = vmax.f32 %v819, 0.0
        %v836 = vmax.f32 %v820, 0.0
        %v837 = vmax.f32 %v821, 0.0
        %v838 = vmax.f32 %v822, 0.0
        %v839 = vmax.f32 %v823, 0.0
        %v840 = vld [vmem:[%s3] sm:$0xff]
        %v841 = vld [vmem:[%s3 + $0x8] sm:$0xff]
        %v842 = vld [vmem:[%s3 + $0x10] sm:$0xff]
        %v843 = vld [vmem:[%s3 + $0x18] sm:$0xff]
        %v844 = vld [vmem:[%s3 + $0x20] sm:$0xff]
        %v845 = vld [vmem:[%s3 + $0x28] sm:$0xff]
        %v846 = vld [vmem:[%s3 + $0x30] sm:$0xff]
        %v847 = vld [vmem:[%s3 + $0x38] sm:$0xff]
        %v848 = vld [vmem:[%s3 + $0x40] sm:$0xff]
        %v849 = vld [vmem:[%s3 + $0x48] sm:$0xff]
        %v850 = vld [vmem:[%s3 + $0x50] sm:$0xff]
        %v851 = vld [vmem:[%s3 + $0x58] sm:$0xff]
        %v852 = vld [vmem:[%s3 + $0x60] sm:$0xff]
        %v853 = vld [vmem:[%s3 + $0x68] sm:$0xff]
        %v854 = vld [vmem:[%s3 + $0x70] sm:$0xff]
        %v855 = vld [vmem:[%s3 + $0x78] sm:$0xff]
        %v856 = vld [vmem:[%s3 + $0x80] sm:$0xff]
        %v857 = vld [vmem:[%s3 + $0x88] sm:$0xff]
        %v858 = vld [vmem:[%s3 + $0x90] sm:$0xff]
        %v859 = vld [vmem:[%s3 + $0x98] sm:$0xff]
        %v860 = vld [vmem:[%s3 + $0xa0] sm:$0xff]
        %v861 = vld [vmem:[%s3 + $0xa8] sm:$0xff]
        %v862 = vld [vmem:[%s3 + $0xb0] sm:$0xff]
        %v863 = vld [vmem:[%s3 + $0xb8] sm:$0xff]
        %v864 = vld [vmem:[%s3 + $0xc0] sm:$0xff]
        %v865 = vld [vmem:[%s3 + $0xc8] sm:$0xff]
        %v866 = vld [vmem:[%s3 + $0xd0] sm:$0xff]
        %v867 = vld [vmem:[%s3 + $0xd8] sm:$0xff]
        %v869 = vsel %vm243, %v825, 0
        %v872 = vsel %vm243, %v827, 0
        %v875 = vsel %vm243, %v829, 0
        %v878 = vsel %vm243, %v831, 0
        %v881 = vsel %vm243, %v833, 0
        %v884 = vsel %vm243, %v835, 0
        %v887 = vsel %vm243, %v837, 0
        %v890 = vsel %vm243, %v839, 0
        %892 = vmatprep.subr.mxu0 0.0
        %893 = vmatpush1.msra.mxu0 %v840
        %894 = vmatprep.subr.mxu0 0.0
        %895 = vmatpush1.msra.mxu0 %v841
        %896 = vmatprep.subr.mxu0 0.0
        %897 = vmatpush1.msra.mxu0 %v842
        %898 = vmatprep.subr.mxu0 0.0
        %899 = vmatpush1.msra.mxu0 %v843
        %900 = vmatprep.subr.mxu0 0.0
        %901 = vmatpush1.msra.mxu0 %v844
        %902 = vmatprep.subr.mxu0 0.0
        %903 = vmatpush1.msra.mxu0 %v845
        %904 = vmatprep.subr.mxu0 0.0
        %905 = vmatpush1.msra.mxu0 %v846
        %906 = vmatprep.subr.mxu0 0.0
        %907 = vmatpush1.msra.mxu0 %v847
        %908 = vmatprep.subr.mxu0 0.0
        %909 = vmatpush1.msra.mxu0 %v848
        %910 = vmatprep.subr.mxu0 0.0
        %911 = vmatpush1.msra.mxu0 %v849
        %912 = vmatprep.subr.mxu0 0.0
        %913 = vmatpush1.msra.mxu0 %v850
        %914 = vmatprep.subr.mxu0 0.0
        %915 = vmatpush1.msra.mxu0 %v851
        %916 = vmatprep.subr.mxu0 0.0
        %917 = vmatpush1.msra.mxu0 %v852
        %918 = vmatprep.subr.mxu0 0.0
        %919 = vmatpush1.msra.mxu0 %v853
        %920 = vmatprep.subr.mxu0 0.0
        %921 = vmatpush1.msra.mxu0 %v854
        %922 = vmatprep.subr.mxu0 0.0
        %923 = vmatpush1.msra.mxu0 %v855
        %924 = vmatprep.subr.mxu0 0.0
        %925 = vmatpush1.msra.mxu0 %v856
        %926 = vmatprep.subr.mxu0 0.0
        %927 = vmatpush1.msra.mxu0 %v857
        %928 = vmatprep.subr.mxu0 0.0
        %929 = vmatpush1.msra.mxu0 %v858
        %930 = vmatprep.subr.mxu0 0.0
        %931 = vmatpush1.msra.mxu0 %v859
        %932 = vmatprep.subr.mxu0 0.0
        %933 = vmatpush1.msra.mxu0 %v860
        %934 = vmatprep.subr.mxu0 0.0
        %935 = vmatpush1.msra.mxu0 %v861
        %936 = vmatprep.subr.mxu0 0.0
        %937 = vmatpush1.msra.mxu0 %v862
        %938 = vmatprep.subr.mxu0 0.0
        %939 = vmatpush1.msra.mxu0 %v863
        %940 = vmatprep.subr.mxu0 0.0
        %941 = vmatpush1.msra.mxu0 %v864
        %942 = vmatprep.subr.mxu0 0.0
        %943 = vmatpush1.msra.mxu0 %v865
        %944 = vmatprep.subr.mxu0 0.0
        %945 = vmatpush1.msra.mxu0 %v866
        %946 = vmatprep.subr.mxu0 0.0
        %947 = vmatpush1.msra.mxu0 %v867
        %948 = vmatprep.subr.mxu0 0.0
        %949 = vmatpush1.msra.mxu0 0.0
        %950 = vmatprep.subr.mxu0 0.0
        %951 = vmatpush1.msra.mxu0 0.0
        %952 = vmatprep.subr.mxu0 0.0
        %953 = vmatpush1.msra.mxu0 0.0
        %954 = vmatprep.subr.mxu0 0.0
        %955 = vmatpush1.msra.mxu0 0.0
        %956 = vmatprep.mubr.f32.mxu0 %v869
        %957 = vmatmul.mubr.f32.gmra.mrb[0].mxu0 %v824
        %v958 = vpop.f32.mrb[0].mxu0
        %v959 = vadd.f32 0.0, %v958
        %v960 = vpop.f32.mrb[0].mxu0
        %961 = vmatprep.mubr.f32.mxu0 %v872
        %962 = vmatmul.mubr.f32.gmra.mrb[0].mxu0 %v826
        %v963 = vpop.f32.mrb[0].mxu0
        %v964 = vadd.f32 0.0, %v963
        %v965 = vpop.f32.mrb[0].mxu0
        %966 = vmatprep.mubr.f32.mxu0 %v875
        %967 = vmatmul.mubr.f32.gmra.mrb[0].mxu0 %v828
        %v968 = vpop.f32.mrb[0].mxu0
        %v969 = vadd.f32 0.0, %v968
        %v970 = vpop.f32.mrb[0].mxu0
        %971 = vmatprep.mubr.f32.mxu0 %v878
        %972 = vmatmul.mubr.f32.gmra.mrb[0].mxu0 %v830
        %v973 = vpop.f32.mrb[0].mxu0
        %v974 = vadd.f32 0.0, %v973
        %v975 = vpop.f32.mrb[0].mxu0
        %976 = vmatprep.mubr.f32.mxu0 %v881
        %977 = vmatmul.mubr.f32.gmra.mrb[0].mxu0 %v832
        %v978 = vpop.f32.mrb[0].mxu0
        %v979 = vadd.f32 0.0, %v978
        %v980 = vpop.f32.mrb[0].mxu0
        %981 = vmatprep.mubr.f32.mxu0 %v884
        %982 = vmatmul.mubr.f32.gmra.mrb[0].mxu0 %v834
        %v983 = vpop.f32.mrb[0].mxu0
        %v984 = vadd.f32 0.0, %v983
        %v985 = vpop.f32.mrb[0].mxu0
        %986 = vmatprep.mubr.f32.mxu0 %v887
        %987 = vmatmul.mubr.f32.gmra.mrb[0].mxu0 %v836
        %v988 = vpop.f32.mrb[0].mxu0
        %v989 = vadd.f32 0.0, %v988
        %v990 = vpop.f32.mrb[0].mxu0
        %991 = vmatprep.mubr.f32.mxu0 %v890
        %992 = vmatmul.mubr.f32.gmra.mrb[0].mxu0 %v838
        %v993 = vpop.f32.mrb[0].mxu0
        %v994 = vadd.f32 0.0, %v993
        %v995 = vpop.f32.mrb[0].mxu0
        %996 = vdwg.mxu0
        %v997 = vld [vmem:[%s4] sm:$0xff]
        %v998 = vld [vmem:[%s4 + $0x8] sm:$0xff]
        %v999 = vld [vmem:[%s4 + $0x10] sm:$0xff]
        %v1000 = vld [vmem:[%s4 + $0x18] sm:$0xff]
        %v1001 = vld [vmem:[%s4 + $0x20] sm:$0xff]
        %v1002 = vld [vmem:[%s4 + $0x28] sm:$0xff]
        %v1003 = vld [vmem:[%s4 + $0x30] sm:$0xff]
        %v1004 = vld [vmem:[%s4 + $0x38] sm:$0xff]
        %v1005 = vld [vmem:[%s4 + $0x40] sm:$0xff]
        %v1006 = vld [vmem:[%s4 + $0x48] sm:$0xff]
        %v1007 = vld [vmem:[%s4 + $0x50] sm:$0xff]
        %v1008 = vld [vmem:[%s4 + $0x58] sm:$0xff]
        %v1009 = vld [vmem:[%s4 + $0x60] sm:$0xff]
        %v1010 = vld [vmem:[%s4 + $0x68] sm:$0xff]
        %v1011 = vld [vmem:[%s4 + $0x70] sm:$0xff]
        %v1012 = vld [vmem:[%s4 + $0x78] sm:$0xff]
        %v1013 = vld [vmem:[%s4 + $0x80] sm:$0xff]
        %v1014 = vld [vmem:[%s4 + $0x88] sm:$0xff]
        %v1015 = vld [vmem:[%s4 + $0x90] sm:$0xff]
        %v1016 = vld [vmem:[%s4 + $0x98] sm:$0xff]
        %v1017 = vld [vmem:[%s4 + $0xa0] sm:$0xff]
        %v1018 = vld [vmem:[%s4 + $0xa8] sm:$0xff]
        %v1019 = vld [vmem:[%s4 + $0xb0] sm:$0xff]
        %v1020 = vld [vmem:[%s4 + $0xb8] sm:$0xff]
        %v1021 = vld [vmem:[%s4 + $0xc0] sm:$0xff]
        %v1022 = vld [vmem:[%s4 + $0xc8] sm:$0xff]
        %v1023 = vld [vmem:[%s4 + $0xd0] sm:$0xff]
        %v1024 = vld [vmem:[%s4 + $0xd8] sm:$0xff]
        %1025 = vmatprep.subr.mxu0 0.0
        %1026 = vmatpush1.msra.mxu0 %v997
        %1027 = vmatprep.subr.mxu0 0.0
        %1028 = vmatpush1.msra.mxu0 %v998
        %1029 = vmatprep.subr.mxu0 0.0
        %1030 = vmatpush1.msra.mxu0 %v999
        %1031 = vmatprep.subr.mxu0 0.0
        %1032 = vmatpush1.msra.mxu0 %v1000
        %1033 = vmatprep.subr.mxu0 0.0
        %1034 = vmatpush1.msra.mxu0 %v1001
        %1035 = vmatprep.subr.mxu0 0.0
        %1036 = vmatpush1.msra.mxu0 %v1002
        %1037 = vmatprep.subr.mxu0 0.0
        %1038 = vmatpush1.msra.mxu0 %v1003
        %1039 = vmatprep.subr.mxu0 0.0
        %1040 = vmatpush1.msra.mxu0 %v1004
        %1041 = vmatprep.subr.mxu0 0.0
        %1042 = vmatpush1.msra.mxu0 %v1005
        %1043 = vmatprep.subr.mxu0 0.0
        %1044 = vmatpush1.msra.mxu0 %v1006
        %1045 = vmatprep.subr.mxu0 0.0
        %1046 = vmatpush1.msra.mxu0 %v1007
        %1047 = vmatprep.subr.mxu0 0.0
        %1048 = vmatpush1.msra.mxu0 %v1008
        %1049 = vmatprep.subr.mxu0 0.0
        %1050 = vmatpush1.msra.mxu0 %v1009
        %1051 = vmatprep.subr.mxu0 0.0
        %1052 = vmatpush1.msra.mxu0 %v1010
        %1053 = vmatprep.subr.mxu0 0.0
        %1054 = vmatpush1.msra.mxu0 %v1011
        %1055 = vmatprep.subr.mxu0 0.0
        %1056 = vmatpush1.msra.mxu0 %v1012
        %1057 = vmatprep.subr.mxu0 0.0
        %1058 = vmatpush1.msra.mxu0 %v1013
        %1059 = vmatprep.subr.mxu0 0.0
        %1060 = vmatpush1.msra.mxu0 %v1014
        %1061 = vmatprep.subr.mxu0 0.0
        %1062 = vmatpush1.msra.mxu0 %v1015
        %1063 = vmatprep.subr.mxu0 0.0
        %1064 = vmatpush1.msra.mxu0 %v1016
        %1065 = vmatprep.subr.mxu0 0.0
        %1066 = vmatpush1.msra.mxu0 %v1017
        %1067 = vmatprep.subr.mxu0 0.0
        %1068 = vmatpush1.msra.mxu0 %v1018
        %1069 = vmatprep.subr.mxu0 0.0
        %1070 = vmatpush1.msra.mxu0 %v1019
        %1071 = vmatprep.subr.mxu0 0.0
        %1072 = vmatpush1.msra.mxu0 %v1020
        %1073 = vmatprep.subr.mxu0 0.0
        %1074 = vmatpush1.msra.mxu0 %v1021
        %1075 = vmatprep.subr.mxu0 0.0
        %1076 = vmatpush1.msra.mxu0 %v1022
        %1077 = vmatprep.subr.mxu0 0.0
        %1078 = vmatpush1.msra.mxu0 %v1023
        %1079 = vmatprep.subr.mxu0 0.0
        %1080 = vmatpush1.msra.mxu0 %v1024
        %1081 = vmatprep.subr.mxu0 0.0
        %1082 = vmatpush1.msra.mxu0 0.0
        %1083 = vmatprep.subr.mxu0 0.0
        %1084 = vmatpush1.msra.mxu0 0.0
        %1085 = vmatprep.subr.mxu0 0.0
        %1086 = vmatpush1.msra.mxu0 0.0
        %1087 = vmatprep.subr.mxu0 0.0
        %1088 = vmatpush1.msra.mxu0 0.0
        %1089 = vmatprep.mubr.f32.mxu0 %v869
        %1090 = vmatmul.mubr.f32.gmra.mrb[0].mxu0 %v824
        %v1091 = vpop.f32.mrb[0].mxu0
        %v1092 = vadd.f32 0.0, %v1091
        %v1093 = vpop.f32.mrb[0].mxu0
        %1094 = vmatprep.mubr.f32.mxu0 %v872
        %1095 = vmatmul.mubr.f32.gmra.mrb[0].mxu0 %v826
        %v1096 = vpop.f32.mrb[0].mxu0
        %v1097 = vadd.f32 0.0, %v1096
        %v1098 = vpop.f32.mrb[0].mxu0
        %1099 = vmatprep.mubr.f32.mxu0 %v875
        %1100 = vmatmul.mubr.f32.gmra.mrb[0].mxu0 %v828
        %v1101 = vpop.f32.mrb[0].mxu0
        %v1102 = vadd.f32 0.0, %v1101
        %v1103 = vpop.f32.mrb[0].mxu0
        %1104 = vmatprep.mubr.f32.mxu0 %v878
        %1105 = vmatmul.mubr.f32.gmra.mrb[0].mxu0 %v830
        %v1106 = vpop.f32.mrb[0].mxu0
        %v1107 = vadd.f32 0.0, %v1106
        %v1108 = vpop.f32.mrb[0].mxu0
        %1109 = vmatprep.mubr.f32.mxu0 %v881
        %1110 = vmatmul.mubr.f32.gmra.mrb[0].mxu0 %v832
        %v1111 = vpop.f32.mrb[0].mxu0
        %v1112 = vadd.f32 0.0, %v1111
        %v1113 = vpop.f32.mrb[0].mxu0
        %1114 = vmatprep.mubr.f32.mxu0 %v884
        %1115 = vmatmul.mubr.f32.gmra.mrb[0].mxu0 %v834
        %v1116 = vpop.f32.mrb[0].mxu0
        %v1117 = vadd.f32 0.0, %v1116
        %v1118 = vpop.f32.mrb[0].mxu0
        %1119 = vmatprep.mubr.f32.mxu0 %v887
        %1120 = vmatmul.mubr.f32.gmra.mrb[0].mxu0 %v836
        %v1121 = vpop.f32.mrb[0].mxu0
        %v1122 = vadd.f32 0.0, %v1121
        %v1123 = vpop.f32.mrb[0].mxu0
        %1124 = vmatprep.mubr.f32.mxu0 %v890
        %1125 = vmatmul.mubr.f32.gmra.mrb[0].mxu0 %v838
        %v1126 = vpop.f32.mrb[0].mxu0
        %v1127 = vadd.f32 0.0, %v1126
        %v1128 = vpop.f32.mrb[0].mxu0
        %1129 = vdwg.mxu0
        %v1130 = vmax.f32 %v959, %v1092
        %v1131 = vmax.f32 %v964, %v1097
        %v1132 = vmax.f32 %v969, %v1102
        %v1133 = vmax.f32 %v974, %v1107
        %v1134 = vmax.f32 %v979, %v1112
        %v1135 = vmax.f32 %v984, %v1117
        %v1136 = vmax.f32 %v989, %v1122
        %v1137 = vmax.f32 %v994, %v1127
        %v1140 = vcombine.high %v1130, %v1130
        %v1142 = vunpack.c.l.s4 1966171168
        %v1143 = vunpack.c.0.s8 %v1142
        %v1144 = vlaneseq
        %v1145 = vshrl.u32 %v1144, 7
        %v1146 = vsub.s32 %v1143, %v1145
        %v1147 = vrot.slane %v1130, %v1146
        %v1149 = vunpack.c.l.s4 1966171168
        %v1150 = vunpack.c.0.s8 %v1149
        %v1151 = vlaneseq
        %v1152 = vshrl.u32 %v1151, 7
        %v1153 = vsub.s32 %v1150, %v1152
        %v1154 = vrot.slane %v1140, %v1153
        %v1155 = vcombine.high %v1147, %v1147
        %v1156 = vcombine.high %v1154, %v1154
        %v1158 = vunpack.c.l.s4 1966171168
        %v1159 = vunpack.c.0.s8 %v1158
        %v1160 = vlaneseq
        %v1161 = vshrl.u32 %v1160, 7
        %v1162 = vsub.s32 %v1159, %v1161
        %v1163 = vrot.slane %v1147, %v1162
        %v1165 = vunpack.c.l.s4 1966171168
        %v1166 = vunpack.c.0.s8 %v1165
        %v1167 = vlaneseq
        %v1168 = vshrl.u32 %v1167, 7
        %v1169 = vsub.s32 %v1166, %v1168
        %v1170 = vrot.slane %v1154, %v1169
        %v1172 = vunpack.c.l.s4 1966171168
        %v1173 = vunpack.c.0.s8 %v1172
        %v1174 = vlaneseq
        %v1175 = vshrl.u32 %v1174, 7
        %v1176 = vsub.s32 %v1173, %v1175
        %v1177 = vrot.slane %v1155, %v1176
        %v1179 = vunpack.c.l.s4 1966171168
        %v1180 = vunpack.c.0.s8 %v1179
        %v1181 = vlaneseq
        %v1182 = vshrl.u32 %v1181, 7
        %v1183 = vsub.s32 %v1180, %v1182
        %v1184 = vrot.slane %v1156, %v1183
        %v1185 = vcombine.high %v1163, %v1163
        %v1186 = vcombine.high %v1170, %v1170
        %v1187 = vcombine.high %v1177, %v1177
        %v1188 = vcombine.high %v1184, %v1184
        %v1189 = vcombine.high %v1131, %v1131
        %v1191 = vunpack.c.l.s4 1966171168
        %v1192 = vunpack.c.0.s8 %v1191
        %v1193 = vlaneseq
        %v1194 = vshrl.u32 %v1193, 7
        %v1195 = vsub.s32 %v1192, %v1194
        %v1196 = vrot.slane %v1131, %v1195
        %v1198 = vunpack.c.l.s4 1966171168
        %v1199 = vunpack.c.0.s8 %v1198
        %v1200 = vlaneseq
        %v1201 = vshrl.u32 %v1200, 7
        %v1202 = vsub.s32 %v1199, %v1201
        %v1203 = vrot.slane %v1189, %v1202
        %v1204 = vcombine.high %v1196, %v1196
        %v1205 = vcombine.high %v1203, %v1203
        %v1207 = vunpack.c.l.s4 1966171168
        %v1208 = vunpack.c.0.s8 %v1207
        %v1209 = vlaneseq
        %v1210 = vshrl.u32 %v1209, 7
        %v1211 = vsub.s32 %v1208, %v1210
        %v1212 = vrot.slane %v1196, %v1211
        %v1214 = vunpack.c.l.s4 1966171168
        %v1215 = vunpack.c.0.s8 %v1214
        %v1216 = vlaneseq
        %v1217 = vshrl.u32 %v1216, 7
        %v1218 = vsub.s32 %v1215, %v1217
        %v1219 = vrot.slane %v1203, %v1218
        %v1221 = vunpack.c.l.s4 1966171168
        %v1222 = vunpack.c.0.s8 %v1221
        %v1223 = vlaneseq
        %v1224 = vshrl.u32 %v1223, 7
        %v1225 = vsub.s32 %v1222, %v1224
        %v1226 = vrot.slane %v1204, %v1225
        %v1228 = vunpack.c.l.s4 1966171168
        %v1229 = vunpack.c.0.s8 %v1228
        %v1230 = vlaneseq
        %v1231 = vshrl.u32 %v1230, 7
        %v1232 = vsub.s32 %v1229, %v1231
        %v1233 = vrot.slane %v1205, %v1232
        %v1234 = vcombine.high %v1212, %v1212
        %v1235 = vcombine.high %v1219, %v1219
        %v1236 = vcombine.high %v1226, %v1226
        %v1237 = vcombine.high %v1233, %v1233
        %s1254 = scalar_lea.vmem %s224, %s232
        %vm1255 = vcmask 909312
        %1256 = vst.msk [vmem:[%s1254] sm:$0x1] %vm1255, %v1163
        %1257 = vst.msk [vmem:[%s1254 + $0x70] sm:$0x1] %vm1255, %v1177
        %1258 = vst.msk [vmem:[%s1254 + $0xe0] sm:$0x1] %vm1255, %v1185
        %1259 = vst.msk [vmem:[%s1254 + $0x150] sm:$0x1] %vm1255, %v1187
        %1260 = vst.msk [vmem:[%s1254 + $0x1c0] sm:$0x1] %vm1255, %v1170
        %1261 = vst.msk [vmem:[%s1254 + $0x230] sm:$0x1] %vm1255, %v1184
        %1262 = vst.msk [vmem:[%s1254 + $0x2a0] sm:$0x1] %vm1255, %v1186
        %1263 = vst.msk [vmem:[%s1254 + $0x310] sm:$0x1] %vm1255, %v1188
        %1264 = vst.msk [vmem:[%s1254 + $0x380] sm:$0x1] %vm1255, %v1212
        %1265 = vst.msk [vmem:[%s1254 + $0x3f0] sm:$0x1] %vm1255, %v1226
        %1266 = vst.msk [vmem:[%s1254 + $0x460] sm:$0x1] %vm1255, %v1234
        %1267 = vst.msk [vmem:[%s1254 + $0x4d0] sm:$0x1] %vm1255, %v1236
        %1268 = vst.msk [vmem:[%s1254 + $0x540] sm:$0x1] %vm1255, %v1219
        %1269 = vst.msk [vmem:[%s1254 + $0x5b0] sm:$0x1] %vm1255, %v1233
        %1270 = vst.msk [vmem:[%s1254 + $0x620] sm:$0x1] %vm1255, %v1235
        %1271 = vst.msk [vmem:[%s1254 + $0x690] sm:$0x1] %vm1255, %v1237
        %s1272 = sadd.s32 %s232, 1
        %v1275 = vcombine.high %v1132, %v1132
        %v1277 = vunpack.c.l.s4 1966171168
        %v1278 = vunpack.c.0.s8 %v1277
        %v1279 = vlaneseq
        %v1280 = vshrl.u32 %v1279, 7
        %v1281 = vsub.s32 %v1278, %v1280
        %v1282 = vrot.slane %v1132, %v1281
        %v1284 = vunpack.c.l.s4 1966171168
        %v1285 = vunpack.c.0.s8 %v1284
        %v1286 = vlaneseq
        %v1287 = vshrl.u32 %v1286, 7
        %v1288 = vsub.s32 %v1285, %v1287
        %v1289 = vrot.slane %v1275, %v1288
        %v1290 = vcombine.high %v1282, %v1282
        %v1291 = vcombine.high %v1289, %v1289
        %v1293 = vunpack.c.l.s4 1966171168
        %v1294 = vunpack.c.0.s8 %v1293
        %v1295 = vlaneseq
        %v1296 = vshrl.u32 %v1295, 7
        %v1297 = vsub.s32 %v1294, %v1296
        %v1298 = vrot.slane %v1282, %v1297
        %v1300 = vunpack.c.l.s4 1966171168
        %v1301 = vunpack.c.0.s8 %v1300
        %v1302 = vlaneseq
        %v1303 = vshrl.u32 %v1302, 7
        %v1304 = vsub.s32 %v1301, %v1303
        %v1305 = vrot.slane %v1289, %v1304
        %v1307 = vunpack.c.l.s4 1966171168
        %v1308 = vunpack.c.0.s8 %v1307
        %v1309 = vlaneseq
        %v1310 = vshrl.u32 %v1309, 7
        %v1311 = vsub.s32 %v1308, %v1310
        %v1312 = vrot.slane %v1290, %v1311
        %v1314 = vunpack.c.l.s4 1966171168
        %v1315 = vunpack.c.0.s8 %v1314
        %v1316 = vlaneseq
        %v1317 = vshrl.u32 %v1316, 7
        %v1318 = vsub.s32 %v1315, %v1317
        %v1319 = vrot.slane %v1291, %v1318
        %v1320 = vcombine.high %v1298, %v1298
        %v1321 = vcombine.high %v1305, %v1305
        %v1322 = vcombine.high %v1312, %v1312
        %v1323 = vcombine.high %v1319, %v1319
        %v1324 = vcombine.high %v1133, %v1133
        %v1326 = vunpack.c.l.s4 1966171168
        %v1327 = vunpack.c.0.s8 %v1326
        %v1328 = vlaneseq
        %v1329 = vshrl.u32 %v1328, 7
        %v1330 = vsub.s32 %v1327, %v1329
        %v1331 = vrot.slane %v1133, %v1330
        %v1333 = vunpack.c.l.s4 1966171168
        %v1334 = vunpack.c.0.s8 %v1333
        %v1335 = vlaneseq
        %v1336 = vshrl.u32 %v1335, 7
        %v1337 = vsub.s32 %v1334, %v1336
        %v1338 = vrot.slane %v1324, %v1337
        %v1339 = vcombine.high %v1331, %v1331
        %v1340 = vcombine.high %v1338, %v1338
        %v1342 = vunpack.c.l.s4 1966171168
        %v1343 = vunpack.c.0.s8 %v1342
        %v1344 = vlaneseq
        %v1345 = vshrl.u32 %v1344, 7
        %v1346 = vsub.s32 %v1343, %v1345
        %v1347 = vrot.slane %v1331, %v1346
        %v1349 = vunpack.c.l.s4 1966171168
        %v1350 = vunpack.c.0.s8 %v1349
        %v1351 = vlaneseq
        %v1352 = vshrl.u32 %v1351, 7
        %v1353 = vsub.s32 %v1350, %v1352
        %v1354 = vrot.slane %v1338, %v1353
        %v1356 = vunpack.c.l.s4 1966171168
        %v1357 = vunpack.c.0.s8 %v1356
        %v1358 = vlaneseq
        %v1359 = vshrl.u32 %v1358, 7
        %v1360 = vsub.s32 %v1357, %v1359
        %v1361 = vrot.slane %v1339, %v1360
        %v1363 = vunpack.c.l.s4 1966171168
        %v1364 = vunpack.c.0.s8 %v1363
        %v1365 = vlaneseq
        %v1366 = vshrl.u32 %v1365, 7
        %v1367 = vsub.s32 %v1364, %v1366
        %v1368 = vrot.slane %v1340, %v1367
        %v1369 = vcombine.high %v1347, %v1347
        %v1370 = vcombine.high %v1354, %v1354
        %v1371 = vcombine.high %v1361, %v1361
        %v1372 = vcombine.high %v1368, %v1368
        %s1389 = scalar_lea.vmem %s224, %s1272
        %1390 = vst.msk [vmem:[%s1389] sm:$0x1] %vm1255, %v1298
        %1391 = vst.msk [vmem:[%s1389 + $0x70] sm:$0x1] %vm1255, %v1312
        %1392 = vst.msk [vmem:[%s1389 + $0xe0] sm:$0x1] %vm1255, %v1320
        %1393 = vst.msk [vmem:[%s1389 + $0x150] sm:$0x1] %vm1255, %v1322
        %1394 = vst.msk [vmem:[%s1389 + $0x1c0] sm:$0x1] %vm1255, %v1305
        %1395 = vst.msk [vmem:[%s1389 + $0x230] sm:$0x1] %vm1255, %v1319
        %1396 = vst.msk [vmem:[%s1389 + $0x2a0] sm:$0x1] %vm1255, %v1321
        %1397 = vst.msk [vmem:[%s1389 + $0x310] sm:$0x1] %vm1255, %v1323
        %1398 = vst.msk [vmem:[%s1389 + $0x380] sm:$0x1] %vm1255, %v1347
        %1399 = vst.msk [vmem:[%s1389 + $0x3f0] sm:$0x1] %vm1255, %v1361
        %1400 = vst.msk [vmem:[%s1389 + $0x460] sm:$0x1] %vm1255, %v1369
        %1401 = vst.msk [vmem:[%s1389 + $0x4d0] sm:$0x1] %vm1255, %v1371
        %1402 = vst.msk [vmem:[%s1389 + $0x540] sm:$0x1] %vm1255, %v1354
        %1403 = vst.msk [vmem:[%s1389 + $0x5b0] sm:$0x1] %vm1255, %v1368
        %1404 = vst.msk [vmem:[%s1389 + $0x620] sm:$0x1] %vm1255, %v1370
        %1405 = vst.msk [vmem:[%s1389 + $0x690] sm:$0x1] %vm1255, %v1372
        %s1406 = sadd.s32 %s232, 2
        %v1409 = vcombine.high %v1134, %v1134
        %v1411 = vunpack.c.l.s4 1966171168
        %v1412 = vunpack.c.0.s8 %v1411
        %v1413 = vlaneseq
        %v1414 = vshrl.u32 %v1413, 7
        %v1415 = vsub.s32 %v1412, %v1414
        %v1416 = vrot.slane %v1134, %v1415
        %v1418 = vunpack.c.l.s4 1966171168
        %v1419 = vunpack.c.0.s8 %v1418
        %v1420 = vlaneseq
        %v1421 = vshrl.u32 %v1420, 7
        %v1422 = vsub.s32 %v1419, %v1421
        %v1423 = vrot.slane %v1409, %v1422
        %v1424 = vcombine.high %v1416, %v1416
        %v1425 = vcombine.high %v1423, %v1423
        %v1427 = vunpack.c.l.s4 1966171168
        %v1428 = vunpack.c.0.s8 %v1427
        %v1429 = vlaneseq
        %v1430 = vshrl.u32 %v1429, 7
        %v1431 = vsub.s32 %v1428, %v1430
        %v1432 = vrot.slane %v1416, %v1431
        %v1434 = vunpack.c.l.s4 1966171168
        %v1435 = vunpack.c.0.s8 %v1434
        %v1436 = vlaneseq
        %v1437 = vshrl.u32 %v1436, 7
        %v1438 = vsub.s32 %v1435, %v1437
        %v1439 = vrot.slane %v1423, %v1438
        %v1441 = vunpack.c.l.s4 1966171168
        %v1442 = vunpack.c.0.s8 %v1441
        %v1443 = vlaneseq
        %v1444 = vshrl.u32 %v1443, 7
        %v1445 = vsub.s32 %v1442, %v1444
        %v1446 = vrot.slane %v1424, %v1445
        %v1448 = vunpack.c.l.s4 1966171168
        %v1449 = vunpack.c.0.s8 %v1448
        %v1450 = vlaneseq
        %v1451 = vshrl.u32 %v1450, 7
        %v1452 = vsub.s32 %v1449, %v1451
        %v1453 = vrot.slane %v1425, %v1452
        %v1454 = vcombine.high %v1432, %v1432
        %v1455 = vcombine.high %v1439, %v1439
        %v1456 = vcombine.high %v1446, %v1446
        %v1457 = vcombine.high %v1453, %v1453
        %v1458 = vcombine.high %v1135, %v1135
        %v1460 = vunpack.c.l.s4 1966171168
        %v1461 = vunpack.c.0.s8 %v1460
        %v1462 = vlaneseq
        %v1463 = vshrl.u32 %v1462, 7
        %v1464 = vsub.s32 %v1461, %v1463
        %v1465 = vrot.slane %v1135, %v1464
        %v1467 = vunpack.c.l.s4 1966171168
        %v1468 = vunpack.c.0.s8 %v1467
        %v1469 = vlaneseq
        %v1470 = vshrl.u32 %v1469, 7
        %v1471 = vsub.s32 %v1468, %v1470
        %v1472 = vrot.slane %v1458, %v1471
        %v1473 = vcombine.high %v1465, %v1465
        %v1474 = vcombine.high %v1472, %v1472
        %v1476 = vunpack.c.l.s4 1966171168
        %v1477 = vunpack.c.0.s8 %v1476
        %v1478 = vlaneseq
        %v1479 = vshrl.u32 %v1478, 7
        %v1480 = vsub.s32 %v1477, %v1479
        %v1481 = vrot.slane %v1465, %v1480
        %v1483 = vunpack.c.l.s4 1966171168
        %v1484 = vunpack.c.0.s8 %v1483
        %v1485 = vlaneseq
        %v1486 = vshrl.u32 %v1485, 7
        %v1487 = vsub.s32 %v1484, %v1486
        %v1488 = vrot.slane %v1472, %v1487
        %v1490 = vunpack.c.l.s4 1966171168
        %v1491 = vunpack.c.0.s8 %v1490
        %v1492 = vlaneseq
        %v1493 = vshrl.u32 %v1492, 7
        %v1494 = vsub.s32 %v1491, %v1493
        %v1495 = vrot.slane %v1473, %v1494
        %v1497 = vunpack.c.l.s4 1966171168
        %v1498 = vunpack.c.0.s8 %v1497
        %v1499 = vlaneseq
        %v1500 = vshrl.u32 %v1499, 7
        %v1501 = vsub.s32 %v1498, %v1500
        %v1502 = vrot.slane %v1474, %v1501
        %v1503 = vcombine.high %v1481, %v1481
        %v1504 = vcombine.high %v1488, %v1488
        %v1505 = vcombine.high %v1495, %v1495
        %v1506 = vcombine.high %v1502, %v1502
        %s1523 = scalar_lea.vmem %s224, %s1406
        %1524 = vst.msk [vmem:[%s1523] sm:$0x1] %vm1255, %v1432
        %1525 = vst.msk [vmem:[%s1523 + $0x70] sm:$0x1] %vm1255, %v1446
        %1526 = vst.msk [vmem:[%s1523 + $0xe0] sm:$0x1] %vm1255, %v1454
        %1527 = vst.msk [vmem:[%s1523 + $0x150] sm:$0x1] %vm1255, %v1456
        %1528 = vst.msk [vmem:[%s1523 + $0x1c0] sm:$0x1] %vm1255, %v1439
        %1529 = vst.msk [vmem:[%s1523 + $0x230] sm:$0x1] %vm1255, %v1453
        %1530 = vst.msk [vmem:[%s1523 + $0x2a0] sm:$0x1] %vm1255, %v1455
        %1531 = vst.msk [vmem:[%s1523 + $0x310] sm:$0x1] %vm1255, %v1457
        %1532 = vst.msk [vmem:[%s1523 + $0x380] sm:$0x1] %vm1255, %v1481
        %1533 = vst.msk [vmem:[%s1523 + $0x3f0] sm:$0x1] %vm1255, %v1495
        %1534 = vst.msk [vmem:[%s1523 + $0x460] sm:$0x1] %vm1255, %v1503
        %1535 = vst.msk [vmem:[%s1523 + $0x4d0] sm:$0x1] %vm1255, %v1505
        %1536 = vst.msk [vmem:[%s1523 + $0x540] sm:$0x1] %vm1255, %v1488
        %1537 = vst.msk [vmem:[%s1523 + $0x5b0] sm:$0x1] %vm1255, %v1502
        %1538 = vst.msk [vmem:[%s1523 + $0x620] sm:$0x1] %vm1255, %v1504
        %1539 = vst.msk [vmem:[%s1523 + $0x690] sm:$0x1] %vm1255, %v1506
        %s1540 = sadd.s32 %s232, 3
        %v1543 = vcombine.high %v1136, %v1136
        %v1545 = vunpack.c.l.s4 1966171168
        %v1546 = vunpack.c.0.s8 %v1545
        %v1547 = vlaneseq
        %v1548 = vshrl.u32 %v1547, 7
        %v1549 = vsub.s32 %v1546, %v1548
        %v1550 = vrot.slane %v1136, %v1549
        %v1552 = vunpack.c.l.s4 1966171168
        %v1553 = vunpack.c.0.s8 %v1552
        %v1554 = vlaneseq
        %v1555 = vshrl.u32 %v1554, 7
        %v1556 = vsub.s32 %v1553, %v1555
        %v1557 = vrot.slane %v1543, %v1556
        %v1558 = vcombine.high %v1550, %v1550
        %v1559 = vcombine.high %v1557, %v1557
        %v1561 = vunpack.c.l.s4 1966171168
        %v1562 = vunpack.c.0.s8 %v1561
        %v1563 = vlaneseq
        %v1564 = vshrl.u32 %v1563, 7
        %v1565 = vsub.s32 %v1562, %v1564
        %v1566 = vrot.slane %v1550, %v1565
        %v1568 = vunpack.c.l.s4 1966171168
        %v1569 = vunpack.c.0.s8 %v1568
        %v1570 = vlaneseq
        %v1571 = vshrl.u32 %v1570, 7
        %v1572 = vsub.s32 %v1569, %v1571
        %v1573 = vrot.slane %v1557, %v1572
        %v1575 = vunpack.c.l.s4 1966171168
        %v1576 = vunpack.c.0.s8 %v1575
        %v1577 = vlaneseq
        %v1578 = vshrl.u32 %v1577, 7
        %v1579 = vsub.s32 %v1576, %v1578
        %v1580 = vrot.slane %v1558, %v1579
        %v1582 = vunpack.c.l.s4 1966171168
        %v1583 = vunpack.c.0.s8 %v1582
        %v1584 = vlaneseq
        %v1585 = vshrl.u32 %v1584, 7
        %v1586 = vsub.s32 %v1583, %v1585
        %v1587 = vrot.slane %v1559, %v1586
        %v1588 = vcombine.high %v1566, %v1566
        %v1589 = vcombine.high %v1573, %v1573
        %v1590 = vcombine.high %v1580, %v1580
        %v1591 = vcombine.high %v1587, %v1587
        %v1592 = vcombine.high %v1137, %v1137
        %v1594 = vunpack.c.l.s4 1966171168
        %v1595 = vunpack.c.0.s8 %v1594
        %v1596 = vlaneseq
        %v1597 = vshrl.u32 %v1596, 7
        %v1598 = vsub.s32 %v1595, %v1597
        %v1599 = vrot.slane %v1137, %v1598
        %v1601 = vunpack.c.l.s4 1966171168
        %v1602 = vunpack.c.0.s8 %v1601
        %v1603 = vlaneseq
        %v1604 = vshrl.u32 %v1603, 7
        %v1605 = vsub.s32 %v1602, %v1604
        %v1606 = vrot.slane %v1592, %v1605
        %v1607 = vcombine.high %v1599, %v1599
        %v1608 = vcombine.high %v1606, %v1606
        %v1610 = vunpack.c.l.s4 1966171168
        %v1611 = vunpack.c.0.s8 %v1610
        %v1612 = vlaneseq
        %v1613 = vshrl.u32 %v1612, 7
        %v1614 = vsub.s32 %v1611, %v1613
        %v1615 = vrot.slane %v1599, %v1614
        %v1617 = vunpack.c.l.s4 1966171168
        %v1618 = vunpack.c.0.s8 %v1617
        %v1619 = vlaneseq
        %v1620 = vshrl.u32 %v1619, 7
        %v1621 = vsub.s32 %v1618, %v1620
        %v1622 = vrot.slane %v1606, %v1621
        %v1624 = vunpack.c.l.s4 1966171168
        %v1625 = vunpack.c.0.s8 %v1624
        %v1626 = vlaneseq
        %v1627 = vshrl.u32 %v1626, 7
        %v1628 = vsub.s32 %v1625, %v1627
        %v1629 = vrot.slane %v1607, %v1628
        %v1631 = vunpack.c.l.s4 1966171168
        %v1632 = vunpack.c.0.s8 %v1631
        %v1633 = vlaneseq
        %v1634 = vshrl.u32 %v1633, 7
        %v1635 = vsub.s32 %v1632, %v1634
        %v1636 = vrot.slane %v1608, %v1635
        %v1637 = vcombine.high %v1615, %v1615
        %v1638 = vcombine.high %v1622, %v1622
        %v1639 = vcombine.high %v1629, %v1629
        %v1640 = vcombine.high %v1636, %v1636
        %s1657 = scalar_lea.vmem %s224, %s1540
        %1658 = vst.msk [vmem:[%s1657] sm:$0x1] %vm1255, %v1566
        %1659 = vst.msk [vmem:[%s1657 + $0x70] sm:$0x1] %vm1255, %v1580
        %1660 = vst.msk [vmem:[%s1657 + $0xe0] sm:$0x1] %vm1255, %v1588
        %1661 = vst.msk [vmem:[%s1657 + $0x150] sm:$0x1] %vm1255, %v1590
        %1662 = vst.msk [vmem:[%s1657 + $0x1c0] sm:$0x1] %vm1255, %v1573
        %1663 = vst.msk [vmem:[%s1657 + $0x230] sm:$0x1] %vm1255, %v1587
        %1664 = vst.msk [vmem:[%s1657 + $0x2a0] sm:$0x1] %vm1255, %v1589
        %1665 = vst.msk [vmem:[%s1657 + $0x310] sm:$0x1] %vm1255, %v1591
        %1666 = vst.msk [vmem:[%s1657 + $0x380] sm:$0x1] %vm1255, %v1615
        %1667 = vst.msk [vmem:[%s1657 + $0x3f0] sm:$0x1] %vm1255, %v1629
        %1668 = vst.msk [vmem:[%s1657 + $0x460] sm:$0x1] %vm1255, %v1637
        %1669 = vst.msk [vmem:[%s1657 + $0x4d0] sm:$0x1] %vm1255, %v1639
        %1670 = vst.msk [vmem:[%s1657 + $0x540] sm:$0x1] %vm1255, %v1622
        %1671 = vst.msk [vmem:[%s1657 + $0x5b0] sm:$0x1] %vm1255, %v1636
        %1672 = vst.msk [vmem:[%s1657 + $0x620] sm:$0x1] %vm1255, %v1638
        %1673 = vst.msk [vmem:[%s1657 + $0x690] sm:$0x1] %vm1255, %v1640
      $region45: #{simple_cnn_forward.3} parent=39 // loop_footer
        %s230 = sadd.s32 1, %s226
      $region46: #{simple_cnn_forward.3} parent=39 // loop_footer_branch
        %225 = sbr.rel target = $region42
      $region47: #{simple_cnn_forward.3} parent=39 // loop_exit
        _
      %p1674 = scmp.lt.s32.totalorder %s16, 1
      %s1675 = scalar_select %p1674, %s16, 1
      %s1676 = smul.addr %s1675, 224
      %s1677 = smul.addr %s1676, 8
      %s1678 = scalar_lea.vmem %s5, %s1677
      // Predicated region
      $region48: #{simple_cnn_forward.3} parent=39 // pred_check
        %p1679 = pneg %p144
      $region49: #{simple_cnn_forward.3} parent=39 // pred_check_branch
        %1681 = sbr.rel (%p1679) target = $region51
      $region50: #{simple_cnn_forward.3} parent=39 // pred_region
        _
      $region51: #{simple_cnn_forward.3} parent=39 // pred_fallthru
        _
    $region40: #{simple_cnn_forward.3} parent=5 // pred_fallthru
      _
    %p1682 = scmp.le.s32.totalorder 2, %s11
    // Predicated region
    $region52: #{simple_cnn_forward.3} parent=5 // pred_check
      %p1683 = pneg %p1682
    $region53: #{simple_cnn_forward.3} parent=5 // pred_check_branch
      %1685 = sbr.rel (%p1683) target = $region55
    $region54: #{simple_cnn_forward.3} parent=5 // pred_region
      %s1686 = ssub.s32 %s11, 2
      // Predicated region
      $region56: #{simple_cnn_forward.3} parent=54 // pred_check
        %p1687 = pneg %p150
      $region57: #{simple_cnn_forward.3} parent=54 // pred_check_branch
        %1689 = sbr.rel (%p1687) target = $region59
      $region58: #{simple_cnn_forward.3} parent=54 // pred_region
        %p1690 = scmp.lt.s32.totalorder %s17, 1
        %s1691 = scalar_select %p1690, %s17, 1
        %s1692 = smul.addr %s1691, 224
        %s1693 = smul.addr %s1692, 8
        %s1694 = scalar_lea.vmem %s5, %s1693
      $region59: #{simple_cnn_forward.3} parent=54 // pred_fallthru
        _
    $region55: #{simple_cnn_forward.3} parent=5 // pred_fallthru
      _
  $region6: #{simple_cnn_forward.3} parent=0 // loop_footer
    %s15 = sadd.s32 1, %s11
  $region7: #{simple_cnn_forward.3} parent=0 // loop_footer_branch
    %10 = sbr.rel target = $region3
  $region8: #{simple_cnn_forward.3} parent=0 // loop_exit
    _

// kernel: tile.18
$region0: #{tile.18}
  #allocation0 [shape = 's32[1]{0}', space=sflag, size = 0x4, scoped, tag = 'scoped memory for tile.18']
  %s0 = inlined_call_operand.vmem [shape: f32[32], index: 0, kind: input, shape index: {}]
  %s1 = inlined_call_operand.vmem [shape: f32[4,32], index: 1, kind: output, shape index: {}]
  // Predicated region
  $region2: #{tile.18} parent=0 // pred_check
    _
  $region3: #{tile.18} parent=0 // pred_check_branch
    %3 = sbr.rel (0) target = $region5
  $region4: #{tile.18} parent=0 // pred_region
    _
  $region5: #{tile.18} parent=0 // pred_fallthru
    _
  %v4 = vld [vmem:[%s0] ss:$0 sm:$0xff]
  %5 = vst [vmem:[%s1] sm:$0xf] %v4

// kernel: tile.1
$region0: #{tile.1}
  %s0 = inlined_call_operand.vmem [shape: f32[4,32], index: 0, kind: input, shape index: {}]
  %s1 = inlined_call_operand.vmem [shape: f32[128,1], index: 1, kind: output, shape index: {}]
  $region1: #{tile.1} parent=0
    #allocation0 [shape = 'u8[4096]{0}', space=vmem, size = 0x1000, scoped, tag = 'scoped mem for input reshape']
    %s3 = sshllo.u32 0, 4
    %v4 = vld [vmem:[%s0] sm:%s3]
    %5 = vst [vmem:[#allocation0] sm:%s3] %v4
    %v6 = vld [vmem:[#allocation0] sm:$0xf]
    %vm7 = vcmask 7168
    %8 = vst.msk [vmem:[%s1] sm:$0x1] %vm7, %v6
    %s9 = scalar_lea.vmem %s1, 31
    %10 = vst.msk [vmem:[%s9] sm:$0x2] %vm7, %v6
    %s11 = scalar_lea.vmem %s1, 62
    %12 = vst.msk [vmem:[%s11] sm:$0x4] %vm7, %v6
    %s13 = scalar_lea.vmem %s1, 93
    %14 = vst.msk [vmem:[%s13] sm:$0x8] %vm7, %v6
    %v15 = vld [vmem:[#allocation0] sm:$0xf]
    %16 = vrot.lane.b32.xlu0 %v15, 127
    %v17 = vpop.permute.xlu0 %16
    %vm18 = vcmask 7168
    %s19 = scalar_lea.vmem %s1, 1
    %20 = vst.msk [vmem:[%s19] sm:$0x1] %vm18, %v17
    %s21 = scalar_lea.vmem %s1, 32
    %22 = vst.msk [vmem:[%s21] sm:$0x2] %vm18, %v17
    %s23 = scalar_lea.vmem %s1, 63
    %24 = vst.msk [vmem:[%s23] sm:$0x4] %vm18, %v17
    %s25 = scalar_lea.vmem %s1, 94
    %26 = vst.msk [vmem:[%s25] sm:$0x8] %vm18, %v17
    %v27 = vld [vmem:[#allocation0] sm:$0xf]
    %28 = vrot.lane.b32.xlu0 %v27, 126
    %v29 = vpop.permute.xlu0 %28
    %vm30 = vcmask 7168
    %s31 = scalar_lea.vmem %s1, 2
    %32 = vst.msk [vmem:[%s31] sm:$0x1] %vm30, %v29
    %s33 = scalar_lea.vmem %s1, 33
    %34 = vst.msk [vmem:[%s33] sm:$0x2] %vm30, %v29
    %s35 = scalar_lea.vmem %s1, 64
    %36 = vst.msk [vmem:[%s35] sm:$0x4] %vm30, %v29
    %s37 = scalar_lea.vmem %s1, 95
    %38 = vst.msk [vmem:[%s37] sm:$0x8] %vm30, %v29
    %v39 = vld [vmem:[#allocation0] sm:$0xf]
    %40 = vrot.lane.b32.xlu0 %v39, 125
    %v41 = vpop.permute.xlu0 %40
    %vm42 = vcmask 7168
    %s43 = scalar_lea.vmem %s1, 3
    %44 = vst.msk [vmem:[%s43] sm:$0x1] %vm42, %v41
    %s45 = scalar_lea.vmem %s1, 34
    %46 = vst.msk [vmem:[%s45] sm:$0x2] %vm42, %v41
    %s47 = scalar_lea.vmem %s1, 65
    %48 = vst.msk [vmem:[%s47] sm:$0x4] %vm42, %v41
    %s49 = scalar_lea.vmem %s1, 96
    %50 = vst.msk [vmem:[%s49] sm:$0x8] %vm42, %v41
    %v51 = vld [vmem:[#allocation0] sm:$0xf]
    %52 = vrot.lane.b32.xlu0 %v51, 124
    %v53 = vpop.permute.xlu0 %52
    %vm54 = vcmask 7168
    %s55 = scalar_lea.vmem %s1, 4
    %56 = vst.msk [vmem:[%s55] sm:$0x1] %vm54, %v53
    %s57 = scalar_lea.vmem %s1, 35
    %58 = vst.msk [vmem:[%s57] sm:$0x2] %vm54, %v53
    %s59 = scalar_lea.vmem %s1, 66
    %60 = vst.msk [vmem:[%s59] sm:$0x4] %vm54, %v53
    %s61 = scalar_lea.vmem %s1, 97
    %62 = vst.msk [vmem:[%s61] sm:$0x8] %vm54, %v53
    %v63 = vld [vmem:[#allocation0] sm:$0xf]
    %64 = vrot.lane.b32.xlu0 %v63, 123
    %v65 = vpop.permute.xlu0 %64
    %vm66 = vcmask 7168
    %s67 = scalar_lea.vmem %s1, 5
    %68 = vst.msk [vmem:[%s67] sm:$0x1] %vm66, %v65
    %s69 = scalar_lea.vmem %s1, 36
    %70 = vst.msk [vmem:[%s69] sm:$0x2] %vm66, %v65
    %s71 = scalar_lea.vmem %s1, 67
    %72 = vst.msk [vmem:[%s71] sm:$0x4] %vm66, %v65
    %s73 = scalar_lea.vmem %s1, 98
    %74 = vst.msk [vmem:[%s73] sm:$0x8] %vm66, %v65
    %v75 = vld [vmem:[#allocation0] sm:$0xf]
    %76 = vrot.lane.b32.xlu0 %v75, 122
    %v77 = vpop.permute.xlu0 %76
    %vm78 = vcmask 7168
    %s79 = scalar_lea.vmem %s1, 6
    %80 = vst.msk [vmem:[%s79] sm:$0x1] %vm78, %v77
    %s81 = scalar_lea.vmem %s1, 37
    %82 = vst.msk [vmem:[%s81] sm:$0x2] %vm78, %v77
    %s83 = scalar_lea.vmem %s1, 68
    %84 = vst.msk [vmem:[%s83] sm:$0x4] %vm78, %v77
    %s85 = scalar_lea.vmem %s1, 99
    %86 = vst.msk [vmem:[%s85] sm:$0x8] %vm78, %v77
    %v87 = vld [vmem:[#allocation0] sm:$0xf]
    %88 = vrot.lane.b32.xlu0 %v87, 121
    %v89 = vpop.permute.xlu0 %88
    %vm90 = vcmask 7168
    %s91 = scalar_lea.vmem %s1, 7
    %92 = vst.msk [vmem:[%s91] sm:$0x1] %vm90, %v89
    %s93 = scalar_lea.vmem %s1, 38
    %94 = vst.msk [vmem:[%s93] sm:$0x2] %vm90, %v89
    %s95 = scalar_lea.vmem %s1, 69
    %96 = vst.msk [vmem:[%s95] sm:$0x4] %vm90, %v89
    %s97 = scalar_lea.vmem %s1, 100
    %98 = vst.msk [vmem:[%s97] sm:$0x8] %vm90, %v89
    %v99 = vld [vmem:[#allocation0] sm:$0xf]
    %100 = vrot.lane.b32.xlu0 %v99, 120
    %v101 = vpop.permute.xlu0 %100
    %vm102 = vcmask 7168
    %s103 = scalar_lea.vmem %s1, 8
    %104 = vst.msk [vmem:[%s103] sm:$0x1] %vm102, %v101
    %s105 = scalar_lea.vmem %s1, 39
    %106 = vst.msk [vmem:[%s105] sm:$0x2] %vm102, %v101
    %s107 = scalar_lea.vmem %s1, 70
    %108 = vst.msk [vmem:[%s107] sm:$0x4] %vm102, %v101
    %s109 = scalar_lea.vmem %s1, 101
    %110 = vst.msk [vmem:[%s109] sm:$0x8] %vm102, %v101
    %v111 = vld [vmem:[#allocation0] sm:$0xf]
    %112 = vrot.lane.b32.xlu0 %v111, 119
    %v113 = vpop.permute.xlu0 %112
    %vm114 = vcmask 7168
    %s115 = scalar_lea.vmem %s1, 9
    %116 = vst.msk [vmem:[%s115] sm:$0x1] %vm114, %v113
    %s117 = scalar_lea.vmem %s1, 40
    %118 = vst.msk [vmem:[%s117] sm:$0x2] %vm114, %v113
    %s119 = scalar_lea.vmem %s1, 71
    %120 = vst.msk [vmem:[%s119] sm:$0x4] %vm114, %v113
    %s121 = scalar_lea.vmem %s1, 102
    %122 = vst.msk [vmem:[%s121] sm:$0x8] %vm114, %v113
    %v123 = vld [vmem:[#allocation0] sm:$0xf]
    %124 = vrot.lane.b32.xlu0 %v123, 118
    %v125 = vpop.permute.xlu0 %124
    %vm126 = vcmask 7168
    %s127 = scalar_lea.vmem %s1, 10
    %128 = vst.msk [vmem:[%s127] sm:$0x1] %vm126, %v125
    %s129 = scalar_lea.vmem %s1, 41
    %130 = vst.msk [vmem:[%s129] sm:$0x2] %vm126, %v125
    %s131 = scalar_lea.vmem %s1, 72
    %132 = vst.msk [vmem:[%s131] sm:$0x4] %vm126, %v125
    %s133 = scalar_lea.vmem %s1, 103
    %134 = vst.msk [vmem:[%s133] sm:$0x8] %vm126, %v125
    %v135 = vld [vmem:[#allocation0] sm:$0xf]
    %136 = vrot.lane.b32.xlu0 %v135, 117
    %v137 = vpop.permute.xlu0 %136
    %vm138 = vcmask 7168
    %s139 = scalar_lea.vmem %s1, 11
    %140 = vst.msk [vmem:[%s139] sm:$0x1] %vm138, %v137
    %s141 = scalar_lea.vmem %s1, 42
    %142 = vst.msk [vmem:[%s141] sm:$0x2] %vm138, %v137
    %s143 = scalar_lea.vmem %s1, 73
    %144 = vst.msk [vmem:[%s143] sm:$0x4] %vm138, %v137
    %s145 = scalar_lea.vmem %s1, 104
    %146 = vst.msk [vmem:[%s145] sm:$0x8] %vm138, %v137
    %v147 = vld [vmem:[#allocation0] sm:$0xf]
    %148 = vrot.lane.b32.xlu0 %v147, 116
    %v149 = vpop.permute.xlu0 %148
    %vm150 = vcmask 7168
    %s151 = scalar_lea.vmem %s1, 12
    %152 = vst.msk [vmem:[%s151] sm:$0x1] %vm150, %v149
    %s153 = scalar_lea.vmem %s1, 43
    %154 = vst.msk [vmem:[%s153] sm:$0x2] %vm150, %v149
    %s155 = scalar_lea.vmem %s1, 74
    %156 = vst.msk [vmem:[%s155] sm:$0x4] %vm150, %v149
    %s157 = scalar_lea.vmem %s1, 105
    %158 = vst.msk [vmem:[%s157] sm:$0x8] %vm150, %v149
    %v159 = vld [vmem:[#allocation0] sm:$0xf]
    %160 = vrot.lane.b32.xlu0 %v159, 115
    %v161 = vpop.permute.xlu0 %160
    %vm162 = vcmask 7168
    %s163 = scalar_lea.vmem %s1, 13
    %164 = vst.msk [vmem:[%s163] sm:$0x1] %vm162, %v161
    %s165 = scalar_lea.vmem %s1, 44
    %166 = vst.msk [vmem:[%s165] sm:$0x2] %vm162, %v161
    %s167 = scalar_lea.vmem %s1, 75
    %168 = vst.msk [vmem:[%s167] sm:$0x4] %vm162, %v161
    %s169 = scalar_lea.vmem %s1, 106
    %170 = vst.msk [vmem:[%s169] sm:$0x8] %vm162, %v161
    %v171 = vld [vmem:[#allocation0] sm:$0xf]
    %172 = vrot.lane.b32.xlu0 %v171, 114
    %v173 = vpop.permute.xlu0 %172
    %vm174 = vcmask 7168
    %s175 = scalar_lea.vmem %s1, 14
    %176 = vst.msk [vmem:[%s175] sm:$0x1] %vm174, %v173
    %s177 = scalar_lea.vmem %s1, 45
    %178 = vst.msk [vmem:[%s177] sm:$0x2] %vm174, %v173
    %s179 = scalar_lea.vmem %s1, 76
    %180 = vst.msk [vmem:[%s179] sm:$0x4] %vm174, %v173
    %s181 = scalar_lea.vmem %s1, 107
    %182 = vst.msk [vmem:[%s181] sm:$0x8] %vm174, %v173
    %v183 = vld [vmem:[#allocation0] sm:$0xf]
    %184 = vrot.lane.b32.xlu0 %v183, 113
    %v185 = vpop.permute.xlu0 %184
    %vm186 = vcmask 7168
    %s187 = scalar_lea.vmem %s1, 15
    %188 = vst.msk [vmem:[%s187] sm:$0x1] %vm186, %v185
    %s189 = scalar_lea.vmem %s1, 46
    %190 = vst.msk [vmem:[%s189] sm:$0x2] %vm186, %v185
    %s191 = scalar_lea.vmem %s1, 77
    %192 = vst.msk [vmem:[%s191] sm:$0x4] %vm186, %v185
    %s193 = scalar_lea.vmem %s1, 108
    %194 = vst.msk [vmem:[%s193] sm:$0x8] %vm186, %v185
    %v195 = vld [vmem:[#allocation0] sm:$0xf]
    %196 = vrot.lane.b32.xlu0 %v195, 112
    %v197 = vpop.permute.xlu0 %196
    %vm198 = vcmask 7168
    %s199 = scalar_lea.vmem %s1, 16
    %200 = vst.msk [vmem:[%s199] sm:$0x1] %vm198, %v197
    %s201 = scalar_lea.vmem %s1, 47
    %202 = vst.msk [vmem:[%s201] sm:$0x2] %vm198, %v197
    %s203 = scalar_lea.vmem %s1, 78
    %204 = vst.msk [vmem:[%s203] sm:$0x4] %vm198, %v197
    %s205 = scalar_lea.vmem %s1, 109
    %206 = vst.msk [vmem:[%s205] sm:$0x8] %vm198, %v197
    %v207 = vld [vmem:[#allocation0] sm:$0xf]
    %208 = vrot.lane.b32.xlu0 %v207, 111
    %v209 = vpop.permute.xlu0 %208
    %vm210 = vcmask 7168
    %s211 = scalar_lea.vmem %s1, 17
    %212 = vst.msk [vmem:[%s211] sm:$0x1] %vm210, %v209
    %s213 = scalar_lea.vmem %s1, 48
    %214 = vst.msk [vmem:[%s213] sm:$0x2] %vm210, %v209
    %s215 = scalar_lea.vmem %s1, 79
    %216 = vst.msk [vmem:[%s215] sm:$0x4] %vm210, %v209
    %s217 = scalar_lea.vmem %s1, 110
    %218 = vst.msk [vmem:[%s217] sm:$0x8] %vm210, %v209
    %v219 = vld [vmem:[#allocation0] sm:$0xf]
    %220 = vrot.lane.b32.xlu0 %v219, 110
    %v221 = vpop.permute.xlu0 %220
    %vm222 = vcmask 7168
    %s223 = scalar_lea.vmem %s1, 18
    %224 = vst.msk [vmem:[%s223] sm:$0x1] %vm222, %v221
    %s225 = scalar_lea.vmem %s1, 49
    %226 = vst.msk [vmem:[%s225] sm:$0x2] %vm222, %v221
    %s227 = scalar_lea.vmem %s1, 80
    %228 = vst.msk [vmem:[%s227] sm:$0x4] %vm222, %v221
    %s229 = scalar_lea.vmem %s1, 111
    %230 = vst.msk [vmem:[%s229] sm:$0x8] %vm222, %v221
    %v231 = vld [vmem:[#allocation0] sm:$0xf]
    %232 = vrot.lane.b32.xlu0 %v231, 109
    %v233 = vpop.permute.xlu0 %232
    %vm234 = vcmask 7168
    %s235 = scalar_lea.vmem %s1, 19
    %236 = vst.msk [vmem:[%s235] sm:$0x1] %vm234, %v233
    %s237 = scalar_lea.vmem %s1, 50
    %238 = vst.msk [vmem:[%s237] sm:$0x2] %vm234, %v233
    %s239 = scalar_lea.vmem %s1, 81
    %240 = vst.msk [vmem:[%s239] sm:$0x4] %vm234, %v233
    %s241 = scalar_lea.vmem %s1, 112
    %242 = vst.msk [vmem:[%s241] sm:$0x8] %vm234, %v233
    %v243 = vld [vmem:[#allocation0] sm:$0xf]
    %244 = vrot.lane.b32.xlu0 %v243, 108
    %v245 = vpop.permute.xlu0 %244
    %vm246 = vcmask 7168
    %s247 = scalar_lea.vmem %s1, 20
    %248 = vst.msk [vmem:[%s247] sm:$0x1] %vm246, %v245
    %s249 = scalar_lea.vmem %s1, 51
    %250 = vst.msk [vmem:[%s249] sm:$0x2] %vm246, %v245
    %s251 = scalar_lea.vmem %s1, 82
    %252 = vst.msk [vmem:[%s251] sm:$0x4] %vm246, %v245
    %s253 = scalar_lea.vmem %s1, 113
    %254 = vst.msk [vmem:[%s253] sm:$0x8] %vm246, %v245
    %v255 = vld [vmem:[#allocation0] sm:$0xf]
    %256 = vrot.lane.b32.xlu0 %v255, 107
    %v257 = vpop.permute.xlu0 %256
    %vm258 = vcmask 7168
    %s259 = scalar_lea.vmem %s1, 21
    %260 = vst.msk [vmem:[%s259] sm:$0x1] %vm258, %v257
    %s261 = scalar_lea.vmem %s1, 52
    %262 = vst.msk [vmem:[%s261] sm:$0x2] %vm258, %v257
    %s263 = scalar_lea.vmem %s1, 83
    %264 = vst.msk [vmem:[%s263] sm:$0x4] %vm258, %v257
    %s265 = scalar_lea.vmem %s1, 114
    %266 = vst.msk [vmem:[%s265] sm:$0x8] %vm258, %v257
    %v267 = vld [vmem:[#allocation0] sm:$0xf]
    %268 = vrot.lane.b32.xlu0 %v267, 106
    %v269 = vpop.permute.xlu0 %268
    %vm270 = vcmask 7168
    %s271 = scalar_lea.vmem %s1, 22
    %272 = vst.msk [vmem:[%s271] sm:$0x1] %vm270, %v269
    %s273 = scalar_lea.vmem %s1, 53
    %274 = vst.msk [vmem:[%s273] sm:$0x2] %vm270, %v269
    %s275 = scalar_lea.vmem %s1, 84
    %276 = vst.msk [vmem:[%s275] sm:$0x4] %vm270, %v269
    %s277 = scalar_lea.vmem %s1, 115
    %278 = vst.msk [vmem:[%s277] sm:$0x8] %vm270, %v269
    %v279 = vld [vmem:[#allocation0] sm:$0xf]
    %280 = vrot.lane.b32.xlu0 %v279, 105
    %v281 = vpop.permute.xlu0 %280
    %vm282 = vcmask 7168
    %s283 = scalar_lea.vmem %s1, 23
    %284 = vst.msk [vmem:[%s283] sm:$0x1] %vm282, %v281
    %s285 = scalar_lea.vmem %s1, 54
    %286 = vst.msk [vmem:[%s285] sm:$0x2] %vm282, %v281
    %s287 = scalar_lea.vmem %s1, 85
    %288 = vst.msk [vmem:[%s287] sm:$0x4] %vm282, %v281
    %s289 = scalar_lea.vmem %s1, 116
    %290 = vst.msk [vmem:[%s289] sm:$0x8] %vm282, %v281
    %v291 = vld [vmem:[#allocation0] sm:$0xf]
    %292 = vrot.lane.b32.xlu0 %v291, 104
    %v293 = vpop.permute.xlu0 %292
    %vm294 = vcmask 7168
    %s295 = scalar_lea.vmem %s1, 24
    %296 = vst.msk [vmem:[%s295] sm:$0x1] %vm294, %v293
    %s297 = scalar_lea.vmem %s1, 55
    %298 = vst.msk [vmem:[%s297] sm:$0x2] %vm294, %v293
    %s299 = scalar_lea.vmem %s1, 86
    %300 = vst.msk [vmem:[%s299] sm:$0x4] %vm294, %v293
    %s301 = scalar_lea.vmem %s1, 117
    %302 = vst.msk [vmem:[%s301] sm:$0x8] %vm294, %v293
    %v303 = vld [vmem:[#allocation0] sm:$0xf]
    %304 = vrot.lane.b32.xlu0 %v303, 103
    %v305 = vpop.permute.xlu0 %304
    %vm306 = vcmask 7168
    %s307 = scalar_lea.vmem %s1, 25
    %308 = vst.msk [vmem:[%s307] sm:$0x1] %vm306, %v305
    %s309 = scalar_lea.vmem %s1, 56
    %310 = vst.msk [vmem:[%s309] sm:$0x2] %vm306, %v305
    %s311 = scalar_lea.vmem %s1, 87
    %312 = vst.msk [vmem:[%s311] sm:$0x4] %vm306, %v305
    %s313 = scalar_lea.vmem %s1, 118
    %314 = vst.msk [vmem:[%s313] sm:$0x8] %vm306, %v305
    %v315 = vld [vmem:[#allocation0] sm:$0xf]
    %316 = vrot.lane.b32.xlu0 %v315, 102
    %v317 = vpop.permute.xlu0 %316
    %vm318 = vcmask 7168
    %s319 = scalar_lea.vmem %s1, 26
    %320 = vst.msk [vmem:[%s319] sm:$0x1] %vm318, %v317
    %s321 = scalar_lea.vmem %s1, 57
    %322 = vst.msk [vmem:[%s321] sm:$0x2] %vm318, %v317
    %s323 = scalar_lea.vmem %s1, 88
    %324 = vst.msk [vmem:[%s323] sm:$0x4] %vm318, %v317
    %s325 = scalar_lea.vmem %s1, 119
    %326 = vst.msk [vmem:[%s325] sm:$0x8] %vm318, %v317
    %v327 = vld [vmem:[#allocation0] sm:$0xf]
    %328 = vrot.lane.b32.xlu0 %v327, 101
    %v329 = vpop.permute.xlu0 %328
    %vm330 = vcmask 7168
    %s331 = scalar_lea.vmem %s1, 27
    %332 = vst.msk [vmem:[%s331] sm:$0x1] %vm330, %v329
    %s333 = scalar_lea.vmem %s1, 58
    %334 = vst.msk [vmem:[%s333] sm:$0x2] %vm330, %v329
    %s335 = scalar_lea.vmem %s1, 89
    %336 = vst.msk [vmem:[%s335] sm:$0x4] %vm330, %v329
    %s337 = scalar_lea.vmem %s1, 120
    %338 = vst.msk [vmem:[%s337] sm:$0x8] %vm330, %v329
    %v339 = vld [vmem:[#allocation0] sm:$0xf]
    %340 = vrot.lane.b32.xlu0 %v339, 100
    %v341 = vpop.permute.xlu0 %340
    %vm342 = vcmask 7168
    %s343 = scalar_lea.vmem %s1, 28
    %344 = vst.msk [vmem:[%s343] sm:$0x1] %vm342, %v341
    %s345 = scalar_lea.vmem %s1, 59
    %346 = vst.msk [vmem:[%s345] sm:$0x2] %vm342, %v341
    %s347 = scalar_lea.vmem %s1, 90
    %348 = vst.msk [vmem:[%s347] sm:$0x4] %vm342, %v341
    %s349 = scalar_lea.vmem %s1, 121
    %350 = vst.msk [vmem:[%s349] sm:$0x8] %vm342, %v341
    %v351 = vld [vmem:[#allocation0] sm:$0xf]
    %352 = vrot.lane.b32.xlu0 %v351, 99
    %v353 = vpop.permute.xlu0 %352
    %vm354 = vcmask 7168
    %s355 = scalar_lea.vmem %s1, 29
    %356 = vst.msk [vmem:[%s355] sm:$0x1] %vm354, %v353
    %s357 = scalar_lea.vmem %s1, 60
    %358 = vst.msk [vmem:[%s357] sm:$0x2] %vm354, %v353
    %s359 = scalar_lea.vmem %s1, 91
    %360 = vst.msk [vmem:[%s359] sm:$0x4] %vm354, %v353
    %s361 = scalar_lea.vmem %s1, 122
    %362 = vst.msk [vmem:[%s361] sm:$0x8] %vm354, %v353
    %v363 = vld [vmem:[#allocation0] sm:$0xf]
    %364 = vrot.lane.b32.xlu0 %v363, 98
    %v365 = vpop.permute.xlu0 %364
    %vm366 = vcmask 7168
    %s367 = scalar_lea.vmem %s1, 30
    %368 = vst.msk [vmem:[%s367] sm:$0x1] %vm366, %v365
    %s369 = scalar_lea.vmem %s1, 61
    %370 = vst.msk [vmem:[%s369] sm:$0x2] %vm366, %v365
    %s371 = scalar_lea.vmem %s1, 92
    %372 = vst.msk [vmem:[%s371] sm:$0x4] %vm366, %v365
    %s373 = scalar_lea.vmem %s1, 123
    %374 = vst.msk [vmem:[%s373] sm:$0x8] %vm366, %v365
    %v375 = vld [vmem:[#allocation0] sm:$0xf]
    %376 = vrot.lane.b32.xlu0 %v375, 97
    %v377 = vpop.permute.xlu0 %376
    %vm378 = vcmask 7168
    %s379 = scalar_lea.vmem %s1, 31
    %380 = vst.msk [vmem:[%s379] sm:$0x1] %vm378, %v377
    %s381 = scalar_lea.vmem %s1, 62
    %382 = vst.msk [vmem:[%s381] sm:$0x2] %vm378, %v377
    %s383 = scalar_lea.vmem %s1, 93
    %384 = vst.msk [vmem:[%s383] sm:$0x4] %vm378, %v377
    %s385 = scalar_lea.vmem %s1, 124
    %386 = vst.msk [vmem:[%s385] sm:$0x8] %vm378, %v377

// kernel: simple_cnn_forward.4
$region0: #{simple_cnn_forward.4}
  #allocation0 [shape = 'u32[]', space=smem, size = 0x4, offset = 0x4, fixed_abs, tag = 'smem constant byte address 0x4 - core index']
  #allocation1 [shape = 'u32[144,128]{1,0:T(1,128)}', space=vmem, size = 0x12000, scoped, tag = 'internal scratch']
  #allocation2 [shape = 'f32[480,112]{1,0:T(8,128)}', space=vmem, size = 0x3c000, scoped, tag = 'scratch operand']
  %s0 = inlined_call_operand.vmem [shape: f32[2,16,114,114], index: 0, kind: input, shape index: {}]
  %s1 = inlined_call_operand.vmem [shape: f32[256,480], index: 1, kind: input, shape index: {}]
  %s2 = inlined_call_operand.vmem [shape: f32[128,1], index: 2, kind: input, shape index: {}]
  %s3 = inlined_call_operand.vmem [shape: f32[112,56], index: 3, kind: input, shape index: {}]
  %s4 = inlined_call_operand.vmem [shape: f32[112,56], index: 4, kind: input, shape index: {}]
  %s5 = inlined_call_operand.vmem [shape: f32[2,32,56,56], index: 5, kind: output, shape index: {}]
  %s6 = sld [smem:[#allocation0]]
  $region60: #{simple_cnn_forward.4} parent=0
    _
  %s8 = ssub.s32 1, %s6
  %s9 = scalar_select 0, %s8, %s6
  loop: start=0, step=1, limit=4
  $region2: #{simple_cnn_forward.4} parent=0 // loop_pre_header
    _
  $region3: #{simple_cnn_forward.4} parent=0 // loop_header
    %s11 = sphi 0, %s15
    %p12 = scmp.ge.s32.totalorder %s11, 4
    %s21 = sphi 0, %s23
    %s24 = sphi 0, %s21
    %s25 = sphi 0, %s24
    %s41 = sphi 0, %s25
    %s45 = sphi 0, %s45
    %s47 = sphi 0, %s45
    %s48 = sphi 0, %s47
    %s62 = sphi 0, %s48
    %s66 = sphi 0, %s66
    %s68 = sphi 0, %s66
    %s69 = sphi 0, %s68
    %s83 = sphi 0, %s69
    %s87 = sphi 0, %s87
    %s89 = sphi 0, %s87
    %s90 = sphi 0, %s89
    %s104 = sphi 0, %s90
    %s108 = sphi 0, %s108
    %s110 = sphi 0, %s108
    %s111 = sphi 0, %s110
    %s125 = sphi 0, %s111
    %s131 = sphi 0, %s133
    %s134 = sphi 0, %s131
    %s135 = sphi 0, %s134
    %s151 = sphi 0, %s135
  $region4: #{simple_cnn_forward.4} parent=0 // loop_header_branch
    %14 = sbr.rel (%p12) target = $region8
  $region5: #{simple_cnn_forward.4} parent=0 // loop_body
    %s16 = ssub.s32 %s11, 1
    %s17 = ssub.s32 %s11, 2
    %s18 = sadd.s32 %s11, 1
    %s19 = ssub.s32 %s11, %s18
    %p20 = scmp.eq.s32.totalorder %s19, 0
    %s22 = sadd.s32 %s21, 1
    %s23 = scalar_select %p20, %s21, %s22
    %p26 = pneg %p20
    %p27 = scmp.eq.s32.totalorder %s11, 1
    %p28 = por %p26, %p27
    %p29 = scmp.ne.s32.totalorder %s21, %s24
    %p30 = scmp.eq.s32.totalorder %s11, 0
    %p31 = por %p29, %p30
    %p32 = scmp.ne.s32.totalorder %s21, %s24
    %p33 = scmp.eq.s32.totalorder %s16, 1
    %p34 = por %p32, %p33
    %p35 = scmp.ne.s32.totalorder %s24, %s25
    %p36 = scmp.eq.s32.totalorder %s16, 0
    %p37 = por %p35, %p36
    %p38 = scmp.ne.s32.totalorder %s24, %s25
    %p39 = scmp.eq.s32.totalorder %s17, 1
    %p40 = por %p38, %p39
    %p42 = scmp.ne.s32.totalorder %s25, %s41
    %p43 = scmp.eq.s32.totalorder %s17, 0
    %p44 = por %p42, %p43
    %s46 = sadd.s32 %s45, 1
    %p49 = scmp.eq.s32.totalorder %s11, 1
    %p50 = scmp.ne.s32.totalorder %s45, %s47
    %p51 = scmp.eq.s32.totalorder %s11, 0
    %p52 = por %p50, %p51
    %p53 = scmp.ne.s32.totalorder %s45, %s47
    %p54 = scmp.eq.s32.totalorder %s16, 1
    %p55 = por %p53, %p54
    %p56 = scmp.ne.s32.totalorder %s47, %s48
    %p57 = scmp.eq.s32.totalorder %s16, 0
    %p58 = por %p56, %p57
    %p59 = scmp.ne.s32.totalorder %s47, %s48
    %p60 = scmp.eq.s32.totalorder %s17, 1
    %p61 = por %p59, %p60
    %p63 = scmp.ne.s32.totalorder %s48, %s62
    %p64 = scmp.eq.s32.totalorder %s17, 0
    %p65 = por %p63, %p64
    %s67 = sadd.s32 %s66, 1
    %p70 = scmp.eq.s32.totalorder %s11, 1
    %p71 = scmp.ne.s32.totalorder %s66, %s68
    %p72 = scmp.eq.s32.totalorder %s11, 0
    %p73 = por %p71, %p72
    %p74 = scmp.ne.s32.totalorder %s66, %s68
    %p75 = scmp.eq.s32.totalorder %s16, 1
    %p76 = por %p74, %p75
    %p77 = scmp.ne.s32.totalorder %s68, %s69
    %p78 = scmp.eq.s32.totalorder %s16, 0
    %p79 = por %p77, %p78
    %p80 = scmp.ne.s32.totalorder %s68, %s69
    %p81 = scmp.eq.s32.totalorder %s17, 1
    %p82 = por %p80, %p81
    %p84 = scmp.ne.s32.totalorder %s69, %s83
    %p85 = scmp.eq.s32.totalorder %s17, 0
    %p86 = por %p84, %p85
    %s88 = sadd.s32 %s87, 1
    %p91 = scmp.eq.s32.totalorder %s11, 1
    %p92 = scmp.ne.s32.totalorder %s87, %s89
    %p93 = scmp.eq.s32.totalorder %s11, 0
    %p94 = por %p92, %p93
    %p95 = scmp.ne.s32.totalorder %s87, %s89
    %p96 = scmp.eq.s32.totalorder %s16, 1
    %p97 = por %p95, %p96
    %p98 = scmp.ne.s32.totalorder %s89, %s90
    %p99 = scmp.eq.s32.totalorder %s16, 0
    %p100 = por %p98, %p99
    %p101 = scmp.ne.s32.totalorder %s89, %s90
    %p102 = scmp.eq.s32.totalorder %s17, 1
    %p103 = por %p101, %p102
    %p105 = scmp.ne.s32.totalorder %s90, %s104
    %p106 = scmp.eq.s32.totalorder %s17, 0
    %p107 = por %p105, %p106
    %s109 = sadd.s32 %s108, 1
    %p112 = scmp.eq.s32.totalorder %s11, 1
    %p113 = scmp.ne.s32.totalorder %s108, %s110
    %p114 = scmp.eq.s32.totalorder %s11, 0
    %p115 = por %p113, %p114
    %p116 = scmp.ne.s32.totalorder %s108, %s110
    %p117 = scmp.eq.s32.totalorder %s16, 1
    %p118 = por %p116, %p117
    %p119 = scmp.ne.s32.totalorder %s110, %s111
    %p120 = scmp.eq.s32.totalorder %s16, 0
    %p121 = por %p119, %p120
    %p122 = scmp.ne.s32.totalorder %s110, %s111
    %p123 = scmp.eq.s32.totalorder %s17, 1
    %p124 = por %p122, %p123
    %p126 = scmp.ne.s32.totalorder %s111, %s125
    %p127 = scmp.eq.s32.totalorder %s17, 0
    %p128 = por %p126, %p127
    %s129 = ssub.s32 %s11, %s18
    %p130 = scmp.eq.s32.totalorder %s129, 0
    %s132 = sadd.s32 %s131, 1
    %s133 = scalar_select %p130, %s131, %s132
    %p136 = pneg %p130
    %p137 = scmp.eq.s32.totalorder %s11, 1
    %p138 = por %p136, %p137
    %p139 = scmp.ne.s32.totalorder %s131, %s134
    %p140 = scmp.eq.s32.totalorder %s11, 0
    %p141 = por %p139, %p140
    %p142 = scmp.ne.s32.totalorder %s131, %s134
    %p143 = scmp.eq.s32.totalorder %s16, 1
    %p144 = por %p142, %p143
    %p145 = scmp.ne.s32.totalorder %s134, %s135
    %p146 = scmp.eq.s32.totalorder %s16, 0
    %p147 = por %p145, %p146
    %p148 = scmp.ne.s32.totalorder %s134, %s135
    %p149 = scmp.eq.s32.totalorder %s17, 1
    %p150 = por %p148, %p149
    %p152 = scmp.ne.s32.totalorder %s135, %s151
    %p153 = scmp.eq.s32.totalorder %s17, 0
    %p154 = por %p152, %p153
    %p155 = scmp.le.s32.totalorder 1, %s11
    %p156 = scmp.lt.s32.totalorder %s11, 3
    %p157 = pnand %p155, %p156
    %p158 = pneg %p157
    // Predicated region
    $region9: #{simple_cnn_forward.4} parent=5 // pred_check
      _
    $region10: #{simple_cnn_forward.4} parent=5 // pred_check_branch
      %160 = sbr.rel (%p157) target = $region12
    $region11: #{simple_cnn_forward.4} parent=5 // pred_region
      %s161 = ssub.s32 %s11, 1
      // Predicated region
      $region13: #{simple_cnn_forward.4} parent=11 // pred_check
        %p162 = pneg %p58
      $region14: #{simple_cnn_forward.4} parent=11 // pred_check_branch
        %164 = sbr.rel (%p162) target = $region16
      $region15: #{simple_cnn_forward.4} parent=11 // pred_region
        _
      $region16: #{simple_cnn_forward.4} parent=11 // pred_fallthru
        _
      // Predicated region
      $region17: #{simple_cnn_forward.4} parent=11 // pred_check
        %p165 = pneg %p79
      $region18: #{simple_cnn_forward.4} parent=11 // pred_check_branch
        %167 = sbr.rel (%p165) target = $region20
      $region19: #{simple_cnn_forward.4} parent=11 // pred_region
        _
      $region20: #{simple_cnn_forward.4} parent=11 // pred_fallthru
        _
      // Predicated region
      $region21: #{simple_cnn_forward.4} parent=11 // pred_check
        %p168 = pneg %p100
      $region22: #{simple_cnn_forward.4} parent=11 // pred_check_branch
        %170 = sbr.rel (%p168) target = $region24
      $region23: #{simple_cnn_forward.4} parent=11 // pred_region
        _
      $region24: #{simple_cnn_forward.4} parent=11 // pred_fallthru
        _
      // Predicated region
      $region25: #{simple_cnn_forward.4} parent=11 // pred_check
        %p171 = pneg %p121
      $region26: #{simple_cnn_forward.4} parent=11 // pred_check_branch
        %173 = sbr.rel (%p171) target = $region28
      $region27: #{simple_cnn_forward.4} parent=11 // pred_region
        _
      $region28: #{simple_cnn_forward.4} parent=11 // pred_fallthru
        _
    $region12: #{simple_cnn_forward.4} parent=5 // pred_fallthru
      _
    %p174 = scmp.lt.s32.totalorder %s11, 2
    // Predicated region
    $region29: #{simple_cnn_forward.4} parent=5 // pred_check
      %p175 = pneg %p174
    $region30: #{simple_cnn_forward.4} parent=5 // pred_check_branch
      %177 = sbr.rel (%p175) target = $region32
    $region31: #{simple_cnn_forward.4} parent=5 // pred_region
      // Predicated region
      $region33: #{simple_cnn_forward.4} parent=31 // pred_check
        %p178 = pneg %p31
      $region34: #{simple_cnn_forward.4} parent=31 // pred_check_branch
        %180 = sbr.rel (%p178) target = $region36
      $region35: #{simple_cnn_forward.4} parent=31 // pred_region
        %p181 = scmp.lt.s32.totalorder %s11, 1
        %s182 = scalar_select %p181, %s11, 1
        %s183 = smul.addr %s182, 240
        %s184 = smul.addr %s183, 8
        %s185 = scalar_lea.vmem %s0, %s184
      $region36: #{simple_cnn_forward.4} parent=31 // pred_fallthru
        _
    $region32: #{simple_cnn_forward.4} parent=5 // pred_fallthru
      _
    %p186 = scmp.le.s32.totalorder 1, %s11
    %p187 = scmp.lt.s32.totalorder %s11, 3
    %p188 = pnand %p186, %p187
    %p189 = pneg %p188
    // Predicated region
    $region37: #{simple_cnn_forward.4} parent=5 // pred_check
      _
    $region38: #{simple_cnn_forward.4} parent=5 // pred_check_branch
      %191 = sbr.rel (%p188) target = $region40
    $region39: #{simple_cnn_forward.4} parent=5 // pred_region
      %s192 = ssub.s32 %s11, 1
      %p193 = scmp.lt.s32.totalorder %s16, 1
      %s194 = scalar_select %p193, %s16, 1
      %s195 = smul.addr %s194, 240
      %s196 = smul.addr %s195, 8
      %s197 = scalar_lea.vmem %s0, %s196
      %p198 = pneg %p37
      %p199 = pneg %p34
      %p200 = pneg %p58
      %p201 = pneg %p55
      %p202 = pneg %p79
      %p203 = pneg %p76
      %p204 = pneg %p100
      %p205 = pneg %p97
      %p206 = pneg %p121
      %p207 = pneg %p118
      %p208 = pneg %p147
      %p209 = pneg %p144
      %p210 = scmp.lt.s32.totalorder %s16, 1
      %s211 = scalar_select %p210, %s16, 1
      %s212 = smul.addr %s211, 224
      %s213 = smul.addr %s212, 8
      %s214 = scalar_lea.vmem %s5, %s213
      %p215 = scmp.lt.s32.totalorder %s16, 1
      %s216 = scalar_select %p215, %s16, 1
      %s217 = smul.addr %s216, 240
      %s218 = smul.addr %s217, 8
      %s219 = scalar_lea.vmem %s0, %s218
      %p220 = scmp.lt.s32.totalorder %s16, 1
      %s221 = scalar_select %p220, %s16, 1
      %s222 = smul.addr %s221, 224
      %s223 = smul.addr %s222, 8
      %s224 = scalar_lea.vmem %s5, %s223
      loop: start=0, step=1, limit=14
      $region41: #{simple_cnn_forward.4} parent=39 // loop_pre_header
        _
      $region42: #{simple_cnn_forward.4} parent=39 // loop_header
        %s226 = sphi 0, %s230
        %p227 = scmp.ge.s32.totalorder %s226, 14
      $region43: #{simple_cnn_forward.4} parent=39 // loop_header_branch
        %229 = sbr.rel (%p227) target = $region47
      $region44: #{simple_cnn_forward.4} parent=39 // loop_body
        %s231 = smul.u32 %s226, 8
        %s232 = smul.u32 %s226, 4
        %s233 = scalar_lea.vmem %s219, %s231
        %v234 = vld [vmem:[%s233] sm:$0xff]
        %v235 = vld [vmem:[%s233 + $0x8] sm:$0x3]
        %vm236 = vcmask 916480
        %237 = vst.msk [vmem:[#allocation2] sm:$0xff] %vm236, %v234
        %vm238 = vcmask 910336
        %239 = vst.msk [vmem:[#allocation2 + $0x8] sm:$0x3] %vm238, %v235
        %v240 = vld [vmem:[%s233] sm:$0xff]
        %v241 = vld [vmem:[%s233 + $0x8] sm:$0x3]
        %244 = vrot.lane.b32.xlu0 %v240, 127
        %v245 = vpop.permute.xlu0 %244
        %246 = vrot.lane.b32.xlu0 %v241, 127
        %v247 = vpop.permute.xlu0 %246
        %250 = vst.msk [vmem:[#allocation2 + $0xa] sm:$0xff] %vm236, %v245
        %251 = vst.msk [vmem:[#allocation2 + $0x12] sm:$0x3] %vm238, %v247
        %v252 = vld [vmem:[%s233] sm:$0xff]
        %v253 = vld [vmem:[%s233 + $0x8] sm:$0x3]
        %256 = vrot.lane.b32.xlu0 %v252, 126
        %v257 = vpop.permute.xlu0 %256
        %258 = vrot.lane.b32.xlu0 %v253, 126
        %v259 = vpop.permute.xlu0 %258
        %262 = vst.msk [vmem:[#allocation2 + $0x14] sm:$0xff] %vm236, %v257
        %263 = vst.msk [vmem:[#allocation2 + $0x1c] sm:$0x3] %vm238, %v259
        %s264 = sadd.s32 %s231, 120
        %s265 = scalar_lea.vmem %s219, %s264
        %v266 = vld [vmem:[%s265] sm:$0xff]
        %v267 = vld [vmem:[%s265 + $0x8] sm:$0x3]
        %268 = vst.msk [vmem:[#allocation2 + $0x1e] sm:$0xff] %vm236, %v266
        %269 = vst.msk [vmem:[#allocation2 + $0x26] sm:$0x3] %vm238, %v267
        %v270 = vld [vmem:[%s265] sm:$0xff]
        %v271 = vld [vmem:[%s265 + $0x8] sm:$0x3]
        %274 = vrot.lane.b32.xlu0 %v270, 127
        %v275 = vpop.permute.xlu0 %274
        %276 = vrot.lane.b32.xlu0 %v271, 127
        %v277 = vpop.permute.xlu0 %276
        %280 = vst.msk [vmem:[#allocation2 + $0x28] sm:$0xff] %vm236, %v275
        %281 = vst.msk [vmem:[#allocation2 + $0x30] sm:$0x3] %vm238, %v277
        %v282 = vld [vmem:[%s265] sm:$0xff]
        %v283 = vld [vmem:[%s265 + $0x8] sm:$0x3]
        %286 = vrot.lane.b32.xlu0 %v282, 126
        %v287 = vpop.permute.xlu0 %286
        %288 = vrot.lane.b32.xlu0 %v283, 126
        %v289 = vpop.permute.xlu0 %288
        %292 = vst.msk [vmem:[#allocation2 + $0x32] sm:$0xff] %vm236, %v287
        %293 = vst.msk [vmem:[#allocation2 + $0x3a] sm:$0x3] %vm238, %v289
        %s294 = sadd.s32 %s231, 240
        %s295 = scalar_lea.vmem %s219, %s294
        %v296 = vld [vmem:[%s295] sm:$0xff]
        %v297 = vld [vmem:[%s295 + $0x8] sm:$0x3]
        %298 = vst.msk [vmem:[#allocation2 + $0x3c] sm:$0xff] %vm236, %v296
        %299 = vst.msk [vmem:[#allocation2 + $0x44] sm:$0x3] %vm238, %v297
        %v300 = vld [vmem:[%s295] sm:$0xff]
        %v301 = vld [vmem:[%s295 + $0x8] sm:$0x3]
        %304 = vrot.lane.b32.xlu0 %v300, 127
        %v305 = vpop.permute.xlu0 %304
        %306 = vrot.lane.b32.xlu0 %v301, 127
        %v307 = vpop.permute.xlu0 %306
        %310 = vst.msk [vmem:[#allocation2 + $0x46] sm:$0xff] %vm236, %v305
        %311 = vst.msk [vmem:[#allocation2 + $0x4e] sm:$0x3] %vm238, %v307
        %v312 = vld [vmem:[%s295] sm:$0xff]
        %v313 = vld [vmem:[%s295 + $0x8] sm:$0x3]
        %316 = vrot.lane.b32.xlu0 %v312, 126
        %v317 = vpop.permute.xlu0 %316
        %318 = vrot.lane.b32.xlu0 %v313, 126
        %v319 = vpop.permute.xlu0 %318
        %322 = vst.msk [vmem:[#allocation2 + $0x50] sm:$0xff] %vm236, %v317
        %323 = vst.msk [vmem:[#allocation2 + $0x58] sm:$0x3] %vm238, %v319
        %s324 = sadd.s32 %s231, 360
        %s325 = scalar_lea.vmem %s219, %s324
        %v326 = vld [vmem:[%s325] sm:$0xff]
        %v327 = vld [vmem:[%s325 + $0x8] sm:$0x3]
        %328 = vst.msk [vmem:[#allocation2 + $0x5a] sm:$0xff] %vm236, %v326
        %329 = vst.msk [vmem:[#allocation2 + $0x62] sm:$0x3] %vm238, %v327
        %v330 = vld [vmem:[%s325] sm:$0xff]
        %v331 = vld [vmem:[%s325 + $0x8] sm:$0x3]
        %334 = vrot.lane.b32.xlu0 %v330, 127
        %v335 = vpop.permute.xlu0 %334
        %336 = vrot.lane.b32.xlu0 %v331, 127
        %v337 = vpop.permute.xlu0 %336
        %340 = vst.msk [vmem:[#allocation2 + $0x64] sm:$0xff] %vm236, %v335
        %341 = vst.msk [vmem:[#allocation2 + $0x6c] sm:$0x3] %vm238, %v337
        %v342 = vld [vmem:[%s325] sm:$0xff]
        %v343 = vld [vmem:[%s325 + $0x8] sm:$0x3]
        %346 = vrot.lane.b32.xlu0 %v342, 126
        %v347 = vpop.permute.xlu0 %346
        %348 = vrot.lane.b32.xlu0 %v343, 126
        %v349 = vpop.permute.xlu0 %348
        %352 = vst.msk [vmem:[#allocation2 + $0x6e] sm:$0xff] %vm236, %v347
        %353 = vst.msk [vmem:[#allocation2 + $0x76] sm:$0x3] %vm238, %v349
        %s354 = sadd.s32 %s231, 480
        %s355 = scalar_lea.vmem %s219, %s354
        %v356 = vld [vmem:[%s355] sm:$0xff]
        %v357 = vld [vmem:[%s355 + $0x8] sm:$0x3]
        %358 = vst.msk [vmem:[#allocation2 + $0x78] sm:$0xff] %vm236, %v356
        %359 = vst.msk [vmem:[#allocation2 + $0x80] sm:$0x3] %vm238, %v357
        %v360 = vld [vmem:[%s355] sm:$0xff]
        %v361 = vld [vmem:[%s355 + $0x8] sm:$0x3]
        %364 = vrot.lane.b32.xlu0 %v360, 127
        %v365 = vpop.permute.xlu0 %364
        %366 = vrot.lane.b32.xlu0 %v361, 127
        %v367 = vpop.permute.xlu0 %366
        %370 = vst.msk [vmem:[#allocation2 + $0x82] sm:$0xff] %vm236, %v365
        %371 = vst.msk [vmem:[#allocation2 + $0x8a] sm:$0x3] %vm238, %v367
        %v372 = vld [vmem:[%s355] sm:$0xff]
        %v373 = vld [vmem:[%s355 + $0x8] sm:$0x3]
        %376 = vrot.lane.b32.xlu0 %v372, 126
        %v377 = vpop.permute.xlu0 %376
        %378 = vrot.lane.b32.xlu0 %v373, 126
        %v379 = vpop.permute.xlu0 %378
        %382 = vst.msk [vmem:[#allocation2 + $0x8c] sm:$0xff] %vm236, %v377
        %383 = vst.msk [vmem:[#allocation2 + $0x94] sm:$0x3] %vm238, %v379
        %s384 = sadd.s32 %s231, 600
        %s385 = scalar_lea.vmem %s219, %s384
        %v386 = vld [vmem:[%s385] sm:$0xff]
        %v387 = vld [vmem:[%s385 + $0x8] sm:$0x3]
        %388 = vst.msk [vmem:[#allocation2 + $0x96] sm:$0xff] %vm236, %v386
        %389 = vst.msk [vmem:[#allocation2 + $0x9e] sm:$0x3] %vm238, %v387
        %v390 = vld [vmem:[%s385] sm:$0xff]
        %v391 = vld [vmem:[%s385 + $0x8] sm:$0x3]
        %394 = vrot.lane.b32.xlu0 %v390, 127
        %v395 = vpop.permute.xlu0 %394
        %396 = vrot.lane.b32.xlu0 %v391, 127
        %v397 = vpop.permute.xlu0 %396
        %400 = vst.msk [vmem:[#allocation2 + $0xa0] sm:$0xff] %vm236, %v395
        %401 = vst.msk [vmem:[#allocation2 + $0xa8] sm:$0x3] %vm238, %v397
        %v402 = vld [vmem:[%s385] sm:$0xff]
        %v403 = vld [vmem:[%s385 + $0x8] sm:$0x3]
        %406 = vrot.lane.b32.xlu0 %v402, 126
        %v407 = vpop.permute.xlu0 %406
        %408 = vrot.lane.b32.xlu0 %v403, 126
        %v409 = vpop.permute.xlu0 %408
        %412 = vst.msk [vmem:[#allocation2 + $0xaa] sm:$0xff] %vm236, %v407
        %413 = vst.msk [vmem:[#allocation2 + $0xb2] sm:$0x3] %vm238, %v409
        %s414 = sadd.s32 %s231, 720
        %s415 = scalar_lea.vmem %s219, %s414
        %v416 = vld [vmem:[%s415] sm:$0xff]
        %v417 = vld [vmem:[%s415 + $0x8] sm:$0x3]
        %418 = vst.msk [vmem:[#allocation2 + $0xb4] sm:$0xff] %vm236, %v416
        %419 = vst.msk [vmem:[#allocation2 + $0xbc] sm:$0x3] %vm238, %v417
        %v420 = vld [vmem:[%s415] sm:$0xff]
        %v421 = vld [vmem:[%s415 + $0x8] sm:$0x3]
        %424 = vrot.lane.b32.xlu0 %v420, 127
        %v425 = vpop.permute.xlu0 %424
        %426 = vrot.lane.b32.xlu0 %v421, 127
        %v427 = vpop.permute.xlu0 %426
        %430 = vst.msk [vmem:[#allocation2 + $0xbe] sm:$0xff] %vm236, %v425
        %431 = vst.msk [vmem:[#allocation2 + $0xc6] sm:$0x3] %vm238, %v427
        %v432 = vld [vmem:[%s415] sm:$0xff]
        %v433 = vld [vmem:[%s415 + $0x8] sm:$0x3]
        %436 = vrot.lane.b32.xlu0 %v432, 126
        %v437 = vpop.permute.xlu0 %436
        %438 = vrot.lane.b32.xlu0 %v433, 126
        %v439 = vpop.permute.xlu0 %438
        %442 = vst.msk [vmem:[#allocation2 + $0xc8] sm:$0xff] %vm236, %v437
        %443 = vst.msk [vmem:[#allocation2 + $0xd0] sm:$0x3] %vm238, %v439
        %s444 = sadd.s32 %s231, 840
        %s445 = scalar_lea.vmem %s219, %s444
        %v446 = vld [vmem:[%s445] sm:$0xff]
        %v447 = vld [vmem:[%s445 + $0x8] sm:$0x3]
        %448 = vst.msk [vmem:[#allocation2 + $0xd2] sm:$0xff] %vm236, %v446
        %449 = vst.msk [vmem:[#allocation2 + $0xda] sm:$0x3] %vm238, %v447
        %v450 = vld [vmem:[%s445] sm:$0xff]
        %v451 = vld [vmem:[%s445 + $0x8] sm:$0x3]
        %454 = vrot.lane.b32.xlu0 %v450, 127
        %v455 = vpop.permute.xlu0 %454
        %456 = vrot.lane.b32.xlu0 %v451, 127
        %v457 = vpop.permute.xlu0 %456
        %460 = vst.msk [vmem:[#allocation2 + $0xdc] sm:$0xff] %vm236, %v455
        %461 = vst.msk [vmem:[#allocation2 + $0xe4] sm:$0x3] %vm238, %v457
        %v462 = vld [vmem:[%s445] sm:$0xff]
        %v463 = vld [vmem:[%s445 + $0x8] sm:$0x3]
        %466 = vrot.lane.b32.xlu0 %v462, 126
        %v467 = vpop.permute.xlu0 %466
        %468 = vrot.lane.b32.xlu0 %v463, 126
        %v469 = vpop.permute.xlu0 %468
        %472 = vst.msk [vmem:[#allocation2 + $0xe6] sm:$0xff] %vm236, %v467
        %473 = vst.msk [vmem:[#allocation2 + $0xee] sm:$0x3] %vm238, %v469
        %s474 = sadd.s32 %s231, 960
        %s475 = scalar_lea.vmem %s219, %s474
        %v476 = vld [vmem:[%s475] sm:$0xff]
        %v477 = vld [vmem:[%s475 + $0x8] sm:$0x3]
        %478 = vst.msk [vmem:[#allocation2 + $0xf0] sm:$0xff] %vm236, %v476
        %479 = vst.msk [vmem:[#allocation2 + $0xf8] sm:$0x3] %vm238, %v477
        %v480 = vld [vmem:[%s475] sm:$0xff]
        %v481 = vld [vmem:[%s475 + $0x8] sm:$0x3]
        %484 = vrot.lane.b32.xlu0 %v480, 127
        %v485 = vpop.permute.xlu0 %484
        %486 = vrot.lane.b32.xlu0 %v481, 127
        %v487 = vpop.permute.xlu0 %486
        %490 = vst.msk [vmem:[#allocation2 + $0xfa] sm:$0xff] %vm236, %v485
        %491 = vst.msk [vmem:[#allocation2 + $0x102] sm:$0x3] %vm238, %v487
        %v492 = vld [vmem:[%s475] sm:$0xff]
        %v493 = vld [vmem:[%s475 + $0x8] sm:$0x3]
        %496 = vrot.lane.b32.xlu0 %v492, 126
        %v497 = vpop.permute.xlu0 %496
        %498 = vrot.lane.b32.xlu0 %v493, 126
        %v499 = vpop.permute.xlu0 %498
        %502 = vst.msk [vmem:[#allocation2 + $0x104] sm:$0xff] %vm236, %v497
        %503 = vst.msk [vmem:[#allocation2 + $0x10c] sm:$0x3] %vm238, %v499
        %s504 = sadd.s32 %s231, 1080
        %s505 = scalar_lea.vmem %s219, %s504
        %v506 = vld [vmem:[%s505] sm:$0xff]
        %v507 = vld [vmem:[%s505 + $0x8] sm:$0x3]
        %508 = vst.msk [vmem:[#allocation2 + $0x10e] sm:$0xff] %vm236, %v506
        %509 = vst.msk [vmem:[#allocation2 + $0x116] sm:$0x3] %vm238, %v507
        %v510 = vld [vmem:[%s505] sm:$0xff]
        %v511 = vld [vmem:[%s505 + $0x8] sm:$0x3]
        %514 = vrot.lane.b32.xlu0 %v510, 127
        %v515 = vpop.permute.xlu0 %514
        %516 = vrot.lane.b32.xlu0 %v511, 127
        %v517 = vpop.permute.xlu0 %516
        %520 = vst.msk [vmem:[#allocation2 + $0x118] sm:$0xff] %vm236, %v515
        %521 = vst.msk [vmem:[#allocation2 + $0x120] sm:$0x3] %vm238, %v517
        %v522 = vld [vmem:[%s505] sm:$0xff]
        %v523 = vld [vmem:[%s505 + $0x8] sm:$0x3]
        %526 = vrot.lane.b32.xlu0 %v522, 126
        %v527 = vpop.permute.xlu0 %526
        %528 = vrot.lane.b32.xlu0 %v523, 126
        %v529 = vpop.permute.xlu0 %528
        %532 = vst.msk [vmem:[#allocation2 + $0x122] sm:$0xff] %vm236, %v527
        %533 = vst.msk [vmem:[#allocation2 + $0x12a] sm:$0x3] %vm238, %v529
        %s534 = sadd.s32 %s231, 1200
        %s535 = scalar_lea.vmem %s219, %s534
        %v536 = vld [vmem:[%s535] sm:$0xff]
        %v537 = vld [vmem:[%s535 + $0x8] sm:$0x3]
        %538 = vst.msk [vmem:[#allocation2 + $0x12c] sm:$0xff] %vm236, %v536
        %539 = vst.msk [vmem:[#allocation2 + $0x134] sm:$0x3] %vm238, %v537
        %v540 = vld [vmem:[%s535] sm:$0xff]
        %v541 = vld [vmem:[%s535 + $0x8] sm:$0x3]
        %544 = vrot.lane.b32.xlu0 %v540, 127
        %v545 = vpop.permute.xlu0 %544
        %546 = vrot.lane.b32.xlu0 %v541, 127
        %v547 = vpop.permute.xlu0 %546
        %550 = vst.msk [vmem:[#allocation2 + $0x136] sm:$0xff] %vm236, %v545
        %551 = vst.msk [vmem:[#allocation2 + $0x13e] sm:$0x3] %vm238, %v547
        %v552 = vld [vmem:[%s535] sm:$0xff]
        %v553 = vld [vmem:[%s535 + $0x8] sm:$0x3]
        %556 = vrot.lane.b32.xlu0 %v552, 126
        %v557 = vpop.permute.xlu0 %556
        %558 = vrot.lane.b32.xlu0 %v553, 126
        %v559 = vpop.permute.xlu0 %558
        %562 = vst.msk [vmem:[#allocation2 + $0x140] sm:$0xff] %vm236, %v557
        %563 = vst.msk [vmem:[#allocation2 + $0x148] sm:$0x3] %vm238, %v559
        %s564 = sadd.s32 %s231, 1320
        %s565 = scalar_lea.vmem %s219, %s564
        %v566 = vld [vmem:[%s565] sm:$0xff]
        %v567 = vld [vmem:[%s565 + $0x8] sm:$0x3]
        %568 = vst.msk [vmem:[#allocation2 + $0x14a] sm:$0xff] %vm236, %v566
        %569 = vst.msk [vmem:[#allocation2 + $0x152] sm:$0x3] %vm238, %v567
        %v570 = vld [vmem:[%s565] sm:$0xff]
        %v571 = vld [vmem:[%s565 + $0x8] sm:$0x3]
        %574 = vrot.lane.b32.xlu0 %v570, 127
        %v575 = vpop.permute.xlu0 %574
        %576 = vrot.lane.b32.xlu0 %v571, 127
        %v577 = vpop.permute.xlu0 %576
        %580 = vst.msk [vmem:[#allocation2 + $0x154] sm:$0xff] %vm236, %v575
        %581 = vst.msk [vmem:[#allocation2 + $0x15c] sm:$0x3] %vm238, %v577
        %v582 = vld [vmem:[%s565] sm:$0xff]
        %v583 = vld [vmem:[%s565 + $0x8] sm:$0x3]
        %586 = vrot.lane.b32.xlu0 %v582, 126
        %v587 = vpop.permute.xlu0 %586
        %588 = vrot.lane.b32.xlu0 %v583, 126
        %v589 = vpop.permute.xlu0 %588
        %592 = vst.msk [vmem:[#allocation2 + $0x15e] sm:$0xff] %vm236, %v587
        %593 = vst.msk [vmem:[#allocation2 + $0x166] sm:$0x3] %vm238, %v589
        %s594 = sadd.s32 %s231, 1440
        %s595 = scalar_lea.vmem %s219, %s594
        %v596 = vld [vmem:[%s595] sm:$0xff]
        %v597 = vld [vmem:[%s595 + $0x8] sm:$0x3]
        %598 = vst.msk [vmem:[#allocation2 + $0x168] sm:$0xff] %vm236, %v596
        %599 = vst.msk [vmem:[#allocation2 + $0x170] sm:$0x3] %vm238, %v597
        %v600 = vld [vmem:[%s595] sm:$0xff]
        %v601 = vld [vmem:[%s595 + $0x8] sm:$0x3]
        %604 = vrot.lane.b32.xlu0 %v600, 127
        %v605 = vpop.permute.xlu0 %604
        %606 = vrot.lane.b32.xlu0 %v601, 127
        %v607 = vpop.permute.xlu0 %606
        %610 = vst.msk [vmem:[#allocation2 + $0x172] sm:$0xff] %vm236, %v605
        %611 = vst.msk [vmem:[#allocation2 + $0x17a] sm:$0x3] %vm238, %v607
        %v612 = vld [vmem:[%s595] sm:$0xff]
        %v613 = vld [vmem:[%s595 + $0x8] sm:$0x3]
        %616 = vrot.lane.b32.xlu0 %v612, 126
        %v617 = vpop.permute.xlu0 %616
        %618 = vrot.lane.b32.xlu0 %v613, 126
        %v619 = vpop.permute.xlu0 %618
        %622 = vst.msk [vmem:[#allocation2 + $0x17c] sm:$0xff] %vm236, %v617
        %623 = vst.msk [vmem:[#allocation2 + $0x184] sm:$0x3] %vm238, %v619
        %s624 = sadd.s32 %s231, 1560
        %s625 = scalar_lea.vmem %s219, %s624
        %v626 = vld [vmem:[%s625] sm:$0xff]
        %v627 = vld [vmem:[%s625 + $0x8] sm:$0x3]
        %628 = vst.msk [vmem:[#allocation2 + $0x186] sm:$0xff] %vm236, %v626
        %629 = vst.msk [vmem:[#allocation2 + $0x18e] sm:$0x3] %vm238, %v627
        %v630 = vld [vmem:[%s625] sm:$0xff]
        %v631 = vld [vmem:[%s625 + $0x8] sm:$0x3]
        %634 = vrot.lane.b32.xlu0 %v630, 127
        %v635 = vpop.permute.xlu0 %634
        %636 = vrot.lane.b32.xlu0 %v631, 127
        %v637 = vpop.permute.xlu0 %636
        %640 = vst.msk [vmem:[#allocation2 + $0x190] sm:$0xff] %vm236, %v635
        %641 = vst.msk [vmem:[#allocation2 + $0x198] sm:$0x3] %vm238, %v637
        %v642 = vld [vmem:[%s625] sm:$0xff]
        %v643 = vld [vmem:[%s625 + $0x8] sm:$0x3]
        %646 = vrot.lane.b32.xlu0 %v642, 126
        %v647 = vpop.permute.xlu0 %646
        %648 = vrot.lane.b32.xlu0 %v643, 126
        %v649 = vpop.permute.xlu0 %648
        %652 = vst.msk [vmem:[#allocation2 + $0x19a] sm:$0xff] %vm236, %v647
        %653 = vst.msk [vmem:[#allocation2 + $0x1a2] sm:$0x3] %vm238, %v649
        %s654 = sadd.s32 %s231, 1680
        %s655 = scalar_lea.vmem %s219, %s654
        %v656 = vld [vmem:[%s655] sm:$0xff]
        %v657 = vld [vmem:[%s655 + $0x8] sm:$0x3]
        %658 = vst.msk [vmem:[#allocation2 + $0x1a4] sm:$0xff] %vm236, %v656
        %659 = vst.msk [vmem:[#allocation2 + $0x1ac] sm:$0x3] %vm238, %v657
        %v660 = vld [vmem:[%s655] sm:$0xff]
        %v661 = vld [vmem:[%s655 + $0x8] sm:$0x3]
        %664 = vrot.lane.b32.xlu0 %v660, 127
        %v665 = vpop.permute.xlu0 %664
        %666 = vrot.lane.b32.xlu0 %v661, 127
        %v667 = vpop.permute.xlu0 %666
        %670 = vst.msk [vmem:[#allocation2 + $0x1ae] sm:$0xff] %vm236, %v665
        %671 = vst.msk [vmem:[#allocation2 + $0x1b6] sm:$0x3] %vm238, %v667
        %v672 = vld [vmem:[%s655] sm:$0xff]
        %v673 = vld [vmem:[%s655 + $0x8] sm:$0x3]
        %676 = vrot.lane.b32.xlu0 %v672, 126
        %v677 = vpop.permute.xlu0 %676
        %678 = vrot.lane.b32.xlu0 %v673, 126
        %v679 = vpop.permute.xlu0 %678
        %682 = vst.msk [vmem:[#allocation2 + $0x1b8] sm:$0xff] %vm236, %v677
        %683 = vst.msk [vmem:[#allocation2 + $0x1c0] sm:$0x3] %vm238, %v679
        %s684 = sadd.s32 %s231, 1800
        %s685 = scalar_lea.vmem %s219, %s684
        %v686 = vld [vmem:[%s685] sm:$0xff]
        %v687 = vld [vmem:[%s685 + $0x8] sm:$0x3]
        %688 = vst.msk [vmem:[#allocation2 + $0x1c2] sm:$0xff] %vm236, %v686
        %689 = vst.msk [vmem:[#allocation2 + $0x1ca] sm:$0x3] %vm238, %v687
        %v690 = vld [vmem:[%s685] sm:$0xff]
        %v691 = vld [vmem:[%s685 + $0x8] sm:$0x3]
        %694 = vrot.lane.b32.xlu0 %v690, 127
        %v695 = vpop.permute.xlu0 %694
        %696 = vrot.lane.b32.xlu0 %v691, 127
        %v697 = vpop.permute.xlu0 %696
        %700 = vst.msk [vmem:[#allocation2 + $0x1cc] sm:$0xff] %vm236, %v695
        %701 = vst.msk [vmem:[#allocation2 + $0x1d4] sm:$0x3] %vm238, %v697
        %v702 = vld [vmem:[%s685] sm:$0xff]
        %v703 = vld [vmem:[%s685 + $0x8] sm:$0x3]
        %706 = vrot.lane.b32.xlu0 %v702, 126
        %v707 = vpop.permute.xlu0 %706
        %708 = vrot.lane.b32.xlu0 %v703, 126
        %v709 = vpop.permute.xlu0 %708
        %712 = vst.msk [vmem:[#allocation2 + $0x1d6] sm:$0xff] %vm236, %v707
        %713 = vst.msk [vmem:[#allocation2 + $0x1de] sm:$0x3] %vm238, %v709
        %v714 = vld [vmem:[%s1] sm:$0xff]
        %v715 = vld [vmem:[%s1 + $0x8] sm:$0xff]
        %v716 = vld [vmem:[%s1 + $0x10] sm:$0xff]
        %v717 = vld [vmem:[%s1 + $0x18] sm:$0xff]
        %v718 = vld [vmem:[%s1 + $0x20] sm:$0xff]
        %v719 = vld [vmem:[%s1 + $0x28] sm:$0xff]
        %v720 = vld [vmem:[%s1 + $0x30] sm:$0xff]
        %v721 = vld [vmem:[%s1 + $0x38] sm:$0xff]
        %v722 = vld [vmem:[%s1 + $0x40] sm:$0xff]
        %v723 = vld [vmem:[%s1 + $0x48] sm:$0xff]
        %v724 = vld [vmem:[%s1 + $0x50] sm:$0xff]
        %v725 = vld [vmem:[%s1 + $0x58] sm:$0xff]
        %v726 = vld [vmem:[%s1 + $0x60] sm:$0xff]
        %v727 = vld [vmem:[%s1 + $0x68] sm:$0xff]
        %v728 = vld [vmem:[%s1 + $0x70] sm:$0xff]
        %v729 = vld [vmem:[%s1 + $0x78] sm:$0xff]
        %v730 = vld [vmem:[%s1 + $0x80] sm:$0xff]
        %v731 = vld [vmem:[%s1 + $0x88] sm:$0xff]
        %v732 = vld [vmem:[%s1 + $0x90] sm:$0xff]
        %v733 = vld [vmem:[%s1 + $0x98] sm:$0xff]
        %v734 = vld [vmem:[%s1 + $0xa0] sm:$0xff]
        %v735 = vld [vmem:[%s1 + $0xa8] sm:$0xff]
        %v736 = vld [vmem:[%s1 + $0xb0] sm:$0xff]
        %v737 = vld [vmem:[%s1 + $0xb8] sm:$0xff]
        %v738 = vld [vmem:[%s1 + $0xc0] sm:$0xff]
        %v739 = vld [vmem:[%s1 + $0xc8] sm:$0xff]
        %v740 = vld [vmem:[%s1 + $0xd0] sm:$0xff]
        %v741 = vld [vmem:[%s1 + $0xd8] sm:$0xff]
        %v742 = vld [vmem:[%s1 + $0xe0] sm:$0xff]
        %v743 = vld [vmem:[%s1 + $0xe8] sm:$0xff]
        %v744 = vld [vmem:[%s1 + $0xf0] sm:$0xff]
        %v745 = vld [vmem:[%s1 + $0xf8] sm:$0xff]
        %v746 = vld [vmem:[%s1 + $0x100] sm:$0xff]
        %v747 = vld [vmem:[%s1 + $0x108] sm:$0xff]
        %v748 = vld [vmem:[%s1 + $0x110] sm:$0xff]
        %v749 = vld [vmem:[%s1 + $0x118] sm:$0xff]
        %v750 = vld [vmem:[%s1 + $0x120] sm:$0xff]
        %v751 = vld [vmem:[%s1 + $0x128] sm:$0xff]
        %v752 = vld [vmem:[%s1 + $0x130] sm:$0xff]
        %v753 = vld [vmem:[%s1 + $0x138] sm:$0xff]
        %v754 = vld [vmem:[%s1 + $0x140] sm:$0xff]
        %v755 = vld [vmem:[%s1 + $0x148] sm:$0xff]
        %v756 = vld [vmem:[%s1 + $0x150] sm:$0xff]
        %v757 = vld [vmem:[%s1 + $0x158] sm:$0xff]
        %v758 = vld [vmem:[%s1 + $0x160] sm:$0xff]
        %v759 = vld [vmem:[%s1 + $0x168] sm:$0xff]
        %v760 = vld [vmem:[%s1 + $0x170] sm:$0xff]
        %v761 = vld [vmem:[%s1 + $0x178] sm:$0xff]
        %v762 = vld [vmem:[%s1 + $0x180] sm:$0xff]
        %v763 = vld [vmem:[%s1 + $0x188] sm:$0xff]
        %v764 = vld [vmem:[%s1 + $0x190] sm:$0xff]
        %v765 = vld [vmem:[%s1 + $0x198] sm:$0xff]
        %v766 = vld [vmem:[%s1 + $0x1a0] sm:$0xff]
        %v767 = vld [vmem:[%s1 + $0x1a8] sm:$0xff]
        %v768 = vld [vmem:[%s1 + $0x1b0] sm:$0xff]
        %v769 = vld [vmem:[%s1 + $0x1b8] sm:$0xff]
        %v770 = vld [vmem:[%s1 + $0x1c0] sm:$0xff]
        %v771 = vld [vmem:[%s1 + $0x1c8] sm:$0xff]
        %v772 = vld [vmem:[%s1 + $0x1d0] sm:$0xff]
        %v773 = vld [vmem:[%s1 + $0x1d8] sm:$0xff]
        %v774 = vld [vmem:[%s1 + $0x1e0] sm:$0xff]
        %v775 = vld [vmem:[%s1 + $0x1e8] sm:$0xff]
        %v776 = vld [vmem:[%s1 + $0x1f0] sm:$0xff]
        %v777 = vld [vmem:[%s1 + $0x1f8] sm:$0xff]
        %v778 = vld [vmem:[%s1 + $0x200] sm:$0xff]
        %v779 = vld [vmem:[%s1 + $0x208] sm:$0xff]
        %v780 = vld [vmem:[%s1 + $0x210] sm:$0xff]
        %v781 = vld [vmem:[%s1 + $0x218] sm:$0xff]
        %v782 = vld [vmem:[%s1 + $0x220] sm:$0xff]
        %v783 = vld [vmem:[%s1 + $0x228] sm:$0xff]
        %v784 = vld [vmem:[%s1 + $0x230] sm:$0xff]
        %v785 = vld [vmem:[%s1 + $0x238] sm:$0xff]
        %v786 = vld [vmem:[%s1 + $0x240] sm:$0xff]
        %v787 = vld [vmem:[%s1 + $0x248] sm:$0xff]
        %v788 = vld [vmem:[%s1 + $0x250] sm:$0xff]
        %v789 = vld [vmem:[%s1 + $0x258] sm:$0xff]
        %v790 = vld [vmem:[%s1 + $0x260] sm:$0xff]
        %v791 = vld [vmem:[%s1 + $0x268] sm:$0xff]
        %v792 = vld [vmem:[%s1 + $0x270] sm:$0xff]
        %v793 = vld [vmem:[%s1 + $0x278] sm:$0xff]
        %v794 = vld [vmem:[%s1 + $0x280] sm:$0xff]
        %v795 = vld [vmem:[%s1 + $0x288] sm:$0xff]
        %v796 = vld [vmem:[%s1 + $0x290] sm:$0xff]
        %v797 = vld [vmem:[%s1 + $0x298] sm:$0xff]
        %v798 = vld [vmem:[%s1 + $0x2a0] sm:$0xff]
        %v799 = vld [vmem:[%s1 + $0x2a8] sm:$0xff]
        %v800 = vld [vmem:[%s1 + $0x2b0] sm:$0xff]
        %v801 = vld [vmem:[%s1 + $0x2b8] sm:$0xff]
        %v802 = vld [vmem:[%s1 + $0x2c0] sm:$0xff]
        %v803 = vld [vmem:[%s1 + $0x2c8] sm:$0xff]
        %v804 = vld [vmem:[%s1 + $0x2d0] sm:$0xff]
        %v805 = vld [vmem:[%s1 + $0x2d8] sm:$0xff]
        %v806 = vld [vmem:[%s1 + $0x2e0] sm:$0xff]
        %v807 = vld [vmem:[%s1 + $0x2e8] sm:$0xff]
        %v808 = vld [vmem:[%s1 + $0x2f0] sm:$0xff]
        %v809 = vld [vmem:[%s1 + $0x2f8] sm:$0xff]
        %v810 = vld [vmem:[%s1 + $0x300] sm:$0xff]
        %v811 = vld [vmem:[%s1 + $0x308] sm:$0xff]
        %v812 = vld [vmem:[%s1 + $0x310] sm:$0xff]
        %v813 = vld [vmem:[%s1 + $0x318] sm:$0xff]
        %v814 = vld [vmem:[%s1 + $0x320] sm:$0xff]
        %v815 = vld [vmem:[%s1 + $0x328] sm:$0xff]
        %v816 = vld [vmem:[%s1 + $0x330] sm:$0xff]
        %v817 = vld [vmem:[%s1 + $0x338] sm:$0xff]
        %v818 = vld [vmem:[%s1 + $0x340] sm:$0xff]
        %v819 = vld [vmem:[%s1 + $0x348] sm:$0xff]
        %v820 = vld [vmem:[%s1 + $0x350] sm:$0xff]
        %v821 = vld [vmem:[%s1 + $0x358] sm:$0xff]
        %v822 = vld [vmem:[%s1 + $0x360] sm:$0xff]
        %v823 = vld [vmem:[%s1 + $0x368] sm:$0xff]
        %v824 = vld [vmem:[%s1 + $0x370] sm:$0xff]
        %v825 = vld [vmem:[%s1 + $0x378] sm:$0xff]
        %v826 = vld [vmem:[%s1 + $0x380] sm:$0xff]
        %v827 = vld [vmem:[%s1 + $0x388] sm:$0xff]
        %v828 = vld [vmem:[%s1 + $0x390] sm:$0xff]
        %v829 = vld [vmem:[%s1 + $0x398] sm:$0xff]
        %v830 = vld [vmem:[%s1 + $0x3a0] sm:$0xff]
        %v831 = vld [vmem:[%s1 + $0x3a8] sm:$0xff]
        %v832 = vld [vmem:[%s1 + $0x3b0] sm:$0xff]
        %v833 = vld [vmem:[%s1 + $0x3b8] sm:$0xff]
        %v834 = vld [vmem:[%s1 + $0x3c0] sm:$0xff]
        %v835 = vld [vmem:[%s1 + $0x3c8] sm:$0xff]
        %v836 = vld [vmem:[%s1 + $0x3d0] sm:$0xff]
        %v837 = vld [vmem:[%s1 + $0x3d8] sm:$0xff]
        %v838 = vld [vmem:[%s1 + $0x3e0] sm:$0xff]
        %v839 = vld [vmem:[%s1 + $0x3e8] sm:$0xff]
        %v840 = vld [vmem:[%s1 + $0x3f0] sm:$0xff]
        %v841 = vld [vmem:[%s1 + $0x3f8] sm:$0xff]
        %v842 = vld [vmem:[#allocation2] sm:$0xff]
        %v843 = vld [vmem:[#allocation2 + $0x8] sm:$0xff]
        %v844 = vld [vmem:[#allocation2 + $0x10] sm:$0xff]
        %v845 = vld [vmem:[#allocation2 + $0x18] sm:$0xff]
        %v846 = vld [vmem:[#allocation2 + $0x20] sm:$0xff]
        %v847 = vld [vmem:[#allocation2 + $0x28] sm:$0xff]
        %v848 = vld [vmem:[#allocation2 + $0x30] sm:$0xff]
        %v849 = vld [vmem:[#allocation2 + $0x38] sm:$0xff]
        %v850 = vld [vmem:[#allocation2 + $0x40] sm:$0xff]
        %v851 = vld [vmem:[#allocation2 + $0x48] sm:$0xff]
        %v852 = vld [vmem:[#allocation2 + $0x50] sm:$0xff]
        %v853 = vld [vmem:[#allocation2 + $0x58] sm:$0xff]
        %v854 = vld [vmem:[#allocation2 + $0x60] sm:$0xff]
        %v855 = vld [vmem:[#allocation2 + $0x68] sm:$0xff]
        %v856 = vld [vmem:[#allocation2 + $0x70] sm:$0xff]
        %v857 = vld [vmem:[#allocation2 + $0x78] sm:$0xff]
        %v858 = vld [vmem:[#allocation2 + $0x80] sm:$0xff]
        %v859 = vld [vmem:[#allocation2 + $0x88] sm:$0xff]
        %v860 = vld [vmem:[#allocation2 + $0x90] sm:$0xff]
        %v861 = vld [vmem:[#allocation2 + $0x98] sm:$0xff]
        %v862 = vld [vmem:[#allocation2 + $0xa0] sm:$0xff]
        %v863 = vld [vmem:[#allocation2 + $0xa8] sm:$0xff]
        %v864 = vld [vmem:[#allocation2 + $0xb0] sm:$0xff]
        %v865 = vld [vmem:[#allocation2 + $0xb8] sm:$0xff]
        %v866 = vld [vmem:[#allocation2 + $0xc0] sm:$0xff]
        %v867 = vld [vmem:[#allocation2 + $0xc8] sm:$0xff]
        %v868 = vld [vmem:[#allocation2 + $0xd0] sm:$0xff]
        %v869 = vld [vmem:[#allocation2 + $0xd8] sm:$0xff]
        %v870 = vld [vmem:[#allocation2 + $0xe0] sm:$0xff]
        %v871 = vld [vmem:[#allocation2 + $0xe8] sm:$0xff]
        %v872 = vld [vmem:[#allocation2 + $0xf0] sm:$0xff]
        %v873 = vld [vmem:[#allocation2 + $0xf8] sm:$0xff]
        %v874 = vld [vmem:[#allocation2 + $0x100] sm:$0xff]
        %v875 = vld [vmem:[#allocation2 + $0x108] sm:$0xff]
        %v876 = vld [vmem:[#allocation2 + $0x110] sm:$0xff]
        %v877 = vld [vmem:[#allocation2 + $0x118] sm:$0xff]
        %v878 = vld [vmem:[#allocation2 + $0x120] sm:$0xff]
        %v879 = vld [vmem:[#allocation2 + $0x128] sm:$0xff]
        %v880 = vld [vmem:[#allocation2 + $0x130] sm:$0xff]
        %v881 = vld [vmem:[#allocation2 + $0x138] sm:$0xff]
        %v882 = vld [vmem:[#allocation2 + $0x140] sm:$0xff]
        %v883 = vld [vmem:[#allocation2 + $0x148] sm:$0xff]
        %v884 = vld [vmem:[#allocation2 + $0x150] sm:$0xff]
        %v885 = vld [vmem:[#allocation2 + $0x158] sm:$0xff]
        %v886 = vld [vmem:[#allocation2 + $0x160] sm:$0xff]
        %v887 = vld [vmem:[#allocation2 + $0x168] sm:$0xff]
        %v888 = vld [vmem:[#allocation2 + $0x170] sm:$0xff]
        %v889 = vld [vmem:[#allocation2 + $0x178] sm:$0xff]
        %v890 = vld [vmem:[#allocation2 + $0x180] sm:$0xff]
        %v891 = vld [vmem:[#allocation2 + $0x188] sm:$0xff]
        %v892 = vld [vmem:[#allocation2 + $0x190] sm:$0xff]
        %v893 = vld [vmem:[#allocation2 + $0x198] sm:$0xff]
        %v894 = vld [vmem:[#allocation2 + $0x1a0] sm:$0xff]
        %v895 = vld [vmem:[#allocation2 + $0x1a8] sm:$0xff]
        %v896 = vld [vmem:[#allocation2 + $0x1b0] sm:$0xff]
        %v897 = vld [vmem:[#allocation2 + $0x1b8] sm:$0xff]
        %v898 = vld [vmem:[#allocation2 + $0x1c0] sm:$0xff]
        %v899 = vld [vmem:[#allocation2 + $0x1c8] sm:$0xff]
        %v900 = vld [vmem:[#allocation2 + $0x1d0] sm:$0xff]
        %v901 = vld [vmem:[#allocation2 + $0x1d8] sm:$0xff]
        %vm902 = vcmask 785408
        %v904 = vsel %vm902, %v717, 0
        %v907 = vsel %vm902, %v721, 0
        %v910 = vsel %vm902, %v725, 0
        %v913 = vsel %vm902, %v729, 0
        %v916 = vsel %vm902, %v733, 0
        %v919 = vsel %vm902, %v737, 0
        %v922 = vsel %vm902, %v741, 0
        %v925 = vsel %vm902, %v745, 0
        %v928 = vsel %vm902, %v749, 0
        %v931 = vsel %vm902, %v753, 0
        %v934 = vsel %vm902, %v757, 0
        %v937 = vsel %vm902, %v761, 0
        %v940 = vsel %vm902, %v765, 0
        %v943 = vsel %vm902, %v769, 0
        %v946 = vsel %vm902, %v773, 0
        %v949 = vsel %vm902, %v777, 0
        %v952 = vsel %vm902, %v781, 0
        %v955 = vsel %vm902, %v785, 0
        %v958 = vsel %vm902, %v789, 0
        %v961 = vsel %vm902, %v793, 0
        %v964 = vsel %vm902, %v797, 0
        %v967 = vsel %vm902, %v801, 0
        %v970 = vsel %vm902, %v805, 0
        %v973 = vsel %vm902, %v809, 0
        %v976 = vsel %vm902, %v813, 0
        %v979 = vsel %vm902, %v817, 0
        %v982 = vsel %vm902, %v821, 0
        %v985 = vsel %vm902, %v825, 0
        %v988 = vsel %vm902, %v829, 0
        %v991 = vsel %vm902, %v833, 0
        %v994 = vsel %vm902, %v837, 0
        %v997 = vsel %vm902, %v841, 0
        %999 = vmatprep.subr.mxu0 0.0
        %1000 = vmatpush1.msra.mxu0 %v842
        %1001 = vmatprep.subr.mxu0 0.0
        %1002 = vmatpush1.msra.mxu0 %v843
        %1003 = vmatprep.subr.mxu0 0.0
        %1004 = vmatpush1.msra.mxu0 %v844
        %1005 = vmatprep.subr.mxu0 0.0
        %1006 = vmatpush1.msra.mxu0 %v845
        %1007 = vmatprep.subr.mxu0 0.0
        %1008 = vmatpush1.msra.mxu0 %v846
        %1009 = vmatprep.subr.mxu0 0.0
        %1010 = vmatpush1.msra.mxu0 %v847
        %1011 = vmatprep.subr.mxu0 0.0
        %1012 = vmatpush1.msra.mxu0 %v848
        %1013 = vmatprep.subr.mxu0 0.0
        %1014 = vmatpush1.msra.mxu0 %v849
        %1015 = vmatprep.subr.mxu0 0.0
        %1016 = vmatpush1.msra.mxu0 %v850
        %1017 = vmatprep.subr.mxu0 0.0
        %1018 = vmatpush1.msra.mxu0 %v851
        %1019 = vmatprep.subr.mxu0 0.0
        %1020 = vmatpush1.msra.mxu0 %v852
        %1021 = vmatprep.subr.mxu0 0.0
        %1022 = vmatpush1.msra.mxu0 %v853
        %1023 = vmatprep.subr.mxu0 0.0
        %1024 = vmatpush1.msra.mxu0 %v854
        %1025 = vmatprep.subr.mxu0 0.0
        %1026 = vmatpush1.msra.mxu0 %v855
        %1027 = vmatprep.subr.mxu0 0.0
        %1028 = vmatpush1.msra.mxu0 %v856
        %1029 = vmatprep.subr.mxu0 0.0
        %1030 = vmatpush1.msra.mxu0 %v857
        %1031 = vmatprep.subr.mxu0 0.0
        %1032 = vmatpush1.msra.mxu0 %v858
        %1033 = vmatprep.subr.mxu0 0.0
        %1034 = vmatpush1.msra.mxu0 %v859
        %1035 = vmatprep.subr.mxu0 0.0
        %1036 = vmatpush1.msra.mxu0 %v860
        %1037 = vmatprep.subr.mxu0 0.0
        %1038 = vmatpush1.msra.mxu0 %v861
        %1039 = vmatprep.subr.mxu0 0.0
        %1040 = vmatpush1.msra.mxu0 %v862
        %1041 = vmatprep.subr.mxu0 0.0
        %1042 = vmatpush1.msra.mxu0 %v863
        %1043 = vmatprep.subr.mxu0 0.0
        %1044 = vmatpush1.msra.mxu0 %v864
        %1045 = vmatprep.subr.mxu0 0.0
        %1046 = vmatpush1.msra.mxu0 %v865
        %1047 = vmatprep.subr.mxu0 0.0
        %1048 = vmatpush1.msra.mxu0 %v866
        %1049 = vmatprep.subr.mxu0 0.0
        %1050 = vmatpush1.msra.mxu0 %v867
        %1051 = vmatprep.subr.mxu0 0.0
        %1052 = vmatpush1.msra.mxu0 %v868
        %1053 = vmatprep.subr.mxu0 0.0
        %1054 = vmatpush1.msra.mxu0 %v869
        %1055 = vmatprep.subr.mxu0 0.0
        %1056 = vmatpush1.msra.mxu0 %v870
        %1057 = vmatprep.subr.mxu0 0.0
        %1058 = vmatpush1.msra.mxu0 %v871
        %1059 = vmatprep.subr.mxu0 0.0
        %1060 = vmatpush1.msra.mxu0 %v872
        %1061 = vmatprep.subr.mxu0 0.0
        %1062 = vmatpush1.msra.mxu0 %v873
        %1063 = vmatprep.mubr.f32.mxu0 %v715
        %1064 = vmatmul.mubr.f32.gmra.mrb[0].mxu0 %v714
        %v1065 = vpop.f32.mrb[0].mxu0
        %v1066 = vadd.f32 0.0, %v1065
        %v1067 = vpop.f32.mrb[0].mxu0
        %1068 = vmatprep.mubr.f32.mxu0 %v719
        %1069 = vmatmul.mubr.f32.gmra.mrb[0].mxu0 %v718
        %v1070 = vpop.f32.mrb[0].mxu0
        %v1071 = vadd.f32 0.0, %v1070
        %v1072 = vpop.f32.mrb[0].mxu0
        %1073 = vmatprep.mubr.f32.mxu0 %v723
        %1074 = vmatmul.mubr.f32.gmra.mrb[0].mxu0 %v722
        %v1075 = vpop.f32.mrb[0].mxu0
        %v1076 = vadd.f32 0.0, %v1075
        %v1077 = vpop.f32.mrb[0].mxu0
        %1078 = vmatprep.mubr.f32.mxu0 %v727
        %1079 = vmatmul.mubr.f32.gmra.mrb[0].mxu0 %v726
        %v1080 = vpop.f32.mrb[0].mxu0
        %v1081 = vadd.f32 0.0, %v1080
        %v1082 = vpop.f32.mrb[0].mxu0
        %1083 = vmatprep.mubr.f32.mxu0 %v731
        %1084 = vmatmul.mubr.f32.gmra.mrb[0].mxu0 %v730
        %v1085 = vpop.f32.mrb[0].mxu0
        %v1086 = vadd.f32 0.0, %v1085
        %v1087 = vpop.f32.mrb[0].mxu0
        %1088 = vmatprep.mubr.f32.mxu0 %v735
        %1089 = vmatmul.mubr.f32.gmra.mrb[0].mxu0 %v734
        %v1090 = vpop.f32.mrb[0].mxu0
        %v1091 = vadd.f32 0.0, %v1090
        %v1092 = vpop.f32.mrb[0].mxu0
        %1093 = vmatprep.mubr.f32.mxu0 %v739
        %1094 = vmatmul.mubr.f32.gmra.mrb[0].mxu0 %v738
        %v1095 = vpop.f32.mrb[0].mxu0
        %v1096 = vadd.f32 0.0, %v1095
        %v1097 = vpop.f32.mrb[0].mxu0
        %1098 = vmatprep.mubr.f32.mxu0 %v743
        %1099 = vmatmul.mubr.f32.gmra.mrb[0].mxu0 %v742
        %v1100 = vpop.f32.mrb[0].mxu0
        %v1101 = vadd.f32 0.0, %v1100
        %v1102 = vpop.f32.mrb[0].mxu0
        %1103 = vmatprep.mubr.f32.mxu0 %v747
        %1104 = vmatmul.mubr.f32.gmra.mrb[0].mxu0 %v746
        %v1105 = vpop.f32.mrb[0].mxu0
        %v1106 = vadd.f32 0.0, %v1105
        %v1107 = vpop.f32.mrb[0].mxu0
        %1108 = vmatprep.mubr.f32.mxu0 %v751
        %1109 = vmatmul.mubr.f32.gmra.mrb[0].mxu0 %v750
        %v1110 = vpop.f32.mrb[0].mxu0
        %v1111 = vadd.f32 0.0, %v1110
        %v1112 = vpop.f32.mrb[0].mxu0
        %1113 = vmatprep.mubr.f32.mxu0 %v755
        %1114 = vmatmul.mubr.f32.gmra.mrb[0].mxu0 %v754
        %v1115 = vpop.f32.mrb[0].mxu0
        %v1116 = vadd.f32 0.0, %v1115
        %v1117 = vpop.f32.mrb[0].mxu0
        %1118 = vmatprep.mubr.f32.mxu0 %v759
        %1119 = vmatmul.mubr.f32.gmra.mrb[0].mxu0 %v758
        %v1120 = vpop.f32.mrb[0].mxu0
        %v1121 = vadd.f32 0.0, %v1120
        %v1122 = vpop.f32.mrb[0].mxu0
        %1123 = vmatprep.mubr.f32.mxu0 %v763
        %1124 = vmatmul.mubr.f32.gmra.mrb[0].mxu0 %v762
        %v1125 = vpop.f32.mrb[0].mxu0
        %v1126 = vadd.f32 0.0, %v1125
        %v1127 = vpop.f32.mrb[0].mxu0
        %1128 = vmatprep.mubr.f32.mxu0 %v767
        %1129 = vmatmul.mubr.f32.gmra.mrb[0].mxu0 %v766
        %v1130 = vpop.f32.mrb[0].mxu0
        %v1131 = vadd.f32 0.0, %v1130
        %v1132 = vpop.f32.mrb[0].mxu0
        %1133 = vmatprep.mubr.f32.mxu0 %v771
        %1134 = vmatmul.mubr.f32.gmra.mrb[0].mxu0 %v770
        %v1135 = vpop.f32.mrb[0].mxu0
        %v1136 = vadd.f32 0.0, %v1135
        %v1137 = vpop.f32.mrb[0].mxu0
        %1138 = vmatprep.mubr.f32.mxu0 %v775
        %1139 = vmatmul.mubr.f32.gmra.mrb[0].mxu0 %v774
        %v1140 = vpop.f32.mrb[0].mxu0
        %v1141 = vadd.f32 0.0, %v1140
        %v1142 = vpop.f32.mrb[0].mxu0
        %1143 = vmatprep.mubr.f32.mxu0 %v779
        %1144 = vmatmul.mubr.f32.gmra.mrb[0].mxu0 %v778
        %v1145 = vpop.f32.mrb[0].mxu0
        %v1146 = vadd.f32 0.0, %v1145
        %v1147 = vpop.f32.mrb[0].mxu0
        %1148 = vmatprep.mubr.f32.mxu0 %v783
        %1149 = vmatmul.mubr.f32.gmra.mrb[0].mxu0 %v782
        %v1150 = vpop.f32.mrb[0].mxu0
        %v1151 = vadd.f32 0.0, %v1150
        %v1152 = vpop.f32.mrb[0].mxu0
        %1153 = vmatprep.mubr.f32.mxu0 %v787
        %1154 = vmatmul.mubr.f32.gmra.mrb[0].mxu0 %v786
        %v1155 = vpop.f32.mrb[0].mxu0
        %v1156 = vadd.f32 0.0, %v1155
        %v1157 = vpop.f32.mrb[0].mxu0
        %1158 = vmatprep.mubr.f32.mxu0 %v791
        %1159 = vmatmul.mubr.f32.gmra.mrb[0].mxu0 %v790
        %v1160 = vpop.f32.mrb[0].mxu0
        %v1161 = vadd.f32 0.0, %v1160
        %v1162 = vpop.f32.mrb[0].mxu0
        %1163 = vmatprep.mubr.f32.mxu0 %v795
        %1164 = vmatmul.mubr.f32.gmra.mrb[0].mxu0 %v794
        %v1165 = vpop.f32.mrb[0].mxu0
        %v1166 = vadd.f32 0.0, %v1165
        %v1167 = vpop.f32.mrb[0].mxu0
        %1168 = vmatprep.mubr.f32.mxu0 %v799
        %1169 = vmatmul.mubr.f32.gmra.mrb[0].mxu0 %v798
        %v1170 = vpop.f32.mrb[0].mxu0
        %v1171 = vadd.f32 0.0, %v1170
        %v1172 = vpop.f32.mrb[0].mxu0
        %1173 = vmatprep.mubr.f32.mxu0 %v803
        %1174 = vmatmul.mubr.f32.gmra.mrb[0].mxu0 %v802
        %v1175 = vpop.f32.mrb[0].mxu0
        %v1176 = vadd.f32 0.0, %v1175
        %v1177 = vpop.f32.mrb[0].mxu0
        %1178 = vmatprep.mubr.f32.mxu0 %v807
        %1179 = vmatmul.mubr.f32.gmra.mrb[0].mxu0 %v806
        %v1180 = vpop.f32.mrb[0].mxu0
        %v1181 = vadd.f32 0.0, %v1180
        %v1182 = vpop.f32.mrb[0].mxu0
        %1183 = vmatprep.mubr.f32.mxu0 %v811
        %1184 = vmatmul.mubr.f32.gmra.mrb[0].mxu0 %v810
        %v1185 = vpop.f32.mrb[0].mxu0
        %v1186 = vadd.f32 0.0, %v1185
        %v1187 = vpop.f32.mrb[0].mxu0
        %1188 = vmatprep.mubr.f32.mxu0 %v815
        %1189 = vmatmul.mubr.f32.gmra.mrb[0].mxu0 %v814
        %v1190 = vpop.f32.mrb[0].mxu0
        %v1191 = vadd.f32 0.0, %v1190
        %v1192 = vpop.f32.mrb[0].mxu0
        %1193 = vmatprep.mubr.f32.mxu0 %v819
        %1194 = vmatmul.mubr.f32.gmra.mrb[0].mxu0 %v818
        %v1195 = vpop.f32.mrb[0].mxu0
        %v1196 = vadd.f32 0.0, %v1195
        %v1197 = vpop.f32.mrb[0].mxu0
        %1198 = vmatprep.mubr.f32.mxu0 %v823
        %1199 = vmatmul.mubr.f32.gmra.mrb[0].mxu0 %v822
        %v1200 = vpop.f32.mrb[0].mxu0
        %v1201 = vadd.f32 0.0, %v1200
        %v1202 = vpop.f32.mrb[0].mxu0
        %1203 = vmatprep.mubr.f32.mxu0 %v827
        %1204 = vmatmul.mubr.f32.gmra.mrb[0].mxu0 %v826
        %v1205 = vpop.f32.mrb[0].mxu0
        %v1206 = vadd.f32 0.0, %v1205
        %v1207 = vpop.f32.mrb[0].mxu0
        %1208 = vmatprep.mubr.f32.mxu0 %v831
        %1209 = vmatmul.mubr.f32.gmra.mrb[0].mxu0 %v830
        %v1210 = vpop.f32.mrb[0].mxu0
        %v1211 = vadd.f32 0.0, %v1210
        %v1212 = vpop.f32.mrb[0].mxu0
        %1213 = vmatprep.mubr.f32.mxu0 %v835
        %1214 = vmatmul.mubr.f32.gmra.mrb[0].mxu0 %v834
        %v1215 = vpop.f32.mrb[0].mxu0
        %v1216 = vadd.f32 0.0, %v1215
        %v1217 = vpop.f32.mrb[0].mxu0
        %1218 = vmatprep.mubr.f32.mxu0 %v839
        %1219 = vmatmul.mubr.f32.gmra.mrb[0].mxu0 %v838
        %v1220 = vpop.f32.mrb[0].mxu0
        %v1221 = vadd.f32 0.0, %v1220
        %v1222 = vpop.f32.mrb[0].mxu0
        %1223 = vdwg.mxu0
        %1224 = vmatprep.subr.mxu0 0.0
        %1225 = vmatpush1.msra.mxu0 %v874
        %1226 = vmatprep.subr.mxu0 0.0
        %1227 = vmatpush1.msra.mxu0 %v875
        %1228 = vmatprep.subr.mxu0 0.0
        %1229 = vmatpush1.msra.mxu0 %v876
        %1230 = vmatprep.subr.mxu0 0.0
        %1231 = vmatpush1.msra.mxu0 %v877
        %1232 = vmatprep.subr.mxu0 0.0
        %1233 = vmatpush1.msra.mxu0 %v878
        %1234 = vmatprep.subr.mxu0 0.0
        %1235 = vmatpush1.msra.mxu0 %v879
        %1236 = vmatprep.subr.mxu0 0.0
        %1237 = vmatpush1.msra.mxu0 %v880
        %1238 = vmatprep.subr.mxu0 0.0
        %1239 = vmatpush1.msra.mxu0 %v881
        %1240 = vmatprep.subr.mxu0 0.0
        %1241 = vmatpush1.msra.mxu0 %v882
        %1242 = vmatprep.subr.mxu0 0.0
        %1243 = vmatpush1.msra.mxu0 %v883
        %1244 = vmatprep.subr.mxu0 0.0
        %1245 = vmatpush1.msra.mxu0 %v884
        %1246 = vmatprep.subr.mxu0 0.0
        %1247 = vmatpush1.msra.mxu0 %v885
        %1248 = vmatprep.subr.mxu0 0.0
        %1249 = vmatpush1.msra.mxu0 %v886
        %1250 = vmatprep.subr.mxu0 0.0
        %1251 = vmatpush1.msra.mxu0 %v887
        %1252 = vmatprep.subr.mxu0 0.0
        %1253 = vmatpush1.msra.mxu0 %v888
        %1254 = vmatprep.subr.mxu0 0.0
        %1255 = vmatpush1.msra.mxu0 %v889
        %1256 = vmatprep.subr.mxu0 0.0
        %1257 = vmatpush1.msra.mxu0 %v890
        %1258 = vmatprep.subr.mxu0 0.0
        %1259 = vmatpush1.msra.mxu0 %v891
        %1260 = vmatprep.subr.mxu0 0.0
        %1261 = vmatpush1.msra.mxu0 %v892
        %1262 = vmatprep.subr.mxu0 0.0
        %1263 = vmatpush1.msra.mxu0 %v893
        %1264 = vmatprep.subr.mxu0 0.0
        %1265 = vmatpush1.msra.mxu0 %v894
        %1266 = vmatprep.subr.mxu0 0.0
        %1267 = vmatpush1.msra.mxu0 %v895
        %1268 = vmatprep.subr.mxu0 0.0
        %1269 = vmatpush1.msra.mxu0 %v896
        %1270 = vmatprep.subr.mxu0 0.0
        %1271 = vmatpush1.msra.mxu0 %v897
        %1272 = vmatprep.subr.mxu0 0.0
        %1273 = vmatpush1.msra.mxu0 %v898
        %1274 = vmatprep.subr.mxu0 0.0
        %1275 = vmatpush1.msra.mxu0 %v899
        %1276 = vmatprep.subr.mxu0 0.0
        %1277 = vmatpush1.msra.mxu0 %v900
        %1278 = vmatprep.subr.mxu0 0.0
        %1279 = vmatpush1.msra.mxu0 %v901
        %1280 = vmatprep.subr.mxu0 0.0
        %1281 = vmatpush1.msra.mxu0 0.0
        %1282 = vmatprep.subr.mxu0 0.0
        %1283 = vmatpush1.msra.mxu0 0.0
        %1284 = vmatprep.subr.mxu0 0.0
        %1285 = vmatpush1.msra.mxu0 0.0
        %1286 = vmatprep.subr.mxu0 0.0
        %1287 = vmatpush1.msra.mxu0 0.0
        %1288 = vmatprep.mubr.f32.mxu0 %v904
        %1289 = vmatmul.mubr.f32.gmra.mrb[0].mxu0 %v716
        %v1290 = vpop.f32.mrb[0].mxu0
        %v1291 = vadd.f32 %v1066, %v1290
        %v1292 = vpop.f32.mrb[0].mxu0
        %1293 = vmatprep.mubr.f32.mxu0 %v907
        %1294 = vmatmul.mubr.f32.gmra.mrb[0].mxu0 %v720
        %v1295 = vpop.f32.mrb[0].mxu0
        %v1296 = vadd.f32 %v1071, %v1295
        %v1297 = vpop.f32.mrb[0].mxu0
        %1298 = vmatprep.mubr.f32.mxu0 %v910
        %1299 = vmatmul.mubr.f32.gmra.mrb[0].mxu0 %v724
        %v1300 = vpop.f32.mrb[0].mxu0
        %v1301 = vadd.f32 %v1076, %v1300
        %v1302 = vpop.f32.mrb[0].mxu0
        %1303 = vmatprep.mubr.f32.mxu0 %v913
        %1304 = vmatmul.mubr.f32.gmra.mrb[0].mxu0 %v728
        %v1305 = vpop.f32.mrb[0].mxu0
        %v1306 = vadd.f32 %v1081, %v1305
        %v1307 = vpop.f32.mrb[0].mxu0
        %1308 = vmatprep.mubr.f32.mxu0 %v916
        %1309 = vmatmul.mubr.f32.gmra.mrb[0].mxu0 %v732
        %v1310 = vpop.f32.mrb[0].mxu0
        %v1311 = vadd.f32 %v1086, %v1310
        %v1312 = vpop.f32.mrb[0].mxu0
        %1313 = vmatprep.mubr.f32.mxu0 %v919
        %1314 = vmatmul.mubr.f32.gmra.mrb[0].mxu0 %v736
        %v1315 = vpop.f32.mrb[0].mxu0
        %v1316 = vadd.f32 %v1091, %v1315
        %v1317 = vpop.f32.mrb[0].mxu0
        %1318 = vmatprep.mubr.f32.mxu0 %v922
        %1319 = vmatmul.mubr.f32.gmra.mrb[0].mxu0 %v740
        %v1320 = vpop.f32.mrb[0].mxu0
        %v1321 = vadd.f32 %v1096, %v1320
        %v1322 = vpop.f32.mrb[0].mxu0
        %1323 = vmatprep.mubr.f32.mxu0 %v925
        %1324 = vmatmul.mubr.f32.gmra.mrb[0].mxu0 %v744
        %v1325 = vpop.f32.mrb[0].mxu0
        %v1326 = vadd.f32 %v1101, %v1325
        %v1327 = vpop.f32.mrb[0].mxu0
        %1328 = vmatprep.mubr.f32.mxu0 %v928
        %1329 = vmatmul.mubr.f32.gmra.mrb[0].mxu0 %v748
        %v1330 = vpop.f32.mrb[0].mxu0
        %v1331 = vadd.f32 %v1106, %v1330
        %v1332 = vpop.f32.mrb[0].mxu0
        %1333 = vmatprep.mubr.f32.mxu0 %v931
        %1334 = vmatmul.mubr.f32.gmra.mrb[0].mxu0 %v752
        %v1335 = vpop.f32.mrb[0].mxu0
        %v1336 = vadd.f32 %v1111, %v1335
        %v1337 = vpop.f32.mrb[0].mxu0
        %1338 = vmatprep.mubr.f32.mxu0 %v934
        %1339 = vmatmul.mubr.f32.gmra.mrb[0].mxu0 %v756
        %v1340 = vpop.f32.mrb[0].mxu0
        %v1341 = vadd.f32 %v1116, %v1340
        %v1342 = vpop.f32.mrb[0].mxu0
        %1343 = vmatprep.mubr.f32.mxu0 %v937
        %1344 = vmatmul.mubr.f32.gmra.mrb[0].mxu0 %v760
        %v1345 = vpop.f32.mrb[0].mxu0
        %v1346 = vadd.f32 %v1121, %v1345
        %v1347 = vpop.f32.mrb[0].mxu0
        %1348 = vmatprep.mubr.f32.mxu0 %v940
        %1349 = vmatmul.mubr.f32.gmra.mrb[0].mxu0 %v764
        %v1350 = vpop.f32.mrb[0].mxu0
        %v1351 = vadd.f32 %v1126, %v1350
        %v1352 = vpop.f32.mrb[0].mxu0
        %1353 = vmatprep.mubr.f32.mxu0 %v943
        %1354 = vmatmul.mubr.f32.gmra.mrb[0].mxu0 %v768
        %v1355 = vpop.f32.mrb[0].mxu0
        %v1356 = vadd.f32 %v1131, %v1355
        %v1357 = vpop.f32.mrb[0].mxu0
        %1358 = vmatprep.mubr.f32.mxu0 %v946
        %1359 = vmatmul.mubr.f32.gmra.mrb[0].mxu0 %v772
        %v1360 = vpop.f32.mrb[0].mxu0
        %v1361 = vadd.f32 %v1136, %v1360
        %v1362 = vpop.f32.mrb[0].mxu0
        %1363 = vmatprep.mubr.f32.mxu0 %v949
        %1364 = vmatmul.mubr.f32.gmra.mrb[0].mxu0 %v776
        %v1365 = vpop.f32.mrb[0].mxu0
        %v1366 = vadd.f32 %v1141, %v1365
        %v1367 = vpop.f32.mrb[0].mxu0
        %1368 = vmatprep.mubr.f32.mxu0 %v952
        %1369 = vmatmul.mubr.f32.gmra.mrb[0].mxu0 %v780
        %v1370 = vpop.f32.mrb[0].mxu0
        %v1371 = vadd.f32 %v1146, %v1370
        %v1372 = vpop.f32.mrb[0].mxu0
        %1373 = vmatprep.mubr.f32.mxu0 %v955
        %1374 = vmatmul.mubr.f32.gmra.mrb[0].mxu0 %v784
        %v1375 = vpop.f32.mrb[0].mxu0
        %v1376 = vadd.f32 %v1151, %v1375
        %v1377 = vpop.f32.mrb[0].mxu0
        %1378 = vmatprep.mubr.f32.mxu0 %v958
        %1379 = vmatmul.mubr.f32.gmra.mrb[0].mxu0 %v788
        %v1380 = vpop.f32.mrb[0].mxu0
        %v1381 = vadd.f32 %v1156, %v1380
        %v1382 = vpop.f32.mrb[0].mxu0
        %1383 = vmatprep.mubr.f32.mxu0 %v961
        %1384 = vmatmul.mubr.f32.gmra.mrb[0].mxu0 %v792
        %v1385 = vpop.f32.mrb[0].mxu0
        %v1386 = vadd.f32 %v1161, %v1385
        %v1387 = vpop.f32.mrb[0].mxu0
        %1388 = vmatprep.mubr.f32.mxu0 %v964
        %1389 = vmatmul.mubr.f32.gmra.mrb[0].mxu0 %v796
        %v1390 = vpop.f32.mrb[0].mxu0
        %v1391 = vadd.f32 %v1166, %v1390
        %v1392 = vpop.f32.mrb[0].mxu0
        %1393 = vmatprep.mubr.f32.mxu0 %v967
        %1394 = vmatmul.mubr.f32.gmra.mrb[0].mxu0 %v800
        %v1395 = vpop.f32.mrb[0].mxu0
        %v1396 = vadd.f32 %v1171, %v1395
        %v1397 = vpop.f32.mrb[0].mxu0
        %1398 = vmatprep.mubr.f32.mxu0 %v970
        %1399 = vmatmul.mubr.f32.gmra.mrb[0].mxu0 %v804
        %v1400 = vpop.f32.mrb[0].mxu0
        %v1401 = vadd.f32 %v1176, %v1400
        %v1402 = vpop.f32.mrb[0].mxu0
        %1403 = vmatprep.mubr.f32.mxu0 %v973
        %1404 = vmatmul.mubr.f32.gmra.mrb[0].mxu0 %v808
        %v1405 = vpop.f32.mrb[0].mxu0
        %v1406 = vadd.f32 %v1181, %v1405
        %v1407 = vpop.f32.mrb[0].mxu0
        %1408 = vmatprep.mubr.f32.mxu0 %v976
        %1409 = vmatmul.mubr.f32.gmra.mrb[0].mxu0 %v812
        %v1410 = vpop.f32.mrb[0].mxu0
        %v1411 = vadd.f32 %v1186, %v1410
        %v1412 = vpop.f32.mrb[0].mxu0
        %1413 = vmatprep.mubr.f32.mxu0 %v979
        %1414 = vmatmul.mubr.f32.gmra.mrb[0].mxu0 %v816
        %v1415 = vpop.f32.mrb[0].mxu0
        %v1416 = vadd.f32 %v1191, %v1415
        %v1417 = vpop.f32.mrb[0].mxu0
        %1418 = vmatprep.mubr.f32.mxu0 %v982
        %1419 = vmatmul.mubr.f32.gmra.mrb[0].mxu0 %v820
        %v1420 = vpop.f32.mrb[0].mxu0
        %v1421 = vadd.f32 %v1196, %v1420
        %v1422 = vpop.f32.mrb[0].mxu0
        %1423 = vmatprep.mubr.f32.mxu0 %v985
        %1424 = vmatmul.mubr.f32.gmra.mrb[0].mxu0 %v824
        %v1425 = vpop.f32.mrb[0].mxu0
        %v1426 = vadd.f32 %v1201, %v1425
        %v1427 = vpop.f32.mrb[0].mxu0
        %1428 = vmatprep.mubr.f32.mxu0 %v988
        %1429 = vmatmul.mubr.f32.gmra.mrb[0].mxu0 %v828
        %v1430 = vpop.f32.mrb[0].mxu0
        %v1431 = vadd.f32 %v1206, %v1430
        %v1432 = vpop.f32.mrb[0].mxu0
        %1433 = vmatprep.mubr.f32.mxu0 %v991
        %1434 = vmatmul.mubr.f32.gmra.mrb[0].mxu0 %v832
        %v1435 = vpop.f32.mrb[0].mxu0
        %v1436 = vadd.f32 %v1211, %v1435
        %v1437 = vpop.f32.mrb[0].mxu0
        %1438 = vmatprep.mubr.f32.mxu0 %v994
        %1439 = vmatmul.mubr.f32.gmra.mrb[0].mxu0 %v836
        %v1440 = vpop.f32.mrb[0].mxu0
        %v1441 = vadd.f32 %v1216, %v1440
        %v1442 = vpop.f32.mrb[0].mxu0
        %1443 = vmatprep.mubr.f32.mxu0 %v997
        %1444 = vmatmul.mubr.f32.gmra.mrb[0].mxu0 %v840
        %v1445 = vpop.f32.mrb[0].mxu0
        %v1446 = vadd.f32 %v1221, %v1445
        %v1447 = vpop.f32.mrb[0].mxu0
        %1448 = vdwg.mxu0
        %v1449 = vmax.f32 %v1291, %v1371
        %v1450 = vmax.f32 %v1296, %v1376
        %v1451 = vmax.f32 %v1301, %v1381
        %v1452 = vmax.f32 %v1306, %v1386
        %v1453 = vmax.f32 %v1311, %v1391
        %v1454 = vmax.f32 %v1316, %v1396
        %v1455 = vmax.f32 %v1321, %v1401
        %v1456 = vmax.f32 %v1326, %v1406
        %v1457 = vmax.f32 %v1331, %v1411
        %v1458 = vmax.f32 %v1336, %v1416
        %v1459 = vmax.f32 %v1341, %v1421
        %v1460 = vmax.f32 %v1346, %v1426
        %v1461 = vmax.f32 %v1351, %v1431
        %v1462 = vmax.f32 %v1356, %v1436
        %v1463 = vmax.f32 %v1361, %v1441
        %v1464 = vmax.f32 %v1366, %v1446
        %v1465 = vld [vmem:[%s2] sm:$0xff]
        %v1466 = vld [vmem:[%s2 + $0x8] sm:$0xff]
        %v1467 = vld [vmem:[%s2 + $0x10] sm:$0xff]
        %v1468 = vld [vmem:[%s2 + $0x18] sm:$0xff]
        %v1469 = vld [vmem:[%s2 + $0x20] sm:$0xff]
        %v1470 = vld [vmem:[%s2 + $0x28] sm:$0xff]
        %v1471 = vld [vmem:[%s2 + $0x30] sm:$0xff]
        %v1472 = vld [vmem:[%s2 + $0x38] sm:$0xff]
        %v1473 = vld [vmem:[%s2 + $0x40] sm:$0xff]
        %v1474 = vld [vmem:[%s2 + $0x48] sm:$0xff]
        %v1475 = vld [vmem:[%s2 + $0x50] sm:$0xff]
        %v1476 = vld [vmem:[%s2 + $0x58] sm:$0xff]
        %v1477 = vld [vmem:[%s2 + $0x60] sm:$0xff]
        %v1478 = vld [vmem:[%s2 + $0x68] sm:$0xff]
        %v1479 = vld [vmem:[%s2 + $0x70] sm:$0xff]
        %v1480 = vld [vmem:[%s2 + $0x78] sm:$0xff]
        %1482 = vset.pattern.permute.xlu0 0
        %1483 = vperm.xlu0 %1482, %v1465
        %v1484 = vpop.permute.xlu0 %1483
        %1487 = vset.pattern.permute.xlu0 0
        %1488 = vperm.xlu0 %1487, %v1466
        %v1489 = vpop.permute.xlu0 %1488
        %1492 = vset.pattern.permute.xlu0 0
        %1493 = vperm.xlu0 %1492, %v1467
        %v1494 = vpop.permute.xlu0 %1493
        %1497 = vset.pattern.permute.xlu0 0
        %1498 = vperm.xlu0 %1497, %v1468
        %v1499 = vpop.permute.xlu0 %1498
        %1502 = vset.pattern.permute.xlu0 0
        %1503 = vperm.xlu0 %1502, %v1469
        %v1504 = vpop.permute.xlu0 %1503
        %1507 = vset.pattern.permute.xlu0 0
        %1508 = vperm.xlu0 %1507, %v1470
        %v1509 = vpop.permute.xlu0 %1508
        %1512 = vset.pattern.permute.xlu0 0
        %1513 = vperm.xlu0 %1512, %v1471
        %v1514 = vpop.permute.xlu0 %1513
        %1517 = vset.pattern.permute.xlu0 0
        %1518 = vperm.xlu0 %1517, %v1472
        %v1519 = vpop.permute.xlu0 %1518
        %1522 = vset.pattern.permute.xlu0 0
        %1523 = vperm.xlu0 %1522, %v1473
        %v1524 = vpop.permute.xlu0 %1523
        %1527 = vset.pattern.permute.xlu0 0
        %1528 = vperm.xlu0 %1527, %v1474
        %v1529 = vpop.permute.xlu0 %1528
        %1532 = vset.pattern.permute.xlu0 0
        %1533 = vperm.xlu0 %1532, %v1475
        %v1534 = vpop.permute.xlu0 %1533
        %1537 = vset.pattern.permute.xlu0 0
        %1538 = vperm.xlu0 %1537, %v1476
        %v1539 = vpop.permute.xlu0 %1538
        %1542 = vset.pattern.permute.xlu0 0
        %1543 = vperm.xlu0 %1542, %v1477
        %v1544 = vpop.permute.xlu0 %1543
        %1547 = vset.pattern.permute.xlu0 0
        %1548 = vperm.xlu0 %1547, %v1478
        %v1549 = vpop.permute.xlu0 %1548
        %1552 = vset.pattern.permute.xlu0 0
        %1553 = vperm.xlu0 %1552, %v1479
        %v1554 = vpop.permute.xlu0 %1553
        %1557 = vset.pattern.permute.xlu0 0
        %1558 = vperm.xlu0 %1557, %v1480
        %v1559 = vpop.permute.xlu0 %1558
        %v1561 = vadd.f32 %v1449, %v1484
        %v1562 = vadd.f32 %v1450, %v1489
        %v1563 = vadd.f32 %v1451, %v1494
        %v1564 = vadd.f32 %v1452, %v1499
        %v1565 = vadd.f32 %v1453, %v1504
        %v1566 = vadd.f32 %v1454, %v1509
        %v1567 = vadd.f32 %v1455, %v1514
        %v1568 = vadd.f32 %v1456, %v1519
        %v1569 = vadd.f32 %v1457, %v1524
        %v1570 = vadd.f32 %v1458, %v1529
        %v1571 = vadd.f32 %v1459, %v1534
        %v1572 = vadd.f32 %v1460, %v1539
        %v1573 = vadd.f32 %v1461, %v1544
        %v1574 = vadd.f32 %v1462, %v1549
        %v1575 = vadd.f32 %v1463, %v1554
        %v1576 = vadd.f32 %v1464, %v1559
        %v1577 = vmax.f32 %v1561, 0.0
        %v1578 = vmax.f32 %v1562, 0.0
        %v1579 = vmax.f32 %v1563, 0.0
        %v1580 = vmax.f32 %v1564, 0.0
        %v1581 = vmax.f32 %v1565, 0.0
        %v1582 = vmax.f32 %v1566, 0.0
        %v1583 = vmax.f32 %v1567, 0.0
        %v1584 = vmax.f32 %v1568, 0.0
        %v1585 = vmax.f32 %v1569, 0.0
        %v1586 = vmax.f32 %v1570, 0.0
        %v1587 = vmax.f32 %v1571, 0.0
        %v1588 = vmax.f32 %v1572, 0.0
        %v1589 = vmax.f32 %v1573, 0.0
        %v1590 = vmax.f32 %v1574, 0.0
        %v1591 = vmax.f32 %v1575, 0.0
        %v1592 = vmax.f32 %v1576, 0.0
        %v1593 = vld [vmem:[%s3] sm:$0xff]
        %v1594 = vld [vmem:[%s3 + $0x8] sm:$0xff]
        %v1595 = vld [vmem:[%s3 + $0x10] sm:$0xff]
        %v1596 = vld [vmem:[%s3 + $0x18] sm:$0xff]
        %v1597 = vld [vmem:[%s3 + $0x20] sm:$0xff]
        %v1598 = vld [vmem:[%s3 + $0x28] sm:$0xff]
        %v1599 = vld [vmem:[%s3 + $0x30] sm:$0xff]
        %v1600 = vld [vmem:[%s3 + $0x38] sm:$0xff]
        %v1601 = vld [vmem:[%s3 + $0x40] sm:$0xff]
        %v1602 = vld [vmem:[%s3 + $0x48] sm:$0xff]
        %v1603 = vld [vmem:[%s3 + $0x50] sm:$0xff]
        %v1604 = vld [vmem:[%s3 + $0x58] sm:$0xff]
        %v1605 = vld [vmem:[%s3 + $0x60] sm:$0xff]
        %v1606 = vld [vmem:[%s3 + $0x68] sm:$0xff]
        %v1608 = vsel %vm236, %v1577, 0
        %v1611 = vsel %vm236, %v1578, 0
        %v1614 = vsel %vm236, %v1579, 0
        %v1617 = vsel %vm236, %v1580, 0
        %v1620 = vsel %vm236, %v1581, 0
        %v1623 = vsel %vm236, %v1582, 0
        %v1626 = vsel %vm236, %v1583, 0
        %v1629 = vsel %vm236, %v1584, 0
        %v1632 = vsel %vm236, %v1585, 0
        %v1635 = vsel %vm236, %v1586, 0
        %v1638 = vsel %vm236, %v1587, 0
        %v1641 = vsel %vm236, %v1588, 0
        %v1644 = vsel %vm236, %v1589, 0
        %v1647 = vsel %vm236, %v1590, 0
        %v1650 = vsel %vm236, %v1591, 0
        %v1653 = vsel %vm236, %v1592, 0
        %1655 = vmatprep.subr.mxu0 0.0
        %1656 = vmatpush1.msra.mxu0 %v1593
        %1657 = vmatprep.subr.mxu0 0.0
        %1658 = vmatpush1.msra.mxu0 %v1594
        %1659 = vmatprep.subr.mxu0 0.0
        %1660 = vmatpush1.msra.mxu0 %v1595
        %1661 = vmatprep.subr.mxu0 0.0
        %1662 = vmatpush1.msra.mxu0 %v1596
        %1663 = vmatprep.subr.mxu0 0.0
        %1664 = vmatpush1.msra.mxu0 %v1597
        %1665 = vmatprep.subr.mxu0 0.0
        %1666 = vmatpush1.msra.mxu0 %v1598
        %1667 = vmatprep.subr.mxu0 0.0
        %1668 = vmatpush1.msra.mxu0 %v1599
        %1669 = vmatprep.subr.mxu0 0.0
        %1670 = vmatpush1.msra.mxu0 %v1600
        %1671 = vmatprep.subr.mxu0 0.0
        %1672 = vmatpush1.msra.mxu0 %v1601
        %1673 = vmatprep.subr.mxu0 0.0
        %1674 = vmatpush1.msra.mxu0 %v1602
        %1675 = vmatprep.subr.mxu0 0.0
        %1676 = vmatpush1.msra.mxu0 %v1603
        %1677 = vmatprep.subr.mxu0 0.0
        %1678 = vmatpush1.msra.mxu0 %v1604
        %1679 = vmatprep.subr.mxu0 0.0
        %1680 = vmatpush1.msra.mxu0 %v1605
        %1681 = vmatprep.subr.mxu0 0.0
        %1682 = vmatpush1.msra.mxu0 %v1606
        %1683 = vmatprep.subr.mxu0 0.0
        %1684 = vmatpush1.msra.mxu0 0.0
        %1685 = vmatprep.subr.mxu0 0.0
        %1686 = vmatpush1.msra.mxu0 0.0
        %1687 = vmatprep.subr.mxu0 0.0
        %1688 = vmatpush1.msra.mxu0 0.0
        %1689 = vmatprep.subr.mxu0 0.0
        %1690 = vmatpush1.msra.mxu0 0.0
        %1691 = vmatprep.subr.mxu0 0.0
        %1692 = vmatpush1.msra.mxu0 0.0
        %1693 = vmatprep.subr.mxu0 0.0
        %1694 = vmatpush1.msra.mxu0 0.0
        %1695 = vmatprep.subr.mxu0 0.0
        %1696 = vmatpush1.msra.mxu0 0.0
        %1697 = vmatprep.subr.mxu0 0.0
        %1698 = vmatpush1.msra.mxu0 0.0
        %1699 = vmatprep.subr.mxu0 0.0
        %1700 = vmatpush1.msra.mxu0 0.0
        %1701 = vmatprep.subr.mxu0 0.0
        %1702 = vmatpush1.msra.mxu0 0.0
        %1703 = vmatprep.subr.mxu0 0.0
        %1704 = vmatpush1.msra.mxu0 0.0
        %1705 = vmatprep.subr.mxu0 0.0
        %1706 = vmatpush1.msra.mxu0 0.0
        %1707 = vmatprep.subr.mxu0 0.0
        %1708 = vmatpush1.msra.mxu0 0.0
        %1709 = vmatprep.subr.mxu0 0.0
        %1710 = vmatpush1.msra.mxu0 0.0
        %1711 = vmatprep.subr.mxu0 0.0
        %1712 = vmatpush1.msra.mxu0 0.0
        %1713 = vmatprep.subr.mxu0 0.0
        %1714 = vmatpush1.msra.mxu0 0.0
        %1715 = vmatprep.subr.mxu0 0.0
        %1716 = vmatpush1.msra.mxu0 0.0
        %1717 = vmatprep.subr.mxu0 0.0
        %1718 = vmatpush1.msra.mxu0 0.0
        %1719 = vmatprep.mubr.f32.mxu0 0.0
        %1720 = vmatmul.mubr.f32.gmra.mrb[0].mxu0 %v1608
        %v1721 = vpop.f32.mrb[0].mxu0
        %v1722 = vadd.f32 0.0, %v1721
        %v1723 = vpop.f32.mrb[0].mxu0
        %1724 = vmatprep.mubr.f32.mxu0 0.0
        %1725 = vmatmul.mubr.f32.gmra.mrb[0].mxu0 %v1611
        %v1726 = vpop.f32.mrb[0].mxu0
        %v1727 = vadd.f32 0.0, %v1726
        %v1728 = vpop.f32.mrb[0].mxu0
        %1729 = vmatprep.mubr.f32.mxu0 0.0
        %1730 = vmatmul.mubr.f32.gmra.mrb[0].mxu0 %v1614
        %v1731 = vpop.f32.mrb[0].mxu0
        %v1732 = vadd.f32 0.0, %v1731
        %v1733 = vpop.f32.mrb[0].mxu0
        %1734 = vmatprep.mubr.f32.mxu0 0.0
        %1735 = vmatmul.mubr.f32.gmra.mrb[0].mxu0 %v1617
        %v1736 = vpop.f32.mrb[0].mxu0
        %v1737 = vadd.f32 0.0, %v1736
        %v1738 = vpop.f32.mrb[0].mxu0
        %1739 = vmatprep.mubr.f32.mxu0 0.0
        %1740 = vmatmul.mubr.f32.gmra.mrb[0].mxu0 %v1620
        %v1741 = vpop.f32.mrb[0].mxu0
        %v1742 = vadd.f32 0.0, %v1741
        %v1743 = vpop.f32.mrb[0].mxu0
        %1744 = vmatprep.mubr.f32.mxu0 0.0
        %1745 = vmatmul.mubr.f32.gmra.mrb[0].mxu0 %v1623
        %v1746 = vpop.f32.mrb[0].mxu0
        %v1747 = vadd.f32 0.0, %v1746
        %v1748 = vpop.f32.mrb[0].mxu0
        %1749 = vmatprep.mubr.f32.mxu0 0.0
        %1750 = vmatmul.mubr.f32.gmra.mrb[0].mxu0 %v1626
        %v1751 = vpop.f32.mrb[0].mxu0
        %v1752 = vadd.f32 0.0, %v1751
        %v1753 = vpop.f32.mrb[0].mxu0
        %1754 = vmatprep.mubr.f32.mxu0 0.0
        %1755 = vmatmul.mubr.f32.gmra.mrb[0].mxu0 %v1629
        %v1756 = vpop.f32.mrb[0].mxu0
        %v1757 = vadd.f32 0.0, %v1756
        %v1758 = vpop.f32.mrb[0].mxu0
        %1759 = vmatprep.mubr.f32.mxu0 0.0
        %1760 = vmatmul.mubr.f32.gmra.mrb[0].mxu0 %v1632
        %v1761 = vpop.f32.mrb[0].mxu0
        %v1762 = vadd.f32 0.0, %v1761
        %v1763 = vpop.f32.mrb[0].mxu0
        %1764 = vmatprep.mubr.f32.mxu0 0.0
        %1765 = vmatmul.mubr.f32.gmra.mrb[0].mxu0 %v1635
        %v1766 = vpop.f32.mrb[0].mxu0
        %v1767 = vadd.f32 0.0, %v1766
        %v1768 = vpop.f32.mrb[0].mxu0
        %1769 = vmatprep.mubr.f32.mxu0 0.0
        %1770 = vmatmul.mubr.f32.gmra.mrb[0].mxu0 %v1638
        %v1771 = vpop.f32.mrb[0].mxu0
        %v1772 = vadd.f32 0.0, %v1771
        %v1773 = vpop.f32.mrb[0].mxu0
        %1774 = vmatprep.mubr.f32.mxu0 0.0
        %1775 = vmatmul.mubr.f32.gmra.mrb[0].mxu0 %v1641
        %v1776 = vpop.f32.mrb[0].mxu0
        %v1777 = vadd.f32 0.0, %v1776
        %v1778 = vpop.f32.mrb[0].mxu0
        %1779 = vmatprep.mubr.f32.mxu0 0.0
        %1780 = vmatmul.mubr.f32.gmra.mrb[0].mxu0 %v1644
        %v1781 = vpop.f32.mrb[0].mxu0
        %v1782 = vadd.f32 0.0, %v1781
        %v1783 = vpop.f32.mrb[0].mxu0
        %1784 = vmatprep.mubr.f32.mxu0 0.0
        %1785 = vmatmul.mubr.f32.gmra.mrb[0].mxu0 %v1647
        %v1786 = vpop.f32.mrb[0].mxu0
        %v1787 = vadd.f32 0.0, %v1786
        %v1788 = vpop.f32.mrb[0].mxu0
        %1789 = vmatprep.mubr.f32.mxu0 0.0
        %1790 = vmatmul.mubr.f32.gmra.mrb[0].mxu0 %v1650
        %v1791 = vpop.f32.mrb[0].mxu0
        %v1792 = vadd.f32 0.0, %v1791
        %v1793 = vpop.f32.mrb[0].mxu0
        %1794 = vmatprep.mubr.f32.mxu0 0.0
        %1795 = vmatmul.mubr.f32.gmra.mrb[0].mxu0 %v1653
        %v1796 = vpop.f32.mrb[0].mxu0
        %v1797 = vadd.f32 0.0, %v1796
        %v1798 = vpop.f32.mrb[0].mxu0
        %1799 = vdwg.mxu0
        %v1800 = vld [vmem:[%s4] sm:$0xff]
        %v1801 = vld [vmem:[%s4 + $0x8] sm:$0xff]
        %v1802 = vld [vmem:[%s4 + $0x10] sm:$0xff]
        %v1803 = vld [vmem:[%s4 + $0x18] sm:$0xff]
        %v1804 = vld [vmem:[%s4 + $0x20] sm:$0xff]
        %v1805 = vld [vmem:[%s4 + $0x28] sm:$0xff]
        %v1806 = vld [vmem:[%s4 + $0x30] sm:$0xff]
        %v1807 = vld [vmem:[%s4 + $0x38] sm:$0xff]
        %v1808 = vld [vmem:[%s4 + $0x40] sm:$0xff]
        %v1809 = vld [vmem:[%s4 + $0x48] sm:$0xff]
        %v1810 = vld [vmem:[%s4 + $0x50] sm:$0xff]
        %v1811 = vld [vmem:[%s4 + $0x58] sm:$0xff]
        %v1812 = vld [vmem:[%s4 + $0x60] sm:$0xff]
        %v1813 = vld [vmem:[%s4 + $0x68] sm:$0xff]
        %1814 = vmatprep.subr.mxu0 0.0
        %1815 = vmatpush1.msra.mxu0 %v1800
        %1816 = vmatprep.subr.mxu0 0.0
        %1817 = vmatpush1.msra.mxu0 %v1801
        %1818 = vmatprep.subr.mxu0 0.0
        %1819 = vmatpush1.msra.mxu0 %v1802
        %1820 = vmatprep.subr.mxu0 0.0
        %1821 = vmatpush1.msra.mxu0 %v1803
        %1822 = vmatprep.subr.mxu0 0.0
        %1823 = vmatpush1.msra.mxu0 %v1804
        %1824 = vmatprep.subr.mxu0 0.0
        %1825 = vmatpush1.msra.mxu0 %v1805
        %1826 = vmatprep.subr.mxu0 0.0
        %1827 = vmatpush1.msra.mxu0 %v1806
        %1828 = vmatprep.subr.mxu0 0.0
        %1829 = vmatpush1.msra.mxu0 %v1807
        %1830 = vmatprep.subr.mxu0 0.0
        %1831 = vmatpush1.msra.mxu0 %v1808
        %1832 = vmatprep.subr.mxu0 0.0
        %1833 = vmatpush1.msra.mxu0 %v1809
        %1834 = vmatprep.subr.mxu0 0.0
        %1835 = vmatpush1.msra.mxu0 %v1810
        %1836 = vmatprep.subr.mxu0 0.0
        %1837 = vmatpush1.msra.mxu0 %v1811
        %1838 = vmatprep.subr.mxu0 0.0
        %1839 = vmatpush1.msra.mxu0 %v1812
        %1840 = vmatprep.subr.mxu0 0.0
        %1841 = vmatpush1.msra.mxu0 %v1813
        %1842 = vmatprep.subr.mxu0 0.0
        %1843 = vmatpush1.msra.mxu0 0.0
        %1844 = vmatprep.subr.mxu0 0.0
        %1845 = vmatpush1.msra.mxu0 0.0
        %1846 = vmatprep.subr.mxu0 0.0
        %1847 = vmatpush1.msra.mxu0 0.0
        %1848 = vmatprep.subr.mxu0 0.0
        %1849 = vmatpush1.msra.mxu0 0.0
        %1850 = vmatprep.subr.mxu0 0.0
        %1851 = vmatpush1.msra.mxu0 0.0
        %1852 = vmatprep.subr.mxu0 0.0
        %1853 = vmatpush1.msra.mxu0 0.0
        %1854 = vmatprep.subr.mxu0 0.0
        %1855 = vmatpush1.msra.mxu0 0.0
        %1856 = vmatprep.subr.mxu0 0.0
        %1857 = vmatpush1.msra.mxu0 0.0
        %1858 = vmatprep.subr.mxu0 0.0
        %1859 = vmatpush1.msra.mxu0 0.0
        %1860 = vmatprep.subr.mxu0 0.0
        %1861 = vmatpush1.msra.mxu0 0.0
        %1862 = vmatprep.subr.mxu0 0.0
        %1863 = vmatpush1.msra.mxu0 0.0
        %1864 = vmatprep.subr.mxu0 0.0
        %1865 = vmatpush1.msra.mxu0 0.0
        %1866 = vmatprep.subr.mxu0 0.0
        %1867 = vmatpush1.msra.mxu0 0.0
        %1868 = vmatprep.subr.mxu0 0.0
        %1869 = vmatpush1.msra.mxu0 0.0
        %1870 = vmatprep.subr.mxu0 0.0
        %1871 = vmatpush1.msra.mxu0 0.0
        %1872 = vmatprep.subr.mxu0 0.0
        %1873 = vmatpush1.msra.mxu0 0.0
        %1874 = vmatprep.subr.mxu0 0.0
        %1875 = vmatpush1.msra.mxu0 0.0
        %1876 = vmatprep.subr.mxu0 0.0
        %1877 = vmatpush1.msra.mxu0 0.0
        %1878 = vmatprep.mubr.f32.mxu0 0.0
        %1879 = vmatmul.mubr.f32.gmra.mrb[0].mxu0 %v1608
        %v1880 = vpop.f32.mrb[0].mxu0
        %v1881 = vadd.f32 0.0, %v1880
        %v1882 = vpop.f32.mrb[0].mxu0
        %1883 = vmatprep.mubr.f32.mxu0 0.0
        %1884 = vmatmul.mubr.f32.gmra.mrb[0].mxu0 %v1611
        %v1885 = vpop.f32.mrb[0].mxu0
        %v1886 = vadd.f32 0.0, %v1885
        %v1887 = vpop.f32.mrb[0].mxu0
        %1888 = vmatprep.mubr.f32.mxu0 0.0
        %1889 = vmatmul.mubr.f32.gmra.mrb[0].mxu0 %v1614
        %v1890 = vpop.f32.mrb[0].mxu0
        %v1891 = vadd.f32 0.0, %v1890
        %v1892 = vpop.f32.mrb[0].mxu0
        %1893 = vmatprep.mubr.f32.mxu0 0.0
        %1894 = vmatmul.mubr.f32.gmra.mrb[0].mxu0 %v1617
        %v1895 = vpop.f32.mrb[0].mxu0
        %v1896 = vadd.f32 0.0, %v1895
        %v1897 = vpop.f32.mrb[0].mxu0
        %1898 = vmatprep.mubr.f32.mxu0 0.0
        %1899 = vmatmul.mubr.f32.gmra.mrb[0].mxu0 %v1620
        %v1900 = vpop.f32.mrb[0].mxu0
        %v1901 = vadd.f32 0.0, %v1900
        %v1902 = vpop.f32.mrb[0].mxu0
        %1903 = vmatprep.mubr.f32.mxu0 0.0
        %1904 = vmatmul.mubr.f32.gmra.mrb[0].mxu0 %v1623
        %v1905 = vpop.f32.mrb[0].mxu0
        %v1906 = vadd.f32 0.0, %v1905
        %v1907 = vpop.f32.mrb[0].mxu0
        %1908 = vmatprep.mubr.f32.mxu0 0.0
        %1909 = vmatmul.mubr.f32.gmra.mrb[0].mxu0 %v1626
        %v1910 = vpop.f32.mrb[0].mxu0
        %v1911 = vadd.f32 0.0, %v1910
        %v1912 = vpop.f32.mrb[0].mxu0
        %1913 = vmatprep.mubr.f32.mxu0 0.0
        %1914 = vmatmul.mubr.f32.gmra.mrb[0].mxu0 %v1629
        %v1915 = vpop.f32.mrb[0].mxu0
        %v1916 = vadd.f32 0.0, %v1915
        %v1917 = vpop.f32.mrb[0].mxu0
        %1918 = vmatprep.mubr.f32.mxu0 0.0
        %1919 = vmatmul.mubr.f32.gmra.mrb[0].mxu0 %v1632
        %v1920 = vpop.f32.mrb[0].mxu0
        %v1921 = vadd.f32 0.0, %v1920
        %v1922 = vpop.f32.mrb[0].mxu0
        %1923 = vmatprep.mubr.f32.mxu0 0.0
        %1924 = vmatmul.mubr.f32.gmra.mrb[0].mxu0 %v1635
        %v1925 = vpop.f32.mrb[0].mxu0
        %v1926 = vadd.f32 0.0, %v1925
        %v1927 = vpop.f32.mrb[0].mxu0
        %1928 = vmatprep.mubr.f32.mxu0 0.0
        %1929 = vmatmul.mubr.f32.gmra.mrb[0].mxu0 %v1638
        %v1930 = vpop.f32.mrb[0].mxu0
        %v1931 = vadd.f32 0.0, %v1930
        %v1932 = vpop.f32.mrb[0].mxu0
        %1933 = vmatprep.mubr.f32.mxu0 0.0
        %1934 = vmatmul.mubr.f32.gmra.mrb[0].mxu0 %v1641
        %v1935 = vpop.f32.mrb[0].mxu0
        %v1936 = vadd.f32 0.0, %v1935
        %v1937 = vpop.f32.mrb[0].mxu0
        %1938 = vmatprep.mubr.f32.mxu0 0.0
        %1939 = vmatmul.mubr.f32.gmra.mrb[0].mxu0 %v1644
        %v1940 = vpop.f32.mrb[0].mxu0
        %v1941 = vadd.f32 0.0, %v1940
        %v1942 = vpop.f32.mrb[0].mxu0
        %1943 = vmatprep.mubr.f32.mxu0 0.0
        %1944 = vmatmul.mubr.f32.gmra.mrb[0].mxu0 %v1647
        %v1945 = vpop.f32.mrb[0].mxu0
        %v1946 = vadd.f32 0.0, %v1945
        %v1947 = vpop.f32.mrb[0].mxu0
        %1948 = vmatprep.mubr.f32.mxu0 0.0
        %1949 = vmatmul.mubr.f32.gmra.mrb[0].mxu0 %v1650
        %v1950 = vpop.f32.mrb[0].mxu0
        %v1951 = vadd.f32 0.0, %v1950
        %v1952 = vpop.f32.mrb[0].mxu0
        %1953 = vmatprep.mubr.f32.mxu0 0.0
        %1954 = vmatmul.mubr.f32.gmra.mrb[0].mxu0 %v1653
        %v1955 = vpop.f32.mrb[0].mxu0
        %v1956 = vadd.f32 0.0, %v1955
        %v1957 = vpop.f32.mrb[0].mxu0
        %1958 = vdwg.mxu0
        %v1959 = vmax.f32 %v1722, %v1881
        %v1960 = vmax.f32 %v1727, %v1886
        %v1961 = vmax.f32 %v1732, %v1891
        %v1962 = vmax.f32 %v1737, %v1896
        %v1963 = vmax.f32 %v1742, %v1901
        %v1964 = vmax.f32 %v1747, %v1906
        %v1965 = vmax.f32 %v1752, %v1911
        %v1966 = vmax.f32 %v1757, %v1916
        %v1967 = vmax.f32 %v1762, %v1921
        %v1968 = vmax.f32 %v1767, %v1926
        %v1969 = vmax.f32 %v1772, %v1931
        %v1970 = vmax.f32 %v1777, %v1936
        %v1971 = vmax.f32 %v1782, %v1941
        %v1972 = vmax.f32 %v1787, %v1946
        %v1973 = vmax.f32 %v1792, %v1951
        %v1974 = vmax.f32 %v1797, %v1956
        %v1979 = vcombine.high %v1959, %v1959
        %v1981 = vunpack.c.l.s4 1966171168
        %v1982 = vunpack.c.0.s8 %v1981
        %v1983 = vlaneseq
        %v1984 = vshrl.u32 %v1983, 7
        %v1985 = vsub.s32 %v1982, %v1984
        %v1986 = vrot.slane %v1959, %v1985
        %v1988 = vunpack.c.l.s4 1966171168
        %v1989 = vunpack.c.0.s8 %v1988
        %v1990 = vlaneseq
        %v1991 = vshrl.u32 %v1990, 7
        %v1992 = vsub.s32 %v1989, %v1991
        %v1993 = vrot.slane %v1979, %v1992
        %v1994 = vcombine.high %v1986, %v1986
        %v1995 = vcombine.high %v1993, %v1993
        %v1997 = vunpack.c.l.s4 1966171168
        %v1998 = vunpack.c.0.s8 %v1997
        %v1999 = vlaneseq
        %v2000 = vshrl.u32 %v1999, 7
        %v2001 = vsub.s32 %v1998, %v2000
        %v2002 = vrot.slane %v1986, %v2001
        %v2004 = vunpack.c.l.s4 1966171168
        %v2005 = vunpack.c.0.s8 %v2004
        %v2006 = vlaneseq
        %v2007 = vshrl.u32 %v2006, 7
        %v2008 = vsub.s32 %v2005, %v2007
        %v2009 = vrot.slane %v1993, %v2008
        %v2011 = vunpack.c.l.s4 1966171168
        %v2012 = vunpack.c.0.s8 %v2011
        %v2013 = vlaneseq
        %v2014 = vshrl.u32 %v2013, 7
        %v2015 = vsub.s32 %v2012, %v2014
        %v2016 = vrot.slane %v1994, %v2015
        %v2018 = vunpack.c.l.s4 1966171168
        %v2019 = vunpack.c.0.s8 %v2018
        %v2020 = vlaneseq
        %v2021 = vshrl.u32 %v2020, 7
        %v2022 = vsub.s32 %v2019, %v2021
        %v2023 = vrot.slane %v1995, %v2022
        %v2024 = vcombine.high %v2002, %v2002
        %v2025 = vcombine.high %v2009, %v2009
        %v2026 = vcombine.high %v2016, %v2016
        %v2027 = vcombine.high %v2023, %v2023
        %v2028 = vcombine.high %v1960, %v1960
        %v2030 = vunpack.c.l.s4 1966171168
        %v2031 = vunpack.c.0.s8 %v2030
        %v2032 = vlaneseq
        %v2033 = vshrl.u32 %v2032, 7
        %v2034 = vsub.s32 %v2031, %v2033
        %v2035 = vrot.slane %v1960, %v2034
        %v2037 = vunpack.c.l.s4 1966171168
        %v2038 = vunpack.c.0.s8 %v2037
        %v2039 = vlaneseq
        %v2040 = vshrl.u32 %v2039, 7
        %v2041 = vsub.s32 %v2038, %v2040
        %v2042 = vrot.slane %v2028, %v2041
        %v2043 = vcombine.high %v2035, %v2035
        %v2044 = vcombine.high %v2042, %v2042
        %v2046 = vunpack.c.l.s4 1966171168
        %v2047 = vunpack.c.0.s8 %v2046
        %v2048 = vlaneseq
        %v2049 = vshrl.u32 %v2048, 7
        %v2050 = vsub.s32 %v2047, %v2049
        %v2051 = vrot.slane %v2035, %v2050
        %v2053 = vunpack.c.l.s4 1966171168
        %v2054 = vunpack.c.0.s8 %v2053
        %v2055 = vlaneseq
        %v2056 = vshrl.u32 %v2055, 7
        %v2057 = vsub.s32 %v2054, %v2056
        %v2058 = vrot.slane %v2042, %v2057
        %v2060 = vunpack.c.l.s4 1966171168
        %v2061 = vunpack.c.0.s8 %v2060
        %v2062 = vlaneseq
        %v2063 = vshrl.u32 %v2062, 7
        %v2064 = vsub.s32 %v2061, %v2063
        %v2065 = vrot.slane %v2043, %v2064
        %v2067 = vunpack.c.l.s4 1966171168
        %v2068 = vunpack.c.0.s8 %v2067
        %v2069 = vlaneseq
        %v2070 = vshrl.u32 %v2069, 7
        %v2071 = vsub.s32 %v2068, %v2070
        %v2072 = vrot.slane %v2044, %v2071
        %v2073 = vcombine.high %v2051, %v2051
        %v2074 = vcombine.high %v2058, %v2058
        %v2075 = vcombine.high %v2065, %v2065
        %v2076 = vcombine.high %v2072, %v2072
        %v2077 = vcombine.high %v1961, %v1961
        %v2079 = vunpack.c.l.s4 1966171168
        %v2080 = vunpack.c.0.s8 %v2079
        %v2081 = vlaneseq
        %v2082 = vshrl.u32 %v2081, 7
        %v2083 = vsub.s32 %v2080, %v2082
        %v2084 = vrot.slane %v1961, %v2083
        %v2086 = vunpack.c.l.s4 1966171168
        %v2087 = vunpack.c.0.s8 %v2086
        %v2088 = vlaneseq
        %v2089 = vshrl.u32 %v2088, 7
        %v2090 = vsub.s32 %v2087, %v2089
        %v2091 = vrot.slane %v2077, %v2090
        %v2092 = vcombine.high %v2084, %v2084
        %v2093 = vcombine.high %v2091, %v2091
        %v2095 = vunpack.c.l.s4 1966171168
        %v2096 = vunpack.c.0.s8 %v2095
        %v2097 = vlaneseq
        %v2098 = vshrl.u32 %v2097, 7
        %v2099 = vsub.s32 %v2096, %v2098
        %v2100 = vrot.slane %v2084, %v2099
        %v2102 = vunpack.c.l.s4 1966171168
        %v2103 = vunpack.c.0.s8 %v2102
        %v2104 = vlaneseq
        %v2105 = vshrl.u32 %v2104, 7
        %v2106 = vsub.s32 %v2103, %v2105
        %v2107 = vrot.slane %v2091, %v2106
        %v2109 = vunpack.c.l.s4 1966171168
        %v2110 = vunpack.c.0.s8 %v2109
        %v2111 = vlaneseq
        %v2112 = vshrl.u32 %v2111, 7
        %v2113 = vsub.s32 %v2110, %v2112
        %v2114 = vrot.slane %v2092, %v2113
        %v2116 = vunpack.c.l.s4 1966171168
        %v2117 = vunpack.c.0.s8 %v2116
        %v2118 = vlaneseq
        %v2119 = vshrl.u32 %v2118, 7
        %v2120 = vsub.s32 %v2117, %v2119
        %v2121 = vrot.slane %v2093, %v2120
        %v2122 = vcombine.high %v2100, %v2100
        %v2123 = vcombine.high %v2107, %v2107
        %v2124 = vcombine.high %v2114, %v2114
        %v2125 = vcombine.high %v2121, %v2121
        %v2126 = vcombine.high %v1962, %v1962
        %v2128 = vunpack.c.l.s4 1966171168
        %v2129 = vunpack.c.0.s8 %v2128
        %v2130 = vlaneseq
        %v2131 = vshrl.u32 %v2130, 7
        %v2132 = vsub.s32 %v2129, %v2131
        %v2133 = vrot.slane %v1962, %v2132
        %v2135 = vunpack.c.l.s4 1966171168
        %v2136 = vunpack.c.0.s8 %v2135
        %v2137 = vlaneseq
        %v2138 = vshrl.u32 %v2137, 7
        %v2139 = vsub.s32 %v2136, %v2138
        %v2140 = vrot.slane %v2126, %v2139
        %v2141 = vcombine.high %v2133, %v2133
        %v2142 = vcombine.high %v2140, %v2140
        %v2144 = vunpack.c.l.s4 1966171168
        %v2145 = vunpack.c.0.s8 %v2144
        %v2146 = vlaneseq
        %v2147 = vshrl.u32 %v2146, 7
        %v2148 = vsub.s32 %v2145, %v2147
        %v2149 = vrot.slane %v2133, %v2148
        %v2151 = vunpack.c.l.s4 1966171168
        %v2152 = vunpack.c.0.s8 %v2151
        %v2153 = vlaneseq
        %v2154 = vshrl.u32 %v2153, 7
        %v2155 = vsub.s32 %v2152, %v2154
        %v2156 = vrot.slane %v2140, %v2155
        %v2158 = vunpack.c.l.s4 1966171168
        %v2159 = vunpack.c.0.s8 %v2158
        %v2160 = vlaneseq
        %v2161 = vshrl.u32 %v2160, 7
        %v2162 = vsub.s32 %v2159, %v2161
        %v2163 = vrot.slane %v2141, %v2162
        %v2165 = vunpack.c.l.s4 1966171168
        %v2166 = vunpack.c.0.s8 %v2165
        %v2167 = vlaneseq
        %v2168 = vshrl.u32 %v2167, 7
        %v2169 = vsub.s32 %v2166, %v2168
        %v2170 = vrot.slane %v2142, %v2169
        %v2171 = vcombine.high %v2149, %v2149
        %v2172 = vcombine.high %v2156, %v2156
        %v2173 = vcombine.high %v2163, %v2163
        %v2174 = vcombine.high %v2170, %v2170
        %s2207 = scalar_lea.vmem %s224, %s232
        %vm2208 = vcmask 450560
        %2209 = vst.msk [vmem:[%s2207] sm:$0x1] %vm2208, %v2002
        %2210 = vst.msk [vmem:[%s2207 + $0x38] sm:$0x1] %vm2208, %v2016
        %2211 = vst.msk [vmem:[%s2207 + $0x70] sm:$0x1] %vm2208, %v2024
        %2212 = vst.msk [vmem:[%s2207 + $0xa8] sm:$0x1] %vm2208, %v2026
        %2213 = vst.msk [vmem:[%s2207 + $0xe0] sm:$0x1] %vm2208, %v2009
        %2214 = vst.msk [vmem:[%s2207 + $0x118] sm:$0x1] %vm2208, %v2023
        %2215 = vst.msk [vmem:[%s2207 + $0x150] sm:$0x1] %vm2208, %v2025
        %2216 = vst.msk [vmem:[%s2207 + $0x188] sm:$0x1] %vm2208, %v2027
        %2217 = vst.msk [vmem:[%s2207 + $0x1c0] sm:$0x1] %vm2208, %v2051
        %2218 = vst.msk [vmem:[%s2207 + $0x1f8] sm:$0x1] %vm2208, %v2065
        %2219 = vst.msk [vmem:[%s2207 + $0x230] sm:$0x1] %vm2208, %v2073
        %2220 = vst.msk [vmem:[%s2207 + $0x268] sm:$0x1] %vm2208, %v2075
        %2221 = vst.msk [vmem:[%s2207 + $0x2a0] sm:$0x1] %vm2208, %v2058
        %2222 = vst.msk [vmem:[%s2207 + $0x2d8] sm:$0x1] %vm2208, %v2072
        %2223 = vst.msk [vmem:[%s2207 + $0x310] sm:$0x1] %vm2208, %v2074
        %2224 = vst.msk [vmem:[%s2207 + $0x348] sm:$0x1] %vm2208, %v2076
        %2225 = vst.msk [vmem:[%s2207 + $0x380] sm:$0x1] %vm2208, %v2100
        %2226 = vst.msk [vmem:[%s2207 + $0x3b8] sm:$0x1] %vm2208, %v2114
        %2227 = vst.msk [vmem:[%s2207 + $0x3f0] sm:$0x1] %vm2208, %v2122
        %2228 = vst.msk [vmem:[%s2207 + $0x428] sm:$0x1] %vm2208, %v2124
        %2229 = vst.msk [vmem:[%s2207 + $0x460] sm:$0x1] %vm2208, %v2107
        %2230 = vst.msk [vmem:[%s2207 + $0x498] sm:$0x1] %vm2208, %v2121
        %2231 = vst.msk [vmem:[%s2207 + $0x4d0] sm:$0x1] %vm2208, %v2123
        %2232 = vst.msk [vmem:[%s2207 + $0x508] sm:$0x1] %vm2208, %v2125
        %2233 = vst.msk [vmem:[%s2207 + $0x540] sm:$0x1] %vm2208, %v2149
        %2234 = vst.msk [vmem:[%s2207 + $0x578] sm:$0x1] %vm2208, %v2163
        %2235 = vst.msk [vmem:[%s2207 + $0x5b0] sm:$0x1] %vm2208, %v2171
        %2236 = vst.msk [vmem:[%s2207 + $0x5e8] sm:$0x1] %vm2208, %v2173
        %2237 = vst.msk [vmem:[%s2207 + $0x620] sm:$0x1] %vm2208, %v2156
        %2238 = vst.msk [vmem:[%s2207 + $0x658] sm:$0x1] %vm2208, %v2170
        %2239 = vst.msk [vmem:[%s2207 + $0x690] sm:$0x1] %vm2208, %v2172
        %2240 = vst.msk [vmem:[%s2207 + $0x6c8] sm:$0x1] %vm2208, %v2174
        %s2241 = sadd.s32 %s232, 1
        %v2246 = vcombine.high %v1963, %v1963
        %v2248 = vunpack.c.l.s4 1966171168
        %v2249 = vunpack.c.0.s8 %v2248
        %v2250 = vlaneseq
        %v2251 = vshrl.u32 %v2250, 7
        %v2252 = vsub.s32 %v2249, %v2251
        %v2253 = vrot.slane %v1963, %v2252
        %v2255 = vunpack.c.l.s4 1966171168
        %v2256 = vunpack.c.0.s8 %v2255
        %v2257 = vlaneseq
        %v2258 = vshrl.u32 %v2257, 7
        %v2259 = vsub.s32 %v2256, %v2258
        %v2260 = vrot.slane %v2246, %v2259
        %v2261 = vcombine.high %v2253, %v2253
        %v2262 = vcombine.high %v2260, %v2260
        %v2264 = vunpack.c.l.s4 1966171168
        %v2265 = vunpack.c.0.s8 %v2264
        %v2266 = vlaneseq
        %v2267 = vshrl.u32 %v2266, 7
        %v2268 = vsub.s32 %v2265, %v2267
        %v2269 = vrot.slane %v2253, %v2268
        %v2271 = vunpack.c.l.s4 1966171168
        %v2272 = vunpack.c.0.s8 %v2271
        %v2273 = vlaneseq
        %v2274 = vshrl.u32 %v2273, 7
        %v2275 = vsub.s32 %v2272, %v2274
        %v2276 = vrot.slane %v2260, %v2275
        %v2278 = vunpack.c.l.s4 1966171168
        %v2279 = vunpack.c.0.s8 %v2278
        %v2280 = vlaneseq
        %v2281 = vshrl.u32 %v2280, 7
        %v2282 = vsub.s32 %v2279, %v2281
        %v2283 = vrot.slane %v2261, %v2282
        %v2285 = vunpack.c.l.s4 1966171168
        %v2286 = vunpack.c.0.s8 %v2285
        %v2287 = vlaneseq
        %v2288 = vshrl.u32 %v2287, 7
        %v2289 = vsub.s32 %v2286, %v2288
        %v2290 = vrot.slane %v2262, %v2289
        %v2291 = vcombine.high %v2269, %v2269
        %v2292 = vcombine.high %v2276, %v2276
        %v2293 = vcombine.high %v2283, %v2283
        %v2294 = vcombine.high %v2290, %v2290
        %v2295 = vcombine.high %v1964, %v1964
        %v2297 = vunpack.c.l.s4 1966171168
        %v2298 = vunpack.c.0.s8 %v2297
        %v2299 = vlaneseq
        %v2300 = vshrl.u32 %v2299, 7
        %v2301 = vsub.s32 %v2298, %v2300
        %v2302 = vrot.slane %v1964, %v2301
        %v2304 = vunpack.c.l.s4 1966171168
        %v2305 = vunpack.c.0.s8 %v2304
        %v2306 = vlaneseq
        %v2307 = vshrl.u32 %v2306, 7
        %v2308 = vsub.s32 %v2305, %v2307
        %v2309 = vrot.slane %v2295, %v2308
        %v2310 = vcombine.high %v2302, %v2302
        %v2311 = vcombine.high %v2309, %v2309
        %v2313 = vunpack.c.l.s4 1966171168
        %v2314 = vunpack.c.0.s8 %v2313
        %v2315 = vlaneseq
        %v2316 = vshrl.u32 %v2315, 7
        %v2317 = vsub.s32 %v2314, %v2316
        %v2318 = vrot.slane %v2302, %v2317
        %v2320 = vunpack.c.l.s4 1966171168
        %v2321 = vunpack.c.0.s8 %v2320
        %v2322 = vlaneseq
        %v2323 = vshrl.u32 %v2322, 7
        %v2324 = vsub.s32 %v2321, %v2323
        %v2325 = vrot.slane %v2309, %v2324
        %v2327 = vunpack.c.l.s4 1966171168
        %v2328 = vunpack.c.0.s8 %v2327
        %v2329 = vlaneseq
        %v2330 = vshrl.u32 %v2329, 7
        %v2331 = vsub.s32 %v2328, %v2330
        %v2332 = vrot.slane %v2310, %v2331
        %v2334 = vunpack.c.l.s4 1966171168
        %v2335 = vunpack.c.0.s8 %v2334
        %v2336 = vlaneseq
        %v2337 = vshrl.u32 %v2336, 7
        %v2338 = vsub.s32 %v2335, %v2337
        %v2339 = vrot.slane %v2311, %v2338
        %v2340 = vcombine.high %v2318, %v2318
        %v2341 = vcombine.high %v2325, %v2325
        %v2342 = vcombine.high %v2332, %v2332
        %v2343 = vcombine.high %v2339, %v2339
        %v2344 = vcombine.high %v1965, %v1965
        %v2346 = vunpack.c.l.s4 1966171168
        %v2347 = vunpack.c.0.s8 %v2346
        %v2348 = vlaneseq
        %v2349 = vshrl.u32 %v2348, 7
        %v2350 = vsub.s32 %v2347, %v2349
        %v2351 = vrot.slane %v1965, %v2350
        %v2353 = vunpack.c.l.s4 1966171168
        %v2354 = vunpack.c.0.s8 %v2353
        %v2355 = vlaneseq
        %v2356 = vshrl.u32 %v2355, 7
        %v2357 = vsub.s32 %v2354, %v2356
        %v2358 = vrot.slane %v2344, %v2357
        %v2359 = vcombine.high %v2351, %v2351
        %v2360 = vcombine.high %v2358, %v2358
        %v2362 = vunpack.c.l.s4 1966171168
        %v2363 = vunpack.c.0.s8 %v2362
        %v2364 = vlaneseq
        %v2365 = vshrl.u32 %v2364, 7
        %v2366 = vsub.s32 %v2363, %v2365
        %v2367 = vrot.slane %v2351, %v2366
        %v2369 = vunpack.c.l.s4 1966171168
        %v2370 = vunpack.c.0.s8 %v2369
        %v2371 = vlaneseq
        %v2372 = vshrl.u32 %v2371, 7
        %v2373 = vsub.s32 %v2370, %v2372
        %v2374 = vrot.slane %v2358, %v2373
        %v2376 = vunpack.c.l.s4 1966171168
        %v2377 = vunpack.c.0.s8 %v2376
        %v2378 = vlaneseq
        %v2379 = vshrl.u32 %v2378, 7
        %v2380 = vsub.s32 %v2377, %v2379
        %v2381 = vrot.slane %v2359, %v2380
        %v2383 = vunpack.c.l.s4 1966171168
        %v2384 = vunpack.c.0.s8 %v2383
        %v2385 = vlaneseq
        %v2386 = vshrl.u32 %v2385, 7
        %v2387 = vsub.s32 %v2384, %v2386
        %v2388 = vrot.slane %v2360, %v2387
        %v2389 = vcombine.high %v2367, %v2367
        %v2390 = vcombine.high %v2374, %v2374
        %v2391 = vcombine.high %v2381, %v2381
        %v2392 = vcombine.high %v2388, %v2388
        %v2393 = vcombine.high %v1966, %v1966
        %v2395 = vunpack.c.l.s4 1966171168
        %v2396 = vunpack.c.0.s8 %v2395
        %v2397 = vlaneseq
        %v2398 = vshrl.u32 %v2397, 7
        %v2399 = vsub.s32 %v2396, %v2398
        %v2400 = vrot.slane %v1966, %v2399
        %v2402 = vunpack.c.l.s4 1966171168
        %v2403 = vunpack.c.0.s8 %v2402
        %v2404 = vlaneseq
        %v2405 = vshrl.u32 %v2404, 7
        %v2406 = vsub.s32 %v2403, %v2405
        %v2407 = vrot.slane %v2393, %v2406
        %v2408 = vcombine.high %v2400, %v2400
        %v2409 = vcombine.high %v2407, %v2407
        %v2411 = vunpack.c.l.s4 1966171168
        %v2412 = vunpack.c.0.s8 %v2411
        %v2413 = vlaneseq
        %v2414 = vshrl.u32 %v2413, 7
        %v2415 = vsub.s32 %v2412, %v2414
        %v2416 = vrot.slane %v2400, %v2415
        %v2418 = vunpack.c.l.s4 1966171168
        %v2419 = vunpack.c.0.s8 %v2418
        %v2420 = vlaneseq
        %v2421 = vshrl.u32 %v2420, 7
        %v2422 = vsub.s32 %v2419, %v2421
        %v2423 = vrot.slane %v2407, %v2422
        %v2425 = vunpack.c.l.s4 1966171168
        %v2426 = vunpack.c.0.s8 %v2425
        %v2427 = vlaneseq
        %v2428 = vshrl.u32 %v2427, 7
        %v2429 = vsub.s32 %v2426, %v2428
        %v2430 = vrot.slane %v2408, %v2429
        %v2432 = vunpack.c.l.s4 1966171168
        %v2433 = vunpack.c.0.s8 %v2432
        %v2434 = vlaneseq
        %v2435 = vshrl.u32 %v2434, 7
        %v2436 = vsub.s32 %v2433, %v2435
        %v2437 = vrot.slane %v2409, %v2436
        %v2438 = vcombine.high %v2416, %v2416
        %v2439 = vcombine.high %v2423, %v2423
        %v2440 = vcombine.high %v2430, %v2430
        %v2441 = vcombine.high %v2437, %v2437
        %s2474 = scalar_lea.vmem %s224, %s2241
        %2475 = vst.msk [vmem:[%s2474] sm:$0x1] %vm2208, %v2269
        %2476 = vst.msk [vmem:[%s2474 + $0x38] sm:$0x1] %vm2208, %v2283
        %2477 = vst.msk [vmem:[%s2474 + $0x70] sm:$0x1] %vm2208, %v2291
        %2478 = vst.msk [vmem:[%s2474 + $0xa8] sm:$0x1] %vm2208, %v2293
        %2479 = vst.msk [vmem:[%s2474 + $0xe0] sm:$0x1] %vm2208, %v2276
        %2480 = vst.msk [vmem:[%s2474 + $0x118] sm:$0x1] %vm2208, %v2290
        %2481 = vst.msk [vmem:[%s2474 + $0x150] sm:$0x1] %vm2208, %v2292
        %2482 = vst.msk [vmem:[%s2474 + $0x188] sm:$0x1] %vm2208, %v2294
        %2483 = vst.msk [vmem:[%s2474 + $0x1c0] sm:$0x1] %vm2208, %v2318
        %2484 = vst.msk [vmem:[%s2474 + $0x1f8] sm:$0x1] %vm2208, %v2332
        %2485 = vst.msk [vmem:[%s2474 + $0x230] sm:$0x1] %vm2208, %v2340
        %2486 = vst.msk [vmem:[%s2474 + $0x268] sm:$0x1] %vm2208, %v2342
        %2487 = vst.msk [vmem:[%s2474 + $0x2a0] sm:$0x1] %vm2208, %v2325
        %2488 = vst.msk [vmem:[%s2474 + $0x2d8] sm:$0x1] %vm2208, %v2339
        %2489 = vst.msk [vmem:[%s2474 + $0x310] sm:$0x1] %vm2208, %v2341
        %2490 = vst.msk [vmem:[%s2474 + $0x348] sm:$0x1] %vm2208, %v2343
        %2491 = vst.msk [vmem:[%s2474 + $0x380] sm:$0x1] %vm2208, %v2367
        %2492 = vst.msk [vmem:[%s2474 + $0x3b8] sm:$0x1] %vm2208, %v2381
        %2493 = vst.msk [vmem:[%s2474 + $0x3f0] sm:$0x1] %vm2208, %v2389
        %2494 = vst.msk [vmem:[%s2474 + $0x428] sm:$0x1] %vm2208, %v2391
        %2495 = vst.msk [vmem:[%s2474 + $0x460] sm:$0x1] %vm2208, %v2374
        %2496 = vst.msk [vmem:[%s2474 + $0x498] sm:$0x1] %vm2208, %v2388
        %2497 = vst.msk [vmem:[%s2474 + $0x4d0] sm:$0x1] %vm2208, %v2390
        %2498 = vst.msk [vmem:[%s2474 + $0x508] sm:$0x1] %vm2208, %v2392
        %2499 = vst.msk [vmem:[%s2474 + $0x540] sm:$0x1] %vm2208, %v2416
        %2500 = vst.msk [vmem:[%s2474 + $0x578] sm:$0x1] %vm2208, %v2430
        %2501 = vst.msk [vmem:[%s2474 + $0x5b0] sm:$0x1] %vm2208, %v2438
        %2502 = vst.msk [vmem:[%s2474 + $0x5e8] sm:$0x1] %vm2208, %v2440
        %2503 = vst.msk [vmem:[%s2474 + $0x620] sm:$0x1] %vm2208, %v2423
        %2504 = vst.msk [vmem:[%s2474 + $0x658] sm:$0x1] %vm2208, %v2437
        %2505 = vst.msk [vmem:[%s2474 + $0x690] sm:$0x1] %vm2208, %v2439
        %2506 = vst.msk [vmem:[%s2474 + $0x6c8] sm:$0x1] %vm2208, %v2441
        %s2507 = sadd.s32 %s232, 2
        %v2512 = vcombine.high %v1967, %v1967
        %v2514 = vunpack.c.l.s4 1966171168
        %v2515 = vunpack.c.0.s8 %v2514
        %v2516 = vlaneseq
        %v2517 = vshrl.u32 %v2516, 7
        %v2518 = vsub.s32 %v2515, %v2517
        %v2519 = vrot.slane %v1967, %v2518
        %v2521 = vunpack.c.l.s4 1966171168
        %v2522 = vunpack.c.0.s8 %v2521
        %v2523 = vlaneseq
        %v2524 = vshrl.u32 %v2523, 7
        %v2525 = vsub.s32 %v2522, %v2524
        %v2526 = vrot.slane %v2512, %v2525
        %v2527 = vcombine.high %v2519, %v2519
        %v2528 = vcombine.high %v2526, %v2526
        %v2530 = vunpack.c.l.s4 1966171168
        %v2531 = vunpack.c.0.s8 %v2530
        %v2532 = vlaneseq
        %v2533 = vshrl.u32 %v2532, 7
        %v2534 = vsub.s32 %v2531, %v2533
        %v2535 = vrot.slane %v2519, %v2534
        %v2537 = vunpack.c.l.s4 1966171168
        %v2538 = vunpack.c.0.s8 %v2537
        %v2539 = vlaneseq
        %v2540 = vshrl.u32 %v2539, 7
        %v2541 = vsub.s32 %v2538, %v2540
        %v2542 = vrot.slane %v2526, %v2541
        %v2544 = vunpack.c.l.s4 1966171168
        %v2545 = vunpack.c.0.s8 %v2544
        %v2546 = vlaneseq
        %v2547 = vshrl.u32 %v2546, 7
        %v2548 = vsub.s32 %v2545, %v2547
        %v2549 = vrot.slane %v2527, %v2548
        %v2551 = vunpack.c.l.s4 1966171168
        %v2552 = vunpack.c.0.s8 %v2551
        %v2553 = vlaneseq
        %v2554 = vshrl.u32 %v2553, 7
        %v2555 = vsub.s32 %v2552, %v2554
        %v2556 = vrot.slane %v2528, %v2555
        %v2557 = vcombine.high %v2535, %v2535
        %v2558 = vcombine.high %v2542, %v2542
        %v2559 = vcombine.high %v2549, %v2549
        %v2560 = vcombine.high %v2556, %v2556
        %v2561 = vcombine.high %v1968, %v1968
        %v2563 = vunpack.c.l.s4 1966171168
        %v2564 = vunpack.c.0.s8 %v2563
        %v2565 = vlaneseq
        %v2566 = vshrl.u32 %v2565, 7
        %v2567 = vsub.s32 %v2564, %v2566
        %v2568 = vrot.slane %v1968, %v2567
        %v2570 = vunpack.c.l.s4 1966171168
        %v2571 = vunpack.c.0.s8 %v2570
        %v2572 = vlaneseq
        %v2573 = vshrl.u32 %v2572, 7
        %v2574 = vsub.s32 %v2571, %v2573
        %v2575 = vrot.slane %v2561, %v2574
        %v2576 = vcombine.high %v2568, %v2568
        %v2577 = vcombine.high %v2575, %v2575
        %v2579 = vunpack.c.l.s4 1966171168
        %v2580 = vunpack.c.0.s8 %v2579
        %v2581 = vlaneseq
        %v2582 = vshrl.u32 %v2581, 7
        %v2583 = vsub.s32 %v2580, %v2582
        %v2584 = vrot.slane %v2568, %v2583
        %v2586 = vunpack.c.l.s4 1966171168
        %v2587 = vunpack.c.0.s8 %v2586
        %v2588 = vlaneseq
        %v2589 = vshrl.u32 %v2588, 7
        %v2590 = vsub.s32 %v2587, %v2589
        %v2591 = vrot.slane %v2575, %v2590
        %v2593 = vunpack.c.l.s4 1966171168
        %v2594 = vunpack.c.0.s8 %v2593
        %v2595 = vlaneseq
        %v2596 = vshrl.u32 %v2595, 7
        %v2597 = vsub.s32 %v2594, %v2596
        %v2598 = vrot.slane %v2576, %v2597
        %v2600 = vunpack.c.l.s4 1966171168
        %v2601 = vunpack.c.0.s8 %v2600
        %v2602 = vlaneseq
        %v2603 = vshrl.u32 %v2602, 7
        %v2604 = vsub.s32 %v2601, %v2603
        %v2605 = vrot.slane %v2577, %v2604
        %v2606 = vcombine.high %v2584, %v2584
        %v2607 = vcombine.high %v2591, %v2591
        %v2608 = vcombine.high %v2598, %v2598
        %v2609 = vcombine.high %v2605, %v2605
        %v2610 = vcombine.high %v1969, %v1969
        %v2612 = vunpack.c.l.s4 1966171168
        %v2613 = vunpack.c.0.s8 %v2612
        %v2614 = vlaneseq
        %v2615 = vshrl.u32 %v2614, 7
        %v2616 = vsub.s32 %v2613, %v2615
        %v2617 = vrot.slane %v1969, %v2616
        %v2619 = vunpack.c.l.s4 1966171168
        %v2620 = vunpack.c.0.s8 %v2619
        %v2621 = vlaneseq
        %v2622 = vshrl.u32 %v2621, 7
        %v2623 = vsub.s32 %v2620, %v2622
        %v2624 = vrot.slane %v2610, %v2623
        %v2625 = vcombine.high %v2617, %v2617
        %v2626 = vcombine.high %v2624, %v2624
        %v2628 = vunpack.c.l.s4 1966171168
        %v2629 = vunpack.c.0.s8 %v2628
        %v2630 = vlaneseq
        %v2631 = vshrl.u32 %v2630, 7
        %v2632 = vsub.s32 %v2629, %v2631
        %v2633 = vrot.slane %v2617, %v2632
        %v2635 = vunpack.c.l.s4 1966171168
        %v2636 = vunpack.c.0.s8 %v2635
        %v2637 = vlaneseq
        %v2638 = vshrl.u32 %v2637, 7
        %v2639 = vsub.s32 %v2636, %v2638
        %v2640 = vrot.slane %v2624, %v2639
        %v2642 = vunpack.c.l.s4 1966171168
        %v2643 = vunpack.c.0.s8 %v2642
        %v2644 = vlaneseq
        %v2645 = vshrl.u32 %v2644, 7
        %v2646 = vsub.s32 %v2643, %v2645
        %v2647 = vrot.slane %v2625, %v2646
        %v2649 = vunpack.c.l.s4 1966171168
        %v2650 = vunpack.c.0.s8 %v2649
        %v2651 = vlaneseq
        %v2652 = vshrl.u32 %v2651, 7
        %v2653 = vsub.s32 %v2650, %v2652
        %v2654 = vrot.slane %v2626, %v2653
        %v2655 = vcombine.high %v2633, %v2633
        %v2656 = vcombine.high %v2640, %v2640
        %v2657 = vcombine.high %v2647, %v2647
        %v2658 = vcombine.high %v2654, %v2654
        %v2659 = vcombine.high %v1970, %v1970
        %v2661 = vunpack.c.l.s4 1966171168
        %v2662 = vunpack.c.0.s8 %v2661
        %v2663 = vlaneseq
        %v2664 = vshrl.u32 %v2663, 7
        %v2665 = vsub.s32 %v2662, %v2664
        %v2666 = vrot.slane %v1970, %v2665
        %v2668 = vunpack.c.l.s4 1966171168
        %v2669 = vunpack.c.0.s8 %v2668
        %v2670 = vlaneseq
        %v2671 = vshrl.u32 %v2670, 7
        %v2672 = vsub.s32 %v2669, %v2671
        %v2673 = vrot.slane %v2659, %v2672
        %v2674 = vcombine.high %v2666, %v2666
        %v2675 = vcombine.high %v2673, %v2673
        %v2677 = vunpack.c.l.s4 1966171168
        %v2678 = vunpack.c.0.s8 %v2677
        %v2679 = vlaneseq
        %v2680 = vshrl.u32 %v2679, 7
        %v2681 = vsub.s32 %v2678, %v2680
        %v2682 = vrot.slane %v2666, %v2681
        %v2684 = vunpack.c.l.s4 1966171168
        %v2685 = vunpack.c.0.s8 %v2684
        %v2686 = vlaneseq
        %v2687 = vshrl.u32 %v2686, 7
        %v2688 = vsub.s32 %v2685, %v2687
        %v2689 = vrot.slane %v2673, %v2688
        %v2691 = vunpack.c.l.s4 1966171168
        %v2692 = vunpack.c.0.s8 %v2691
        %v2693 = vlaneseq
        %v2694 = vshrl.u32 %v2693, 7
        %v2695 = vsub.s32 %v2692, %v2694
        %v2696 = vrot.slane %v2674, %v2695
        %v2698 = vunpack.c.l.s4 1966171168
        %v2699 = vunpack.c.0.s8 %v2698
        %v2700 = vlaneseq
        %v2701 = vshrl.u32 %v2700, 7
        %v2702 = vsub.s32 %v2699, %v2701
        %v2703 = vrot.slane %v2675, %v2702
        %v2704 = vcombine.high %v2682, %v2682
        %v2705 = vcombine.high %v2689, %v2689
        %v2706 = vcombine.high %v2696, %v2696
        %v2707 = vcombine.high %v2703, %v2703
        %s2740 = scalar_lea.vmem %s224, %s2507
        %2741 = vst.msk [vmem:[%s2740] sm:$0x1] %vm2208, %v2535
        %2742 = vst.msk [vmem:[%s2740 + $0x38] sm:$0x1] %vm2208, %v2549
        %2743 = vst.msk [vmem:[%s2740 + $0x70] sm:$0x1] %vm2208, %v2557
        %2744 = vst.msk [vmem:[%s2740 + $0xa8] sm:$0x1] %vm2208, %v2559
        %2745 = vst.msk [vmem:[%s2740 + $0xe0] sm:$0x1] %vm2208, %v2542
        %2746 = vst.msk [vmem:[%s2740 + $0x118] sm:$0x1] %vm2208, %v2556
        %2747 = vst.msk [vmem:[%s2740 + $0x150] sm:$0x1] %vm2208, %v2558
        %2748 = vst.msk [vmem:[%s2740 + $0x188] sm:$0x1] %vm2208, %v2560
        %2749 = vst.msk [vmem:[%s2740 + $0x1c0] sm:$0x1] %vm2208, %v2584
        %2750 = vst.msk [vmem:[%s2740 + $0x1f8] sm:$0x1] %vm2208, %v2598
        %2751 = vst.msk [vmem:[%s2740 + $0x230] sm:$0x1] %vm2208, %v2606
        %2752 = vst.msk [vmem:[%s2740 + $0x268] sm:$0x1] %vm2208, %v2608
        %2753 = vst.msk [vmem:[%s2740 + $0x2a0] sm:$0x1] %vm2208, %v2591
        %2754 = vst.msk [vmem:[%s2740 + $0x2d8] sm:$0x1] %vm2208, %v2605
        %2755 = vst.msk [vmem:[%s2740 + $0x310] sm:$0x1] %vm2208, %v2607
        %2756 = vst.msk [vmem:[%s2740 + $0x348] sm:$0x1] %vm2208, %v2609
        %2757 = vst.msk [vmem:[%s2740 + $0x380] sm:$0x1] %vm2208, %v2633
        %2758 = vst.msk [vmem:[%s2740 + $0x3b8] sm:$0x1] %vm2208, %v2647
        %2759 = vst.msk [vmem:[%s2740 + $0x3f0] sm:$0x1] %vm2208, %v2655
        %2760 = vst.msk [vmem:[%s2740 + $0x428] sm:$0x1] %vm2208, %v2657
        %2761 = vst.msk [vmem:[%s2740 + $0x460] sm:$0x1] %vm2208, %v2640
        %2762 = vst.msk [vmem:[%s2740 + $0x498] sm:$0x1] %vm2208, %v2654
        %2763 = vst.msk [vmem:[%s2740 + $0x4d0] sm:$0x1] %vm2208, %v2656
        %2764 = vst.msk [vmem:[%s2740 + $0x508] sm:$0x1] %vm2208, %v2658
        %2765 = vst.msk [vmem:[%s2740 + $0x540] sm:$0x1] %vm2208, %v2682
        %2766 = vst.msk [vmem:[%s2740 + $0x578] sm:$0x1] %vm2208, %v2696
        %2767 = vst.msk [vmem:[%s2740 + $0x5b0] sm:$0x1] %vm2208, %v2704
        %2768 = vst.msk [vmem:[%s2740 + $0x5e8] sm:$0x1] %vm2208, %v2706
        %2769 = vst.msk [vmem:[%s2740 + $0x620] sm:$0x1] %vm2208, %v2689
        %2770 = vst.msk [vmem:[%s2740 + $0x658] sm:$0x1] %vm2208, %v2703
        %2771 = vst.msk [vmem:[%s2740 + $0x690] sm:$0x1] %vm2208, %v2705
        %2772 = vst.msk [vmem:[%s2740 + $0x6c8] sm:$0x1] %vm2208, %v2707
        %s2773 = sadd.s32 %s232, 3
        %v2778 = vcombine.high %v1971, %v1971
        %v2780 = vunpack.c.l.s4 1966171168
        %v2781 = vunpack.c.0.s8 %v2780
        %v2782 = vlaneseq
        %v2783 = vshrl.u32 %v2782, 7
        %v2784 = vsub.s32 %v2781, %v2783
        %v2785 = vrot.slane %v1971, %v2784
        %v2787 = vunpack.c.l.s4 1966171168
        %v2788 = vunpack.c.0.s8 %v2787
        %v2789 = vlaneseq
        %v2790 = vshrl.u32 %v2789, 7
        %v2791 = vsub.s32 %v2788, %v2790
        %v2792 = vrot.slane %v2778, %v2791
        %v2793 = vcombine.high %v2785, %v2785
        %v2794 = vcombine.high %v2792, %v2792
        %v2796 = vunpack.c.l.s4 1966171168
        %v2797 = vunpack.c.0.s8 %v2796
        %v2798 = vlaneseq
        %v2799 = vshrl.u32 %v2798, 7
        %v2800 = vsub.s32 %v2797, %v2799
        %v2801 = vrot.slane %v2785, %v2800
        %v2803 = vunpack.c.l.s4 1966171168
        %v2804 = vunpack.c.0.s8 %v2803
        %v2805 = vlaneseq
        %v2806 = vshrl.u32 %v2805, 7
        %v2807 = vsub.s32 %v2804, %v2806
        %v2808 = vrot.slane %v2792, %v2807
        %v2810 = vunpack.c.l.s4 1966171168
        %v2811 = vunpack.c.0.s8 %v2810
        %v2812 = vlaneseq
        %v2813 = vshrl.u32 %v2812, 7
        %v2814 = vsub.s32 %v2811, %v2813
        %v2815 = vrot.slane %v2793, %v2814
        %v2817 = vunpack.c.l.s4 1966171168
        %v2818 = vunpack.c.0.s8 %v2817
        %v2819 = vlaneseq
        %v2820 = vshrl.u32 %v2819, 7
        %v2821 = vsub.s32 %v2818, %v2820
        %v2822 = vrot.slane %v2794, %v2821
        %v2823 = vcombine.high %v2801, %v2801
        %v2824 = vcombine.high %v2808, %v2808
        %v2825 = vcombine.high %v2815, %v2815
        %v2826 = vcombine.high %v2822, %v2822
        %v2827 = vcombine.high %v1972, %v1972
        %v2829 = vunpack.c.l.s4 1966171168
        %v2830 = vunpack.c.0.s8 %v2829
        %v2831 = vlaneseq
        %v2832 = vshrl.u32 %v2831, 7
        %v2833 = vsub.s32 %v2830, %v2832
        %v2834 = vrot.slane %v1972, %v2833
        %v2836 = vunpack.c.l.s4 1966171168
        %v2837 = vunpack.c.0.s8 %v2836
        %v2838 = vlaneseq
        %v2839 = vshrl.u32 %v2838, 7
        %v2840 = vsub.s32 %v2837, %v2839
        %v2841 = vrot.slane %v2827, %v2840
        %v2842 = vcombine.high %v2834, %v2834
        %v2843 = vcombine.high %v2841, %v2841
        %v2845 = vunpack.c.l.s4 1966171168
        %v2846 = vunpack.c.0.s8 %v2845
        %v2847 = vlaneseq
        %v2848 = vshrl.u32 %v2847, 7
        %v2849 = vsub.s32 %v2846, %v2848
        %v2850 = vrot.slane %v2834, %v2849
        %v2852 = vunpack.c.l.s4 1966171168
        %v2853 = vunpack.c.0.s8 %v2852
        %v2854 = vlaneseq
        %v2855 = vshrl.u32 %v2854, 7
        %v2856 = vsub.s32 %v2853, %v2855
        %v2857 = vrot.slane %v2841, %v2856
        %v2859 = vunpack.c.l.s4 1966171168
        %v2860 = vunpack.c.0.s8 %v2859
        %v2861 = vlaneseq
        %v2862 = vshrl.u32 %v2861, 7
        %v2863 = vsub.s32 %v2860, %v2862
        %v2864 = vrot.slane %v2842, %v2863
        %v2866 = vunpack.c.l.s4 1966171168
        %v2867 = vunpack.c.0.s8 %v2866
        %v2868 = vlaneseq
        %v2869 = vshrl.u32 %v2868, 7
        %v2870 = vsub.s32 %v2867, %v2869
        %v2871 = vrot.slane %v2843, %v2870
        %v2872 = vcombine.high %v2850, %v2850
        %v2873 = vcombine.high %v2857, %v2857
        %v2874 = vcombine.high %v2864, %v2864
        %v2875 = vcombine.high %v2871, %v2871
        %v2876 = vcombine.high %v1973, %v1973
        %v2878 = vunpack.c.l.s4 1966171168
        %v2879 = vunpack.c.0.s8 %v2878
        %v2880 = vlaneseq
        %v2881 = vshrl.u32 %v2880, 7
        %v2882 = vsub.s32 %v2879, %v2881
        %v2883 = vrot.slane %v1973, %v2882
        %v2885 = vunpack.c.l.s4 1966171168
        %v2886 = vunpack.c.0.s8 %v2885
        %v2887 = vlaneseq
        %v2888 = vshrl.u32 %v2887, 7
        %v2889 = vsub.s32 %v2886, %v2888
        %v2890 = vrot.slane %v2876, %v2889
        %v2891 = vcombine.high %v2883, %v2883
        %v2892 = vcombine.high %v2890, %v2890
        %v2894 = vunpack.c.l.s4 1966171168
        %v2895 = vunpack.c.0.s8 %v2894
        %v2896 = vlaneseq
        %v2897 = vshrl.u32 %v2896, 7
        %v2898 = vsub.s32 %v2895, %v2897
        %v2899 = vrot.slane %v2883, %v2898
        %v2901 = vunpack.c.l.s4 1966171168
        %v2902 = vunpack.c.0.s8 %v2901
        %v2903 = vlaneseq
        %v2904 = vshrl.u32 %v2903, 7
        %v2905 = vsub.s32 %v2902, %v2904
        %v2906 = vrot.slane %v2890, %v2905
        %v2908 = vunpack.c.l.s4 1966171168
        %v2909 = vunpack.c.0.s8 %v2908
        %v2910 = vlaneseq
        %v2911 = vshrl.u32 %v2910, 7
        %v2912 = vsub.s32 %v2909, %v2911
        %v2913 = vrot.slane %v2891, %v2912
        %v2915 = vunpack.c.l.s4 1966171168
        %v2916 = vunpack.c.0.s8 %v2915
        %v2917 = vlaneseq
        %v2918 = vshrl.u32 %v2917, 7
        %v2919 = vsub.s32 %v2916, %v2918
        %v2920 = vrot.slane %v2892, %v2919
        %v2921 = vcombine.high %v2899, %v2899
        %v2922 = vcombine.high %v2906, %v2906
        %v2923 = vcombine.high %v2913, %v2913
        %v2924 = vcombine.high %v2920, %v2920
        %v2925 = vcombine.high %v1974, %v1974
        %v2927 = vunpack.c.l.s4 1966171168
        %v2928 = vunpack.c.0.s8 %v2927
        %v2929 = vlaneseq
        %v2930 = vshrl.u32 %v2929, 7
        %v2931 = vsub.s32 %v2928, %v2930
        %v2932 = vrot.slane %v1974, %v2931
        %v2934 = vunpack.c.l.s4 1966171168
        %v2935 = vunpack.c.0.s8 %v2934
        %v2936 = vlaneseq
        %v2937 = vshrl.u32 %v2936, 7
        %v2938 = vsub.s32 %v2935, %v2937
        %v2939 = vrot.slane %v2925, %v2938
        %v2940 = vcombine.high %v2932, %v2932
        %v2941 = vcombine.high %v2939, %v2939
        %v2943 = vunpack.c.l.s4 1966171168
        %v2944 = vunpack.c.0.s8 %v2943
        %v2945 = vlaneseq
        %v2946 = vshrl.u32 %v2945, 7
        %v2947 = vsub.s32 %v2944, %v2946
        %v2948 = vrot.slane %v2932, %v2947
        %v2950 = vunpack.c.l.s4 1966171168
        %v2951 = vunpack.c.0.s8 %v2950
        %v2952 = vlaneseq
        %v2953 = vshrl.u32 %v2952, 7
        %v2954 = vsub.s32 %v2951, %v2953
        %v2955 = vrot.slane %v2939, %v2954
        %v2957 = vunpack.c.l.s4 1966171168
        %v2958 = vunpack.c.0.s8 %v2957
        %v2959 = vlaneseq
        %v2960 = vshrl.u32 %v2959, 7
        %v2961 = vsub.s32 %v2958, %v2960
        %v2962 = vrot.slane %v2940, %v2961
        %v2964 = vunpack.c.l.s4 1966171168
        %v2965 = vunpack.c.0.s8 %v2964
        %v2966 = vlaneseq
        %v2967 = vshrl.u32 %v2966, 7
        %v2968 = vsub.s32 %v2965, %v2967
        %v2969 = vrot.slane %v2941, %v2968
        %v2970 = vcombine.high %v2948, %v2948
        %v2971 = vcombine.high %v2955, %v2955
        %v2972 = vcombine.high %v2962, %v2962
        %v2973 = vcombine.high %v2969, %v2969
        %s3006 = scalar_lea.vmem %s224, %s2773
        %3007 = vst.msk [vmem:[%s3006] sm:$0x1] %vm2208, %v2801
        %3008 = vst.msk [vmem:[%s3006 + $0x38] sm:$0x1] %vm2208, %v2815
        %3009 = vst.msk [vmem:[%s3006 + $0x70] sm:$0x1] %vm2208, %v2823
        %3010 = vst.msk [vmem:[%s3006 + $0xa8] sm:$0x1] %vm2208, %v2825
        %3011 = vst.msk [vmem:[%s3006 + $0xe0] sm:$0x1] %vm2208, %v2808
        %3012 = vst.msk [vmem:[%s3006 + $0x118] sm:$0x1] %vm2208, %v2822
        %3013 = vst.msk [vmem:[%s3006 + $0x150] sm:$0x1] %vm2208, %v2824
        %3014 = vst.msk [vmem:[%s3006 + $0x188] sm:$0x1] %vm2208, %v2826
        %3015 = vst.msk [vmem:[%s3006 + $0x1c0] sm:$0x1] %vm2208, %v2850
        %3016 = vst.msk [vmem:[%s3006 + $0x1f8] sm:$0x1] %vm2208, %v2864
        %3017 = vst.msk [vmem:[%s3006 + $0x230] sm:$0x1] %vm2208, %v2872
        %3018 = vst.msk [vmem:[%s3006 + $0x268] sm:$0x1] %vm2208, %v2874
        %3019 = vst.msk [vmem:[%s3006 + $0x2a0] sm:$0x1] %vm2208, %v2857
        %3020 = vst.msk [vmem:[%s3006 + $0x2d8] sm:$0x1] %vm2208, %v2871
        %3021 = vst.msk [vmem:[%s3006 + $0x310] sm:$0x1] %vm2208, %v2873
        %3022 = vst.msk [vmem:[%s3006 + $0x348] sm:$0x1] %vm2208, %v2875
        %3023 = vst.msk [vmem:[%s3006 + $0x380] sm:$0x1] %vm2208, %v2899
        %3024 = vst.msk [vmem:[%s3006 + $0x3b8] sm:$0x1] %vm2208, %v2913
        %3025 = vst.msk [vmem:[%s3006 + $0x3f0] sm:$0x1] %vm2208, %v2921
        %3026 = vst.msk [vmem:[%s3006 + $0x428] sm:$0x1] %vm2208, %v2923
        %3027 = vst.msk [vmem:[%s3006 + $0x460] sm:$0x1] %vm2208, %v2906
        %3028 = vst.msk [vmem:[%s3006 + $0x498] sm:$0x1] %vm2208, %v2920
        %3029 = vst.msk [vmem:[%s3006 + $0x4d0] sm:$0x1] %vm2208, %v2922
        %3030 = vst.msk [vmem:[%s3006 + $0x508] sm:$0x1] %vm2208, %v2924
        %3031 = vst.msk [vmem:[%s3006 + $0x540] sm:$0x1] %vm2208, %v2948
        %3032 = vst.msk [vmem:[%s3006 + $0x578] sm:$0x1] %vm2208, %v2962
        %3033 = vst.msk [vmem:[%s3006 + $0x5b0] sm:$0x1] %vm2208, %v2970
        %3034 = vst.msk [vmem:[%s3006 + $0x5e8] sm:$0x1] %vm2208, %v2972
        %3035 = vst.msk [vmem:[%s3006 + $0x620] sm:$0x1] %vm2208, %v2955
        %3036 = vst.msk [vmem:[%s3006 + $0x658] sm:$0x1] %vm2208, %v2969
        %3037 = vst.msk [vmem:[%s3006 + $0x690] sm:$0x1] %vm2208, %v2971
        %3038 = vst.msk [vmem:[%s3006 + $0x6c8] sm:$0x1] %vm2208, %v2973
      $region45: #{simple_cnn_forward.4} parent=39 // loop_footer
        %s230 = sadd.s32 1, %s226
      $region46: #{simple_cnn_forward.4} parent=39 // loop_footer_branch
        %225 = sbr.rel target = $region42
      $region47: #{simple_cnn_forward.4} parent=39 // loop_exit
        _
      %p3039 = scmp.lt.s32.totalorder %s16, 1
      %s3040 = scalar_select %p3039, %s16, 1
      %s3041 = smul.addr %s3040, 224
      %s3042 = smul.addr %s3041, 8
      %s3043 = scalar_lea.vmem %s5, %s3042
      // Predicated region
      $region48: #{simple_cnn_forward.4} parent=39 // pred_check
        %p3044 = pneg %p144
      $region49: #{simple_cnn_forward.4} parent=39 // pred_check_branch
        %3046 = sbr.rel (%p3044) target = $region51
      $region50: #{simple_cnn_forward.4} parent=39 // pred_region
        _
      $region51: #{simple_cnn_forward.4} parent=39 // pred_fallthru
        _
    $region40: #{simple_cnn_forward.4} parent=5 // pred_fallthru
      _
    %p3047 = scmp.le.s32.totalorder 2, %s11
    // Predicated region
    $region52: #{simple_cnn_forward.4} parent=5 // pred_check
      %p3048 = pneg %p3047
    $region53: #{simple_cnn_forward.4} parent=5 // pred_check_branch
      %3050 = sbr.rel (%p3048) target = $region55
    $region54: #{simple_cnn_forward.4} parent=5 // pred_region
      %s3051 = ssub.s32 %s11, 2
      // Predicated region
      $region56: #{simple_cnn_forward.4} parent=54 // pred_check
        %p3052 = pneg %p150
      $region57: #{simple_cnn_forward.4} parent=54 // pred_check_branch
        %3054 = sbr.rel (%p3052) target = $region59
      $region58: #{simple_cnn_forward.4} parent=54 // pred_region
        %p3055 = scmp.lt.s32.totalorder %s17, 1
        %s3056 = scalar_select %p3055, %s17, 1
        %s3057 = smul.addr %s3056, 224
        %s3058 = smul.addr %s3057, 8
        %s3059 = scalar_lea.vmem %s5, %s3058
      $region59: #{simple_cnn_forward.4} parent=54 // pred_fallthru
        _
    $region55: #{simple_cnn_forward.4} parent=5 // pred_fallthru
      _
  $region6: #{simple_cnn_forward.4} parent=0 // loop_footer
    %s15 = sadd.s32 1, %s11
  $region7: #{simple_cnn_forward.4} parent=0 // loop_footer_branch
    %10 = sbr.rel target = $region3
  $region8: #{simple_cnn_forward.4} parent=0 // loop_exit
    _

// kernel: simple_cnn_forward.5
$region0: #{simple_cnn_forward.5}
  #allocation0 [shape = 'u32[]', space=smem, size = 0x4, offset = 0x4, fixed_abs, tag = 'smem constant byte address 0x4 - core index']
  #allocation1 [shape = 'u32[144,128]{1,0:T(1,128)}', space=vmem, size = 0x12000, scoped, tag = 'internal scratch']
  #allocation2 [shape = 'f32[2,128]{1,0:T(2,128)}', space=vmem, size = 0x400, scoped, tag = 'scratch operand']
  %s0 = inlined_call_operand.vmem [shape: f32[2,100352], index: 0, kind: input, shape index: {}]
  %s1 = inlined_call_operand.hbm [shape: f32[128,100352], index: 1, kind: input, shape index: {}]
  %s2 = inlined_call_operand.vmem [shape: f32[1,128], index: 2, kind: input, shape index: {}]
  %s3 = inlined_call_operand.vmem [shape: f32[10,128], index: 3, kind: input, shape index: {}]
  %s4 = inlined_call_operand.vmem [shape: f32[1,10], index: 4, kind: input, shape index: {}]
  %s5 = inlined_call_operand.hbm [shape: f32[2,10], index: 5, kind: output, shape index: {}]
  %s6 = sld [smem:[#allocation0]]
  $region65: #{simple_cnn_forward.5} parent=0
    _
  %s8 = ssub.s32 1, %s6
  %s9 = scalar_select 0, %s8, %s6
  $region1: #{simple_cnn_forward.5} parent=0
    #allocation3 [shape = 'u8[7340032]{0}', space=vmem, size = 0x700000, scoped, tag = 'input window, operand 1']
    #allocation4 [shape = 's32[2]{0}', space=sflag, size = 0x8, scoped, tag = 'scoped memory for simple_cnn_forward.5']
    #allocation5 [shape = 's32[2]{0}', space=sflag, size = 0x8, scoped, tag = 'scoped memory for simple_cnn_forward.5']
    #allocation6 [shape = 'u8[1024]{0}', space=vmem, size = 0x400, scoped, tag = 'output window, operand 0, single buffered']
    %10 = vsyncpa [#allocation4], 0
    %s11 = scalar_lea.sflag [#allocation4], 1
    %12 = vsyncpa %s11, 0
    %13 = vsyncpa [#allocation5], 0
    loop: start=0, step=1, limit=16
    $region2: #{simple_cnn_forward.5} parent=1 // loop_pre_header
      _
    $region3: #{simple_cnn_forward.5} parent=1 // loop_header
      %s15 = sphi 0, %s19
      %p16 = scmp.ge.s32.totalorder %s15, 16
      %s25 = sphi 0, %s27
      %s28 = sphi 0, %s25
      %s29 = sphi 0, %s28
      %s45 = sphi 0, %s29
      %s51 = sphi 0, %s53
      %s54 = sphi 0, %s51
      %s55 = sphi 0, %s54
      %s71 = sphi 0, %s55
      %s75 = sphi 0, %s75
      %s77 = sphi 0, %s75
      %s78 = sphi 0, %s77
      %s92 = sphi 0, %s78
      %s96 = sphi 0, %s96
      %s98 = sphi 0, %s96
      %s99 = sphi 0, %s98
      %s113 = sphi 0, %s99
      %s117 = sphi 0, %s117
      %s119 = sphi 0, %s117
      %s120 = sphi 0, %s119
      %s134 = sphi 0, %s120
      %s138 = sphi 0, %s138
      %s140 = sphi 0, %s138
      %s141 = sphi 0, %s140
      %s155 = sphi 0, %s141
    $region4: #{simple_cnn_forward.5} parent=1 // loop_header_branch
      %18 = sbr.rel (%p16) target = $region8
    $region5: #{simple_cnn_forward.5} parent=1 // loop_body
      %s20 = ssub.s32 %s15, 1
      %s21 = ssub.s32 %s15, 2
      %s22 = sadd.s32 %s15, 1
      %s23 = ssub.s32 %s15, %s22
      %p24 = scmp.eq.s32.totalorder %s23, 0
      %s26 = sadd.s32 %s25, 1
      %s27 = scalar_select %p24, %s25, %s26
      %p30 = pneg %p24
      %p31 = scmp.eq.s32.totalorder %s15, 13
      %p32 = por %p30, %p31
      %p33 = scmp.ne.s32.totalorder %s25, %s28
      %p34 = scmp.eq.s32.totalorder %s15, 0
      %p35 = por %p33, %p34
      %p36 = scmp.ne.s32.totalorder %s25, %s28
      %p37 = scmp.eq.s32.totalorder %s20, 13
      %p38 = por %p36, %p37
      %p39 = scmp.ne.s32.totalorder %s28, %s29
      %p40 = scmp.eq.s32.totalorder %s20, 0
      %p41 = por %p39, %p40
      %p42 = scmp.ne.s32.totalorder %s28, %s29
      %p43 = scmp.eq.s32.totalorder %s21, 13
      %p44 = por %p42, %p43
      %p46 = scmp.ne.s32.totalorder %s29, %s45
      %p47 = scmp.eq.s32.totalorder %s21, 0
      %p48 = por %p46, %p47
      %s49 = ssub.s32 %s15, %s22
      %p50 = scmp.eq.s32.totalorder %s49, 0
      %s52 = sadd.s32 %s51, 1
      %s53 = scalar_select %p50, %s51, %s52
      %p56 = pneg %p50
      %p57 = scmp.eq.s32.totalorder %s15, 13
      %p58 = por %p56, %p57
      %p59 = scmp.ne.s32.totalorder %s51, %s54
      %p60 = scmp.eq.s32.totalorder %s15, 0
      %p61 = por %p59, %p60
      %p62 = scmp.ne.s32.totalorder %s51, %s54
      %p63 = scmp.eq.s32.totalorder %s20, 13
      %p64 = por %p62, %p63
      %p65 = scmp.ne.s32.totalorder %s54, %s55
      %p66 = scmp.eq.s32.totalorder %s20, 0
      %p67 = por %p65, %p66
      %p68 = scmp.ne.s32.totalorder %s54, %s55
      %p69 = scmp.eq.s32.totalorder %s21, 13
      %p70 = por %p68, %p69
      %p72 = scmp.ne.s32.totalorder %s55, %s71
      %p73 = scmp.eq.s32.totalorder %s21, 0
      %p74 = por %p72, %p73
      %s76 = sadd.s32 %s75, 1
      %p79 = scmp.eq.s32.totalorder %s15, 13
      %p80 = scmp.ne.s32.totalorder %s75, %s77
      %p81 = scmp.eq.s32.totalorder %s15, 0
      %p82 = por %p80, %p81
      %p83 = scmp.ne.s32.totalorder %s75, %s77
      %p84 = scmp.eq.s32.totalorder %s20, 13
      %p85 = por %p83, %p84
      %p86 = scmp.ne.s32.totalorder %s77, %s78
      %p87 = scmp.eq.s32.totalorder %s20, 0
      %p88 = por %p86, %p87
      %p89 = scmp.ne.s32.totalorder %s77, %s78
      %p90 = scmp.eq.s32.totalorder %s21, 13
      %p91 = por %p89, %p90
      %p93 = scmp.ne.s32.totalorder %s78, %s92
      %p94 = scmp.eq.s32.totalorder %s21, 0
      %p95 = por %p93, %p94
      %s97 = sadd.s32 %s96, 1
      %p100 = scmp.eq.s32.totalorder %s15, 13
      %p101 = scmp.ne.s32.totalorder %s96, %s98
      %p102 = scmp.eq.s32.totalorder %s15, 0
      %p103 = por %p101, %p102
      %p104 = scmp.ne.s32.totalorder %s96, %s98
      %p105 = scmp.eq.s32.totalorder %s20, 13
      %p106 = por %p104, %p105
      %p107 = scmp.ne.s32.totalorder %s98, %s99
      %p108 = scmp.eq.s32.totalorder %s20, 0
      %p109 = por %p107, %p108
      %p110 = scmp.ne.s32.totalorder %s98, %s99
      %p111 = scmp.eq.s32.totalorder %s21, 13
      %p112 = por %p110, %p111
      %p114 = scmp.ne.s32.totalorder %s99, %s113
      %p115 = scmp.eq.s32.totalorder %s21, 0
      %p116 = por %p114, %p115
      %s118 = sadd.s32 %s117, 1
      %p121 = scmp.eq.s32.totalorder %s15, 13
      %p122 = scmp.ne.s32.totalorder %s117, %s119
      %p123 = scmp.eq.s32.totalorder %s15, 0
      %p124 = por %p122, %p123
      %p125 = scmp.ne.s32.totalorder %s117, %s119
      %p126 = scmp.eq.s32.totalorder %s20, 13
      %p127 = por %p125, %p126
      %p128 = scmp.ne.s32.totalorder %s119, %s120
      %p129 = scmp.eq.s32.totalorder %s20, 0
      %p130 = por %p128, %p129
      %p131 = scmp.ne.s32.totalorder %s119, %s120
      %p132 = scmp.eq.s32.totalorder %s21, 13
      %p133 = por %p131, %p132
      %p135 = scmp.ne.s32.totalorder %s120, %s134
      %p136 = scmp.eq.s32.totalorder %s21, 0
      %p137 = por %p135, %p136
      %s139 = sadd.s32 %s138, 1
      %p142 = scmp.eq.s32.totalorder %s15, 13
      %p143 = scmp.ne.s32.totalorder %s138, %s140
      %p144 = scmp.eq.s32.totalorder %s15, 0
      %p145 = por %p143, %p144
      %p146 = scmp.ne.s32.totalorder %s138, %s140
      %p147 = scmp.eq.s32.totalorder %s20, 13
      %p148 = por %p146, %p147
      %p149 = scmp.ne.s32.totalorder %s140, %s141
      %p150 = scmp.eq.s32.totalorder %s20, 0
      %p151 = por %p149, %p150
      %p152 = scmp.ne.s32.totalorder %s140, %s141
      %p153 = scmp.eq.s32.totalorder %s21, 13
      %p154 = por %p152, %p153
      %p156 = scmp.ne.s32.totalorder %s141, %s155
      %p157 = scmp.eq.s32.totalorder %s21, 0
      %p158 = por %p156, %p157
      %p159 = scmp.le.s32.totalorder 1, %s15
      %p160 = scmp.lt.s32.totalorder %s15, 15
      %p161 = pnand %p159, %p160
      %p162 = pneg %p161
      // Predicated region
      $region9: #{simple_cnn_forward.5} parent=5 // pred_check
        _
      $region10: #{simple_cnn_forward.5} parent=5 // pred_check_branch
        %164 = sbr.rel (%p161) target = $region12
      $region11: #{simple_cnn_forward.5} parent=5 // pred_region
        %s165 = ssub.s32 %s15, 1
        // Predicated region
        $region13: #{simple_cnn_forward.5} parent=11 // pred_check
          %p166 = pneg %p88
        $region14: #{simple_cnn_forward.5} parent=11 // pred_check_branch
          %168 = sbr.rel (%p166) target = $region16
        $region15: #{simple_cnn_forward.5} parent=11 // pred_region
          _
        $region16: #{simple_cnn_forward.5} parent=11 // pred_fallthru
          _
        // Predicated region
        $region17: #{simple_cnn_forward.5} parent=11 // pred_check
          %p169 = pneg %p109
        $region18: #{simple_cnn_forward.5} parent=11 // pred_check_branch
          %171 = sbr.rel (%p169) target = $region20
        $region19: #{simple_cnn_forward.5} parent=11 // pred_region
          _
        $region20: #{simple_cnn_forward.5} parent=11 // pred_fallthru
          _
        // Predicated region
        $region21: #{simple_cnn_forward.5} parent=11 // pred_check
          %p172 = pneg %p130
        $region22: #{simple_cnn_forward.5} parent=11 // pred_check_branch
          %174 = sbr.rel (%p172) target = $region24
        $region23: #{simple_cnn_forward.5} parent=11 // pred_region
          _
        $region24: #{simple_cnn_forward.5} parent=11 // pred_fallthru
          _
      $region12: #{simple_cnn_forward.5} parent=5 // pred_fallthru
        _
      %p175 = scmp.lt.s32.totalorder %s15, 14
      // Predicated region
      $region25: #{simple_cnn_forward.5} parent=5 // pred_check
        %p176 = pneg %p175
      $region26: #{simple_cnn_forward.5} parent=5 // pred_check_branch
        %178 = sbr.rel (%p176) target = $region28
      $region27: #{simple_cnn_forward.5} parent=5 // pred_region
        // Predicated region
        $region29: #{simple_cnn_forward.5} parent=27 // pred_check
          %p179 = pneg %p35
        $region30: #{simple_cnn_forward.5} parent=27 // pred_check_branch
          %181 = sbr.rel (%p179) target = $region32
        $region31: #{simple_cnn_forward.5} parent=27 // pred_region
          %s182 = smul.u32 56, %s15
          %p183 = scmp.lt.s32.totalorder %s182, 783
          %s184 = scalar_select %p183, %s182, 783
          %s185 = smul.addr %s184, 2
          %s186 = scalar_lea.vmem %s0, %s185
          %s187 = smul.u32 56, %s15
        $region32: #{simple_cnn_forward.5} parent=27 // pred_fallthru
          _
        // Predicated region
        $region33: #{simple_cnn_forward.5} parent=27 // pred_check
          %p188 = pneg %p61
        $region34: #{simple_cnn_forward.5} parent=27 // pred_check_branch
          %190 = sbr.rel (%p188) target = $region36
        $region35: #{simple_cnn_forward.5} parent=27 // pred_region
          %s191 = sand.u32 %s51, 1
          %s192 = scalar_lea.sflag [#allocation4], %s191
          %s193 = sand.u32 %s51, 1
          %s194 = smul.addr %s193, 7168
          %s195 = scalar_lea.vmem [#allocation3], %s194
          %s196 = smul.u32 56, %s15
          %s198 = ssub.s32 114688, 114688
          %199 = vsyncadd %s192, %s198
          %s200 = smul.addr %s196, 128
          %s201 = scalar_lea.hbm %s1, %s200
          %s202 = sshll.u32 %s195, 4
          %s203 = int_to_ptr.vmem [resolvable:$true] %s202
          %208 = dma.hbm_to_vmem [thread:$0]  %s201, 114688, %s203, %s192, 100352, 7168, 448
        $region36: #{simple_cnn_forward.5} parent=27 // pred_fallthru
          _
      $region28: #{simple_cnn_forward.5} parent=5 // pred_fallthru
        _
      %p209 = scmp.le.s32.totalorder 1, %s15
      %p210 = scmp.lt.s32.totalorder %s15, 15
      %p211 = pnand %p209, %p210
      %p212 = pneg %p211
      // Predicated region
      $region37: #{simple_cnn_forward.5} parent=5 // pred_check
        _
      $region38: #{simple_cnn_forward.5} parent=5 // pred_check_branch
        %214 = sbr.rel (%p211) target = $region40
      $region39: #{simple_cnn_forward.5} parent=5 // pred_region
        %s215 = ssub.s32 %s15, 1
        %s216 = sand.u32 %s54, 1
        %s217 = scalar_lea.sflag [#allocation4], %s216
        %s218 = sand.u32 %s54, 1
        %s219 = smul.addr %s218, 7168
        %s220 = scalar_lea.vmem [#allocation3], %s219
        // Predicated region
        $region41: #{simple_cnn_forward.5} parent=39 // pred_check
          %p221 = pneg %p67
        $region42: #{simple_cnn_forward.5} parent=39 // pred_check_branch
          %223 = sbr.rel (%p221) target = $region44
        $region43: #{simple_cnn_forward.5} parent=39 // pred_region
          %224 = dma.done %s217, 114688
        $region44: #{simple_cnn_forward.5} parent=39 // pred_fallthru
          _
        %s225 = smul.u32 56, %s20
        %p226 = scmp.lt.s32.totalorder %s225, 783
        %s227 = scalar_select %p226, %s225, 783
        %s228 = smul.addr %s227, 2
        %s229 = scalar_lea.vmem %s0, %s228
        %p230 = pneg %p41
        %p231 = pneg %p38
        %s232 = sand.u32 %s54, 1
        %s233 = scalar_lea.sflag [#allocation4], %s232
        %s234 = sand.u32 %s54, 1
        %s235 = smul.addr %s234, 7168
        %s236 = scalar_lea.vmem [#allocation3], %s235
        %p237 = pneg %p67
        %p238 = pneg %p64
        %p239 = pneg %p88
        %p240 = pneg %p85
        %p241 = pneg %p109
        %p242 = pneg %p106
        %p243 = pneg %p130
        %p244 = pneg %p127
        %p245 = pneg %p151
        %p246 = pneg %p148
        %s247 = smul.u32 56, %s20
        %p248 = scmp.lt.s32.totalorder %s247, 783
        %s249 = scalar_select %p248, %s247, 783
        %s250 = smul.addr %s249, 2
        %s251 = scalar_lea.vmem %s0, %s250
        %s252 = smul.u32 56, %s20
        %s253 = smul.u32 56, %s20
        %p254 = scmp.eq.s32.totalorder %s20, 0
        // Predicated region
        $region45: #{simple_cnn_forward.5} parent=39 // pred_check
          %p255 = pneg %p254
        $region46: #{simple_cnn_forward.5} parent=39 // pred_check_branch
          %257 = sbr.rel (%p255) target = $region48
        $region47: #{simple_cnn_forward.5} parent=39 // pred_region
          %258 = vst [vmem:[#allocation2] sm:$0x3] 0.0
        $region48: #{simple_cnn_forward.5} parent=39 // pred_fallthru
          _
        %v259 = vld [vmem:[#allocation2] sm:$0x3]
        %v260 = vld [vmem:[%s251] sm:$0xff]
        %v261 = vld [vmem:[%s251 + $0x8] sm:$0xff]
        %v262 = vld [vmem:[%s251 + $0x10] sm:$0xff]
        %v263 = vld [vmem:[%s251 + $0x18] sm:$0xff]
        %v264 = vld [vmem:[%s251 + $0x20] sm:$0xff]
        %v265 = vld [vmem:[%s251 + $0x28] sm:$0xff]
        %v266 = vld [vmem:[%s251 + $0x30] sm:$0xff]
        %v267 = vld [vmem:[%s251 + $0x38] sm:$0xff]
        %v268 = vld [vmem:[%s251 + $0x40] sm:$0xff]
        %v269 = vld [vmem:[%s251 + $0x48] sm:$0xff]
        %v270 = vld [vmem:[%s251 + $0x50] sm:$0xff]
        %v271 = vld [vmem:[%s251 + $0x58] sm:$0xff]
        %v272 = vld [vmem:[%s251 + $0x60] sm:$0xff]
        %v273 = vld [vmem:[%s251 + $0x68] sm:$0xff]
        %v274 = vld [vmem:[%s220] sm:$0xff]
        %v275 = vld [vmem:[%s220 + $0x8] sm:$0xff]
        %v276 = vld [vmem:[%s220 + $0x10] sm:$0xff]
        %v277 = vld [vmem:[%s220 + $0x18] sm:$0xff]
        %v278 = vld [vmem:[%s220 + $0x20] sm:$0xff]
        %v279 = vld [vmem:[%s220 + $0x28] sm:$0xff]
        %v280 = vld [vmem:[%s220 + $0x30] sm:$0xff]
        %v281 = vld [vmem:[%s220 + $0x38] sm:$0xff]
        %v282 = vld [vmem:[%s220 + $0x40] sm:$0xff]
        %v283 = vld [vmem:[%s220 + $0x48] sm:$0xff]
        %v284 = vld [vmem:[%s220 + $0x50] sm:$0xff]
        %v285 = vld [vmem:[%s220 + $0x58] sm:$0xff]
        %v286 = vld [vmem:[%s220 + $0x60] sm:$0xff]
        %v287 = vld [vmem:[%s220 + $0x68] sm:$0xff]
        %v288 = vld [vmem:[%s220 + $0x70] sm:$0xff]
        %v289 = vld [vmem:[%s220 + $0x78] sm:$0xff]
        %v290 = vld [vmem:[%s220 + $0x80] sm:$0xff]
        %v291 = vld [vmem:[%s220 + $0x88] sm:$0xff]
        %v292 = vld [vmem:[%s220 + $0x90] sm:$0xff]
        %v293 = vld [vmem:[%s220 + $0x98] sm:$0xff]
        %v294 = vld [vmem:[%s220 + $0xa0] sm:$0xff]
        %v295 = vld [vmem:[%s220 + $0xa8] sm:$0xff]
        %v296 = vld [vmem:[%s220 + $0xb0] sm:$0xff]
        %v297 = vld [vmem:[%s220 + $0xb8] sm:$0xff]
        %v298 = vld [vmem:[%s220 + $0xc0] sm:$0xff]
        %v299 = vld [vmem:[%s220 + $0xc8] sm:$0xff]
        %v300 = vld [vmem:[%s220 + $0xd0] sm:$0xff]
        %v301 = vld [vmem:[%s220 + $0xd8] sm:$0xff]
        %v302 = vld [vmem:[%s220 + $0xe0] sm:$0xff]
        %v303 = vld [vmem:[%s220 + $0xe8] sm:$0xff]
        %v304 = vld [vmem:[%s220 + $0xf0] sm:$0xff]
        %v305 = vld [vmem:[%s220 + $0xf8] sm:$0xff]
        %v306 = vld [vmem:[%s220 + $0x100] sm:$0xff]
        %v307 = vld [vmem:[%s220 + $0x108] sm:$0xff]
        %v308 = vld [vmem:[%s220 + $0x110] sm:$0xff]
        %v309 = vld [vmem:[%s220 + $0x118] sm:$0xff]
        %v310 = vld [vmem:[%s220 + $0x120] sm:$0xff]
        %v311 = vld [vmem:[%s220 + $0x128] sm:$0xff]
        %v312 = vld [vmem:[%s220 + $0x130] sm:$0xff]
        %v313 = vld [vmem:[%s220 + $0x138] sm:$0xff]
        %v314 = vld [vmem:[%s220 + $0x140] sm:$0xff]
        %v315 = vld [vmem:[%s220 + $0x148] sm:$0xff]
        %v316 = vld [vmem:[%s220 + $0x150] sm:$0xff]
        %v317 = vld [vmem:[%s220 + $0x158] sm:$0xff]
        %v318 = vld [vmem:[%s220 + $0x160] sm:$0xff]
        %v319 = vld [vmem:[%s220 + $0x168] sm:$0xff]
        %v320 = vld [vmem:[%s220 + $0x170] sm:$0xff]
        %v321 = vld [vmem:[%s220 + $0x178] sm:$0xff]
        %v322 = vld [vmem:[%s220 + $0x180] sm:$0xff]
        %v323 = vld [vmem:[%s220 + $0x188] sm:$0xff]
        %v324 = vld [vmem:[%s220 + $0x190] sm:$0xff]
        %v325 = vld [vmem:[%s220 + $0x198] sm:$0xff]
        %v326 = vld [vmem:[%s220 + $0x1a0] sm:$0xff]
        %v327 = vld [vmem:[%s220 + $0x1a8] sm:$0xff]
        %v328 = vld [vmem:[%s220 + $0x1b0] sm:$0xff]
        %v329 = vld [vmem:[%s220 + $0x1b8] sm:$0xff]
        %v330 = vld [vmem:[%s220 + $0x1c0] sm:$0xff]
        %v331 = vld [vmem:[%s220 + $0x1c8] sm:$0xff]
        %v332 = vld [vmem:[%s220 + $0x1d0] sm:$0xff]
        %v333 = vld [vmem:[%s220 + $0x1d8] sm:$0xff]
        %v334 = vld [vmem:[%s220 + $0x1e0] sm:$0xff]
        %v335 = vld [vmem:[%s220 + $0x1e8] sm:$0xff]
        %v336 = vld [vmem:[%s220 + $0x1f0] sm:$0xff]
        %v337 = vld [vmem:[%s220 + $0x1f8] sm:$0xff]
        %v338 = vld [vmem:[%s220 + $0x200] sm:$0xff]
        %v339 = vld [vmem:[%s220 + $0x208] sm:$0xff]
        %v340 = vld [vmem:[%s220 + $0x210] sm:$0xff]
        %v341 = vld [vmem:[%s220 + $0x218] sm:$0xff]
        %v342 = vld [vmem:[%s220 + $0x220] sm:$0xff]
        %v343 = vld [vmem:[%s220 + $0x228] sm:$0xff]
        %v344 = vld [vmem:[%s220 + $0x230] sm:$0xff]
        %v345 = vld [vmem:[%s220 + $0x238] sm:$0xff]
        %v346 = vld [vmem:[%s220 + $0x240] sm:$0xff]
        %v347 = vld [vmem:[%s220 + $0x248] sm:$0xff]
        %v348 = vld [vmem:[%s220 + $0x250] sm:$0xff]
        %v349 = vld [vmem:[%s220 + $0x258] sm:$0xff]
        %v350 = vld [vmem:[%s220 + $0x260] sm:$0xff]
        %v351 = vld [vmem:[%s220 + $0x268] sm:$0xff]
        %v352 = vld [vmem:[%s220 + $0x270] sm:$0xff]
        %v353 = vld [vmem:[%s220 + $0x278] sm:$0xff]
        %v354 = vld [vmem:[%s220 + $0x280] sm:$0xff]
        %v355 = vld [vmem:[%s220 + $0x288] sm:$0xff]
        %v356 = vld [vmem:[%s220 + $0x290] sm:$0xff]
        %v357 = vld [vmem:[%s220 + $0x298] sm:$0xff]
        %v358 = vld [vmem:[%s220 + $0x2a0] sm:$0xff]
        %v359 = vld [vmem:[%s220 + $0x2a8] sm:$0xff]
        %v360 = vld [vmem:[%s220 + $0x2b0] sm:$0xff]
        %v361 = vld [vmem:[%s220 + $0x2b8] sm:$0xff]
        %v362 = vld [vmem:[%s220 + $0x2c0] sm:$0xff]
        %v363 = vld [vmem:[%s220 + $0x2c8] sm:$0xff]
        %v364 = vld [vmem:[%s220 + $0x2d0] sm:$0xff]
        %v365 = vld [vmem:[%s220 + $0x2d8] sm:$0xff]
        %v366 = vld [vmem:[%s220 + $0x2e0] sm:$0xff]
        %v367 = vld [vmem:[%s220 + $0x2e8] sm:$0xff]
        %v368 = vld [vmem:[%s220 + $0x2f0] sm:$0xff]
        %v369 = vld [vmem:[%s220 + $0x2f8] sm:$0xff]
        %v370 = vld [vmem:[%s220 + $0x300] sm:$0xff]
        %v371 = vld [vmem:[%s220 + $0x308] sm:$0xff]
        %v372 = vld [vmem:[%s220 + $0x310] sm:$0xff]
        %v373 = vld [vmem:[%s220 + $0x318] sm:$0xff]
        %v374 = vld [vmem:[%s220 + $0x320] sm:$0xff]
        %v375 = vld [vmem:[%s220 + $0x328] sm:$0xff]
        %v376 = vld [vmem:[%s220 + $0x330] sm:$0xff]
        %v377 = vld [vmem:[%s220 + $0x338] sm:$0xff]
        %v378 = vld [vmem:[%s220 + $0x340] sm:$0xff]
        %v379 = vld [vmem:[%s220 + $0x348] sm:$0xff]
        %v380 = vld [vmem:[%s220 + $0x350] sm:$0xff]
        %v381 = vld [vmem:[%s220 + $0x358] sm:$0xff]
        %v382 = vld [vmem:[%s220 + $0x360] sm:$0xff]
        %v383 = vld [vmem:[%s220 + $0x368] sm:$0xff]
        %v384 = vld [vmem:[%s220 + $0x370] sm:$0xff]
        %v385 = vld [vmem:[%s220 + $0x378] sm:$0xff]
        %v386 = vld [vmem:[%s220 + $0x380] sm:$0xff]
        %v387 = vld [vmem:[%s220 + $0x388] sm:$0xff]
        %v388 = vld [vmem:[%s220 + $0x390] sm:$0xff]
        %v389 = vld [vmem:[%s220 + $0x398] sm:$0xff]
        %v390 = vld [vmem:[%s220 + $0x3a0] sm:$0xff]
        %v391 = vld [vmem:[%s220 + $0x3a8] sm:$0xff]
        %v392 = vld [vmem:[%s220 + $0x3b0] sm:$0xff]
        %v393 = vld [vmem:[%s220 + $0x3b8] sm:$0xff]
        %v394 = vld [vmem:[%s220 + $0x3c0] sm:$0xff]
        %v395 = vld [vmem:[%s220 + $0x3c8] sm:$0xff]
        %v396 = vld [vmem:[%s220 + $0x3d0] sm:$0xff]
        %v397 = vld [vmem:[%s220 + $0x3d8] sm:$0xff]
        %v398 = vld [vmem:[%s220 + $0x3e0] sm:$0xff]
        %v399 = vld [vmem:[%s220 + $0x3e8] sm:$0xff]
        %v400 = vld [vmem:[%s220 + $0x3f0] sm:$0xff]
        %v401 = vld [vmem:[%s220 + $0x3f8] sm:$0xff]
        %v402 = vld [vmem:[%s220 + $0x400] sm:$0xff]
        %v403 = vld [vmem:[%s220 + $0x408] sm:$0xff]
        %v404 = vld [vmem:[%s220 + $0x410] sm:$0xff]
        %v405 = vld [vmem:[%s220 + $0x418] sm:$0xff]
        %v406 = vld [vmem:[%s220 + $0x420] sm:$0xff]
        %v407 = vld [vmem:[%s220 + $0x428] sm:$0xff]
        %v408 = vld [vmem:[%s220 + $0x430] sm:$0xff]
        %v409 = vld [vmem:[%s220 + $0x438] sm:$0xff]
        %v410 = vld [vmem:[%s220 + $0x440] sm:$0xff]
        %v411 = vld [vmem:[%s220 + $0x448] sm:$0xff]
        %v412 = vld [vmem:[%s220 + $0x450] sm:$0xff]
        %v413 = vld [vmem:[%s220 + $0x458] sm:$0xff]
        %v414 = vld [vmem:[%s220 + $0x460] sm:$0xff]
        %v415 = vld [vmem:[%s220 + $0x468] sm:$0xff]
        %v416 = vld [vmem:[%s220 + $0x470] sm:$0xff]
        %v417 = vld [vmem:[%s220 + $0x478] sm:$0xff]
        %v418 = vld [vmem:[%s220 + $0x480] sm:$0xff]
        %v419 = vld [vmem:[%s220 + $0x488] sm:$0xff]
        %v420 = vld [vmem:[%s220 + $0x490] sm:$0xff]
        %v421 = vld [vmem:[%s220 + $0x498] sm:$0xff]
        %v422 = vld [vmem:[%s220 + $0x4a0] sm:$0xff]
        %v423 = vld [vmem:[%s220 + $0x4a8] sm:$0xff]
        %v424 = vld [vmem:[%s220 + $0x4b0] sm:$0xff]
        %v425 = vld [vmem:[%s220 + $0x4b8] sm:$0xff]
        %v426 = vld [vmem:[%s220 + $0x4c0] sm:$0xff]
        %v427 = vld [vmem:[%s220 + $0x4c8] sm:$0xff]
        %v428 = vld [vmem:[%s220 + $0x4d0] sm:$0xff]
        %v429 = vld [vmem:[%s220 + $0x4d8] sm:$0xff]
        %v430 = vld [vmem:[%s220 + $0x4e0] sm:$0xff]
        %v431 = vld [vmem:[%s220 + $0x4e8] sm:$0xff]
        %v432 = vld [vmem:[%s220 + $0x4f0] sm:$0xff]
        %v433 = vld [vmem:[%s220 + $0x4f8] sm:$0xff]
        %v434 = vld [vmem:[%s220 + $0x500] sm:$0xff]
        %v435 = vld [vmem:[%s220 + $0x508] sm:$0xff]
        %v436 = vld [vmem:[%s220 + $0x510] sm:$0xff]
        %v437 = vld [vmem:[%s220 + $0x518] sm:$0xff]
        %v438 = vld [vmem:[%s220 + $0x520] sm:$0xff]
        %v439 = vld [vmem:[%s220 + $0x528] sm:$0xff]
        %v440 = vld [vmem:[%s220 + $0x530] sm:$0xff]
        %v441 = vld [vmem:[%s220 + $0x538] sm:$0xff]
        %v442 = vld [vmem:[%s220 + $0x540] sm:$0xff]
        %v443 = vld [vmem:[%s220 + $0x548] sm:$0xff]
        %v444 = vld [vmem:[%s220 + $0x550] sm:$0xff]
        %v445 = vld [vmem:[%s220 + $0x558] sm:$0xff]
        %v446 = vld [vmem:[%s220 + $0x560] sm:$0xff]
        %v447 = vld [vmem:[%s220 + $0x568] sm:$0xff]
        %v448 = vld [vmem:[%s220 + $0x570] sm:$0xff]
        %v449 = vld [vmem:[%s220 + $0x578] sm:$0xff]
        %v450 = vld [vmem:[%s220 + $0x580] sm:$0xff]
        %v451 = vld [vmem:[%s220 + $0x588] sm:$0xff]
        %v452 = vld [vmem:[%s220 + $0x590] sm:$0xff]
        %v453 = vld [vmem:[%s220 + $0x598] sm:$0xff]
        %v454 = vld [vmem:[%s220 + $0x5a0] sm:$0xff]
        %v455 = vld [vmem:[%s220 + $0x5a8] sm:$0xff]
        %v456 = vld [vmem:[%s220 + $0x5b0] sm:$0xff]
        %v457 = vld [vmem:[%s220 + $0x5b8] sm:$0xff]
        %v458 = vld [vmem:[%s220 + $0x5c0] sm:$0xff]
        %v459 = vld [vmem:[%s220 + $0x5c8] sm:$0xff]
        %v460 = vld [vmem:[%s220 + $0x5d0] sm:$0xff]
        %v461 = vld [vmem:[%s220 + $0x5d8] sm:$0xff]
        %v462 = vld [vmem:[%s220 + $0x5e0] sm:$0xff]
        %v463 = vld [vmem:[%s220 + $0x5e8] sm:$0xff]
        %v464 = vld [vmem:[%s220 + $0x5f0] sm:$0xff]
        %v465 = vld [vmem:[%s220 + $0x5f8] sm:$0xff]
        %v466 = vld [vmem:[%s220 + $0x600] sm:$0xff]
        %v467 = vld [vmem:[%s220 + $0x608] sm:$0xff]
        %v468 = vld [vmem:[%s220 + $0x610] sm:$0xff]
        %v469 = vld [vmem:[%s220 + $0x618] sm:$0xff]
        %v470 = vld [vmem:[%s220 + $0x620] sm:$0xff]
        %v471 = vld [vmem:[%s220 + $0x628] sm:$0xff]
        %v472 = vld [vmem:[%s220 + $0x630] sm:$0xff]
        %v473 = vld [vmem:[%s220 + $0x638] sm:$0xff]
        %v474 = vld [vmem:[%s220 + $0x640] sm:$0xff]
        %v475 = vld [vmem:[%s220 + $0x648] sm:$0xff]
        %v476 = vld [vmem:[%s220 + $0x650] sm:$0xff]
        %v477 = vld [vmem:[%s220 + $0x658] sm:$0xff]
        %v478 = vld [vmem:[%s220 + $0x660] sm:$0xff]
        %v479 = vld [vmem:[%s220 + $0x668] sm:$0xff]
        %v480 = vld [vmem:[%s220 + $0x670] sm:$0xff]
        %v481 = vld [vmem:[%s220 + $0x678] sm:$0xff]
        %v482 = vld [vmem:[%s220 + $0x680] sm:$0xff]
        %v483 = vld [vmem:[%s220 + $0x688] sm:$0xff]
        %v484 = vld [vmem:[%s220 + $0x690] sm:$0xff]
        %v485 = vld [vmem:[%s220 + $0x698] sm:$0xff]
        %v486 = vld [vmem:[%s220 + $0x6a0] sm:$0xff]
        %v487 = vld [vmem:[%s220 + $0x6a8] sm:$0xff]
        %v488 = vld [vmem:[%s220 + $0x6b0] sm:$0xff]
        %v489 = vld [vmem:[%s220 + $0x6b8] sm:$0xff]
        %v490 = vld [vmem:[%s220 + $0x6c0] sm:$0xff]
        %v491 = vld [vmem:[%s220 + $0x6c8] sm:$0xff]
        %v492 = vld [vmem:[%s220 + $0x6d0] sm:$0xff]
        %v493 = vld [vmem:[%s220 + $0x6d8] sm:$0xff]
        %v494 = vld [vmem:[%s220 + $0x6e0] sm:$0xff]
        %v495 = vld [vmem:[%s220 + $0x6e8] sm:$0xff]
        %v496 = vld [vmem:[%s220 + $0x6f0] sm:$0xff]
        %v497 = vld [vmem:[%s220 + $0x6f8] sm:$0xff]
        %v498 = vld [vmem:[%s220 + $0x700] sm:$0xff]
        %v499 = vld [vmem:[%s220 + $0x708] sm:$0xff]
        %v500 = vld [vmem:[%s220 + $0x710] sm:$0xff]
        %v501 = vld [vmem:[%s220 + $0x718] sm:$0xff]
        %v502 = vld [vmem:[%s220 + $0x720] sm:$0xff]
        %v503 = vld [vmem:[%s220 + $0x728] sm:$0xff]
        %v504 = vld [vmem:[%s220 + $0x730] sm:$0xff]
        %v505 = vld [vmem:[%s220 + $0x738] sm:$0xff]
        %v506 = vld [vmem:[%s220 + $0x740] sm:$0xff]
        %v507 = vld [vmem:[%s220 + $0x748] sm:$0xff]
        %v508 = vld [vmem:[%s220 + $0x750] sm:$0xff]
        %v509 = vld [vmem:[%s220 + $0x758] sm:$0xff]
        %v510 = vld [vmem:[%s220 + $0x760] sm:$0xff]
        %v511 = vld [vmem:[%s220 + $0x768] sm:$0xff]
        %v512 = vld [vmem:[%s220 + $0x770] sm:$0xff]
        %v513 = vld [vmem:[%s220 + $0x778] sm:$0xff]
        %v514 = vld [vmem:[%s220 + $0x780] sm:$0xff]
        %v515 = vld [vmem:[%s220 + $0x788] sm:$0xff]
        %v516 = vld [vmem:[%s220 + $0x790] sm:$0xff]
        %v517 = vld [vmem:[%s220 + $0x798] sm:$0xff]
        %v518 = vld [vmem:[%s220 + $0x7a0] sm:$0xff]
        %v519 = vld [vmem:[%s220 + $0x7a8] sm:$0xff]
        %v520 = vld [vmem:[%s220 + $0x7b0] sm:$0xff]
        %v521 = vld [vmem:[%s220 + $0x7b8] sm:$0xff]
        %v522 = vld [vmem:[%s220 + $0x7c0] sm:$0xff]
        %v523 = vld [vmem:[%s220 + $0x7c8] sm:$0xff]
        %v524 = vld [vmem:[%s220 + $0x7d0] sm:$0xff]
        %v525 = vld [vmem:[%s220 + $0x7d8] sm:$0xff]
        %v526 = vld [vmem:[%s220 + $0x7e0] sm:$0xff]
        %v527 = vld [vmem:[%s220 + $0x7e8] sm:$0xff]
        %v528 = vld [vmem:[%s220 + $0x7f0] sm:$0xff]
        %v529 = vld [vmem:[%s220 + $0x7f8] sm:$0xff]
        %v530 = vld [vmem:[%s220 + $0x800] sm:$0xff]
        %v531 = vld [vmem:[%s220 + $0x808] sm:$0xff]
        %v532 = vld [vmem:[%s220 + $0x810] sm:$0xff]
        %v533 = vld [vmem:[%s220 + $0x818] sm:$0xff]
        %v534 = vld [vmem:[%s220 + $0x820] sm:$0xff]
        %v535 = vld [vmem:[%s220 + $0x828] sm:$0xff]
        %v536 = vld [vmem:[%s220 + $0x830] sm:$0xff]
        %v537 = vld [vmem:[%s220 + $0x838] sm:$0xff]
        %v538 = vld [vmem:[%s220 + $0x840] sm:$0xff]
        %v539 = vld [vmem:[%s220 + $0x848] sm:$0xff]
        %v540 = vld [vmem:[%s220 + $0x850] sm:$0xff]
        %v541 = vld [vmem:[%s220 + $0x858] sm:$0xff]
        %v542 = vld [vmem:[%s220 + $0x860] sm:$0xff]
        %v543 = vld [vmem:[%s220 + $0x868] sm:$0xff]
        %v544 = vld [vmem:[%s220 + $0x870] sm:$0xff]
        %v545 = vld [vmem:[%s220 + $0x878] sm:$0xff]
        %v546 = vld [vmem:[%s220 + $0x880] sm:$0xff]
        %v547 = vld [vmem:[%s220 + $0x888] sm:$0xff]
        %v548 = vld [vmem:[%s220 + $0x890] sm:$0xff]
        %v549 = vld [vmem:[%s220 + $0x898] sm:$0xff]
        %v550 = vld [vmem:[%s220 + $0x8a0] sm:$0xff]
        %v551 = vld [vmem:[%s220 + $0x8a8] sm:$0xff]
        %v552 = vld [vmem:[%s220 + $0x8b0] sm:$0xff]
        %v553 = vld [vmem:[%s220 + $0x8b8] sm:$0xff]
        %v554 = vld [vmem:[%s220 + $0x8c0] sm:$0xff]
        %v555 = vld [vmem:[%s220 + $0x8c8] sm:$0xff]
        %v556 = vld [vmem:[%s220 + $0x8d0] sm:$0xff]
        %v557 = vld [vmem:[%s220 + $0x8d8] sm:$0xff]
        %v558 = vld [vmem:[%s220 + $0x8e0] sm:$0xff]
        %v559 = vld [vmem:[%s220 + $0x8e8] sm:$0xff]
        %v560 = vld [vmem:[%s220 + $0x8f0] sm:$0xff]
        %v561 = vld [vmem:[%s220 + $0x8f8] sm:$0xff]
        %v562 = vld [vmem:[%s220 + $0x900] sm:$0xff]
        %v563 = vld [vmem:[%s220 + $0x908] sm:$0xff]
        %v564 = vld [vmem:[%s220 + $0x910] sm:$0xff]
        %v565 = vld [vmem:[%s220 + $0x918] sm:$0xff]
        %v566 = vld [vmem:[%s220 + $0x920] sm:$0xff]
        %v567 = vld [vmem:[%s220 + $0x928] sm:$0xff]
        %v568 = vld [vmem:[%s220 + $0x930] sm:$0xff]
        %v569 = vld [vmem:[%s220 + $0x938] sm:$0xff]
        %v570 = vld [vmem:[%s220 + $0x940] sm:$0xff]
        %v571 = vld [vmem:[%s220 + $0x948] sm:$0xff]
        %v572 = vld [vmem:[%s220 + $0x950] sm:$0xff]
        %v573 = vld [vmem:[%s220 + $0x958] sm:$0xff]
        %v574 = vld [vmem:[%s220 + $0x960] sm:$0xff]
        %v575 = vld [vmem:[%s220 + $0x968] sm:$0xff]
        %v576 = vld [vmem:[%s220 + $0x970] sm:$0xff]
        %v577 = vld [vmem:[%s220 + $0x978] sm:$0xff]
        %v578 = vld [vmem:[%s220 + $0x980] sm:$0xff]
        %v579 = vld [vmem:[%s220 + $0x988] sm:$0xff]
        %v580 = vld [vmem:[%s220 + $0x990] sm:$0xff]
        %v581 = vld [vmem:[%s220 + $0x998] sm:$0xff]
        %v582 = vld [vmem:[%s220 + $0x9a0] sm:$0xff]
        %v583 = vld [vmem:[%s220 + $0x9a8] sm:$0xff]
        %v584 = vld [vmem:[%s220 + $0x9b0] sm:$0xff]
        %v585 = vld [vmem:[%s220 + $0x9b8] sm:$0xff]
        %v586 = vld [vmem:[%s220 + $0x9c0] sm:$0xff]
        %v587 = vld [vmem:[%s220 + $0x9c8] sm:$0xff]
        %v588 = vld [vmem:[%s220 + $0x9d0] sm:$0xff]
        %v589 = vld [vmem:[%s220 + $0x9d8] sm:$0xff]
        %v590 = vld [vmem:[%s220 + $0x9e0] sm:$0xff]
        %v591 = vld [vmem:[%s220 + $0x9e8] sm:$0xff]
        %v592 = vld [vmem:[%s220 + $0x9f0] sm:$0xff]
        %v593 = vld [vmem:[%s220 + $0x9f8] sm:$0xff]
        %v594 = vld [vmem:[%s220 + $0xa00] sm:$0xff]
        %v595 = vld [vmem:[%s220 + $0xa08] sm:$0xff]
        %v596 = vld [vmem:[%s220 + $0xa10] sm:$0xff]
        %v597 = vld [vmem:[%s220 + $0xa18] sm:$0xff]
        %v598 = vld [vmem:[%s220 + $0xa20] sm:$0xff]
        %v599 = vld [vmem:[%s220 + $0xa28] sm:$0xff]
        %v600 = vld [vmem:[%s220 + $0xa30] sm:$0xff]
        %v601 = vld [vmem:[%s220 + $0xa38] sm:$0xff]
        %v602 = vld [vmem:[%s220 + $0xa40] sm:$0xff]
        %v603 = vld [vmem:[%s220 + $0xa48] sm:$0xff]
        %v604 = vld [vmem:[%s220 + $0xa50] sm:$0xff]
        %v605 = vld [vmem:[%s220 + $0xa58] sm:$0xff]
        %v606 = vld [vmem:[%s220 + $0xa60] sm:$0xff]
        %v607 = vld [vmem:[%s220 + $0xa68] sm:$0xff]
        %v608 = vld [vmem:[%s220 + $0xa70] sm:$0xff]
        %v609 = vld [vmem:[%s220 + $0xa78] sm:$0xff]
        %v610 = vld [vmem:[%s220 + $0xa80] sm:$0xff]
        %v611 = vld [vmem:[%s220 + $0xa88] sm:$0xff]
        %v612 = vld [vmem:[%s220 + $0xa90] sm:$0xff]
        %v613 = vld [vmem:[%s220 + $0xa98] sm:$0xff]
        %v614 = vld [vmem:[%s220 + $0xaa0] sm:$0xff]
        %v615 = vld [vmem:[%s220 + $0xaa8] sm:$0xff]
        %v616 = vld [vmem:[%s220 + $0xab0] sm:$0xff]
        %v617 = vld [vmem:[%s220 + $0xab8] sm:$0xff]
        %v618 = vld [vmem:[%s220 + $0xac0] sm:$0xff]
        %v619 = vld [vmem:[%s220 + $0xac8] sm:$0xff]
        %v620 = vld [vmem:[%s220 + $0xad0] sm:$0xff]
        %v621 = vld [vmem:[%s220 + $0xad8] sm:$0xff]
        %v622 = vld [vmem:[%s220 + $0xae0] sm:$0xff]
        %v623 = vld [vmem:[%s220 + $0xae8] sm:$0xff]
        %v624 = vld [vmem:[%s220 + $0xaf0] sm:$0xff]
        %v625 = vld [vmem:[%s220 + $0xaf8] sm:$0xff]
        %v626 = vld [vmem:[%s220 + $0xb00] sm:$0xff]
        %v627 = vld [vmem:[%s220 + $0xb08] sm:$0xff]
        %v628 = vld [vmem:[%s220 + $0xb10] sm:$0xff]
        %v629 = vld [vmem:[%s220 + $0xb18] sm:$0xff]
        %v630 = vld [vmem:[%s220 + $0xb20] sm:$0xff]
        %v631 = vld [vmem:[%s220 + $0xb28] sm:$0xff]
        %v632 = vld [vmem:[%s220 + $0xb30] sm:$0xff]
        %v633 = vld [vmem:[%s220 + $0xb38] sm:$0xff]
        %v634 = vld [vmem:[%s220 + $0xb40] sm:$0xff]
        %v635 = vld [vmem:[%s220 + $0xb48] sm:$0xff]
        %v636 = vld [vmem:[%s220 + $0xb50] sm:$0xff]
        %v637 = vld [vmem:[%s220 + $0xb58] sm:$0xff]
        %v638 = vld [vmem:[%s220 + $0xb60] sm:$0xff]
        %v639 = vld [vmem:[%s220 + $0xb68] sm:$0xff]
        %v640 = vld [vmem:[%s220 + $0xb70] sm:$0xff]
        %v641 = vld [vmem:[%s220 + $0xb78] sm:$0xff]
        %v642 = vld [vmem:[%s220 + $0xb80] sm:$0xff]
        %v643 = vld [vmem:[%s220 + $0xb88] sm:$0xff]
        %v644 = vld [vmem:[%s220 + $0xb90] sm:$0xff]
        %v645 = vld [vmem:[%s220 + $0xb98] sm:$0xff]
        %v646 = vld [vmem:[%s220 + $0xba0] sm:$0xff]
        %v647 = vld [vmem:[%s220 + $0xba8] sm:$0xff]
        %v648 = vld [vmem:[%s220 + $0xbb0] sm:$0xff]
        %v649 = vld [vmem:[%s220 + $0xbb8] sm:$0xff]
        %v650 = vld [vmem:[%s220 + $0xbc0] sm:$0xff]
        %v651 = vld [vmem:[%s220 + $0xbc8] sm:$0xff]
        %v652 = vld [vmem:[%s220 + $0xbd0] sm:$0xff]
        %v653 = vld [vmem:[%s220 + $0xbd8] sm:$0xff]
        %v654 = vld [vmem:[%s220 + $0xbe0] sm:$0xff]
        %v655 = vld [vmem:[%s220 + $0xbe8] sm:$0xff]
        %v656 = vld [vmem:[%s220 + $0xbf0] sm:$0xff]
        %v657 = vld [vmem:[%s220 + $0xbf8] sm:$0xff]
        %v658 = vld [vmem:[%s220 + $0xc00] sm:$0xff]
        %v659 = vld [vmem:[%s220 + $0xc08] sm:$0xff]
        %v660 = vld [vmem:[%s220 + $0xc10] sm:$0xff]
        %v661 = vld [vmem:[%s220 + $0xc18] sm:$0xff]
        %v662 = vld [vmem:[%s220 + $0xc20] sm:$0xff]
        %v663 = vld [vmem:[%s220 + $0xc28] sm:$0xff]
        %v664 = vld [vmem:[%s220 + $0xc30] sm:$0xff]
        %v665 = vld [vmem:[%s220 + $0xc38] sm:$0xff]
        %v666 = vld [vmem:[%s220 + $0xc40] sm:$0xff]
        %v667 = vld [vmem:[%s220 + $0xc48] sm:$0xff]
        %v668 = vld [vmem:[%s220 + $0xc50] sm:$0xff]
        %v669 = vld [vmem:[%s220 + $0xc58] sm:$0xff]
        %v670 = vld [vmem:[%s220 + $0xc60] sm:$0xff]
        %v671 = vld [vmem:[%s220 + $0xc68] sm:$0xff]
        %v672 = vld [vmem:[%s220 + $0xc70] sm:$0xff]
        %v673 = vld [vmem:[%s220 + $0xc78] sm:$0xff]
        %v674 = vld [vmem:[%s220 + $0xc80] sm:$0xff]
        %v675 = vld [vmem:[%s220 + $0xc88] sm:$0xff]
        %v676 = vld [vmem:[%s220 + $0xc90] sm:$0xff]
        %v677 = vld [vmem:[%s220 + $0xc98] sm:$0xff]
        %v678 = vld [vmem:[%s220 + $0xca0] sm:$0xff]
        %v679 = vld [vmem:[%s220 + $0xca8] sm:$0xff]
        %v680 = vld [vmem:[%s220 + $0xcb0] sm:$0xff]
        %v681 = vld [vmem:[%s220 + $0xcb8] sm:$0xff]
        %v682 = vld [vmem:[%s220 + $0xcc0] sm:$0xff]
        %v683 = vld [vmem:[%s220 + $0xcc8] sm:$0xff]
        %v684 = vld [vmem:[%s220 + $0xcd0] sm:$0xff]
        %v685 = vld [vmem:[%s220 + $0xcd8] sm:$0xff]
        %v686 = vld [vmem:[%s220 + $0xce0] sm:$0xff]
        %v687 = vld [vmem:[%s220 + $0xce8] sm:$0xff]
        %v688 = vld [vmem:[%s220 + $0xcf0] sm:$0xff]
        %v689 = vld [vmem:[%s220 + $0xcf8] sm:$0xff]
        %v690 = vld [vmem:[%s220 + $0xd00] sm:$0xff]
        %v691 = vld [vmem:[%s220 + $0xd08] sm:$0xff]
        %v692 = vld [vmem:[%s220 + $0xd10] sm:$0xff]
        %v693 = vld [vmem:[%s220 + $0xd18] sm:$0xff]
        %v694 = vld [vmem:[%s220 + $0xd20] sm:$0xff]
        %v695 = vld [vmem:[%s220 + $0xd28] sm:$0xff]
        %v696 = vld [vmem:[%s220 + $0xd30] sm:$0xff]
        %v697 = vld [vmem:[%s220 + $0xd38] sm:$0xff]
        %v698 = vld [vmem:[%s220 + $0xd40] sm:$0xff]
        %v699 = vld [vmem:[%s220 + $0xd48] sm:$0xff]
        %v700 = vld [vmem:[%s220 + $0xd50] sm:$0xff]
        %v701 = vld [vmem:[%s220 + $0xd58] sm:$0xff]
        %v702 = vld [vmem:[%s220 + $0xd60] sm:$0xff]
        %v703 = vld [vmem:[%s220 + $0xd68] sm:$0xff]
        %v704 = vld [vmem:[%s220 + $0xd70] sm:$0xff]
        %v705 = vld [vmem:[%s220 + $0xd78] sm:$0xff]
        %v706 = vld [vmem:[%s220 + $0xd80] sm:$0xff]
        %v707 = vld [vmem:[%s220 + $0xd88] sm:$0xff]
        %v708 = vld [vmem:[%s220 + $0xd90] sm:$0xff]
        %v709 = vld [vmem:[%s220 + $0xd98] sm:$0xff]
        %v710 = vld [vmem:[%s220 + $0xda0] sm:$0xff]
        %v711 = vld [vmem:[%s220 + $0xda8] sm:$0xff]
        %v712 = vld [vmem:[%s220 + $0xdb0] sm:$0xff]
        %v713 = vld [vmem:[%s220 + $0xdb8] sm:$0xff]
        %v714 = vld [vmem:[%s220 + $0xdc0] sm:$0xff]
        %v715 = vld [vmem:[%s220 + $0xdc8] sm:$0xff]
        %v716 = vld [vmem:[%s220 + $0xdd0] sm:$0xff]
        %v717 = vld [vmem:[%s220 + $0xdd8] sm:$0xff]
        %v718 = vld [vmem:[%s220 + $0xde0] sm:$0xff]
        %v719 = vld [vmem:[%s220 + $0xde8] sm:$0xff]
        %v720 = vld [vmem:[%s220 + $0xdf0] sm:$0xff]
        %v721 = vld [vmem:[%s220 + $0xdf8] sm:$0xff]
        %v722 = vld [vmem:[%s220 + $0xe00] sm:$0xff]
        %v723 = vld [vmem:[%s220 + $0xe08] sm:$0xff]
        %v724 = vld [vmem:[%s220 + $0xe10] sm:$0xff]
        %v725 = vld [vmem:[%s220 + $0xe18] sm:$0xff]
        %v726 = vld [vmem:[%s220 + $0xe20] sm:$0xff]
        %v727 = vld [vmem:[%s220 + $0xe28] sm:$0xff]
        %v728 = vld [vmem:[%s220 + $0xe30] sm:$0xff]
        %v729 = vld [vmem:[%s220 + $0xe38] sm:$0xff]
        %v730 = vld [vmem:[%s220 + $0xe40] sm:$0xff]
        %v731 = vld [vmem:[%s220 + $0xe48] sm:$0xff]
        %v732 = vld [vmem:[%s220 + $0xe50] sm:$0xff]
        %v733 = vld [vmem:[%s220 + $0xe58] sm:$0xff]
        %v734 = vld [vmem:[%s220 + $0xe60] sm:$0xff]
        %v735 = vld [vmem:[%s220 + $0xe68] sm:$0xff]
        %v736 = vld [vmem:[%s220 + $0xe70] sm:$0xff]
        %v737 = vld [vmem:[%s220 + $0xe78] sm:$0xff]
        %v738 = vld [vmem:[%s220 + $0xe80] sm:$0xff]
        %v739 = vld [vmem:[%s220 + $0xe88] sm:$0xff]
        %v740 = vld [vmem:[%s220 + $0xe90] sm:$0xff]
        %v741 = vld [vmem:[%s220 + $0xe98] sm:$0xff]
        %v742 = vld [vmem:[%s220 + $0xea0] sm:$0xff]
        %v743 = vld [vmem:[%s220 + $0xea8] sm:$0xff]
        %v744 = vld [vmem:[%s220 + $0xeb0] sm:$0xff]
        %v745 = vld [vmem:[%s220 + $0xeb8] sm:$0xff]
        %v746 = vld [vmem:[%s220 + $0xec0] sm:$0xff]
        %v747 = vld [vmem:[%s220 + $0xec8] sm:$0xff]
        %v748 = vld [vmem:[%s220 + $0xed0] sm:$0xff]
        %v749 = vld [vmem:[%s220 + $0xed8] sm:$0xff]
        %v750 = vld [vmem:[%s220 + $0xee0] sm:$0xff]
        %v751 = vld [vmem:[%s220 + $0xee8] sm:$0xff]
        %v752 = vld [vmem:[%s220 + $0xef0] sm:$0xff]
        %v753 = vld [vmem:[%s220 + $0xef8] sm:$0xff]
        %v754 = vld [vmem:[%s220 + $0xf00] sm:$0xff]
        %v755 = vld [vmem:[%s220 + $0xf08] sm:$0xff]
        %v756 = vld [vmem:[%s220 + $0xf10] sm:$0xff]
        %v757 = vld [vmem:[%s220 + $0xf18] sm:$0xff]
        %v758 = vld [vmem:[%s220 + $0xf20] sm:$0xff]
        %v759 = vld [vmem:[%s220 + $0xf28] sm:$0xff]
        %v760 = vld [vmem:[%s220 + $0xf30] sm:$0xff]
        %v761 = vld [vmem:[%s220 + $0xf38] sm:$0xff]
        %v762 = vld [vmem:[%s220 + $0xf40] sm:$0xff]
        %v763 = vld [vmem:[%s220 + $0xf48] sm:$0xff]
        %v764 = vld [vmem:[%s220 + $0xf50] sm:$0xff]
        %v765 = vld [vmem:[%s220 + $0xf58] sm:$0xff]
        %v766 = vld [vmem:[%s220 + $0xf60] sm:$0xff]
        %v767 = vld [vmem:[%s220 + $0xf68] sm:$0xff]
        %v768 = vld [vmem:[%s220 + $0xf70] sm:$0xff]
        %v769 = vld [vmem:[%s220 + $0xf78] sm:$0xff]
        %v770 = vld [vmem:[%s220 + $0xf80] sm:$0xff]
        %v771 = vld [vmem:[%s220 + $0xf88] sm:$0xff]
        %v772 = vld [vmem:[%s220 + $0xf90] sm:$0xff]
        %v773 = vld [vmem:[%s220 + $0xf98] sm:$0xff]
        %v774 = vld [vmem:[%s220 + $0xfa0] sm:$0xff]
        %v775 = vld [vmem:[%s220 + $0xfa8] sm:$0xff]
        %v776 = vld [vmem:[%s220 + $0xfb0] sm:$0xff]
        %v777 = vld [vmem:[%s220 + $0xfb8] sm:$0xff]
        %v778 = vld [vmem:[%s220 + $0xfc0] sm:$0xff]
        %v779 = vld [vmem:[%s220 + $0xfc8] sm:$0xff]
        %v780 = vld [vmem:[%s220 + $0xfd0] sm:$0xff]
        %v781 = vld [vmem:[%s220 + $0xfd8] sm:$0xff]
        %v782 = vld [vmem:[%s220 + $0xfe0] sm:$0xff]
        %v783 = vld [vmem:[%s220 + $0xfe8] sm:$0xff]
        %v784 = vld [vmem:[%s220 + $0xff0] sm:$0xff]
        %v785 = vld [vmem:[%s220 + $0xff8] sm:$0xff]
        %v786 = vld [vmem:[%s220 + $0x1000] sm:$0xff]
        %v787 = vld [vmem:[%s220 + $0x1008] sm:$0xff]
        %v788 = vld [vmem:[%s220 + $0x1010] sm:$0xff]
        %v789 = vld [vmem:[%s220 + $0x1018] sm:$0xff]
        %v790 = vld [vmem:[%s220 + $0x1020] sm:$0xff]
        %v791 = vld [vmem:[%s220 + $0x1028] sm:$0xff]
        %v792 = vld [vmem:[%s220 + $0x1030] sm:$0xff]
        %v793 = vld [vmem:[%s220 + $0x1038] sm:$0xff]
        %v794 = vld [vmem:[%s220 + $0x1040] sm:$0xff]
        %v795 = vld [vmem:[%s220 + $0x1048] sm:$0xff]
        %v796 = vld [vmem:[%s220 + $0x1050] sm:$0xff]
        %v797 = vld [vmem:[%s220 + $0x1058] sm:$0xff]
        %v798 = vld [vmem:[%s220 + $0x1060] sm:$0xff]
        %v799 = vld [vmem:[%s220 + $0x1068] sm:$0xff]
        %v800 = vld [vmem:[%s220 + $0x1070] sm:$0xff]
        %v801 = vld [vmem:[%s220 + $0x1078] sm:$0xff]
        %v802 = vld [vmem:[%s220 + $0x1080] sm:$0xff]
        %v803 = vld [vmem:[%s220 + $0x1088] sm:$0xff]
        %v804 = vld [vmem:[%s220 + $0x1090] sm:$0xff]
        %v805 = vld [vmem:[%s220 + $0x1098] sm:$0xff]
        %v806 = vld [vmem:[%s220 + $0x10a0] sm:$0xff]
        %v807 = vld [vmem:[%s220 + $0x10a8] sm:$0xff]
        %v808 = vld [vmem:[%s220 + $0x10b0] sm:$0xff]
        %v809 = vld [vmem:[%s220 + $0x10b8] sm:$0xff]
        %v810 = vld [vmem:[%s220 + $0x10c0] sm:$0xff]
        %v811 = vld [vmem:[%s220 + $0x10c8] sm:$0xff]
        %v812 = vld [vmem:[%s220 + $0x10d0] sm:$0xff]
        %v813 = vld [vmem:[%s220 + $0x10d8] sm:$0xff]
        %v814 = vld [vmem:[%s220 + $0x10e0] sm:$0xff]
        %v815 = vld [vmem:[%s220 + $0x10e8] sm:$0xff]
        %v816 = vld [vmem:[%s220 + $0x10f0] sm:$0xff]
        %v817 = vld [vmem:[%s220 + $0x10f8] sm:$0xff]
        %v818 = vld [vmem:[%s220 + $0x1100] sm:$0xff]
        %v819 = vld [vmem:[%s220 + $0x1108] sm:$0xff]
        %v820 = vld [vmem:[%s220 + $0x1110] sm:$0xff]
        %v821 = vld [vmem:[%s220 + $0x1118] sm:$0xff]
        %v822 = vld [vmem:[%s220 + $0x1120] sm:$0xff]
        %v823 = vld [vmem:[%s220 + $0x1128] sm:$0xff]
        %v824 = vld [vmem:[%s220 + $0x1130] sm:$0xff]
        %v825 = vld [vmem:[%s220 + $0x1138] sm:$0xff]
        %v826 = vld [vmem:[%s220 + $0x1140] sm:$0xff]
        %v827 = vld [vmem:[%s220 + $0x1148] sm:$0xff]
        %v828 = vld [vmem:[%s220 + $0x1150] sm:$0xff]
        %v829 = vld [vmem:[%s220 + $0x1158] sm:$0xff]
        %v830 = vld [vmem:[%s220 + $0x1160] sm:$0xff]
        %v831 = vld [vmem:[%s220 + $0x1168] sm:$0xff]
        %v832 = vld [vmem:[%s220 + $0x1170] sm:$0xff]
        %v833 = vld [vmem:[%s220 + $0x1178] sm:$0xff]
        %v834 = vld [vmem:[%s220 + $0x1180] sm:$0xff]
        %v835 = vld [vmem:[%s220 + $0x1188] sm:$0xff]
        %v836 = vld [vmem:[%s220 + $0x1190] sm:$0xff]
        %v837 = vld [vmem:[%s220 + $0x1198] sm:$0xff]
        %v838 = vld [vmem:[%s220 + $0x11a0] sm:$0xff]
        %v839 = vld [vmem:[%s220 + $0x11a8] sm:$0xff]
        %v840 = vld [vmem:[%s220 + $0x11b0] sm:$0xff]
        %v841 = vld [vmem:[%s220 + $0x11b8] sm:$0xff]
        %v842 = vld [vmem:[%s220 + $0x11c0] sm:$0xff]
        %v843 = vld [vmem:[%s220 + $0x11c8] sm:$0xff]
        %v844 = vld [vmem:[%s220 + $0x11d0] sm:$0xff]
        %v845 = vld [vmem:[%s220 + $0x11d8] sm:$0xff]
        %v846 = vld [vmem:[%s220 + $0x11e0] sm:$0xff]
        %v847 = vld [vmem:[%s220 + $0x11e8] sm:$0xff]
        %v848 = vld [vmem:[%s220 + $0x11f0] sm:$0xff]
        %v849 = vld [vmem:[%s220 + $0x11f8] sm:$0xff]
        %v850 = vld [vmem:[%s220 + $0x1200] sm:$0xff]
        %v851 = vld [vmem:[%s220 + $0x1208] sm:$0xff]
        %v852 = vld [vmem:[%s220 + $0x1210] sm:$0xff]
        %v853 = vld [vmem:[%s220 + $0x1218] sm:$0xff]
        %v854 = vld [vmem:[%s220 + $0x1220] sm:$0xff]
        %v855 = vld [vmem:[%s220 + $0x1228] sm:$0xff]
        %v856 = vld [vmem:[%s220 + $0x1230] sm:$0xff]
        %v857 = vld [vmem:[%s220 + $0x1238] sm:$0xff]
        %v858 = vld [vmem:[%s220 + $0x1240] sm:$0xff]
        %v859 = vld [vmem:[%s220 + $0x1248] sm:$0xff]
        %v860 = vld [vmem:[%s220 + $0x1250] sm:$0xff]
        %v861 = vld [vmem:[%s220 + $0x1258] sm:$0xff]
        %v862 = vld [vmem:[%s220 + $0x1260] sm:$0xff]
        %v863 = vld [vmem:[%s220 + $0x1268] sm:$0xff]
        %v864 = vld [vmem:[%s220 + $0x1270] sm:$0xff]
        %v865 = vld [vmem:[%s220 + $0x1278] sm:$0xff]
        %v866 = vld [vmem:[%s220 + $0x1280] sm:$0xff]
        %v867 = vld [vmem:[%s220 + $0x1288] sm:$0xff]
        %v868 = vld [vmem:[%s220 + $0x1290] sm:$0xff]
        %v869 = vld [vmem:[%s220 + $0x1298] sm:$0xff]
        %v870 = vld [vmem:[%s220 + $0x12a0] sm:$0xff]
        %v871 = vld [vmem:[%s220 + $0x12a8] sm:$0xff]
        %v872 = vld [vmem:[%s220 + $0x12b0] sm:$0xff]
        %v873 = vld [vmem:[%s220 + $0x12b8] sm:$0xff]
        %v874 = vld [vmem:[%s220 + $0x12c0] sm:$0xff]
        %v875 = vld [vmem:[%s220 + $0x12c8] sm:$0xff]
        %v876 = vld [vmem:[%s220 + $0x12d0] sm:$0xff]
        %v877 = vld [vmem:[%s220 + $0x12d8] sm:$0xff]
        %v878 = vld [vmem:[%s220 + $0x12e0] sm:$0xff]
        %v879 = vld [vmem:[%s220 + $0x12e8] sm:$0xff]
        %v880 = vld [vmem:[%s220 + $0x12f0] sm:$0xff]
        %v881 = vld [vmem:[%s220 + $0x12f8] sm:$0xff]
        %v882 = vld [vmem:[%s220 + $0x1300] sm:$0xff]
        %v883 = vld [vmem:[%s220 + $0x1308] sm:$0xff]
        %v884 = vld [vmem:[%s220 + $0x1310] sm:$0xff]
        %v885 = vld [vmem:[%s220 + $0x1318] sm:$0xff]
        %v886 = vld [vmem:[%s220 + $0x1320] sm:$0xff]
        %v887 = vld [vmem:[%s220 + $0x1328] sm:$0xff]
        %v888 = vld [vmem:[%s220 + $0x1330] sm:$0xff]
        %v889 = vld [vmem:[%s220 + $0x1338] sm:$0xff]
        %v890 = vld [vmem:[%s220 + $0x1340] sm:$0xff]
        %v891 = vld [vmem:[%s220 + $0x1348] sm:$0xff]
        %v892 = vld [vmem:[%s220 + $0x1350] sm:$0xff]
        %v893 = vld [vmem:[%s220 + $0x1358] sm:$0xff]
        %v894 = vld [vmem:[%s220 + $0x1360] sm:$0xff]
        %v895 = vld [vmem:[%s220 + $0x1368] sm:$0xff]
        %v896 = vld [vmem:[%s220 + $0x1370] sm:$0xff]
        %v897 = vld [vmem:[%s220 + $0x1378] sm:$0xff]
        %v898 = vld [vmem:[%s220 + $0x1380] sm:$0xff]
        %v899 = vld [vmem:[%s220 + $0x1388] sm:$0xff]
        %v900 = vld [vmem:[%s220 + $0x1390] sm:$0xff]
        %v901 = vld [vmem:[%s220 + $0x1398] sm:$0xff]
        %v902 = vld [vmem:[%s220 + $0x13a0] sm:$0xff]
        %v903 = vld [vmem:[%s220 + $0x13a8] sm:$0xff]
        %v904 = vld [vmem:[%s220 + $0x13b0] sm:$0xff]
        %v905 = vld [vmem:[%s220 + $0x13b8] sm:$0xff]
        %v906 = vld [vmem:[%s220 + $0x13c0] sm:$0xff]
        %v907 = vld [vmem:[%s220 + $0x13c8] sm:$0xff]
        %v908 = vld [vmem:[%s220 + $0x13d0] sm:$0xff]
        %v909 = vld [vmem:[%s220 + $0x13d8] sm:$0xff]
        %v910 = vld [vmem:[%s220 + $0x13e0] sm:$0xff]
        %v911 = vld [vmem:[%s220 + $0x13e8] sm:$0xff]
        %v912 = vld [vmem:[%s220 + $0x13f0] sm:$0xff]
        %v913 = vld [vmem:[%s220 + $0x13f8] sm:$0xff]
        %v914 = vld [vmem:[%s220 + $0x1400] sm:$0xff]
        %v915 = vld [vmem:[%s220 + $0x1408] sm:$0xff]
        %v916 = vld [vmem:[%s220 + $0x1410] sm:$0xff]
        %v917 = vld [vmem:[%s220 + $0x1418] sm:$0xff]
        %v918 = vld [vmem:[%s220 + $0x1420] sm:$0xff]
        %v919 = vld [vmem:[%s220 + $0x1428] sm:$0xff]
        %v920 = vld [vmem:[%s220 + $0x1430] sm:$0xff]
        %v921 = vld [vmem:[%s220 + $0x1438] sm:$0xff]
        %v922 = vld [vmem:[%s220 + $0x1440] sm:$0xff]
        %v923 = vld [vmem:[%s220 + $0x1448] sm:$0xff]
        %v924 = vld [vmem:[%s220 + $0x1450] sm:$0xff]
        %v925 = vld [vmem:[%s220 + $0x1458] sm:$0xff]
        %v926 = vld [vmem:[%s220 + $0x1460] sm:$0xff]
        %v927 = vld [vmem:[%s220 + $0x1468] sm:$0xff]
        %v928 = vld [vmem:[%s220 + $0x1470] sm:$0xff]
        %v929 = vld [vmem:[%s220 + $0x1478] sm:$0xff]
        %v930 = vld [vmem:[%s220 + $0x1480] sm:$0xff]
        %v931 = vld [vmem:[%s220 + $0x1488] sm:$0xff]
        %v932 = vld [vmem:[%s220 + $0x1490] sm:$0xff]
        %v933 = vld [vmem:[%s220 + $0x1498] sm:$0xff]
        %v934 = vld [vmem:[%s220 + $0x14a0] sm:$0xff]
        %v935 = vld [vmem:[%s220 + $0x14a8] sm:$0xff]
        %v936 = vld [vmem:[%s220 + $0x14b0] sm:$0xff]
        %v937 = vld [vmem:[%s220 + $0x14b8] sm:$0xff]
        %v938 = vld [vmem:[%s220 + $0x14c0] sm:$0xff]
        %v939 = vld [vmem:[%s220 + $0x14c8] sm:$0xff]
        %v940 = vld [vmem:[%s220 + $0x14d0] sm:$0xff]
        %v941 = vld [vmem:[%s220 + $0x14d8] sm:$0xff]
        %v942 = vld [vmem:[%s220 + $0x14e0] sm:$0xff]
        %v943 = vld [vmem:[%s220 + $0x14e8] sm:$0xff]
        %v944 = vld [vmem:[%s220 + $0x14f0] sm:$0xff]
        %v945 = vld [vmem:[%s220 + $0x14f8] sm:$0xff]
        %v946 = vld [vmem:[%s220 + $0x1500] sm:$0xff]
        %v947 = vld [vmem:[%s220 + $0x1508] sm:$0xff]
        %v948 = vld [vmem:[%s220 + $0x1510] sm:$0xff]
        %v949 = vld [vmem:[%s220 + $0x1518] sm:$0xff]
        %v950 = vld [vmem:[%s220 + $0x1520] sm:$0xff]
        %v951 = vld [vmem:[%s220 + $0x1528] sm:$0xff]
        %v952 = vld [vmem:[%s220 + $0x1530] sm:$0xff]
        %v953 = vld [vmem:[%s220 + $0x1538] sm:$0xff]
        %v954 = vld [vmem:[%s220 + $0x1540] sm:$0xff]
        %v955 = vld [vmem:[%s220 + $0x1548] sm:$0xff]
        %v956 = vld [vmem:[%s220 + $0x1550] sm:$0xff]
        %v957 = vld [vmem:[%s220 + $0x1558] sm:$0xff]
        %v958 = vld [vmem:[%s220 + $0x1560] sm:$0xff]
        %v959 = vld [vmem:[%s220 + $0x1568] sm:$0xff]
        %v960 = vld [vmem:[%s220 + $0x1570] sm:$0xff]
        %v961 = vld [vmem:[%s220 + $0x1578] sm:$0xff]
        %v962 = vld [vmem:[%s220 + $0x1580] sm:$0xff]
        %v963 = vld [vmem:[%s220 + $0x1588] sm:$0xff]
        %v964 = vld [vmem:[%s220 + $0x1590] sm:$0xff]
        %v965 = vld [vmem:[%s220 + $0x1598] sm:$0xff]
        %v966 = vld [vmem:[%s220 + $0x15a0] sm:$0xff]
        %v967 = vld [vmem:[%s220 + $0x15a8] sm:$0xff]
        %v968 = vld [vmem:[%s220 + $0x15b0] sm:$0xff]
        %v969 = vld [vmem:[%s220 + $0x15b8] sm:$0xff]
        %v970 = vld [vmem:[%s220 + $0x15c0] sm:$0xff]
        %v971 = vld [vmem:[%s220 + $0x15c8] sm:$0xff]
        %v972 = vld [vmem:[%s220 + $0x15d0] sm:$0xff]
        %v973 = vld [vmem:[%s220 + $0x15d8] sm:$0xff]
        %v974 = vld [vmem:[%s220 + $0x15e0] sm:$0xff]
        %v975 = vld [vmem:[%s220 + $0x15e8] sm:$0xff]
        %v976 = vld [vmem:[%s220 + $0x15f0] sm:$0xff]
        %v977 = vld [vmem:[%s220 + $0x15f8] sm:$0xff]
        %v978 = vld [vmem:[%s220 + $0x1600] sm:$0xff]
        %v979 = vld [vmem:[%s220 + $0x1608] sm:$0xff]
        %v980 = vld [vmem:[%s220 + $0x1610] sm:$0xff]
        %v981 = vld [vmem:[%s220 + $0x1618] sm:$0xff]
        %v982 = vld [vmem:[%s220 + $0x1620] sm:$0xff]
        %v983 = vld [vmem:[%s220 + $0x1628] sm:$0xff]
        %v984 = vld [vmem:[%s220 + $0x1630] sm:$0xff]
        %v985 = vld [vmem:[%s220 + $0x1638] sm:$0xff]
        %v986 = vld [vmem:[%s220 + $0x1640] sm:$0xff]
        %v987 = vld [vmem:[%s220 + $0x1648] sm:$0xff]
        %v988 = vld [vmem:[%s220 + $0x1650] sm:$0xff]
        %v989 = vld [vmem:[%s220 + $0x1658] sm:$0xff]
        %v990 = vld [vmem:[%s220 + $0x1660] sm:$0xff]
        %v991 = vld [vmem:[%s220 + $0x1668] sm:$0xff]
        %v992 = vld [vmem:[%s220 + $0x1670] sm:$0xff]
        %v993 = vld [vmem:[%s220 + $0x1678] sm:$0xff]
        %v994 = vld [vmem:[%s220 + $0x1680] sm:$0xff]
        %v995 = vld [vmem:[%s220 + $0x1688] sm:$0xff]
        %v996 = vld [vmem:[%s220 + $0x1690] sm:$0xff]
        %v997 = vld [vmem:[%s220 + $0x1698] sm:$0xff]
        %v998 = vld [vmem:[%s220 + $0x16a0] sm:$0xff]
        %v999 = vld [vmem:[%s220 + $0x16a8] sm:$0xff]
        %v1000 = vld [vmem:[%s220 + $0x16b0] sm:$0xff]
        %v1001 = vld [vmem:[%s220 + $0x16b8] sm:$0xff]
        %v1002 = vld [vmem:[%s220 + $0x16c0] sm:$0xff]
        %v1003 = vld [vmem:[%s220 + $0x16c8] sm:$0xff]
        %v1004 = vld [vmem:[%s220 + $0x16d0] sm:$0xff]
        %v1005 = vld [vmem:[%s220 + $0x16d8] sm:$0xff]
        %v1006 = vld [vmem:[%s220 + $0x16e0] sm:$0xff]
        %v1007 = vld [vmem:[%s220 + $0x16e8] sm:$0xff]
        %v1008 = vld [vmem:[%s220 + $0x16f0] sm:$0xff]
        %v1009 = vld [vmem:[%s220 + $0x16f8] sm:$0xff]
        %v1010 = vld [vmem:[%s220 + $0x1700] sm:$0xff]
        %v1011 = vld [vmem:[%s220 + $0x1708] sm:$0xff]
        %v1012 = vld [vmem:[%s220 + $0x1710] sm:$0xff]
        %v1013 = vld [vmem:[%s220 + $0x1718] sm:$0xff]
        %v1014 = vld [vmem:[%s220 + $0x1720] sm:$0xff]
        %v1015 = vld [vmem:[%s220 + $0x1728] sm:$0xff]
        %v1016 = vld [vmem:[%s220 + $0x1730] sm:$0xff]
        %v1017 = vld [vmem:[%s220 + $0x1738] sm:$0xff]
        %v1018 = vld [vmem:[%s220 + $0x1740] sm:$0xff]
        %v1019 = vld [vmem:[%s220 + $0x1748] sm:$0xff]
        %v1020 = vld [vmem:[%s220 + $0x1750] sm:$0xff]
        %v1021 = vld [vmem:[%s220 + $0x1758] sm:$0xff]
        %v1022 = vld [vmem:[%s220 + $0x1760] sm:$0xff]
        %v1023 = vld [vmem:[%s220 + $0x1768] sm:$0xff]
        %v1024 = vld [vmem:[%s220 + $0x1770] sm:$0xff]
        %v1025 = vld [vmem:[%s220 + $0x1778] sm:$0xff]
        %v1026 = vld [vmem:[%s220 + $0x1780] sm:$0xff]
        %v1027 = vld [vmem:[%s220 + $0x1788] sm:$0xff]
        %v1028 = vld [vmem:[%s220 + $0x1790] sm:$0xff]
        %v1029 = vld [vmem:[%s220 + $0x1798] sm:$0xff]
        %v1030 = vld [vmem:[%s220 + $0x17a0] sm:$0xff]
        %v1031 = vld [vmem:[%s220 + $0x17a8] sm:$0xff]
        %v1032 = vld [vmem:[%s220 + $0x17b0] sm:$0xff]
        %v1033 = vld [vmem:[%s220 + $0x17b8] sm:$0xff]
        %v1034 = vld [vmem:[%s220 + $0x17c0] sm:$0xff]
        %v1035 = vld [vmem:[%s220 + $0x17c8] sm:$0xff]
        %v1036 = vld [vmem:[%s220 + $0x17d0] sm:$0xff]
        %v1037 = vld [vmem:[%s220 + $0x17d8] sm:$0xff]
        %v1038 = vld [vmem:[%s220 + $0x17e0] sm:$0xff]
        %v1039 = vld [vmem:[%s220 + $0x17e8] sm:$0xff]
        %v1040 = vld [vmem:[%s220 + $0x17f0] sm:$0xff]
        %v1041 = vld [vmem:[%s220 + $0x17f8] sm:$0xff]
        %v1042 = vld [vmem:[%s220 + $0x1800] sm:$0xff]
        %v1043 = vld [vmem:[%s220 + $0x1808] sm:$0xff]
        %v1044 = vld [vmem:[%s220 + $0x1810] sm:$0xff]
        %v1045 = vld [vmem:[%s220 + $0x1818] sm:$0xff]
        %v1046 = vld [vmem:[%s220 + $0x1820] sm:$0xff]
        %v1047 = vld [vmem:[%s220 + $0x1828] sm:$0xff]
        %v1048 = vld [vmem:[%s220 + $0x1830] sm:$0xff]
        %v1049 = vld [vmem:[%s220 + $0x1838] sm:$0xff]
        %v1050 = vld [vmem:[%s220 + $0x1840] sm:$0xff]
        %v1051 = vld [vmem:[%s220 + $0x1848] sm:$0xff]
        %v1052 = vld [vmem:[%s220 + $0x1850] sm:$0xff]
        %v1053 = vld [vmem:[%s220 + $0x1858] sm:$0xff]
        %v1054 = vld [vmem:[%s220 + $0x1860] sm:$0xff]
        %v1055 = vld [vmem:[%s220 + $0x1868] sm:$0xff]
        %v1056 = vld [vmem:[%s220 + $0x1870] sm:$0xff]
        %v1057 = vld [vmem:[%s220 + $0x1878] sm:$0xff]
        %v1058 = vld [vmem:[%s220 + $0x1880] sm:$0xff]
        %v1059 = vld [vmem:[%s220 + $0x1888] sm:$0xff]
        %v1060 = vld [vmem:[%s220 + $0x1890] sm:$0xff]
        %v1061 = vld [vmem:[%s220 + $0x1898] sm:$0xff]
        %v1062 = vld [vmem:[%s220 + $0x18a0] sm:$0xff]
        %v1063 = vld [vmem:[%s220 + $0x18a8] sm:$0xff]
        %v1064 = vld [vmem:[%s220 + $0x18b0] sm:$0xff]
        %v1065 = vld [vmem:[%s220 + $0x18b8] sm:$0xff]
        %v1066 = vld [vmem:[%s220 + $0x18c0] sm:$0xff]
        %v1067 = vld [vmem:[%s220 + $0x18c8] sm:$0xff]
        %v1068 = vld [vmem:[%s220 + $0x18d0] sm:$0xff]
        %v1069 = vld [vmem:[%s220 + $0x18d8] sm:$0xff]
        %v1070 = vld [vmem:[%s220 + $0x18e0] sm:$0xff]
        %v1071 = vld [vmem:[%s220 + $0x18e8] sm:$0xff]
        %v1072 = vld [vmem:[%s220 + $0x18f0] sm:$0xff]
        %v1073 = vld [vmem:[%s220 + $0x18f8] sm:$0xff]
        %v1074 = vld [vmem:[%s220 + $0x1900] sm:$0xff]
        %v1075 = vld [vmem:[%s220 + $0x1908] sm:$0xff]
        %v1076 = vld [vmem:[%s220 + $0x1910] sm:$0xff]
        %v1077 = vld [vmem:[%s220 + $0x1918] sm:$0xff]
        %v1078 = vld [vmem:[%s220 + $0x1920] sm:$0xff]
        %v1079 = vld [vmem:[%s220 + $0x1928] sm:$0xff]
        %v1080 = vld [vmem:[%s220 + $0x1930] sm:$0xff]
        %v1081 = vld [vmem:[%s220 + $0x1938] sm:$0xff]
        %v1082 = vld [vmem:[%s220 + $0x1940] sm:$0xff]
        %v1083 = vld [vmem:[%s220 + $0x1948] sm:$0xff]
        %v1084 = vld [vmem:[%s220 + $0x1950] sm:$0xff]
        %v1085 = vld [vmem:[%s220 + $0x1958] sm:$0xff]
        %v1086 = vld [vmem:[%s220 + $0x1960] sm:$0xff]
        %v1087 = vld [vmem:[%s220 + $0x1968] sm:$0xff]
        %v1088 = vld [vmem:[%s220 + $0x1970] sm:$0xff]
        %v1089 = vld [vmem:[%s220 + $0x1978] sm:$0xff]
        %v1090 = vld [vmem:[%s220 + $0x1980] sm:$0xff]
        %v1091 = vld [vmem:[%s220 + $0x1988] sm:$0xff]
        %v1092 = vld [vmem:[%s220 + $0x1990] sm:$0xff]
        %v1093 = vld [vmem:[%s220 + $0x1998] sm:$0xff]
        %v1094 = vld [vmem:[%s220 + $0x19a0] sm:$0xff]
        %v1095 = vld [vmem:[%s220 + $0x19a8] sm:$0xff]
        %v1096 = vld [vmem:[%s220 + $0x19b0] sm:$0xff]
        %v1097 = vld [vmem:[%s220 + $0x19b8] sm:$0xff]
        %v1098 = vld [vmem:[%s220 + $0x19c0] sm:$0xff]
        %v1099 = vld [vmem:[%s220 + $0x19c8] sm:$0xff]
        %v1100 = vld [vmem:[%s220 + $0x19d0] sm:$0xff]
        %v1101 = vld [vmem:[%s220 + $0x19d8] sm:$0xff]
        %v1102 = vld [vmem:[%s220 + $0x19e0] sm:$0xff]
        %v1103 = vld [vmem:[%s220 + $0x19e8] sm:$0xff]
        %v1104 = vld [vmem:[%s220 + $0x19f0] sm:$0xff]
        %v1105 = vld [vmem:[%s220 + $0x19f8] sm:$0xff]
        %v1106 = vld [vmem:[%s220 + $0x1a00] sm:$0xff]
        %v1107 = vld [vmem:[%s220 + $0x1a08] sm:$0xff]
        %v1108 = vld [vmem:[%s220 + $0x1a10] sm:$0xff]
        %v1109 = vld [vmem:[%s220 + $0x1a18] sm:$0xff]
        %v1110 = vld [vmem:[%s220 + $0x1a20] sm:$0xff]
        %v1111 = vld [vmem:[%s220 + $0x1a28] sm:$0xff]
        %v1112 = vld [vmem:[%s220 + $0x1a30] sm:$0xff]
        %v1113 = vld [vmem:[%s220 + $0x1a38] sm:$0xff]
        %v1114 = vld [vmem:[%s220 + $0x1a40] sm:$0xff]
        %v1115 = vld [vmem:[%s220 + $0x1a48] sm:$0xff]
        %v1116 = vld [vmem:[%s220 + $0x1a50] sm:$0xff]
        %v1117 = vld [vmem:[%s220 + $0x1a58] sm:$0xff]
        %v1118 = vld [vmem:[%s220 + $0x1a60] sm:$0xff]
        %v1119 = vld [vmem:[%s220 + $0x1a68] sm:$0xff]
        %v1120 = vld [vmem:[%s220 + $0x1a70] sm:$0xff]
        %v1121 = vld [vmem:[%s220 + $0x1a78] sm:$0xff]
        %v1122 = vld [vmem:[%s220 + $0x1a80] sm:$0xff]
        %v1123 = vld [vmem:[%s220 + $0x1a88] sm:$0xff]
        %v1124 = vld [vmem:[%s220 + $0x1a90] sm:$0xff]
        %v1125 = vld [vmem:[%s220 + $0x1a98] sm:$0xff]
        %v1126 = vld [vmem:[%s220 + $0x1aa0] sm:$0xff]
        %v1127 = vld [vmem:[%s220 + $0x1aa8] sm:$0xff]
        %v1128 = vld [vmem:[%s220 + $0x1ab0] sm:$0xff]
        %v1129 = vld [vmem:[%s220 + $0x1ab8] sm:$0xff]
        %v1130 = vld [vmem:[%s220 + $0x1ac0] sm:$0xff]
        %v1131 = vld [vmem:[%s220 + $0x1ac8] sm:$0xff]
        %v1132 = vld [vmem:[%s220 + $0x1ad0] sm:$0xff]
        %v1133 = vld [vmem:[%s220 + $0x1ad8] sm:$0xff]
        %v1134 = vld [vmem:[%s220 + $0x1ae0] sm:$0xff]
        %v1135 = vld [vmem:[%s220 + $0x1ae8] sm:$0xff]
        %v1136 = vld [vmem:[%s220 + $0x1af0] sm:$0xff]
        %v1137 = vld [vmem:[%s220 + $0x1af8] sm:$0xff]
        %v1138 = vld [vmem:[%s220 + $0x1b00] sm:$0xff]
        %v1139 = vld [vmem:[%s220 + $0x1b08] sm:$0xff]
        %v1140 = vld [vmem:[%s220 + $0x1b10] sm:$0xff]
        %v1141 = vld [vmem:[%s220 + $0x1b18] sm:$0xff]
        %v1142 = vld [vmem:[%s220 + $0x1b20] sm:$0xff]
        %v1143 = vld [vmem:[%s220 + $0x1b28] sm:$0xff]
        %v1144 = vld [vmem:[%s220 + $0x1b30] sm:$0xff]
        %v1145 = vld [vmem:[%s220 + $0x1b38] sm:$0xff]
        %v1146 = vld [vmem:[%s220 + $0x1b40] sm:$0xff]
        %v1147 = vld [vmem:[%s220 + $0x1b48] sm:$0xff]
        %v1148 = vld [vmem:[%s220 + $0x1b50] sm:$0xff]
        %v1149 = vld [vmem:[%s220 + $0x1b58] sm:$0xff]
        %v1150 = vld [vmem:[%s220 + $0x1b60] sm:$0xff]
        %v1151 = vld [vmem:[%s220 + $0x1b68] sm:$0xff]
        %v1152 = vld [vmem:[%s220 + $0x1b70] sm:$0xff]
        %v1153 = vld [vmem:[%s220 + $0x1b78] sm:$0xff]
        %v1154 = vld [vmem:[%s220 + $0x1b80] sm:$0xff]
        %v1155 = vld [vmem:[%s220 + $0x1b88] sm:$0xff]
        %v1156 = vld [vmem:[%s220 + $0x1b90] sm:$0xff]
        %v1157 = vld [vmem:[%s220 + $0x1b98] sm:$0xff]
        %v1158 = vld [vmem:[%s220 + $0x1ba0] sm:$0xff]
        %v1159 = vld [vmem:[%s220 + $0x1ba8] sm:$0xff]
        %v1160 = vld [vmem:[%s220 + $0x1bb0] sm:$0xff]
        %v1161 = vld [vmem:[%s220 + $0x1bb8] sm:$0xff]
        %v1162 = vld [vmem:[%s220 + $0x1bc0] sm:$0xff]
        %v1163 = vld [vmem:[%s220 + $0x1bc8] sm:$0xff]
        %v1164 = vld [vmem:[%s220 + $0x1bd0] sm:$0xff]
        %v1165 = vld [vmem:[%s220 + $0x1bd8] sm:$0xff]
        %v1166 = vld [vmem:[%s220 + $0x1be0] sm:$0xff]
        %v1167 = vld [vmem:[%s220 + $0x1be8] sm:$0xff]
        %v1168 = vld [vmem:[%s220 + $0x1bf0] sm:$0xff]
        %v1169 = vld [vmem:[%s220 + $0x1bf8] sm:$0xff]
        %v1184 = vcombine.high %v260, %v260
        %v1186 = vunpack.c.l.s4 1983009808
        %v1187 = vunpack.c.0.s8 %v1186
        %v1188 = vlaneseq
        %v1189 = vshrl.u32 %v1188, 7
        %v1190 = vsub.s32 %v1187, %v1189
        %v1191 = vrot.slane %v260, %v1190
        %v1193 = vunpack.c.l.s4 1983009808
        %v1194 = vunpack.c.0.s8 %v1193
        %v1195 = vlaneseq
        %v1196 = vshrl.u32 %v1195, 7
        %v1197 = vsub.s32 %v1194, %v1196
        %v1198 = vrot.slane %v1184, %v1197
        %v1199 = vcombine.high %v1191, %v1191
        %v1200 = vcombine.high %v1198, %v1198
        %v1201 = vcombine.high %v261, %v261
        %v1203 = vunpack.c.l.s4 1983009808
        %v1204 = vunpack.c.0.s8 %v1203
        %v1205 = vlaneseq
        %v1206 = vshrl.u32 %v1205, 7
        %v1207 = vsub.s32 %v1204, %v1206
        %v1208 = vrot.slane %v261, %v1207
        %v1210 = vunpack.c.l.s4 1983009808
        %v1211 = vunpack.c.0.s8 %v1210
        %v1212 = vlaneseq
        %v1213 = vshrl.u32 %v1212, 7
        %v1214 = vsub.s32 %v1211, %v1213
        %v1215 = vrot.slane %v1201, %v1214
        %v1216 = vcombine.high %v1208, %v1208
        %v1217 = vcombine.high %v1215, %v1215
        %v1218 = vcombine.high %v262, %v262
        %v1220 = vunpack.c.l.s4 1983009808
        %v1221 = vunpack.c.0.s8 %v1220
        %v1222 = vlaneseq
        %v1223 = vshrl.u32 %v1222, 7
        %v1224 = vsub.s32 %v1221, %v1223
        %v1225 = vrot.slane %v262, %v1224
        %v1227 = vunpack.c.l.s4 1983009808
        %v1228 = vunpack.c.0.s8 %v1227
        %v1229 = vlaneseq
        %v1230 = vshrl.u32 %v1229, 7
        %v1231 = vsub.s32 %v1228, %v1230
        %v1232 = vrot.slane %v1218, %v1231
        %v1233 = vcombine.high %v1225, %v1225
        %v1234 = vcombine.high %v1232, %v1232
        %v1235 = vcombine.high %v263, %v263
        %v1237 = vunpack.c.l.s4 1983009808
        %v1238 = vunpack.c.0.s8 %v1237
        %v1239 = vlaneseq
        %v1240 = vshrl.u32 %v1239, 7
        %v1241 = vsub.s32 %v1238, %v1240
        %v1242 = vrot.slane %v263, %v1241
        %v1244 = vunpack.c.l.s4 1983009808
        %v1245 = vunpack.c.0.s8 %v1244
        %v1246 = vlaneseq
        %v1247 = vshrl.u32 %v1246, 7
        %v1248 = vsub.s32 %v1245, %v1247
        %v1249 = vrot.slane %v1235, %v1248
        %v1250 = vcombine.high %v1242, %v1242
        %v1251 = vcombine.high %v1249, %v1249
        %v1252 = vcombine.high %v264, %v264
        %v1254 = vunpack.c.l.s4 1983009808
        %v1255 = vunpack.c.0.s8 %v1254
        %v1256 = vlaneseq
        %v1257 = vshrl.u32 %v1256, 7
        %v1258 = vsub.s32 %v1255, %v1257
        %v1259 = vrot.slane %v264, %v1258
        %v1261 = vunpack.c.l.s4 1983009808
        %v1262 = vunpack.c.0.s8 %v1261
        %v1263 = vlaneseq
        %v1264 = vshrl.u32 %v1263, 7
        %v1265 = vsub.s32 %v1262, %v1264
        %v1266 = vrot.slane %v1252, %v1265
        %v1267 = vcombine.high %v1259, %v1259
        %v1268 = vcombine.high %v1266, %v1266
        %v1269 = vcombine.high %v265, %v265
        %v1271 = vunpack.c.l.s4 1983009808
        %v1272 = vunpack.c.0.s8 %v1271
        %v1273 = vlaneseq
        %v1274 = vshrl.u32 %v1273, 7
        %v1275 = vsub.s32 %v1272, %v1274
        %v1276 = vrot.slane %v265, %v1275
        %v1278 = vunpack.c.l.s4 1983009808
        %v1279 = vunpack.c.0.s8 %v1278
        %v1280 = vlaneseq
        %v1281 = vshrl.u32 %v1280, 7
        %v1282 = vsub.s32 %v1279, %v1281
        %v1283 = vrot.slane %v1269, %v1282
        %v1284 = vcombine.high %v1276, %v1276
        %v1285 = vcombine.high %v1283, %v1283
        %v1286 = vcombine.high %v266, %v266
        %v1288 = vunpack.c.l.s4 1983009808
        %v1289 = vunpack.c.0.s8 %v1288
        %v1290 = vlaneseq
        %v1291 = vshrl.u32 %v1290, 7
        %v1292 = vsub.s32 %v1289, %v1291
        %v1293 = vrot.slane %v266, %v1292
        %v1295 = vunpack.c.l.s4 1983009808
        %v1296 = vunpack.c.0.s8 %v1295
        %v1297 = vlaneseq
        %v1298 = vshrl.u32 %v1297, 7
        %v1299 = vsub.s32 %v1296, %v1298
        %v1300 = vrot.slane %v1286, %v1299
        %v1301 = vcombine.high %v1293, %v1293
        %v1302 = vcombine.high %v1300, %v1300
        %v1303 = vcombine.high %v267, %v267
        %v1305 = vunpack.c.l.s4 1983009808
        %v1306 = vunpack.c.0.s8 %v1305
        %v1307 = vlaneseq
        %v1308 = vshrl.u32 %v1307, 7
        %v1309 = vsub.s32 %v1306, %v1308
        %v1310 = vrot.slane %v267, %v1309
        %v1312 = vunpack.c.l.s4 1983009808
        %v1313 = vunpack.c.0.s8 %v1312
        %v1314 = vlaneseq
        %v1315 = vshrl.u32 %v1314, 7
        %v1316 = vsub.s32 %v1313, %v1315
        %v1317 = vrot.slane %v1303, %v1316
        %v1318 = vcombine.high %v1310, %v1310
        %v1319 = vcombine.high %v1317, %v1317
        %v1320 = vcombine.high %v268, %v268
        %v1322 = vunpack.c.l.s4 1983009808
        %v1323 = vunpack.c.0.s8 %v1322
        %v1324 = vlaneseq
        %v1325 = vshrl.u32 %v1324, 7
        %v1326 = vsub.s32 %v1323, %v1325
        %v1327 = vrot.slane %v268, %v1326
        %v1329 = vunpack.c.l.s4 1983009808
        %v1330 = vunpack.c.0.s8 %v1329
        %v1331 = vlaneseq
        %v1332 = vshrl.u32 %v1331, 7
        %v1333 = vsub.s32 %v1330, %v1332
        %v1334 = vrot.slane %v1320, %v1333
        %v1335 = vcombine.high %v1327, %v1327
        %v1336 = vcombine.high %v1334, %v1334
        %v1337 = vcombine.high %v269, %v269
        %v1339 = vunpack.c.l.s4 1983009808
        %v1340 = vunpack.c.0.s8 %v1339
        %v1341 = vlaneseq
        %v1342 = vshrl.u32 %v1341, 7
        %v1343 = vsub.s32 %v1340, %v1342
        %v1344 = vrot.slane %v269, %v1343
        %v1346 = vunpack.c.l.s4 1983009808
        %v1347 = vunpack.c.0.s8 %v1346
        %v1348 = vlaneseq
        %v1349 = vshrl.u32 %v1348, 7
        %v1350 = vsub.s32 %v1347, %v1349
        %v1351 = vrot.slane %v1337, %v1350
        %v1352 = vcombine.high %v1344, %v1344
        %v1353 = vcombine.high %v1351, %v1351
        %v1354 = vcombine.high %v270, %v270
        %v1356 = vunpack.c.l.s4 1983009808
        %v1357 = vunpack.c.0.s8 %v1356
        %v1358 = vlaneseq
        %v1359 = vshrl.u32 %v1358, 7
        %v1360 = vsub.s32 %v1357, %v1359
        %v1361 = vrot.slane %v270, %v1360
        %v1363 = vunpack.c.l.s4 1983009808
        %v1364 = vunpack.c.0.s8 %v1363
        %v1365 = vlaneseq
        %v1366 = vshrl.u32 %v1365, 7
        %v1367 = vsub.s32 %v1364, %v1366
        %v1368 = vrot.slane %v1354, %v1367
        %v1369 = vcombine.high %v1361, %v1361
        %v1370 = vcombine.high %v1368, %v1368
        %v1371 = vcombine.high %v271, %v271
        %v1373 = vunpack.c.l.s4 1983009808
        %v1374 = vunpack.c.0.s8 %v1373
        %v1375 = vlaneseq
        %v1376 = vshrl.u32 %v1375, 7
        %v1377 = vsub.s32 %v1374, %v1376
        %v1378 = vrot.slane %v271, %v1377
        %v1380 = vunpack.c.l.s4 1983009808
        %v1381 = vunpack.c.0.s8 %v1380
        %v1382 = vlaneseq
        %v1383 = vshrl.u32 %v1382, 7
        %v1384 = vsub.s32 %v1381, %v1383
        %v1385 = vrot.slane %v1371, %v1384
        %v1386 = vcombine.high %v1378, %v1378
        %v1387 = vcombine.high %v1385, %v1385
        %v1388 = vcombine.high %v272, %v272
        %v1390 = vunpack.c.l.s4 1983009808
        %v1391 = vunpack.c.0.s8 %v1390
        %v1392 = vlaneseq
        %v1393 = vshrl.u32 %v1392, 7
        %v1394 = vsub.s32 %v1391, %v1393
        %v1395 = vrot.slane %v272, %v1394
        %v1397 = vunpack.c.l.s4 1983009808
        %v1398 = vunpack.c.0.s8 %v1397
        %v1399 = vlaneseq
        %v1400 = vshrl.u32 %v1399, 7
        %v1401 = vsub.s32 %v1398, %v1400
        %v1402 = vrot.slane %v1388, %v1401
        %v1403 = vcombine.high %v1395, %v1395
        %v1404 = vcombine.high %v1402, %v1402
        %v1405 = vcombine.high %v273, %v273
        %v1407 = vunpack.c.l.s4 1983009808
        %v1408 = vunpack.c.0.s8 %v1407
        %v1409 = vlaneseq
        %v1410 = vshrl.u32 %v1409, 7
        %v1411 = vsub.s32 %v1408, %v1410
        %v1412 = vrot.slane %v273, %v1411
        %v1414 = vunpack.c.l.s4 1983009808
        %v1415 = vunpack.c.0.s8 %v1414
        %v1416 = vlaneseq
        %v1417 = vshrl.u32 %v1416, 7
        %v1418 = vsub.s32 %v1415, %v1417
        %v1419 = vrot.slane %v1405, %v1418
        %v1420 = vcombine.high %v1412, %v1412
        %v1421 = vcombine.high %v1419, %v1419
        %1478 = vmatprep.subr.mxu0 %v275
        %1479 = vmatpush1.xpose.msra.mxu0 %v274
        %1480 = vmatprep.subr.mxu0 %v331
        %1481 = vmatpush1.xpose.msra.mxu0 %v330
        %1482 = vmatprep.subr.mxu0 %v387
        %1483 = vmatpush1.xpose.msra.mxu0 %v386
        %1484 = vmatprep.subr.mxu0 %v443
        %1485 = vmatpush1.xpose.msra.mxu0 %v442
        %1486 = vmatprep.subr.mxu0 %v499
        %1487 = vmatpush1.xpose.msra.mxu0 %v498
        %1488 = vmatprep.subr.mxu0 %v555
        %1489 = vmatpush1.xpose.msra.mxu0 %v554
        %1490 = vmatprep.subr.mxu0 %v611
        %1491 = vmatpush1.xpose.msra.mxu0 %v610
        %1492 = vmatprep.subr.mxu0 %v667
        %1493 = vmatpush1.xpose.msra.mxu0 %v666
        %1494 = vmatprep.subr.mxu0 %v723
        %1495 = vmatpush1.xpose.msra.mxu0 %v722
        %1496 = vmatprep.subr.mxu0 %v779
        %1497 = vmatpush1.xpose.msra.mxu0 %v778
        %1498 = vmatprep.subr.mxu0 %v835
        %1499 = vmatpush1.xpose.msra.mxu0 %v834
        %1500 = vmatprep.subr.mxu0 %v891
        %1501 = vmatpush1.xpose.msra.mxu0 %v890
        %1502 = vmatprep.subr.mxu0 %v947
        %1503 = vmatpush1.xpose.msra.mxu0 %v946
        %1504 = vmatprep.subr.mxu0 %v1003
        %1505 = vmatpush1.xpose.msra.mxu0 %v1002
        %1506 = vmatprep.subr.mxu0 %v1059
        %1507 = vmatpush1.xpose.msra.mxu0 %v1058
        %1508 = vmatprep.subr.mxu0 %v1115
        %1509 = vmatpush1.xpose.msra.mxu0 %v1114
        %1510 = vmatprep.subr.mxu0 0.0
        %1511 = vmatpush1.xpose.msra.mxu0 0.0
        %1512 = vmatprep.subr.mxu0 0.0
        %1513 = vmatpush1.xpose.msra.mxu0 0.0
        %1514 = vmatprep.subr.mxu0 0.0
        %1515 = vmatpush1.xpose.msra.mxu0 0.0
        %1516 = vmatprep.subr.mxu0 0.0
        %1517 = vmatpush1.xpose.msra.mxu0 0.0
        %1518 = vmatprep.subr.mxu0 0.0
        %1519 = vmatpush1.xpose.msra.mxu0 0.0
        %1520 = vmatprep.subr.mxu0 0.0
        %1521 = vmatpush1.xpose.msra.mxu0 0.0
        %1522 = vmatprep.subr.mxu0 0.0
        %1523 = vmatpush1.xpose.msra.mxu0 0.0
        %1524 = vmatprep.subr.mxu0 0.0
        %1525 = vmatpush1.xpose.msra.mxu0 0.0
        %1526 = vmatprep.subr.mxu0 0.0
        %1527 = vmatpush1.xpose.msra.mxu0 0.0
        %1528 = vmatprep.subr.mxu0 0.0
        %1529 = vmatpush1.xpose.msra.mxu0 0.0
        %1530 = vmatprep.subr.mxu0 0.0
        %1531 = vmatpush1.xpose.msra.mxu0 0.0
        %1532 = vmatprep.subr.mxu0 0.0
        %1533 = vmatpush1.xpose.msra.mxu0 0.0
        %1534 = vmatprep.subr.mxu0 0.0
        %1535 = vmatpush1.xpose.msra.mxu0 0.0
        %1536 = vmatprep.subr.mxu0 0.0
        %1537 = vmatpush1.xpose.msra.mxu0 0.0
        %1538 = vmatprep.subr.mxu0 0.0
        %1539 = vmatpush1.xpose.msra.mxu0 0.0
        %1540 = vmatprep.subr.mxu0 0.0
        %1541 = vmatpush1.xpose.msra.mxu0 0.0
        %1542 = vmatprep.mubr.f32.mxu0 %v1199
        %1543 = vmatmul.mubr.f32.gmra.mrb[0].mxu0 %v1191
        %v1544 = vpop.f32.mrb[0].mxu0
        %v1545 = vadd.f32 0.0, %v1544
        %v1546 = vpop.f32.mrb[0].mxu0
        %1547 = vdwg.mxu0
        %1548 = vmatprep.subr.mxu0 %v277
        %1549 = vmatpush1.xpose.msra.mxu0 %v276
        %1550 = vmatprep.subr.mxu0 %v333
        %1551 = vmatpush1.xpose.msra.mxu0 %v332
        %1552 = vmatprep.subr.mxu0 %v389
        %1553 = vmatpush1.xpose.msra.mxu0 %v388
        %1554 = vmatprep.subr.mxu0 %v445
        %1555 = vmatpush1.xpose.msra.mxu0 %v444
        %1556 = vmatprep.subr.mxu0 %v501
        %1557 = vmatpush1.xpose.msra.mxu0 %v500
        %1558 = vmatprep.subr.mxu0 %v557
        %1559 = vmatpush1.xpose.msra.mxu0 %v556
        %1560 = vmatprep.subr.mxu0 %v613
        %1561 = vmatpush1.xpose.msra.mxu0 %v612
        %1562 = vmatprep.subr.mxu0 %v669
        %1563 = vmatpush1.xpose.msra.mxu0 %v668
        %1564 = vmatprep.subr.mxu0 %v725
        %1565 = vmatpush1.xpose.msra.mxu0 %v724
        %1566 = vmatprep.subr.mxu0 %v781
        %1567 = vmatpush1.xpose.msra.mxu0 %v780
        %1568 = vmatprep.subr.mxu0 %v837
        %1569 = vmatpush1.xpose.msra.mxu0 %v836
        %1570 = vmatprep.subr.mxu0 %v893
        %1571 = vmatpush1.xpose.msra.mxu0 %v892
        %1572 = vmatprep.subr.mxu0 %v949
        %1573 = vmatpush1.xpose.msra.mxu0 %v948
        %1574 = vmatprep.subr.mxu0 %v1005
        %1575 = vmatpush1.xpose.msra.mxu0 %v1004
        %1576 = vmatprep.subr.mxu0 %v1061
        %1577 = vmatpush1.xpose.msra.mxu0 %v1060
        %1578 = vmatprep.subr.mxu0 %v1117
        %1579 = vmatpush1.xpose.msra.mxu0 %v1116
        %1580 = vmatprep.subr.mxu0 0.0
        %1581 = vmatpush1.xpose.msra.mxu0 0.0
        %1582 = vmatprep.subr.mxu0 0.0
        %1583 = vmatpush1.xpose.msra.mxu0 0.0
        %1584 = vmatprep.subr.mxu0 0.0
        %1585 = vmatpush1.xpose.msra.mxu0 0.0
        %1586 = vmatprep.subr.mxu0 0.0
        %1587 = vmatpush1.xpose.msra.mxu0 0.0
        %1588 = vmatprep.subr.mxu0 0.0
        %1589 = vmatpush1.xpose.msra.mxu0 0.0
        %1590 = vmatprep.subr.mxu0 0.0
        %1591 = vmatpush1.xpose.msra.mxu0 0.0
        %1592 = vmatprep.subr.mxu0 0.0
        %1593 = vmatpush1.xpose.msra.mxu0 0.0
        %1594 = vmatprep.subr.mxu0 0.0
        %1595 = vmatpush1.xpose.msra.mxu0 0.0
        %1596 = vmatprep.subr.mxu0 0.0
        %1597 = vmatpush1.xpose.msra.mxu0 0.0
        %1598 = vmatprep.subr.mxu0 0.0
        %1599 = vmatpush1.xpose.msra.mxu0 0.0
        %1600 = vmatprep.subr.mxu0 0.0
        %1601 = vmatpush1.xpose.msra.mxu0 0.0
        %1602 = vmatprep.subr.mxu0 0.0
        %1603 = vmatpush1.xpose.msra.mxu0 0.0
        %1604 = vmatprep.subr.mxu0 0.0
        %1605 = vmatpush1.xpose.msra.mxu0 0.0
        %1606 = vmatprep.subr.mxu0 0.0
        %1607 = vmatpush1.xpose.msra.mxu0 0.0
        %1608 = vmatprep.subr.mxu0 0.0
        %1609 = vmatpush1.xpose.msra.mxu0 0.0
        %1610 = vmatprep.subr.mxu0 0.0
        %1611 = vmatpush1.xpose.msra.mxu0 0.0
        %1612 = vmatprep.mubr.f32.mxu0 %v1200
        %1613 = vmatmul.mubr.f32.gmra.mrb[0].mxu0 %v1198
        %v1614 = vpop.f32.mrb[0].mxu0
        %v1615 = vadd.f32 %v1545, %v1614
        %v1616 = vpop.f32.mrb[0].mxu0
        %1617 = vdwg.mxu0
        %1618 = vmatprep.subr.mxu0 %v279
        %1619 = vmatpush1.xpose.msra.mxu0 %v278
        %1620 = vmatprep.subr.mxu0 %v335
        %1621 = vmatpush1.xpose.msra.mxu0 %v334
        %1622 = vmatprep.subr.mxu0 %v391
        %1623 = vmatpush1.xpose.msra.mxu0 %v390
        %1624 = vmatprep.subr.mxu0 %v447
        %1625 = vmatpush1.xpose.msra.mxu0 %v446
        %1626 = vmatprep.subr.mxu0 %v503
        %1627 = vmatpush1.xpose.msra.mxu0 %v502
        %1628 = vmatprep.subr.mxu0 %v559
        %1629 = vmatpush1.xpose.msra.mxu0 %v558
        %1630 = vmatprep.subr.mxu0 %v615
        %1631 = vmatpush1.xpose.msra.mxu0 %v614
        %1632 = vmatprep.subr.mxu0 %v671
        %1633 = vmatpush1.xpose.msra.mxu0 %v670
        %1634 = vmatprep.subr.mxu0 %v727
        %1635 = vmatpush1.xpose.msra.mxu0 %v726
        %1636 = vmatprep.subr.mxu0 %v783
        %1637 = vmatpush1.xpose.msra.mxu0 %v782
        %1638 = vmatprep.subr.mxu0 %v839
        %1639 = vmatpush1.xpose.msra.mxu0 %v838
        %1640 = vmatprep.subr.mxu0 %v895
        %1641 = vmatpush1.xpose.msra.mxu0 %v894
        %1642 = vmatprep.subr.mxu0 %v951
        %1643 = vmatpush1.xpose.msra.mxu0 %v950
        %1644 = vmatprep.subr.mxu0 %v1007
        %1645 = vmatpush1.xpose.msra.mxu0 %v1006
        %1646 = vmatprep.subr.mxu0 %v1063
        %1647 = vmatpush1.xpose.msra.mxu0 %v1062
        %1648 = vmatprep.subr.mxu0 %v1119
        %1649 = vmatpush1.xpose.msra.mxu0 %v1118
        %1650 = vmatprep.subr.mxu0 0.0
        %1651 = vmatpush1.xpose.msra.mxu0 0.0
        %1652 = vmatprep.subr.mxu0 0.0
        %1653 = vmatpush1.xpose.msra.mxu0 0.0
        %1654 = vmatprep.subr.mxu0 0.0
        %1655 = vmatpush1.xpose.msra.mxu0 0.0
        %1656 = vmatprep.subr.mxu0 0.0
        %1657 = vmatpush1.xpose.msra.mxu0 0.0
        %1658 = vmatprep.subr.mxu0 0.0
        %1659 = vmatpush1.xpose.msra.mxu0 0.0
        %1660 = vmatprep.subr.mxu0 0.0
        %1661 = vmatpush1.xpose.msra.mxu0 0.0
        %1662 = vmatprep.subr.mxu0 0.0
        %1663 = vmatpush1.xpose.msra.mxu0 0.0
        %1664 = vmatprep.subr.mxu0 0.0
        %1665 = vmatpush1.xpose.msra.mxu0 0.0
        %1666 = vmatprep.subr.mxu0 0.0
        %1667 = vmatpush1.xpose.msra.mxu0 0.0
        %1668 = vmatprep.subr.mxu0 0.0
        %1669 = vmatpush1.xpose.msra.mxu0 0.0
        %1670 = vmatprep.subr.mxu0 0.0
        %1671 = vmatpush1.xpose.msra.mxu0 0.0
        %1672 = vmatprep.subr.mxu0 0.0
        %1673 = vmatpush1.xpose.msra.mxu0 0.0
        %1674 = vmatprep.subr.mxu0 0.0
        %1675 = vmatpush1.xpose.msra.mxu0 0.0
        %1676 = vmatprep.subr.mxu0 0.0
        %1677 = vmatpush1.xpose.msra.mxu0 0.0
        %1678 = vmatprep.subr.mxu0 0.0
        %1679 = vmatpush1.xpose.msra.mxu0 0.0
        %1680 = vmatprep.subr.mxu0 0.0
        %1681 = vmatpush1.xpose.msra.mxu0 0.0
        %1682 = vmatprep.mubr.f32.mxu0 %v1216
        %1683 = vmatmul.mubr.f32.gmra.mrb[0].mxu0 %v1208
        %v1684 = vpop.f32.mrb[0].mxu0
        %v1685 = vadd.f32 %v1615, %v1684
        %v1686 = vpop.f32.mrb[0].mxu0
        %1687 = vdwg.mxu0
        %1688 = vmatprep.subr.mxu0 %v281
        %1689 = vmatpush1.xpose.msra.mxu0 %v280
        %1690 = vmatprep.subr.mxu0 %v337
        %1691 = vmatpush1.xpose.msra.mxu0 %v336
        %1692 = vmatprep.subr.mxu0 %v393
        %1693 = vmatpush1.xpose.msra.mxu0 %v392
        %1694 = vmatprep.subr.mxu0 %v449
        %1695 = vmatpush1.xpose.msra.mxu0 %v448
        %1696 = vmatprep.subr.mxu0 %v505
        %1697 = vmatpush1.xpose.msra.mxu0 %v504
        %1698 = vmatprep.subr.mxu0 %v561
        %1699 = vmatpush1.xpose.msra.mxu0 %v560
        %1700 = vmatprep.subr.mxu0 %v617
        %1701 = vmatpush1.xpose.msra.mxu0 %v616
        %1702 = vmatprep.subr.mxu0 %v673
        %1703 = vmatpush1.xpose.msra.mxu0 %v672
        %1704 = vmatprep.subr.mxu0 %v729
        %1705 = vmatpush1.xpose.msra.mxu0 %v728
        %1706 = vmatprep.subr.mxu0 %v785
        %1707 = vmatpush1.xpose.msra.mxu0 %v784
        %1708 = vmatprep.subr.mxu0 %v841
        %1709 = vmatpush1.xpose.msra.mxu0 %v840
        %1710 = vmatprep.subr.mxu0 %v897
        %1711 = vmatpush1.xpose.msra.mxu0 %v896
        %1712 = vmatprep.subr.mxu0 %v953
        %1713 = vmatpush1.xpose.msra.mxu0 %v952
        %1714 = vmatprep.subr.mxu0 %v1009
        %1715 = vmatpush1.xpose.msra.mxu0 %v1008
        %1716 = vmatprep.subr.mxu0 %v1065
        %1717 = vmatpush1.xpose.msra.mxu0 %v1064
        %1718 = vmatprep.subr.mxu0 %v1121
        %1719 = vmatpush1.xpose.msra.mxu0 %v1120
        %1720 = vmatprep.subr.mxu0 0.0
        %1721 = vmatpush1.xpose.msra.mxu0 0.0
        %1722 = vmatprep.subr.mxu0 0.0
        %1723 = vmatpush1.xpose.msra.mxu0 0.0
        %1724 = vmatprep.subr.mxu0 0.0
        %1725 = vmatpush1.xpose.msra.mxu0 0.0
        %1726 = vmatprep.subr.mxu0 0.0
        %1727 = vmatpush1.xpose.msra.mxu0 0.0
        %1728 = vmatprep.subr.mxu0 0.0
        %1729 = vmatpush1.xpose.msra.mxu0 0.0
        %1730 = vmatprep.subr.mxu0 0.0
        %1731 = vmatpush1.xpose.msra.mxu0 0.0
        %1732 = vmatprep.subr.mxu0 0.0
        %1733 = vmatpush1.xpose.msra.mxu0 0.0
        %1734 = vmatprep.subr.mxu0 0.0
        %1735 = vmatpush1.xpose.msra.mxu0 0.0
        %1736 = vmatprep.subr.mxu0 0.0
        %1737 = vmatpush1.xpose.msra.mxu0 0.0
        %1738 = vmatprep.subr.mxu0 0.0
        %1739 = vmatpush1.xpose.msra.mxu0 0.0
        %1740 = vmatprep.subr.mxu0 0.0
        %1741 = vmatpush1.xpose.msra.mxu0 0.0
        %1742 = vmatprep.subr.mxu0 0.0
        %1743 = vmatpush1.xpose.msra.mxu0 0.0
        %1744 = vmatprep.subr.mxu0 0.0
        %1745 = vmatpush1.xpose.msra.mxu0 0.0
        %1746 = vmatprep.subr.mxu0 0.0
        %1747 = vmatpush1.xpose.msra.mxu0 0.0
        %1748 = vmatprep.subr.mxu0 0.0
        %1749 = vmatpush1.xpose.msra.mxu0 0.0
        %1750 = vmatprep.subr.mxu0 0.0
        %1751 = vmatpush1.xpose.msra.mxu0 0.0
        %1752 = vmatprep.mubr.f32.mxu0 %v1217
        %1753 = vmatmul.mubr.f32.gmra.mrb[0].mxu0 %v1215
        %v1754 = vpop.f32.mrb[0].mxu0
        %v1755 = vadd.f32 %v1685, %v1754
        %v1756 = vpop.f32.mrb[0].mxu0
        %1757 = vdwg.mxu0
        %1758 = vmatprep.subr.mxu0 %v283
        %1759 = vmatpush1.xpose.msra.mxu0 %v282
        %1760 = vmatprep.subr.mxu0 %v339
        %1761 = vmatpush1.xpose.msra.mxu0 %v338
        %1762 = vmatprep.subr.mxu0 %v395
        %1763 = vmatpush1.xpose.msra.mxu0 %v394
        %1764 = vmatprep.subr.mxu0 %v451
        %1765 = vmatpush1.xpose.msra.mxu0 %v450
        %1766 = vmatprep.subr.mxu0 %v507
        %1767 = vmatpush1.xpose.msra.mxu0 %v506
        %1768 = vmatprep.subr.mxu0 %v563
        %1769 = vmatpush1.xpose.msra.mxu0 %v562
        %1770 = vmatprep.subr.mxu0 %v619
        %1771 = vmatpush1.xpose.msra.mxu0 %v618
        %1772 = vmatprep.subr.mxu0 %v675
        %1773 = vmatpush1.xpose.msra.mxu0 %v674
        %1774 = vmatprep.subr.mxu0 %v731
        %1775 = vmatpush1.xpose.msra.mxu0 %v730
        %1776 = vmatprep.subr.mxu0 %v787
        %1777 = vmatpush1.xpose.msra.mxu0 %v786
        %1778 = vmatprep.subr.mxu0 %v843
        %1779 = vmatpush1.xpose.msra.mxu0 %v842
        %1780 = vmatprep.subr.mxu0 %v899
        %1781 = vmatpush1.xpose.msra.mxu0 %v898
        %1782 = vmatprep.subr.mxu0 %v955
        %1783 = vmatpush1.xpose.msra.mxu0 %v954
        %1784 = vmatprep.subr.mxu0 %v1011
        %1785 = vmatpush1.xpose.msra.mxu0 %v1010
        %1786 = vmatprep.subr.mxu0 %v1067
        %1787 = vmatpush1.xpose.msra.mxu0 %v1066
        %1788 = vmatprep.subr.mxu0 %v1123
        %1789 = vmatpush1.xpose.msra.mxu0 %v1122
        %1790 = vmatprep.subr.mxu0 0.0
        %1791 = vmatpush1.xpose.msra.mxu0 0.0
        %1792 = vmatprep.subr.mxu0 0.0
        %1793 = vmatpush1.xpose.msra.mxu0 0.0
        %1794 = vmatprep.subr.mxu0 0.0
        %1795 = vmatpush1.xpose.msra.mxu0 0.0
        %1796 = vmatprep.subr.mxu0 0.0
        %1797 = vmatpush1.xpose.msra.mxu0 0.0
        %1798 = vmatprep.subr.mxu0 0.0
        %1799 = vmatpush1.xpose.msra.mxu0 0.0
        %1800 = vmatprep.subr.mxu0 0.0
        %1801 = vmatpush1.xpose.msra.mxu0 0.0
        %1802 = vmatprep.subr.mxu0 0.0
        %1803 = vmatpush1.xpose.msra.mxu0 0.0
        %1804 = vmatprep.subr.mxu0 0.0
        %1805 = vmatpush1.xpose.msra.mxu0 0.0
        %1806 = vmatprep.subr.mxu0 0.0
        %1807 = vmatpush1.xpose.msra.mxu0 0.0
        %1808 = vmatprep.subr.mxu0 0.0
        %1809 = vmatpush1.xpose.msra.mxu0 0.0
        %1810 = vmatprep.subr.mxu0 0.0
        %1811 = vmatpush1.xpose.msra.mxu0 0.0
        %1812 = vmatprep.subr.mxu0 0.0
        %1813 = vmatpush1.xpose.msra.mxu0 0.0
        %1814 = vmatprep.subr.mxu0 0.0
        %1815 = vmatpush1.xpose.msra.mxu0 0.0
        %1816 = vmatprep.subr.mxu0 0.0
        %1817 = vmatpush1.xpose.msra.mxu0 0.0
        %1818 = vmatprep.subr.mxu0 0.0
        %1819 = vmatpush1.xpose.msra.mxu0 0.0
        %1820 = vmatprep.subr.mxu0 0.0
        %1821 = vmatpush1.xpose.msra.mxu0 0.0
        %1822 = vmatprep.mubr.f32.mxu0 %v1233
        %1823 = vmatmul.mubr.f32.gmra.mrb[0].mxu0 %v1225
        %v1824 = vpop.f32.mrb[0].mxu0
        %v1825 = vadd.f32 %v1755, %v1824
        %v1826 = vpop.f32.mrb[0].mxu0
        %1827 = vdwg.mxu0
        %1828 = vmatprep.subr.mxu0 %v285
        %1829 = vmatpush1.xpose.msra.mxu0 %v284
        %1830 = vmatprep.subr.mxu0 %v341
        %1831 = vmatpush1.xpose.msra.mxu0 %v340
        %1832 = vmatprep.subr.mxu0 %v397
        %1833 = vmatpush1.xpose.msra.mxu0 %v396
        %1834 = vmatprep.subr.mxu0 %v453
        %1835 = vmatpush1.xpose.msra.mxu0 %v452
        %1836 = vmatprep.subr.mxu0 %v509
        %1837 = vmatpush1.xpose.msra.mxu0 %v508
        %1838 = vmatprep.subr.mxu0 %v565
        %1839 = vmatpush1.xpose.msra.mxu0 %v564
        %1840 = vmatprep.subr.mxu0 %v621
        %1841 = vmatpush1.xpose.msra.mxu0 %v620
        %1842 = vmatprep.subr.mxu0 %v677
        %1843 = vmatpush1.xpose.msra.mxu0 %v676
        %1844 = vmatprep.subr.mxu0 %v733
        %1845 = vmatpush1.xpose.msra.mxu0 %v732
        %1846 = vmatprep.subr.mxu0 %v789
        %1847 = vmatpush1.xpose.msra.mxu0 %v788
        %1848 = vmatprep.subr.mxu0 %v845
        %1849 = vmatpush1.xpose.msra.mxu0 %v844
        %1850 = vmatprep.subr.mxu0 %v901
        %1851 = vmatpush1.xpose.msra.mxu0 %v900
        %1852 = vmatprep.subr.mxu0 %v957
        %1853 = vmatpush1.xpose.msra.mxu0 %v956
        %1854 = vmatprep.subr.mxu0 %v1013
        %1855 = vmatpush1.xpose.msra.mxu0 %v1012
        %1856 = vmatprep.subr.mxu0 %v1069
        %1857 = vmatpush1.xpose.msra.mxu0 %v1068
        %1858 = vmatprep.subr.mxu0 %v1125
        %1859 = vmatpush1.xpose.msra.mxu0 %v1124
        %1860 = vmatprep.subr.mxu0 0.0
        %1861 = vmatpush1.xpose.msra.mxu0 0.0
        %1862 = vmatprep.subr.mxu0 0.0
        %1863 = vmatpush1.xpose.msra.mxu0 0.0
        %1864 = vmatprep.subr.mxu0 0.0
        %1865 = vmatpush1.xpose.msra.mxu0 0.0
        %1866 = vmatprep.subr.mxu0 0.0
        %1867 = vmatpush1.xpose.msra.mxu0 0.0
        %1868 = vmatprep.subr.mxu0 0.0
        %1869 = vmatpush1.xpose.msra.mxu0 0.0
        %1870 = vmatprep.subr.mxu0 0.0
        %1871 = vmatpush1.xpose.msra.mxu0 0.0
        %1872 = vmatprep.subr.mxu0 0.0
        %1873 = vmatpush1.xpose.msra.mxu0 0.0
        %1874 = vmatprep.subr.mxu0 0.0
        %1875 = vmatpush1.xpose.msra.mxu0 0.0
        %1876 = vmatprep.subr.mxu0 0.0
        %1877 = vmatpush1.xpose.msra.mxu0 0.0
        %1878 = vmatprep.subr.mxu0 0.0
        %1879 = vmatpush1.xpose.msra.mxu0 0.0
        %1880 = vmatprep.subr.mxu0 0.0
        %1881 = vmatpush1.xpose.msra.mxu0 0.0
        %1882 = vmatprep.subr.mxu0 0.0
        %1883 = vmatpush1.xpose.msra.mxu0 0.0
        %1884 = vmatprep.subr.mxu0 0.0
        %1885 = vmatpush1.xpose.msra.mxu0 0.0
        %1886 = vmatprep.subr.mxu0 0.0
        %1887 = vmatpush1.xpose.msra.mxu0 0.0
        %1888 = vmatprep.subr.mxu0 0.0
        %1889 = vmatpush1.xpose.msra.mxu0 0.0
        %1890 = vmatprep.subr.mxu0 0.0
        %1891 = vmatpush1.xpose.msra.mxu0 0.0
        %1892 = vmatprep.mubr.f32.mxu0 %v1234
        %1893 = vmatmul.mubr.f32.gmra.mrb[0].mxu0 %v1232
        %v1894 = vpop.f32.mrb[0].mxu0
        %v1895 = vadd.f32 %v1825, %v1894
        %v1896 = vpop.f32.mrb[0].mxu0
        %1897 = vdwg.mxu0
        %1898 = vmatprep.subr.mxu0 %v287
        %1899 = vmatpush1.xpose.msra.mxu0 %v286
        %1900 = vmatprep.subr.mxu0 %v343
        %1901 = vmatpush1.xpose.msra.mxu0 %v342
        %1902 = vmatprep.subr.mxu0 %v399
        %1903 = vmatpush1.xpose.msra.mxu0 %v398
        %1904 = vmatprep.subr.mxu0 %v455
        %1905 = vmatpush1.xpose.msra.mxu0 %v454
        %1906 = vmatprep.subr.mxu0 %v511
        %1907 = vmatpush1.xpose.msra.mxu0 %v510
        %1908 = vmatprep.subr.mxu0 %v567
        %1909 = vmatpush1.xpose.msra.mxu0 %v566
        %1910 = vmatprep.subr.mxu0 %v623
        %1911 = vmatpush1.xpose.msra.mxu0 %v622
        %1912 = vmatprep.subr.mxu0 %v679
        %1913 = vmatpush1.xpose.msra.mxu0 %v678
        %1914 = vmatprep.subr.mxu0 %v735
        %1915 = vmatpush1.xpose.msra.mxu0 %v734
        %1916 = vmatprep.subr.mxu0 %v791
        %1917 = vmatpush1.xpose.msra.mxu0 %v790
        %1918 = vmatprep.subr.mxu0 %v847
        %1919 = vmatpush1.xpose.msra.mxu0 %v846
        %1920 = vmatprep.subr.mxu0 %v903
        %1921 = vmatpush1.xpose.msra.mxu0 %v902
        %1922 = vmatprep.subr.mxu0 %v959
        %1923 = vmatpush1.xpose.msra.mxu0 %v958
        %1924 = vmatprep.subr.mxu0 %v1015
        %1925 = vmatpush1.xpose.msra.mxu0 %v1014
        %1926 = vmatprep.subr.mxu0 %v1071
        %1927 = vmatpush1.xpose.msra.mxu0 %v1070
        %1928 = vmatprep.subr.mxu0 %v1127
        %1929 = vmatpush1.xpose.msra.mxu0 %v1126
        %1930 = vmatprep.subr.mxu0 0.0
        %1931 = vmatpush1.xpose.msra.mxu0 0.0
        %1932 = vmatprep.subr.mxu0 0.0
        %1933 = vmatpush1.xpose.msra.mxu0 0.0
        %1934 = vmatprep.subr.mxu0 0.0
        %1935 = vmatpush1.xpose.msra.mxu0 0.0
        %1936 = vmatprep.subr.mxu0 0.0
        %1937 = vmatpush1.xpose.msra.mxu0 0.0
        %1938 = vmatprep.subr.mxu0 0.0
        %1939 = vmatpush1.xpose.msra.mxu0 0.0
        %1940 = vmatprep.subr.mxu0 0.0
        %1941 = vmatpush1.xpose.msra.mxu0 0.0
        %1942 = vmatprep.subr.mxu0 0.0
        %1943 = vmatpush1.xpose.msra.mxu0 0.0
        %1944 = vmatprep.subr.mxu0 0.0
        %1945 = vmatpush1.xpose.msra.mxu0 0.0
        %1946 = vmatprep.subr.mxu0 0.0
        %1947 = vmatpush1.xpose.msra.mxu0 0.0
        %1948 = vmatprep.subr.mxu0 0.0
        %1949 = vmatpush1.xpose.msra.mxu0 0.0
        %1950 = vmatprep.subr.mxu0 0.0
        %1951 = vmatpush1.xpose.msra.mxu0 0.0
        %1952 = vmatprep.subr.mxu0 0.0
        %1953 = vmatpush1.xpose.msra.mxu0 0.0
        %1954 = vmatprep.subr.mxu0 0.0
        %1955 = vmatpush1.xpose.msra.mxu0 0.0
        %1956 = vmatprep.subr.mxu0 0.0
        %1957 = vmatpush1.xpose.msra.mxu0 0.0
        %1958 = vmatprep.subr.mxu0 0.0
        %1959 = vmatpush1.xpose.msra.mxu0 0.0
        %1960 = vmatprep.subr.mxu0 0.0
        %1961 = vmatpush1.xpose.msra.mxu0 0.0
        %1962 = vmatprep.mubr.f32.mxu0 %v1250
        %1963 = vmatmul.mubr.f32.gmra.mrb[0].mxu0 %v1242
        %v1964 = vpop.f32.mrb[0].mxu0
        %v1965 = vadd.f32 %v1895, %v1964
        %v1966 = vpop.f32.mrb[0].mxu0
        %1967 = vdwg.mxu0
        %1968 = vmatprep.subr.mxu0 %v289
        %1969 = vmatpush1.xpose.msra.mxu0 %v288
        %1970 = vmatprep.subr.mxu0 %v345
        %1971 = vmatpush1.xpose.msra.mxu0 %v344
        %1972 = vmatprep.subr.mxu0 %v401
        %1973 = vmatpush1.xpose.msra.mxu0 %v400
        %1974 = vmatprep.subr.mxu0 %v457
        %1975 = vmatpush1.xpose.msra.mxu0 %v456
        %1976 = vmatprep.subr.mxu0 %v513
        %1977 = vmatpush1.xpose.msra.mxu0 %v512
        %1978 = vmatprep.subr.mxu0 %v569
        %1979 = vmatpush1.xpose.msra.mxu0 %v568
        %1980 = vmatprep.subr.mxu0 %v625
        %1981 = vmatpush1.xpose.msra.mxu0 %v624
        %1982 = vmatprep.subr.mxu0 %v681
        %1983 = vmatpush1.xpose.msra.mxu0 %v680
        %1984 = vmatprep.subr.mxu0 %v737
        %1985 = vmatpush1.xpose.msra.mxu0 %v736
        %1986 = vmatprep.subr.mxu0 %v793
        %1987 = vmatpush1.xpose.msra.mxu0 %v792
        %1988 = vmatprep.subr.mxu0 %v849
        %1989 = vmatpush1.xpose.msra.mxu0 %v848
        %1990 = vmatprep.subr.mxu0 %v905
        %1991 = vmatpush1.xpose.msra.mxu0 %v904
        %1992 = vmatprep.subr.mxu0 %v961
        %1993 = vmatpush1.xpose.msra.mxu0 %v960
        %1994 = vmatprep.subr.mxu0 %v1017
        %1995 = vmatpush1.xpose.msra.mxu0 %v1016
        %1996 = vmatprep.subr.mxu0 %v1073
        %1997 = vmatpush1.xpose.msra.mxu0 %v1072
        %1998 = vmatprep.subr.mxu0 %v1129
        %1999 = vmatpush1.xpose.msra.mxu0 %v1128
        %2000 = vmatprep.subr.mxu0 0.0
        %2001 = vmatpush1.xpose.msra.mxu0 0.0
        %2002 = vmatprep.subr.mxu0 0.0
        %2003 = vmatpush1.xpose.msra.mxu0 0.0
        %2004 = vmatprep.subr.mxu0 0.0
        %2005 = vmatpush1.xpose.msra.mxu0 0.0
        %2006 = vmatprep.subr.mxu0 0.0
        %2007 = vmatpush1.xpose.msra.mxu0 0.0
        %2008 = vmatprep.subr.mxu0 0.0
        %2009 = vmatpush1.xpose.msra.mxu0 0.0
        %2010 = vmatprep.subr.mxu0 0.0
        %2011 = vmatpush1.xpose.msra.mxu0 0.0
        %2012 = vmatprep.subr.mxu0 0.0
        %2013 = vmatpush1.xpose.msra.mxu0 0.0
        %2014 = vmatprep.subr.mxu0 0.0
        %2015 = vmatpush1.xpose.msra.mxu0 0.0
        %2016 = vmatprep.subr.mxu0 0.0
        %2017 = vmatpush1.xpose.msra.mxu0 0.0
        %2018 = vmatprep.subr.mxu0 0.0
        %2019 = vmatpush1.xpose.msra.mxu0 0.0
        %2020 = vmatprep.subr.mxu0 0.0
        %2021 = vmatpush1.xpose.msra.mxu0 0.0
        %2022 = vmatprep.subr.mxu0 0.0
        %2023 = vmatpush1.xpose.msra.mxu0 0.0
        %2024 = vmatprep.subr.mxu0 0.0
        %2025 = vmatpush1.xpose.msra.mxu0 0.0
        %2026 = vmatprep.subr.mxu0 0.0
        %2027 = vmatpush1.xpose.msra.mxu0 0.0
        %2028 = vmatprep.subr.mxu0 0.0
        %2029 = vmatpush1.xpose.msra.mxu0 0.0
        %2030 = vmatprep.subr.mxu0 0.0
        %2031 = vmatpush1.xpose.msra.mxu0 0.0
        %2032 = vmatprep.mubr.f32.mxu0 %v1251
        %2033 = vmatmul.mubr.f32.gmra.mrb[0].mxu0 %v1249
        %v2034 = vpop.f32.mrb[0].mxu0
        %v2035 = vadd.f32 %v1965, %v2034
        %v2036 = vpop.f32.mrb[0].mxu0
        %2037 = vdwg.mxu0
        %2038 = vmatprep.subr.mxu0 %v291
        %2039 = vmatpush1.xpose.msra.mxu0 %v290
        %2040 = vmatprep.subr.mxu0 %v347
        %2041 = vmatpush1.xpose.msra.mxu0 %v346
        %2042 = vmatprep.subr.mxu0 %v403
        %2043 = vmatpush1.xpose.msra.mxu0 %v402
        %2044 = vmatprep.subr.mxu0 %v459
        %2045 = vmatpush1.xpose.msra.mxu0 %v458
        %2046 = vmatprep.subr.mxu0 %v515
        %2047 = vmatpush1.xpose.msra.mxu0 %v514
        %2048 = vmatprep.subr.mxu0 %v571
        %2049 = vmatpush1.xpose.msra.mxu0 %v570
        %2050 = vmatprep.subr.mxu0 %v627
        %2051 = vmatpush1.xpose.msra.mxu0 %v626
        %2052 = vmatprep.subr.mxu0 %v683
        %2053 = vmatpush1.xpose.msra.mxu0 %v682
        %2054 = vmatprep.subr.mxu0 %v739
        %2055 = vmatpush1.xpose.msra.mxu0 %v738
        %2056 = vmatprep.subr.mxu0 %v795
        %2057 = vmatpush1.xpose.msra.mxu0 %v794
        %2058 = vmatprep.subr.mxu0 %v851
        %2059 = vmatpush1.xpose.msra.mxu0 %v850
        %2060 = vmatprep.subr.mxu0 %v907
        %2061 = vmatpush1.xpose.msra.mxu0 %v906
        %2062 = vmatprep.subr.mxu0 %v963
        %2063 = vmatpush1.xpose.msra.mxu0 %v962
        %2064 = vmatprep.subr.mxu0 %v1019
        %2065 = vmatpush1.xpose.msra.mxu0 %v1018
        %2066 = vmatprep.subr.mxu0 %v1075
        %2067 = vmatpush1.xpose.msra.mxu0 %v1074
        %2068 = vmatprep.subr.mxu0 %v1131
        %2069 = vmatpush1.xpose.msra.mxu0 %v1130
        %2070 = vmatprep.subr.mxu0 0.0
        %2071 = vmatpush1.xpose.msra.mxu0 0.0
        %2072 = vmatprep.subr.mxu0 0.0
        %2073 = vmatpush1.xpose.msra.mxu0 0.0
        %2074 = vmatprep.subr.mxu0 0.0
        %2075 = vmatpush1.xpose.msra.mxu0 0.0
        %2076 = vmatprep.subr.mxu0 0.0
        %2077 = vmatpush1.xpose.msra.mxu0 0.0
        %2078 = vmatprep.subr.mxu0 0.0
        %2079 = vmatpush1.xpose.msra.mxu0 0.0
        %2080 = vmatprep.subr.mxu0 0.0
        %2081 = vmatpush1.xpose.msra.mxu0 0.0
        %2082 = vmatprep.subr.mxu0 0.0
        %2083 = vmatpush1.xpose.msra.mxu0 0.0
        %2084 = vmatprep.subr.mxu0 0.0
        %2085 = vmatpush1.xpose.msra.mxu0 0.0
        %2086 = vmatprep.subr.mxu0 0.0
        %2087 = vmatpush1.xpose.msra.mxu0 0.0
        %2088 = vmatprep.subr.mxu0 0.0
        %2089 = vmatpush1.xpose.msra.mxu0 0.0
        %2090 = vmatprep.subr.mxu0 0.0
        %2091 = vmatpush1.xpose.msra.mxu0 0.0
        %2092 = vmatprep.subr.mxu0 0.0
        %2093 = vmatpush1.xpose.msra.mxu0 0.0
        %2094 = vmatprep.subr.mxu0 0.0
        %2095 = vmatpush1.xpose.msra.mxu0 0.0
        %2096 = vmatprep.subr.mxu0 0.0
        %2097 = vmatpush1.xpose.msra.mxu0 0.0
        %2098 = vmatprep.subr.mxu0 0.0
        %2099 = vmatpush1.xpose.msra.mxu0 0.0
        %2100 = vmatprep.subr.mxu0 0.0
        %2101 = vmatpush1.xpose.msra.mxu0 0.0
        %2102 = vmatprep.mubr.f32.mxu0 %v1267
        %2103 = vmatmul.mubr.f32.gmra.mrb[0].mxu0 %v1259
        %v2104 = vpop.f32.mrb[0].mxu0
        %v2105 = vadd.f32 %v2035, %v2104
        %v2106 = vpop.f32.mrb[0].mxu0
        %2107 = vdwg.mxu0
        %2108 = vmatprep.subr.mxu0 %v293
        %2109 = vmatpush1.xpose.msra.mxu0 %v292
        %2110 = vmatprep.subr.mxu0 %v349
        %2111 = vmatpush1.xpose.msra.mxu0 %v348
        %2112 = vmatprep.subr.mxu0 %v405
        %2113 = vmatpush1.xpose.msra.mxu0 %v404
        %2114 = vmatprep.subr.mxu0 %v461
        %2115 = vmatpush1.xpose.msra.mxu0 %v460
        %2116 = vmatprep.subr.mxu0 %v517
        %2117 = vmatpush1.xpose.msra.mxu0 %v516
        %2118 = vmatprep.subr.mxu0 %v573
        %2119 = vmatpush1.xpose.msra.mxu0 %v572
        %2120 = vmatprep.subr.mxu0 %v629
        %2121 = vmatpush1.xpose.msra.mxu0 %v628
        %2122 = vmatprep.subr.mxu0 %v685
        %2123 = vmatpush1.xpose.msra.mxu0 %v684
        %2124 = vmatprep.subr.mxu0 %v741
        %2125 = vmatpush1.xpose.msra.mxu0 %v740
        %2126 = vmatprep.subr.mxu0 %v797
        %2127 = vmatpush1.xpose.msra.mxu0 %v796
        %2128 = vmatprep.subr.mxu0 %v853
        %2129 = vmatpush1.xpose.msra.mxu0 %v852
        %2130 = vmatprep.subr.mxu0 %v909
        %2131 = vmatpush1.xpose.msra.mxu0 %v908
        %2132 = vmatprep.subr.mxu0 %v965
        %2133 = vmatpush1.xpose.msra.mxu0 %v964
        %2134 = vmatprep.subr.mxu0 %v1021
        %2135 = vmatpush1.xpose.msra.mxu0 %v1020
        %2136 = vmatprep.subr.mxu0 %v1077
        %2137 = vmatpush1.xpose.msra.mxu0 %v1076
        %2138 = vmatprep.subr.mxu0 %v1133
        %2139 = vmatpush1.xpose.msra.mxu0 %v1132
        %2140 = vmatprep.subr.mxu0 0.0
        %2141 = vmatpush1.xpose.msra.mxu0 0.0
        %2142 = vmatprep.subr.mxu0 0.0
        %2143 = vmatpush1.xpose.msra.mxu0 0.0
        %2144 = vmatprep.subr.mxu0 0.0
        %2145 = vmatpush1.xpose.msra.mxu0 0.0
        %2146 = vmatprep.subr.mxu0 0.0
        %2147 = vmatpush1.xpose.msra.mxu0 0.0
        %2148 = vmatprep.subr.mxu0 0.0
        %2149 = vmatpush1.xpose.msra.mxu0 0.0
        %2150 = vmatprep.subr.mxu0 0.0
        %2151 = vmatpush1.xpose.msra.mxu0 0.0
        %2152 = vmatprep.subr.mxu0 0.0
        %2153 = vmatpush1.xpose.msra.mxu0 0.0
        %2154 = vmatprep.subr.mxu0 0.0
        %2155 = vmatpush1.xpose.msra.mxu0 0.0
        %2156 = vmatprep.subr.mxu0 0.0
        %2157 = vmatpush1.xpose.msra.mxu0 0.0
        %2158 = vmatprep.subr.mxu0 0.0
        %2159 = vmatpush1.xpose.msra.mxu0 0.0
        %2160 = vmatprep.subr.mxu0 0.0
        %2161 = vmatpush1.xpose.msra.mxu0 0.0
        %2162 = vmatprep.subr.mxu0 0.0
        %2163 = vmatpush1.xpose.msra.mxu0 0.0
        %2164 = vmatprep.subr.mxu0 0.0
        %2165 = vmatpush1.xpose.msra.mxu0 0.0
        %2166 = vmatprep.subr.mxu0 0.0
        %2167 = vmatpush1.xpose.msra.mxu0 0.0
        %2168 = vmatprep.subr.mxu0 0.0
        %2169 = vmatpush1.xpose.msra.mxu0 0.0
        %2170 = vmatprep.subr.mxu0 0.0
        %2171 = vmatpush1.xpose.msra.mxu0 0.0
        %2172 = vmatprep.mubr.f32.mxu0 %v1268
        %2173 = vmatmul.mubr.f32.gmra.mrb[0].mxu0 %v1266
        %v2174 = vpop.f32.mrb[0].mxu0
        %v2175 = vadd.f32 %v2105, %v2174
        %v2176 = vpop.f32.mrb[0].mxu0
        %2177 = vdwg.mxu0
        %2178 = vmatprep.subr.mxu0 %v295
        %2179 = vmatpush1.xpose.msra.mxu0 %v294
        %2180 = vmatprep.subr.mxu0 %v351
        %2181 = vmatpush1.xpose.msra.mxu0 %v350
        %2182 = vmatprep.subr.mxu0 %v407
        %2183 = vmatpush1.xpose.msra.mxu0 %v406
        %2184 = vmatprep.subr.mxu0 %v463
        %2185 = vmatpush1.xpose.msra.mxu0 %v462
        %2186 = vmatprep.subr.mxu0 %v519
        %2187 = vmatpush1.xpose.msra.mxu0 %v518
        %2188 = vmatprep.subr.mxu0 %v575
        %2189 = vmatpush1.xpose.msra.mxu0 %v574
        %2190 = vmatprep.subr.mxu0 %v631
        %2191 = vmatpush1.xpose.msra.mxu0 %v630
        %2192 = vmatprep.subr.mxu0 %v687
        %2193 = vmatpush1.xpose.msra.mxu0 %v686
        %2194 = vmatprep.subr.mxu0 %v743
        %2195 = vmatpush1.xpose.msra.mxu0 %v742
        %2196 = vmatprep.subr.mxu0 %v799
        %2197 = vmatpush1.xpose.msra.mxu0 %v798
        %2198 = vmatprep.subr.mxu0 %v855
        %2199 = vmatpush1.xpose.msra.mxu0 %v854
        %2200 = vmatprep.subr.mxu0 %v911
        %2201 = vmatpush1.xpose.msra.mxu0 %v910
        %2202 = vmatprep.subr.mxu0 %v967
        %2203 = vmatpush1.xpose.msra.mxu0 %v966
        %2204 = vmatprep.subr.mxu0 %v1023
        %2205 = vmatpush1.xpose.msra.mxu0 %v1022
        %2206 = vmatprep.subr.mxu0 %v1079
        %2207 = vmatpush1.xpose.msra.mxu0 %v1078
        %2208 = vmatprep.subr.mxu0 %v1135
        %2209 = vmatpush1.xpose.msra.mxu0 %v1134
        %2210 = vmatprep.subr.mxu0 0.0
        %2211 = vmatpush1.xpose.msra.mxu0 0.0
        %2212 = vmatprep.subr.mxu0 0.0
        %2213 = vmatpush1.xpose.msra.mxu0 0.0
        %2214 = vmatprep.subr.mxu0 0.0
        %2215 = vmatpush1.xpose.msra.mxu0 0.0
        %2216 = vmatprep.subr.mxu0 0.0
        %2217 = vmatpush1.xpose.msra.mxu0 0.0
        %2218 = vmatprep.subr.mxu0 0.0
        %2219 = vmatpush1.xpose.msra.mxu0 0.0
        %2220 = vmatprep.subr.mxu0 0.0
        %2221 = vmatpush1.xpose.msra.mxu0 0.0
        %2222 = vmatprep.subr.mxu0 0.0
        %2223 = vmatpush1.xpose.msra.mxu0 0.0
        %2224 = vmatprep.subr.mxu0 0.0
        %2225 = vmatpush1.xpose.msra.mxu0 0.0
        %2226 = vmatprep.subr.mxu0 0.0
        %2227 = vmatpush1.xpose.msra.mxu0 0.0
        %2228 = vmatprep.subr.mxu0 0.0
        %2229 = vmatpush1.xpose.msra.mxu0 0.0
        %2230 = vmatprep.subr.mxu0 0.0
        %2231 = vmatpush1.xpose.msra.mxu0 0.0
        %2232 = vmatprep.subr.mxu0 0.0
        %2233 = vmatpush1.xpose.msra.mxu0 0.0
        %2234 = vmatprep.subr.mxu0 0.0
        %2235 = vmatpush1.xpose.msra.mxu0 0.0
        %2236 = vmatprep.subr.mxu0 0.0
        %2237 = vmatpush1.xpose.msra.mxu0 0.0
        %2238 = vmatprep.subr.mxu0 0.0
        %2239 = vmatpush1.xpose.msra.mxu0 0.0
        %2240 = vmatprep.subr.mxu0 0.0
        %2241 = vmatpush1.xpose.msra.mxu0 0.0
        %2242 = vmatprep.mubr.f32.mxu0 %v1284
        %2243 = vmatmul.mubr.f32.gmra.mrb[0].mxu0 %v1276
        %v2244 = vpop.f32.mrb[0].mxu0
        %v2245 = vadd.f32 %v2175, %v2244
        %v2246 = vpop.f32.mrb[0].mxu0
        %2247 = vdwg.mxu0
        %2248 = vmatprep.subr.mxu0 %v297
        %2249 = vmatpush1.xpose.msra.mxu0 %v296
        %2250 = vmatprep.subr.mxu0 %v353
        %2251 = vmatpush1.xpose.msra.mxu0 %v352
        %2252 = vmatprep.subr.mxu0 %v409
        %2253 = vmatpush1.xpose.msra.mxu0 %v408
        %2254 = vmatprep.subr.mxu0 %v465
        %2255 = vmatpush1.xpose.msra.mxu0 %v464
        %2256 = vmatprep.subr.mxu0 %v521
        %2257 = vmatpush1.xpose.msra.mxu0 %v520
        %2258 = vmatprep.subr.mxu0 %v577
        %2259 = vmatpush1.xpose.msra.mxu0 %v576
        %2260 = vmatprep.subr.mxu0 %v633
        %2261 = vmatpush1.xpose.msra.mxu0 %v632
        %2262 = vmatprep.subr.mxu0 %v689
        %2263 = vmatpush1.xpose.msra.mxu0 %v688
        %2264 = vmatprep.subr.mxu0 %v745
        %2265 = vmatpush1.xpose.msra.mxu0 %v744
        %2266 = vmatprep.subr.mxu0 %v801
        %2267 = vmatpush1.xpose.msra.mxu0 %v800
        %2268 = vmatprep.subr.mxu0 %v857
        %2269 = vmatpush1.xpose.msra.mxu0 %v856
        %2270 = vmatprep.subr.mxu0 %v913
        %2271 = vmatpush1.xpose.msra.mxu0 %v912
        %2272 = vmatprep.subr.mxu0 %v969
        %2273 = vmatpush1.xpose.msra.mxu0 %v968
        %2274 = vmatprep.subr.mxu0 %v1025
        %2275 = vmatpush1.xpose.msra.mxu0 %v1024
        %2276 = vmatprep.subr.mxu0 %v1081
        %2277 = vmatpush1.xpose.msra.mxu0 %v1080
        %2278 = vmatprep.subr.mxu0 %v1137
        %2279 = vmatpush1.xpose.msra.mxu0 %v1136
        %2280 = vmatprep.subr.mxu0 0.0
        %2281 = vmatpush1.xpose.msra.mxu0 0.0
        %2282 = vmatprep.subr.mxu0 0.0
        %2283 = vmatpush1.xpose.msra.mxu0 0.0
        %2284 = vmatprep.subr.mxu0 0.0
        %2285 = vmatpush1.xpose.msra.mxu0 0.0
        %2286 = vmatprep.subr.mxu0 0.0
        %2287 = vmatpush1.xpose.msra.mxu0 0.0
        %2288 = vmatprep.subr.mxu0 0.0
        %2289 = vmatpush1.xpose.msra.mxu0 0.0
        %2290 = vmatprep.subr.mxu0 0.0
        %2291 = vmatpush1.xpose.msra.mxu0 0.0
        %2292 = vmatprep.subr.mxu0 0.0
        %2293 = vmatpush1.xpose.msra.mxu0 0.0
        %2294 = vmatprep.subr.mxu0 0.0
        %2295 = vmatpush1.xpose.msra.mxu0 0.0
        %2296 = vmatprep.subr.mxu0 0.0
        %2297 = vmatpush1.xpose.msra.mxu0 0.0
        %2298 = vmatprep.subr.mxu0 0.0
        %2299 = vmatpush1.xpose.msra.mxu0 0.0
        %2300 = vmatprep.subr.mxu0 0.0
        %2301 = vmatpush1.xpose.msra.mxu0 0.0
        %2302 = vmatprep.subr.mxu0 0.0
        %2303 = vmatpush1.xpose.msra.mxu0 0.0
        %2304 = vmatprep.subr.mxu0 0.0
        %2305 = vmatpush1.xpose.msra.mxu0 0.0
        %2306 = vmatprep.subr.mxu0 0.0
        %2307 = vmatpush1.xpose.msra.mxu0 0.0
        %2308 = vmatprep.subr.mxu0 0.0
        %2309 = vmatpush1.xpose.msra.mxu0 0.0
        %2310 = vmatprep.subr.mxu0 0.0
        %2311 = vmatpush1.xpose.msra.mxu0 0.0
        %2312 = vmatprep.mubr.f32.mxu0 %v1285
        %2313 = vmatmul.mubr.f32.gmra.mrb[0].mxu0 %v1283
        %v2314 = vpop.f32.mrb[0].mxu0
        %v2315 = vadd.f32 %v2245, %v2314
        %v2316 = vpop.f32.mrb[0].mxu0
        %2317 = vdwg.mxu0
        %2318 = vmatprep.subr.mxu0 %v299
        %2319 = vmatpush1.xpose.msra.mxu0 %v298
        %2320 = vmatprep.subr.mxu0 %v355
        %2321 = vmatpush1.xpose.msra.mxu0 %v354
        %2322 = vmatprep.subr.mxu0 %v411
        %2323 = vmatpush1.xpose.msra.mxu0 %v410
        %2324 = vmatprep.subr.mxu0 %v467
        %2325 = vmatpush1.xpose.msra.mxu0 %v466
        %2326 = vmatprep.subr.mxu0 %v523
        %2327 = vmatpush1.xpose.msra.mxu0 %v522
        %2328 = vmatprep.subr.mxu0 %v579
        %2329 = vmatpush1.xpose.msra.mxu0 %v578
        %2330 = vmatprep.subr.mxu0 %v635
        %2331 = vmatpush1.xpose.msra.mxu0 %v634
        %2332 = vmatprep.subr.mxu0 %v691
        %2333 = vmatpush1.xpose.msra.mxu0 %v690
        %2334 = vmatprep.subr.mxu0 %v747
        %2335 = vmatpush1.xpose.msra.mxu0 %v746
        %2336 = vmatprep.subr.mxu0 %v803
        %2337 = vmatpush1.xpose.msra.mxu0 %v802
        %2338 = vmatprep.subr.mxu0 %v859
        %2339 = vmatpush1.xpose.msra.mxu0 %v858
        %2340 = vmatprep.subr.mxu0 %v915
        %2341 = vmatpush1.xpose.msra.mxu0 %v914
        %2342 = vmatprep.subr.mxu0 %v971
        %2343 = vmatpush1.xpose.msra.mxu0 %v970
        %2344 = vmatprep.subr.mxu0 %v1027
        %2345 = vmatpush1.xpose.msra.mxu0 %v1026
        %2346 = vmatprep.subr.mxu0 %v1083
        %2347 = vmatpush1.xpose.msra.mxu0 %v1082
        %2348 = vmatprep.subr.mxu0 %v1139
        %2349 = vmatpush1.xpose.msra.mxu0 %v1138
        %2350 = vmatprep.subr.mxu0 0.0
        %2351 = vmatpush1.xpose.msra.mxu0 0.0
        %2352 = vmatprep.subr.mxu0 0.0
        %2353 = vmatpush1.xpose.msra.mxu0 0.0
        %2354 = vmatprep.subr.mxu0 0.0
        %2355 = vmatpush1.xpose.msra.mxu0 0.0
        %2356 = vmatprep.subr.mxu0 0.0
        %2357 = vmatpush1.xpose.msra.mxu0 0.0
        %2358 = vmatprep.subr.mxu0 0.0
        %2359 = vmatpush1.xpose.msra.mxu0 0.0
        %2360 = vmatprep.subr.mxu0 0.0
        %2361 = vmatpush1.xpose.msra.mxu0 0.0
        %2362 = vmatprep.subr.mxu0 0.0
        %2363 = vmatpush1.xpose.msra.mxu0 0.0
        %2364 = vmatprep.subr.mxu0 0.0
        %2365 = vmatpush1.xpose.msra.mxu0 0.0
        %2366 = vmatprep.subr.mxu0 0.0
        %2367 = vmatpush1.xpose.msra.mxu0 0.0
        %2368 = vmatprep.subr.mxu0 0.0
        %2369 = vmatpush1.xpose.msra.mxu0 0.0
        %2370 = vmatprep.subr.mxu0 0.0
        %2371 = vmatpush1.xpose.msra.mxu0 0.0
        %2372 = vmatprep.subr.mxu0 0.0
        %2373 = vmatpush1.xpose.msra.mxu0 0.0
        %2374 = vmatprep.subr.mxu0 0.0
        %2375 = vmatpush1.xpose.msra.mxu0 0.0
        %2376 = vmatprep.subr.mxu0 0.0
        %2377 = vmatpush1.xpose.msra.mxu0 0.0
        %2378 = vmatprep.subr.mxu0 0.0
        %2379 = vmatpush1.xpose.msra.mxu0 0.0
        %2380 = vmatprep.subr.mxu0 0.0
        %2381 = vmatpush1.xpose.msra.mxu0 0.0
        %2382 = vmatprep.mubr.f32.mxu0 %v1301
        %2383 = vmatmul.mubr.f32.gmra.mrb[0].mxu0 %v1293
        %v2384 = vpop.f32.mrb[0].mxu0
        %v2385 = vadd.f32 %v2315, %v2384
        %v2386 = vpop.f32.mrb[0].mxu0
        %2387 = vdwg.mxu0
        %2388 = vmatprep.subr.mxu0 %v301
        %2389 = vmatpush1.xpose.msra.mxu0 %v300
        %2390 = vmatprep.subr.mxu0 %v357
        %2391 = vmatpush1.xpose.msra.mxu0 %v356
        %2392 = vmatprep.subr.mxu0 %v413
        %2393 = vmatpush1.xpose.msra.mxu0 %v412
        %2394 = vmatprep.subr.mxu0 %v469
        %2395 = vmatpush1.xpose.msra.mxu0 %v468
        %2396 = vmatprep.subr.mxu0 %v525
        %2397 = vmatpush1.xpose.msra.mxu0 %v524
        %2398 = vmatprep.subr.mxu0 %v581
        %2399 = vmatpush1.xpose.msra.mxu0 %v580
        %2400 = vmatprep.subr.mxu0 %v637
        %2401 = vmatpush1.xpose.msra.mxu0 %v636
        %2402 = vmatprep.subr.mxu0 %v693
        %2403 = vmatpush1.xpose.msra.mxu0 %v692
        %2404 = vmatprep.subr.mxu0 %v749
        %2405 = vmatpush1.xpose.msra.mxu0 %v748
        %2406 = vmatprep.subr.mxu0 %v805
        %2407 = vmatpush1.xpose.msra.mxu0 %v804
        %2408 = vmatprep.subr.mxu0 %v861
        %2409 = vmatpush1.xpose.msra.mxu0 %v860
        %2410 = vmatprep.subr.mxu0 %v917
        %2411 = vmatpush1.xpose.msra.mxu0 %v916
        %2412 = vmatprep.subr.mxu0 %v973
        %2413 = vmatpush1.xpose.msra.mxu0 %v972
        %2414 = vmatprep.subr.mxu0 %v1029
        %2415 = vmatpush1.xpose.msra.mxu0 %v1028
        %2416 = vmatprep.subr.mxu0 %v1085
        %2417 = vmatpush1.xpose.msra.mxu0 %v1084
        %2418 = vmatprep.subr.mxu0 %v1141
        %2419 = vmatpush1.xpose.msra.mxu0 %v1140
        %2420 = vmatprep.subr.mxu0 0.0
        %2421 = vmatpush1.xpose.msra.mxu0 0.0
        %2422 = vmatprep.subr.mxu0 0.0
        %2423 = vmatpush1.xpose.msra.mxu0 0.0
        %2424 = vmatprep.subr.mxu0 0.0
        %2425 = vmatpush1.xpose.msra.mxu0 0.0
        %2426 = vmatprep.subr.mxu0 0.0
        %2427 = vmatpush1.xpose.msra.mxu0 0.0
        %2428 = vmatprep.subr.mxu0 0.0
        %2429 = vmatpush1.xpose.msra.mxu0 0.0
        %2430 = vmatprep.subr.mxu0 0.0
        %2431 = vmatpush1.xpose.msra.mxu0 0.0
        %2432 = vmatprep.subr.mxu0 0.0
        %2433 = vmatpush1.xpose.msra.mxu0 0.0
        %2434 = vmatprep.subr.mxu0 0.0
        %2435 = vmatpush1.xpose.msra.mxu0 0.0
        %2436 = vmatprep.subr.mxu0 0.0
        %2437 = vmatpush1.xpose.msra.mxu0 0.0
        %2438 = vmatprep.subr.mxu0 0.0
        %2439 = vmatpush1.xpose.msra.mxu0 0.0
        %2440 = vmatprep.subr.mxu0 0.0
        %2441 = vmatpush1.xpose.msra.mxu0 0.0
        %2442 = vmatprep.subr.mxu0 0.0
        %2443 = vmatpush1.xpose.msra.mxu0 0.0
        %2444 = vmatprep.subr.mxu0 0.0
        %2445 = vmatpush1.xpose.msra.mxu0 0.0
        %2446 = vmatprep.subr.mxu0 0.0
        %2447 = vmatpush1.xpose.msra.mxu0 0.0
        %2448 = vmatprep.subr.mxu0 0.0
        %2449 = vmatpush1.xpose.msra.mxu0 0.0
        %2450 = vmatprep.subr.mxu0 0.0
        %2451 = vmatpush1.xpose.msra.mxu0 0.0
        %2452 = vmatprep.mubr.f32.mxu0 %v1302
        %2453 = vmatmul.mubr.f32.gmra.mrb[0].mxu0 %v1300
        %v2454 = vpop.f32.mrb[0].mxu0
        %v2455 = vadd.f32 %v2385, %v2454
        %v2456 = vpop.f32.mrb[0].mxu0
        %2457 = vdwg.mxu0
        %2458 = vmatprep.subr.mxu0 %v303
        %2459 = vmatpush1.xpose.msra.mxu0 %v302
        %2460 = vmatprep.subr.mxu0 %v359
        %2461 = vmatpush1.xpose.msra.mxu0 %v358
        %2462 = vmatprep.subr.mxu0 %v415
        %2463 = vmatpush1.xpose.msra.mxu0 %v414
        %2464 = vmatprep.subr.mxu0 %v471
        %2465 = vmatpush1.xpose.msra.mxu0 %v470
        %2466 = vmatprep.subr.mxu0 %v527
        %2467 = vmatpush1.xpose.msra.mxu0 %v526
        %2468 = vmatprep.subr.mxu0 %v583
        %2469 = vmatpush1.xpose.msra.mxu0 %v582
        %2470 = vmatprep.subr.mxu0 %v639
        %2471 = vmatpush1.xpose.msra.mxu0 %v638
        %2472 = vmatprep.subr.mxu0 %v695
        %2473 = vmatpush1.xpose.msra.mxu0 %v694
        %2474 = vmatprep.subr.mxu0 %v751
        %2475 = vmatpush1.xpose.msra.mxu0 %v750
        %2476 = vmatprep.subr.mxu0 %v807
        %2477 = vmatpush1.xpose.msra.mxu0 %v806
        %2478 = vmatprep.subr.mxu0 %v863
        %2479 = vmatpush1.xpose.msra.mxu0 %v862
        %2480 = vmatprep.subr.mxu0 %v919
        %2481 = vmatpush1.xpose.msra.mxu0 %v918
        %2482 = vmatprep.subr.mxu0 %v975
        %2483 = vmatpush1.xpose.msra.mxu0 %v974
        %2484 = vmatprep.subr.mxu0 %v1031
        %2485 = vmatpush1.xpose.msra.mxu0 %v1030
        %2486 = vmatprep.subr.mxu0 %v1087
        %2487 = vmatpush1.xpose.msra.mxu0 %v1086
        %2488 = vmatprep.subr.mxu0 %v1143
        %2489 = vmatpush1.xpose.msra.mxu0 %v1142
        %2490 = vmatprep.subr.mxu0 0.0
        %2491 = vmatpush1.xpose.msra.mxu0 0.0
        %2492 = vmatprep.subr.mxu0 0.0
        %2493 = vmatpush1.xpose.msra.mxu0 0.0
        %2494 = vmatprep.subr.mxu0 0.0
        %2495 = vmatpush1.xpose.msra.mxu0 0.0
        %2496 = vmatprep.subr.mxu0 0.0
        %2497 = vmatpush1.xpose.msra.mxu0 0.0
        %2498 = vmatprep.subr.mxu0 0.0
        %2499 = vmatpush1.xpose.msra.mxu0 0.0
        %2500 = vmatprep.subr.mxu0 0.0
        %2501 = vmatpush1.xpose.msra.mxu0 0.0
        %2502 = vmatprep.subr.mxu0 0.0
        %2503 = vmatpush1.xpose.msra.mxu0 0.0
        %2504 = vmatprep.subr.mxu0 0.0
        %2505 = vmatpush1.xpose.msra.mxu0 0.0
        %2506 = vmatprep.subr.mxu0 0.0
        %2507 = vmatpush1.xpose.msra.mxu0 0.0
        %2508 = vmatprep.subr.mxu0 0.0
        %2509 = vmatpush1.xpose.msra.mxu0 0.0
        %2510 = vmatprep.subr.mxu0 0.0
        %2511 = vmatpush1.xpose.msra.mxu0 0.0
        %2512 = vmatprep.subr.mxu0 0.0
        %2513 = vmatpush1.xpose.msra.mxu0 0.0
        %2514 = vmatprep.subr.mxu0 0.0
        %2515 = vmatpush1.xpose.msra.mxu0 0.0
        %2516 = vmatprep.subr.mxu0 0.0
        %2517 = vmatpush1.xpose.msra.mxu0 0.0
        %2518 = vmatprep.subr.mxu0 0.0
        %2519 = vmatpush1.xpose.msra.mxu0 0.0
        %2520 = vmatprep.subr.mxu0 0.0
        %2521 = vmatpush1.xpose.msra.mxu0 0.0
        %2522 = vmatprep.mubr.f32.mxu0 %v1318
        %2523 = vmatmul.mubr.f32.gmra.mrb[0].mxu0 %v1310
        %v2524 = vpop.f32.mrb[0].mxu0
        %v2525 = vadd.f32 %v2455, %v2524
        %v2526 = vpop.f32.mrb[0].mxu0
        %2527 = vdwg.mxu0
        %2528 = vmatprep.subr.mxu0 %v305
        %2529 = vmatpush1.xpose.msra.mxu0 %v304
        %2530 = vmatprep.subr.mxu0 %v361
        %2531 = vmatpush1.xpose.msra.mxu0 %v360
        %2532 = vmatprep.subr.mxu0 %v417
        %2533 = vmatpush1.xpose.msra.mxu0 %v416
        %2534 = vmatprep.subr.mxu0 %v473
        %2535 = vmatpush1.xpose.msra.mxu0 %v472
        %2536 = vmatprep.subr.mxu0 %v529
        %2537 = vmatpush1.xpose.msra.mxu0 %v528
        %2538 = vmatprep.subr.mxu0 %v585
        %2539 = vmatpush1.xpose.msra.mxu0 %v584
        %2540 = vmatprep.subr.mxu0 %v641
        %2541 = vmatpush1.xpose.msra.mxu0 %v640
        %2542 = vmatprep.subr.mxu0 %v697
        %2543 = vmatpush1.xpose.msra.mxu0 %v696
        %2544 = vmatprep.subr.mxu0 %v753
        %2545 = vmatpush1.xpose.msra.mxu0 %v752
        %2546 = vmatprep.subr.mxu0 %v809
        %2547 = vmatpush1.xpose.msra.mxu0 %v808
        %2548 = vmatprep.subr.mxu0 %v865
        %2549 = vmatpush1.xpose.msra.mxu0 %v864
        %2550 = vmatprep.subr.mxu0 %v921
        %2551 = vmatpush1.xpose.msra.mxu0 %v920
        %2552 = vmatprep.subr.mxu0 %v977
        %2553 = vmatpush1.xpose.msra.mxu0 %v976
        %2554 = vmatprep.subr.mxu0 %v1033
        %2555 = vmatpush1.xpose.msra.mxu0 %v1032
        %2556 = vmatprep.subr.mxu0 %v1089
        %2557 = vmatpush1.xpose.msra.mxu0 %v1088
        %2558 = vmatprep.subr.mxu0 %v1145
        %2559 = vmatpush1.xpose.msra.mxu0 %v1144
        %2560 = vmatprep.subr.mxu0 0.0
        %2561 = vmatpush1.xpose.msra.mxu0 0.0
        %2562 = vmatprep.subr.mxu0 0.0
        %2563 = vmatpush1.xpose.msra.mxu0 0.0
        %2564 = vmatprep.subr.mxu0 0.0
        %2565 = vmatpush1.xpose.msra.mxu0 0.0
        %2566 = vmatprep.subr.mxu0 0.0
        %2567 = vmatpush1.xpose.msra.mxu0 0.0
        %2568 = vmatprep.subr.mxu0 0.0
        %2569 = vmatpush1.xpose.msra.mxu0 0.0
        %2570 = vmatprep.subr.mxu0 0.0
        %2571 = vmatpush1.xpose.msra.mxu0 0.0
        %2572 = vmatprep.subr.mxu0 0.0
        %2573 = vmatpush1.xpose.msra.mxu0 0.0
        %2574 = vmatprep.subr.mxu0 0.0
        %2575 = vmatpush1.xpose.msra.mxu0 0.0
        %2576 = vmatprep.subr.mxu0 0.0
        %2577 = vmatpush1.xpose.msra.mxu0 0.0
        %2578 = vmatprep.subr.mxu0 0.0
        %2579 = vmatpush1.xpose.msra.mxu0 0.0
        %2580 = vmatprep.subr.mxu0 0.0
        %2581 = vmatpush1.xpose.msra.mxu0 0.0
        %2582 = vmatprep.subr.mxu0 0.0
        %2583 = vmatpush1.xpose.msra.mxu0 0.0
        %2584 = vmatprep.subr.mxu0 0.0
        %2585 = vmatpush1.xpose.msra.mxu0 0.0
        %2586 = vmatprep.subr.mxu0 0.0
        %2587 = vmatpush1.xpose.msra.mxu0 0.0
        %2588 = vmatprep.subr.mxu0 0.0
        %2589 = vmatpush1.xpose.msra.mxu0 0.0
        %2590 = vmatprep.subr.mxu0 0.0
        %2591 = vmatpush1.xpose.msra.mxu0 0.0
        %2592 = vmatprep.mubr.f32.mxu0 %v1319
        %2593 = vmatmul.mubr.f32.gmra.mrb[0].mxu0 %v1317
        %v2594 = vpop.f32.mrb[0].mxu0
        %v2595 = vadd.f32 %v2525, %v2594
        %v2596 = vpop.f32.mrb[0].mxu0
        %2597 = vdwg.mxu0
        %2598 = vmatprep.subr.mxu0 %v307
        %2599 = vmatpush1.xpose.msra.mxu0 %v306
        %2600 = vmatprep.subr.mxu0 %v363
        %2601 = vmatpush1.xpose.msra.mxu0 %v362
        %2602 = vmatprep.subr.mxu0 %v419
        %2603 = vmatpush1.xpose.msra.mxu0 %v418
        %2604 = vmatprep.subr.mxu0 %v475
        %2605 = vmatpush1.xpose.msra.mxu0 %v474
        %2606 = vmatprep.subr.mxu0 %v531
        %2607 = vmatpush1.xpose.msra.mxu0 %v530
        %2608 = vmatprep.subr.mxu0 %v587
        %2609 = vmatpush1.xpose.msra.mxu0 %v586
        %2610 = vmatprep.subr.mxu0 %v643
        %2611 = vmatpush1.xpose.msra.mxu0 %v642
        %2612 = vmatprep.subr.mxu0 %v699
        %2613 = vmatpush1.xpose.msra.mxu0 %v698
        %2614 = vmatprep.subr.mxu0 %v755
        %2615 = vmatpush1.xpose.msra.mxu0 %v754
        %2616 = vmatprep.subr.mxu0 %v811
        %2617 = vmatpush1.xpose.msra.mxu0 %v810
        %2618 = vmatprep.subr.mxu0 %v867
        %2619 = vmatpush1.xpose.msra.mxu0 %v866
        %2620 = vmatprep.subr.mxu0 %v923
        %2621 = vmatpush1.xpose.msra.mxu0 %v922
        %2622 = vmatprep.subr.mxu0 %v979
        %2623 = vmatpush1.xpose.msra.mxu0 %v978
        %2624 = vmatprep.subr.mxu0 %v1035
        %2625 = vmatpush1.xpose.msra.mxu0 %v1034
        %2626 = vmatprep.subr.mxu0 %v1091
        %2627 = vmatpush1.xpose.msra.mxu0 %v1090
        %2628 = vmatprep.subr.mxu0 %v1147
        %2629 = vmatpush1.xpose.msra.mxu0 %v1146
        %2630 = vmatprep.subr.mxu0 0.0
        %2631 = vmatpush1.xpose.msra.mxu0 0.0
        %2632 = vmatprep.subr.mxu0 0.0
        %2633 = vmatpush1.xpose.msra.mxu0 0.0
        %2634 = vmatprep.subr.mxu0 0.0
        %2635 = vmatpush1.xpose.msra.mxu0 0.0
        %2636 = vmatprep.subr.mxu0 0.0
        %2637 = vmatpush1.xpose.msra.mxu0 0.0
        %2638 = vmatprep.subr.mxu0 0.0
        %2639 = vmatpush1.xpose.msra.mxu0 0.0
        %2640 = vmatprep.subr.mxu0 0.0
        %2641 = vmatpush1.xpose.msra.mxu0 0.0
        %2642 = vmatprep.subr.mxu0 0.0
        %2643 = vmatpush1.xpose.msra.mxu0 0.0
        %2644 = vmatprep.subr.mxu0 0.0
        %2645 = vmatpush1.xpose.msra.mxu0 0.0
        %2646 = vmatprep.subr.mxu0 0.0
        %2647 = vmatpush1.xpose.msra.mxu0 0.0
        %2648 = vmatprep.subr.mxu0 0.0
        %2649 = vmatpush1.xpose.msra.mxu0 0.0
        %2650 = vmatprep.subr.mxu0 0.0
        %2651 = vmatpush1.xpose.msra.mxu0 0.0
        %2652 = vmatprep.subr.mxu0 0.0
        %2653 = vmatpush1.xpose.msra.mxu0 0.0
        %2654 = vmatprep.subr.mxu0 0.0
        %2655 = vmatpush1.xpose.msra.mxu0 0.0
        %2656 = vmatprep.subr.mxu0 0.0
        %2657 = vmatpush1.xpose.msra.mxu0 0.0
        %2658 = vmatprep.subr.mxu0 0.0
        %2659 = vmatpush1.xpose.msra.mxu0 0.0
        %2660 = vmatprep.subr.mxu0 0.0
        %2661 = vmatpush1.xpose.msra.mxu0 0.0
        %2662 = vmatprep.mubr.f32.mxu0 %v1335
        %2663 = vmatmul.mubr.f32.gmra.mrb[0].mxu0 %v1327
        %v2664 = vpop.f32.mrb[0].mxu0
        %v2665 = vadd.f32 %v2595, %v2664
        %v2666 = vpop.f32.mrb[0].mxu0
        %2667 = vdwg.mxu0
        %2668 = vmatprep.subr.mxu0 %v309
        %2669 = vmatpush1.xpose.msra.mxu0 %v308
        %2670 = vmatprep.subr.mxu0 %v365
        %2671 = vmatpush1.xpose.msra.mxu0 %v364
        %2672 = vmatprep.subr.mxu0 %v421
        %2673 = vmatpush1.xpose.msra.mxu0 %v420
        %2674 = vmatprep.subr.mxu0 %v477
        %2675 = vmatpush1.xpose.msra.mxu0 %v476
        %2676 = vmatprep.subr.mxu0 %v533
        %2677 = vmatpush1.xpose.msra.mxu0 %v532
        %2678 = vmatprep.subr.mxu0 %v589
        %2679 = vmatpush1.xpose.msra.mxu0 %v588
        %2680 = vmatprep.subr.mxu0 %v645
        %2681 = vmatpush1.xpose.msra.mxu0 %v644
        %2682 = vmatprep.subr.mxu0 %v701
        %2683 = vmatpush1.xpose.msra.mxu0 %v700
        %2684 = vmatprep.subr.mxu0 %v757
        %2685 = vmatpush1.xpose.msra.mxu0 %v756
        %2686 = vmatprep.subr.mxu0 %v813
        %2687 = vmatpush1.xpose.msra.mxu0 %v812
        %2688 = vmatprep.subr.mxu0 %v869
        %2689 = vmatpush1.xpose.msra.mxu0 %v868
        %2690 = vmatprep.subr.mxu0 %v925
        %2691 = vmatpush1.xpose.msra.mxu0 %v924
        %2692 = vmatprep.subr.mxu0 %v981
        %2693 = vmatpush1.xpose.msra.mxu0 %v980
        %2694 = vmatprep.subr.mxu0 %v1037
        %2695 = vmatpush1.xpose.msra.mxu0 %v1036
        %2696 = vmatprep.subr.mxu0 %v1093
        %2697 = vmatpush1.xpose.msra.mxu0 %v1092
        %2698 = vmatprep.subr.mxu0 %v1149
        %2699 = vmatpush1.xpose.msra.mxu0 %v1148
        %2700 = vmatprep.subr.mxu0 0.0
        %2701 = vmatpush1.xpose.msra.mxu0 0.0
        %2702 = vmatprep.subr.mxu0 0.0
        %2703 = vmatpush1.xpose.msra.mxu0 0.0
        %2704 = vmatprep.subr.mxu0 0.0
        %2705 = vmatpush1.xpose.msra.mxu0 0.0
        %2706 = vmatprep.subr.mxu0 0.0
        %2707 = vmatpush1.xpose.msra.mxu0 0.0
        %2708 = vmatprep.subr.mxu0 0.0
        %2709 = vmatpush1.xpose.msra.mxu0 0.0
        %2710 = vmatprep.subr.mxu0 0.0
        %2711 = vmatpush1.xpose.msra.mxu0 0.0
        %2712 = vmatprep.subr.mxu0 0.0
        %2713 = vmatpush1.xpose.msra.mxu0 0.0
        %2714 = vmatprep.subr.mxu0 0.0
        %2715 = vmatpush1.xpose.msra.mxu0 0.0
        %2716 = vmatprep.subr.mxu0 0.0
        %2717 = vmatpush1.xpose.msra.mxu0 0.0
        %2718 = vmatprep.subr.mxu0 0.0
        %2719 = vmatpush1.xpose.msra.mxu0 0.0
        %2720 = vmatprep.subr.mxu0 0.0
        %2721 = vmatpush1.xpose.msra.mxu0 0.0
        %2722 = vmatprep.subr.mxu0 0.0
        %2723 = vmatpush1.xpose.msra.mxu0 0.0
        %2724 = vmatprep.subr.mxu0 0.0
        %2725 = vmatpush1.xpose.msra.mxu0 0.0
        %2726 = vmatprep.subr.mxu0 0.0
        %2727 = vmatpush1.xpose.msra.mxu0 0.0
        %2728 = vmatprep.subr.mxu0 0.0
        %2729 = vmatpush1.xpose.msra.mxu0 0.0
        %2730 = vmatprep.subr.mxu0 0.0
        %2731 = vmatpush1.xpose.msra.mxu0 0.0
        %2732 = vmatprep.mubr.f32.mxu0 %v1336
        %2733 = vmatmul.mubr.f32.gmra.mrb[0].mxu0 %v1334
        %v2734 = vpop.f32.mrb[0].mxu0
        %v2735 = vadd.f32 %v2665, %v2734
        %v2736 = vpop.f32.mrb[0].mxu0
        %2737 = vdwg.mxu0
        %2738 = vmatprep.subr.mxu0 %v311
        %2739 = vmatpush1.xpose.msra.mxu0 %v310
        %2740 = vmatprep.subr.mxu0 %v367
        %2741 = vmatpush1.xpose.msra.mxu0 %v366
        %2742 = vmatprep.subr.mxu0 %v423
        %2743 = vmatpush1.xpose.msra.mxu0 %v422
        %2744 = vmatprep.subr.mxu0 %v479
        %2745 = vmatpush1.xpose.msra.mxu0 %v478
        %2746 = vmatprep.subr.mxu0 %v535
        %2747 = vmatpush1.xpose.msra.mxu0 %v534
        %2748 = vmatprep.subr.mxu0 %v591
        %2749 = vmatpush1.xpose.msra.mxu0 %v590
        %2750 = vmatprep.subr.mxu0 %v647
        %2751 = vmatpush1.xpose.msra.mxu0 %v646
        %2752 = vmatprep.subr.mxu0 %v703
        %2753 = vmatpush1.xpose.msra.mxu0 %v702
        %2754 = vmatprep.subr.mxu0 %v759
        %2755 = vmatpush1.xpose.msra.mxu0 %v758
        %2756 = vmatprep.subr.mxu0 %v815
        %2757 = vmatpush1.xpose.msra.mxu0 %v814
        %2758 = vmatprep.subr.mxu0 %v871
        %2759 = vmatpush1.xpose.msra.mxu0 %v870
        %2760 = vmatprep.subr.mxu0 %v927
        %2761 = vmatpush1.xpose.msra.mxu0 %v926
        %2762 = vmatprep.subr.mxu0 %v983
        %2763 = vmatpush1.xpose.msra.mxu0 %v982
        %2764 = vmatprep.subr.mxu0 %v1039
        %2765 = vmatpush1.xpose.msra.mxu0 %v1038
        %2766 = vmatprep.subr.mxu0 %v1095
        %2767 = vmatpush1.xpose.msra.mxu0 %v1094
        %2768 = vmatprep.subr.mxu0 %v1151
        %2769 = vmatpush1.xpose.msra.mxu0 %v1150
        %2770 = vmatprep.subr.mxu0 0.0
        %2771 = vmatpush1.xpose.msra.mxu0 0.0
        %2772 = vmatprep.subr.mxu0 0.0
        %2773 = vmatpush1.xpose.msra.mxu0 0.0
        %2774 = vmatprep.subr.mxu0 0.0
        %2775 = vmatpush1.xpose.msra.mxu0 0.0
        %2776 = vmatprep.subr.mxu0 0.0
        %2777 = vmatpush1.xpose.msra.mxu0 0.0
        %2778 = vmatprep.subr.mxu0 0.0
        %2779 = vmatpush1.xpose.msra.mxu0 0.0
        %2780 = vmatprep.subr.mxu0 0.0
        %2781 = vmatpush1.xpose.msra.mxu0 0.0
        %2782 = vmatprep.subr.mxu0 0.0
        %2783 = vmatpush1.xpose.msra.mxu0 0.0
        %2784 = vmatprep.subr.mxu0 0.0
        %2785 = vmatpush1.xpose.msra.mxu0 0.0
        %2786 = vmatprep.subr.mxu0 0.0
        %2787 = vmatpush1.xpose.msra.mxu0 0.0
        %2788 = vmatprep.subr.mxu0 0.0
        %2789 = vmatpush1.xpose.msra.mxu0 0.0
        %2790 = vmatprep.subr.mxu0 0.0
        %2791 = vmatpush1.xpose.msra.mxu0 0.0
        %2792 = vmatprep.subr.mxu0 0.0
        %2793 = vmatpush1.xpose.msra.mxu0 0.0
        %2794 = vmatprep.subr.mxu0 0.0
        %2795 = vmatpush1.xpose.msra.mxu0 0.0
        %2796 = vmatprep.subr.mxu0 0.0
        %2797 = vmatpush1.xpose.msra.mxu0 0.0
        %2798 = vmatprep.subr.mxu0 0.0
        %2799 = vmatpush1.xpose.msra.mxu0 0.0
        %2800 = vmatprep.subr.mxu0 0.0
        %2801 = vmatpush1.xpose.msra.mxu0 0.0
        %2802 = vmatprep.mubr.f32.mxu0 %v1352
        %2803 = vmatmul.mubr.f32.gmra.mrb[0].mxu0 %v1344
        %v2804 = vpop.f32.mrb[0].mxu0
        %v2805 = vadd.f32 %v2735, %v2804
        %v2806 = vpop.f32.mrb[0].mxu0
        %2807 = vdwg.mxu0
        %2808 = vmatprep.subr.mxu0 %v313
        %2809 = vmatpush1.xpose.msra.mxu0 %v312
        %2810 = vmatprep.subr.mxu0 %v369
        %2811 = vmatpush1.xpose.msra.mxu0 %v368
        %2812 = vmatprep.subr.mxu0 %v425
        %2813 = vmatpush1.xpose.msra.mxu0 %v424
        %2814 = vmatprep.subr.mxu0 %v481
        %2815 = vmatpush1.xpose.msra.mxu0 %v480
        %2816 = vmatprep.subr.mxu0 %v537
        %2817 = vmatpush1.xpose.msra.mxu0 %v536
        %2818 = vmatprep.subr.mxu0 %v593
        %2819 = vmatpush1.xpose.msra.mxu0 %v592
        %2820 = vmatprep.subr.mxu0 %v649
        %2821 = vmatpush1.xpose.msra.mxu0 %v648
        %2822 = vmatprep.subr.mxu0 %v705
        %2823 = vmatpush1.xpose.msra.mxu0 %v704
        %2824 = vmatprep.subr.mxu0 %v761
        %2825 = vmatpush1.xpose.msra.mxu0 %v760
        %2826 = vmatprep.subr.mxu0 %v817
        %2827 = vmatpush1.xpose.msra.mxu0 %v816
        %2828 = vmatprep.subr.mxu0 %v873
        %2829 = vmatpush1.xpose.msra.mxu0 %v872
        %2830 = vmatprep.subr.mxu0 %v929
        %2831 = vmatpush1.xpose.msra.mxu0 %v928
        %2832 = vmatprep.subr.mxu0 %v985
        %2833 = vmatpush1.xpose.msra.mxu0 %v984
        %2834 = vmatprep.subr.mxu0 %v1041
        %2835 = vmatpush1.xpose.msra.mxu0 %v1040
        %2836 = vmatprep.subr.mxu0 %v1097
        %2837 = vmatpush1.xpose.msra.mxu0 %v1096
        %2838 = vmatprep.subr.mxu0 %v1153
        %2839 = vmatpush1.xpose.msra.mxu0 %v1152
        %2840 = vmatprep.subr.mxu0 0.0
        %2841 = vmatpush1.xpose.msra.mxu0 0.0
        %2842 = vmatprep.subr.mxu0 0.0
        %2843 = vmatpush1.xpose.msra.mxu0 0.0
        %2844 = vmatprep.subr.mxu0 0.0
        %2845 = vmatpush1.xpose.msra.mxu0 0.0
        %2846 = vmatprep.subr.mxu0 0.0
        %2847 = vmatpush1.xpose.msra.mxu0 0.0
        %2848 = vmatprep.subr.mxu0 0.0
        %2849 = vmatpush1.xpose.msra.mxu0 0.0
        %2850 = vmatprep.subr.mxu0 0.0
        %2851 = vmatpush1.xpose.msra.mxu0 0.0
        %2852 = vmatprep.subr.mxu0 0.0
        %2853 = vmatpush1.xpose.msra.mxu0 0.0
        %2854 = vmatprep.subr.mxu0 0.0
        %2855 = vmatpush1.xpose.msra.mxu0 0.0
        %2856 = vmatprep.subr.mxu0 0.0
        %2857 = vmatpush1.xpose.msra.mxu0 0.0
        %2858 = vmatprep.subr.mxu0 0.0
        %2859 = vmatpush1.xpose.msra.mxu0 0.0
        %2860 = vmatprep.subr.mxu0 0.0
        %2861 = vmatpush1.xpose.msra.mxu0 0.0
        %2862 = vmatprep.subr.mxu0 0.0
        %2863 = vmatpush1.xpose.msra.mxu0 0.0
        %2864 = vmatprep.subr.mxu0 0.0
        %2865 = vmatpush1.xpose.msra.mxu0 0.0
        %2866 = vmatprep.subr.mxu0 0.0
        %2867 = vmatpush1.xpose.msra.mxu0 0.0
        %2868 = vmatprep.subr.mxu0 0.0
        %2869 = vmatpush1.xpose.msra.mxu0 0.0
        %2870 = vmatprep.subr.mxu0 0.0
        %2871 = vmatpush1.xpose.msra.mxu0 0.0
        %2872 = vmatprep.mubr.f32.mxu0 %v1353
        %2873 = vmatmul.mubr.f32.gmra.mrb[0].mxu0 %v1351
        %v2874 = vpop.f32.mrb[0].mxu0
        %v2875 = vadd.f32 %v2805, %v2874
        %v2876 = vpop.f32.mrb[0].mxu0
        %2877 = vdwg.mxu0
        %2878 = vmatprep.subr.mxu0 %v315
        %2879 = vmatpush1.xpose.msra.mxu0 %v314
        %2880 = vmatprep.subr.mxu0 %v371
        %2881 = vmatpush1.xpose.msra.mxu0 %v370
        %2882 = vmatprep.subr.mxu0 %v427
        %2883 = vmatpush1.xpose.msra.mxu0 %v426
        %2884 = vmatprep.subr.mxu0 %v483
        %2885 = vmatpush1.xpose.msra.mxu0 %v482
        %2886 = vmatprep.subr.mxu0 %v539
        %2887 = vmatpush1.xpose.msra.mxu0 %v538
        %2888 = vmatprep.subr.mxu0 %v595
        %2889 = vmatpush1.xpose.msra.mxu0 %v594
        %2890 = vmatprep.subr.mxu0 %v651
        %2891 = vmatpush1.xpose.msra.mxu0 %v650
        %2892 = vmatprep.subr.mxu0 %v707
        %2893 = vmatpush1.xpose.msra.mxu0 %v706
        %2894 = vmatprep.subr.mxu0 %v763
        %2895 = vmatpush1.xpose.msra.mxu0 %v762
        %2896 = vmatprep.subr.mxu0 %v819
        %2897 = vmatpush1.xpose.msra.mxu0 %v818
        %2898 = vmatprep.subr.mxu0 %v875
        %2899 = vmatpush1.xpose.msra.mxu0 %v874
        %2900 = vmatprep.subr.mxu0 %v931
        %2901 = vmatpush1.xpose.msra.mxu0 %v930
        %2902 = vmatprep.subr.mxu0 %v987
        %2903 = vmatpush1.xpose.msra.mxu0 %v986
        %2904 = vmatprep.subr.mxu0 %v1043
        %2905 = vmatpush1.xpose.msra.mxu0 %v1042
        %2906 = vmatprep.subr.mxu0 %v1099
        %2907 = vmatpush1.xpose.msra.mxu0 %v1098
        %2908 = vmatprep.subr.mxu0 %v1155
        %2909 = vmatpush1.xpose.msra.mxu0 %v1154
        %2910 = vmatprep.subr.mxu0 0.0
        %2911 = vmatpush1.xpose.msra.mxu0 0.0
        %2912 = vmatprep.subr.mxu0 0.0
        %2913 = vmatpush1.xpose.msra.mxu0 0.0
        %2914 = vmatprep.subr.mxu0 0.0
        %2915 = vmatpush1.xpose.msra.mxu0 0.0
        %2916 = vmatprep.subr.mxu0 0.0
        %2917 = vmatpush1.xpose.msra.mxu0 0.0
        %2918 = vmatprep.subr.mxu0 0.0
        %2919 = vmatpush1.xpose.msra.mxu0 0.0
        %2920 = vmatprep.subr.mxu0 0.0
        %2921 = vmatpush1.xpose.msra.mxu0 0.0
        %2922 = vmatprep.subr.mxu0 0.0
        %2923 = vmatpush1.xpose.msra.mxu0 0.0
        %2924 = vmatprep.subr.mxu0 0.0
        %2925 = vmatpush1.xpose.msra.mxu0 0.0
        %2926 = vmatprep.subr.mxu0 0.0
        %2927 = vmatpush1.xpose.msra.mxu0 0.0
        %2928 = vmatprep.subr.mxu0 0.0
        %2929 = vmatpush1.xpose.msra.mxu0 0.0
        %2930 = vmatprep.subr.mxu0 0.0
        %2931 = vmatpush1.xpose.msra.mxu0 0.0
        %2932 = vmatprep.subr.mxu0 0.0
        %2933 = vmatpush1.xpose.msra.mxu0 0.0
        %2934 = vmatprep.subr.mxu0 0.0
        %2935 = vmatpush1.xpose.msra.mxu0 0.0
        %2936 = vmatprep.subr.mxu0 0.0
        %2937 = vmatpush1.xpose.msra.mxu0 0.0
        %2938 = vmatprep.subr.mxu0 0.0
        %2939 = vmatpush1.xpose.msra.mxu0 0.0
        %2940 = vmatprep.subr.mxu0 0.0
        %2941 = vmatpush1.xpose.msra.mxu0 0.0
        %2942 = vmatprep.mubr.f32.mxu0 %v1369
        %2943 = vmatmul.mubr.f32.gmra.mrb[0].mxu0 %v1361
        %v2944 = vpop.f32.mrb[0].mxu0
        %v2945 = vadd.f32 %v2875, %v2944
        %v2946 = vpop.f32.mrb[0].mxu0
        %2947 = vdwg.mxu0
        %2948 = vmatprep.subr.mxu0 %v317
        %2949 = vmatpush1.xpose.msra.mxu0 %v316
        %2950 = vmatprep.subr.mxu0 %v373
        %2951 = vmatpush1.xpose.msra.mxu0 %v372
        %2952 = vmatprep.subr.mxu0 %v429
        %2953 = vmatpush1.xpose.msra.mxu0 %v428
        %2954 = vmatprep.subr.mxu0 %v485
        %2955 = vmatpush1.xpose.msra.mxu0 %v484
        %2956 = vmatprep.subr.mxu0 %v541
        %2957 = vmatpush1.xpose.msra.mxu0 %v540
        %2958 = vmatprep.subr.mxu0 %v597
        %2959 = vmatpush1.xpose.msra.mxu0 %v596
        %2960 = vmatprep.subr.mxu0 %v653
        %2961 = vmatpush1.xpose.msra.mxu0 %v652
        %2962 = vmatprep.subr.mxu0 %v709
        %2963 = vmatpush1.xpose.msra.mxu0 %v708
        %2964 = vmatprep.subr.mxu0 %v765
        %2965 = vmatpush1.xpose.msra.mxu0 %v764
        %2966 = vmatprep.subr.mxu0 %v821
        %2967 = vmatpush1.xpose.msra.mxu0 %v820
        %2968 = vmatprep.subr.mxu0 %v877
        %2969 = vmatpush1.xpose.msra.mxu0 %v876
        %2970 = vmatprep.subr.mxu0 %v933
        %2971 = vmatpush1.xpose.msra.mxu0 %v932
        %2972 = vmatprep.subr.mxu0 %v989
        %2973 = vmatpush1.xpose.msra.mxu0 %v988
        %2974 = vmatprep.subr.mxu0 %v1045
        %2975 = vmatpush1.xpose.msra.mxu0 %v1044
        %2976 = vmatprep.subr.mxu0 %v1101
        %2977 = vmatpush1.xpose.msra.mxu0 %v1100
        %2978 = vmatprep.subr.mxu0 %v1157
        %2979 = vmatpush1.xpose.msra.mxu0 %v1156
        %2980 = vmatprep.subr.mxu0 0.0
        %2981 = vmatpush1.xpose.msra.mxu0 0.0
        %2982 = vmatprep.subr.mxu0 0.0
        %2983 = vmatpush1.xpose.msra.mxu0 0.0
        %2984 = vmatprep.subr.mxu0 0.0
        %2985 = vmatpush1.xpose.msra.mxu0 0.0
        %2986 = vmatprep.subr.mxu0 0.0
        %2987 = vmatpush1.xpose.msra.mxu0 0.0
        %2988 = vmatprep.subr.mxu0 0.0
        %2989 = vmatpush1.xpose.msra.mxu0 0.0
        %2990 = vmatprep.subr.mxu0 0.0
        %2991 = vmatpush1.xpose.msra.mxu0 0.0
        %2992 = vmatprep.subr.mxu0 0.0
        %2993 = vmatpush1.xpose.msra.mxu0 0.0
        %2994 = vmatprep.subr.mxu0 0.0
        %2995 = vmatpush1.xpose.msra.mxu0 0.0
        %2996 = vmatprep.subr.mxu0 0.0
        %2997 = vmatpush1.xpose.msra.mxu0 0.0
        %2998 = vmatprep.subr.mxu0 0.0
        %2999 = vmatpush1.xpose.msra.mxu0 0.0
        %3000 = vmatprep.subr.mxu0 0.0
        %3001 = vmatpush1.xpose.msra.mxu0 0.0
        %3002 = vmatprep.subr.mxu0 0.0
        %3003 = vmatpush1.xpose.msra.mxu0 0.0
        %3004 = vmatprep.subr.mxu0 0.0
        %3005 = vmatpush1.xpose.msra.mxu0 0.0
        %3006 = vmatprep.subr.mxu0 0.0
        %3007 = vmatpush1.xpose.msra.mxu0 0.0
        %3008 = vmatprep.subr.mxu0 0.0
        %3009 = vmatpush1.xpose.msra.mxu0 0.0
        %3010 = vmatprep.subr.mxu0 0.0
        %3011 = vmatpush1.xpose.msra.mxu0 0.0
        %3012 = vmatprep.mubr.f32.mxu0 %v1370
        %3013 = vmatmul.mubr.f32.gmra.mrb[0].mxu0 %v1368
        %v3014 = vpop.f32.mrb[0].mxu0
        %v3015 = vadd.f32 %v2945, %v3014
        %v3016 = vpop.f32.mrb[0].mxu0
        %3017 = vdwg.mxu0
        %3018 = vmatprep.subr.mxu0 %v319
        %3019 = vmatpush1.xpose.msra.mxu0 %v318
        %3020 = vmatprep.subr.mxu0 %v375
        %3021 = vmatpush1.xpose.msra.mxu0 %v374
        %3022 = vmatprep.subr.mxu0 %v431
        %3023 = vmatpush1.xpose.msra.mxu0 %v430
        %3024 = vmatprep.subr.mxu0 %v487
        %3025 = vmatpush1.xpose.msra.mxu0 %v486
        %3026 = vmatprep.subr.mxu0 %v543
        %3027 = vmatpush1.xpose.msra.mxu0 %v542
        %3028 = vmatprep.subr.mxu0 %v599
        %3029 = vmatpush1.xpose.msra.mxu0 %v598
        %3030 = vmatprep.subr.mxu0 %v655
        %3031 = vmatpush1.xpose.msra.mxu0 %v654
        %3032 = vmatprep.subr.mxu0 %v711
        %3033 = vmatpush1.xpose.msra.mxu0 %v710
        %3034 = vmatprep.subr.mxu0 %v767
        %3035 = vmatpush1.xpose.msra.mxu0 %v766
        %3036 = vmatprep.subr.mxu0 %v823
        %3037 = vmatpush1.xpose.msra.mxu0 %v822
        %3038 = vmatprep.subr.mxu0 %v879
        %3039 = vmatpush1.xpose.msra.mxu0 %v878
        %3040 = vmatprep.subr.mxu0 %v935
        %3041 = vmatpush1.xpose.msra.mxu0 %v934
        %3042 = vmatprep.subr.mxu0 %v991
        %3043 = vmatpush1.xpose.msra.mxu0 %v990
        %3044 = vmatprep.subr.mxu0 %v1047
        %3045 = vmatpush1.xpose.msra.mxu0 %v1046
        %3046 = vmatprep.subr.mxu0 %v1103
        %3047 = vmatpush1.xpose.msra.mxu0 %v1102
        %3048 = vmatprep.subr.mxu0 %v1159
        %3049 = vmatpush1.xpose.msra.mxu0 %v1158
        %3050 = vmatprep.subr.mxu0 0.0
        %3051 = vmatpush1.xpose.msra.mxu0 0.0
        %3052 = vmatprep.subr.mxu0 0.0
        %3053 = vmatpush1.xpose.msra.mxu0 0.0
        %3054 = vmatprep.subr.mxu0 0.0
        %3055 = vmatpush1.xpose.msra.mxu0 0.0
        %3056 = vmatprep.subr.mxu0 0.0
        %3057 = vmatpush1.xpose.msra.mxu0 0.0
        %3058 = vmatprep.subr.mxu0 0.0
        %3059 = vmatpush1.xpose.msra.mxu0 0.0
        %3060 = vmatprep.subr.mxu0 0.0
        %3061 = vmatpush1.xpose.msra.mxu0 0.0
        %3062 = vmatprep.subr.mxu0 0.0
        %3063 = vmatpush1.xpose.msra.mxu0 0.0
        %3064 = vmatprep.subr.mxu0 0.0
        %3065 = vmatpush1.xpose.msra.mxu0 0.0
        %3066 = vmatprep.subr.mxu0 0.0
        %3067 = vmatpush1.xpose.msra.mxu0 0.0
        %3068 = vmatprep.subr.mxu0 0.0
        %3069 = vmatpush1.xpose.msra.mxu0 0.0
        %3070 = vmatprep.subr.mxu0 0.0
        %3071 = vmatpush1.xpose.msra.mxu0 0.0
        %3072 = vmatprep.subr.mxu0 0.0
        %3073 = vmatpush1.xpose.msra.mxu0 0.0
        %3074 = vmatprep.subr.mxu0 0.0
        %3075 = vmatpush1.xpose.msra.mxu0 0.0
        %3076 = vmatprep.subr.mxu0 0.0
        %3077 = vmatpush1.xpose.msra.mxu0 0.0
        %3078 = vmatprep.subr.mxu0 0.0
        %3079 = vmatpush1.xpose.msra.mxu0 0.0
        %3080 = vmatprep.subr.mxu0 0.0
        %3081 = vmatpush1.xpose.msra.mxu0 0.0
        %3082 = vmatprep.mubr.f32.mxu0 %v1386
        %3083 = vmatmul.mubr.f32.gmra.mrb[0].mxu0 %v1378
        %v3084 = vpop.f32.mrb[0].mxu0
        %v3085 = vadd.f32 %v3015, %v3084
        %v3086 = vpop.f32.mrb[0].mxu0
        %3087 = vdwg.mxu0
        %3088 = vmatprep.subr.mxu0 %v321
        %3089 = vmatpush1.xpose.msra.mxu0 %v320
        %3090 = vmatprep.subr.mxu0 %v377
        %3091 = vmatpush1.xpose.msra.mxu0 %v376
        %3092 = vmatprep.subr.mxu0 %v433
        %3093 = vmatpush1.xpose.msra.mxu0 %v432
        %3094 = vmatprep.subr.mxu0 %v489
        %3095 = vmatpush1.xpose.msra.mxu0 %v488
        %3096 = vmatprep.subr.mxu0 %v545
        %3097 = vmatpush1.xpose.msra.mxu0 %v544
        %3098 = vmatprep.subr.mxu0 %v601
        %3099 = vmatpush1.xpose.msra.mxu0 %v600
        %3100 = vmatprep.subr.mxu0 %v657
        %3101 = vmatpush1.xpose.msra.mxu0 %v656
        %3102 = vmatprep.subr.mxu0 %v713
        %3103 = vmatpush1.xpose.msra.mxu0 %v712
        %3104 = vmatprep.subr.mxu0 %v769
        %3105 = vmatpush1.xpose.msra.mxu0 %v768
        %3106 = vmatprep.subr.mxu0 %v825
        %3107 = vmatpush1.xpose.msra.mxu0 %v824
        %3108 = vmatprep.subr.mxu0 %v881
        %3109 = vmatpush1.xpose.msra.mxu0 %v880
        %3110 = vmatprep.subr.mxu0 %v937
        %3111 = vmatpush1.xpose.msra.mxu0 %v936
        %3112 = vmatprep.subr.mxu0 %v993
        %3113 = vmatpush1.xpose.msra.mxu0 %v992
        %3114 = vmatprep.subr.mxu0 %v1049
        %3115 = vmatpush1.xpose.msra.mxu0 %v1048
        %3116 = vmatprep.subr.mxu0 %v1105
        %3117 = vmatpush1.xpose.msra.mxu0 %v1104
        %3118 = vmatprep.subr.mxu0 %v1161
        %3119 = vmatpush1.xpose.msra.mxu0 %v1160
        %3120 = vmatprep.subr.mxu0 0.0
        %3121 = vmatpush1.xpose.msra.mxu0 0.0
        %3122 = vmatprep.subr.mxu0 0.0
        %3123 = vmatpush1.xpose.msra.mxu0 0.0
        %3124 = vmatprep.subr.mxu0 0.0
        %3125 = vmatpush1.xpose.msra.mxu0 0.0
        %3126 = vmatprep.subr.mxu0 0.0
        %3127 = vmatpush1.xpose.msra.mxu0 0.0
        %3128 = vmatprep.subr.mxu0 0.0
        %3129 = vmatpush1.xpose.msra.mxu0 0.0
        %3130 = vmatprep.subr.mxu0 0.0
        %3131 = vmatpush1.xpose.msra.mxu0 0.0
        %3132 = vmatprep.subr.mxu0 0.0
        %3133 = vmatpush1.xpose.msra.mxu0 0.0
        %3134 = vmatprep.subr.mxu0 0.0
        %3135 = vmatpush1.xpose.msra.mxu0 0.0
        %3136 = vmatprep.subr.mxu0 0.0
        %3137 = vmatpush1.xpose.msra.mxu0 0.0
        %3138 = vmatprep.subr.mxu0 0.0
        %3139 = vmatpush1.xpose.msra.mxu0 0.0
        %3140 = vmatprep.subr.mxu0 0.0
        %3141 = vmatpush1.xpose.msra.mxu0 0.0
        %3142 = vmatprep.subr.mxu0 0.0
        %3143 = vmatpush1.xpose.msra.mxu0 0.0
        %3144 = vmatprep.subr.mxu0 0.0
        %3145 = vmatpush1.xpose.msra.mxu0 0.0
        %3146 = vmatprep.subr.mxu0 0.0
        %3147 = vmatpush1.xpose.msra.mxu0 0.0
        %3148 = vmatprep.subr.mxu0 0.0
        %3149 = vmatpush1.xpose.msra.mxu0 0.0
        %3150 = vmatprep.subr.mxu0 0.0
        %3151 = vmatpush1.xpose.msra.mxu0 0.0
        %3152 = vmatprep.mubr.f32.mxu0 %v1387
        %3153 = vmatmul.mubr.f32.gmra.mrb[0].mxu0 %v1385
        %v3154 = vpop.f32.mrb[0].mxu0
        %v3155 = vadd.f32 %v3085, %v3154
        %v3156 = vpop.f32.mrb[0].mxu0
        %3157 = vdwg.mxu0
        %3158 = vmatprep.subr.mxu0 %v323
        %3159 = vmatpush1.xpose.msra.mxu0 %v322
        %3160 = vmatprep.subr.mxu0 %v379
        %3161 = vmatpush1.xpose.msra.mxu0 %v378
        %3162 = vmatprep.subr.mxu0 %v435
        %3163 = vmatpush1.xpose.msra.mxu0 %v434
        %3164 = vmatprep.subr.mxu0 %v491
        %3165 = vmatpush1.xpose.msra.mxu0 %v490
        %3166 = vmatprep.subr.mxu0 %v547
        %3167 = vmatpush1.xpose.msra.mxu0 %v546
        %3168 = vmatprep.subr.mxu0 %v603
        %3169 = vmatpush1.xpose.msra.mxu0 %v602
        %3170 = vmatprep.subr.mxu0 %v659
        %3171 = vmatpush1.xpose.msra.mxu0 %v658
        %3172 = vmatprep.subr.mxu0 %v715
        %3173 = vmatpush1.xpose.msra.mxu0 %v714
        %3174 = vmatprep.subr.mxu0 %v771
        %3175 = vmatpush1.xpose.msra.mxu0 %v770
        %3176 = vmatprep.subr.mxu0 %v827
        %3177 = vmatpush1.xpose.msra.mxu0 %v826
        %3178 = vmatprep.subr.mxu0 %v883
        %3179 = vmatpush1.xpose.msra.mxu0 %v882
        %3180 = vmatprep.subr.mxu0 %v939
        %3181 = vmatpush1.xpose.msra.mxu0 %v938
        %3182 = vmatprep.subr.mxu0 %v995
        %3183 = vmatpush1.xpose.msra.mxu0 %v994
        %3184 = vmatprep.subr.mxu0 %v1051
        %3185 = vmatpush1.xpose.msra.mxu0 %v1050
        %3186 = vmatprep.subr.mxu0 %v1107
        %3187 = vmatpush1.xpose.msra.mxu0 %v1106
        %3188 = vmatprep.subr.mxu0 %v1163
        %3189 = vmatpush1.xpose.msra.mxu0 %v1162
        %3190 = vmatprep.subr.mxu0 0.0
        %3191 = vmatpush1.xpose.msra.mxu0 0.0
        %3192 = vmatprep.subr.mxu0 0.0
        %3193 = vmatpush1.xpose.msra.mxu0 0.0
        %3194 = vmatprep.subr.mxu0 0.0
        %3195 = vmatpush1.xpose.msra.mxu0 0.0
        %3196 = vmatprep.subr.mxu0 0.0
        %3197 = vmatpush1.xpose.msra.mxu0 0.0
        %3198 = vmatprep.subr.mxu0 0.0
        %3199 = vmatpush1.xpose.msra.mxu0 0.0
        %3200 = vmatprep.subr.mxu0 0.0
        %3201 = vmatpush1.xpose.msra.mxu0 0.0
        %3202 = vmatprep.subr.mxu0 0.0
        %3203 = vmatpush1.xpose.msra.mxu0 0.0
        %3204 = vmatprep.subr.mxu0 0.0
        %3205 = vmatpush1.xpose.msra.mxu0 0.0
        %3206 = vmatprep.subr.mxu0 0.0
        %3207 = vmatpush1.xpose.msra.mxu0 0.0
        %3208 = vmatprep.subr.mxu0 0.0
        %3209 = vmatpush1.xpose.msra.mxu0 0.0
        %3210 = vmatprep.subr.mxu0 0.0
        %3211 = vmatpush1.xpose.msra.mxu0 0.0
        %3212 = vmatprep.subr.mxu0 0.0
        %3213 = vmatpush1.xpose.msra.mxu0 0.0
        %3214 = vmatprep.subr.mxu0 0.0
        %3215 = vmatpush1.xpose.msra.mxu0 0.0
        %3216 = vmatprep.subr.mxu0 0.0
        %3217 = vmatpush1.xpose.msra.mxu0 0.0
        %3218 = vmatprep.subr.mxu0 0.0
        %3219 = vmatpush1.xpose.msra.mxu0 0.0
        %3220 = vmatprep.subr.mxu0 0.0
        %3221 = vmatpush1.xpose.msra.mxu0 0.0
        %3222 = vmatprep.mubr.f32.mxu0 %v1403
        %3223 = vmatmul.mubr.f32.gmra.mrb[0].mxu0 %v1395
        %v3224 = vpop.f32.mrb[0].mxu0
        %v3225 = vadd.f32 %v3155, %v3224
        %v3226 = vpop.f32.mrb[0].mxu0
        %3227 = vdwg.mxu0
        %3228 = vmatprep.subr.mxu0 %v325
        %3229 = vmatpush1.xpose.msra.mxu0 %v324
        %3230 = vmatprep.subr.mxu0 %v381
        %3231 = vmatpush1.xpose.msra.mxu0 %v380
        %3232 = vmatprep.subr.mxu0 %v437
        %3233 = vmatpush1.xpose.msra.mxu0 %v436
        %3234 = vmatprep.subr.mxu0 %v493
        %3235 = vmatpush1.xpose.msra.mxu0 %v492
        %3236 = vmatprep.subr.mxu0 %v549
        %3237 = vmatpush1.xpose.msra.mxu0 %v548
        %3238 = vmatprep.subr.mxu0 %v605
        %3239 = vmatpush1.xpose.msra.mxu0 %v604
        %3240 = vmatprep.subr.mxu0 %v661
        %3241 = vmatpush1.xpose.msra.mxu0 %v660
        %3242 = vmatprep.subr.mxu0 %v717
        %3243 = vmatpush1.xpose.msra.mxu0 %v716
        %3244 = vmatprep.subr.mxu0 %v773
        %3245 = vmatpush1.xpose.msra.mxu0 %v772
        %3246 = vmatprep.subr.mxu0 %v829
        %3247 = vmatpush1.xpose.msra.mxu0 %v828
        %3248 = vmatprep.subr.mxu0 %v885
        %3249 = vmatpush1.xpose.msra.mxu0 %v884
        %3250 = vmatprep.subr.mxu0 %v941
        %3251 = vmatpush1.xpose.msra.mxu0 %v940
        %3252 = vmatprep.subr.mxu0 %v997
        %3253 = vmatpush1.xpose.msra.mxu0 %v996
        %3254 = vmatprep.subr.mxu0 %v1053
        %3255 = vmatpush1.xpose.msra.mxu0 %v1052
        %3256 = vmatprep.subr.mxu0 %v1109
        %3257 = vmatpush1.xpose.msra.mxu0 %v1108
        %3258 = vmatprep.subr.mxu0 %v1165
        %3259 = vmatpush1.xpose.msra.mxu0 %v1164
        %3260 = vmatprep.subr.mxu0 0.0
        %3261 = vmatpush1.xpose.msra.mxu0 0.0
        %3262 = vmatprep.subr.mxu0 0.0
        %3263 = vmatpush1.xpose.msra.mxu0 0.0
        %3264 = vmatprep.subr.mxu0 0.0
        %3265 = vmatpush1.xpose.msra.mxu0 0.0
        %3266 = vmatprep.subr.mxu0 0.0
        %3267 = vmatpush1.xpose.msra.mxu0 0.0
        %3268 = vmatprep.subr.mxu0 0.0
        %3269 = vmatpush1.xpose.msra.mxu0 0.0
        %3270 = vmatprep.subr.mxu0 0.0
        %3271 = vmatpush1.xpose.msra.mxu0 0.0
        %3272 = vmatprep.subr.mxu0 0.0
        %3273 = vmatpush1.xpose.msra.mxu0 0.0
        %3274 = vmatprep.subr.mxu0 0.0
        %3275 = vmatpush1.xpose.msra.mxu0 0.0
        %3276 = vmatprep.subr.mxu0 0.0
        %3277 = vmatpush1.xpose.msra.mxu0 0.0
        %3278 = vmatprep.subr.mxu0 0.0
        %3279 = vmatpush1.xpose.msra.mxu0 0.0
        %3280 = vmatprep.subr.mxu0 0.0
        %3281 = vmatpush1.xpose.msra.mxu0 0.0
        %3282 = vmatprep.subr.mxu0 0.0
        %3283 = vmatpush1.xpose.msra.mxu0 0.0
        %3284 = vmatprep.subr.mxu0 0.0
        %3285 = vmatpush1.xpose.msra.mxu0 0.0
        %3286 = vmatprep.subr.mxu0 0.0
        %3287 = vmatpush1.xpose.msra.mxu0 0.0
        %3288 = vmatprep.subr.mxu0 0.0
        %3289 = vmatpush1.xpose.msra.mxu0 0.0
        %3290 = vmatprep.subr.mxu0 0.0
        %3291 = vmatpush1.xpose.msra.mxu0 0.0
        %3292 = vmatprep.mubr.f32.mxu0 %v1404
        %3293 = vmatmul.mubr.f32.gmra.mrb[0].mxu0 %v1402
        %v3294 = vpop.f32.mrb[0].mxu0
        %v3295 = vadd.f32 %v3225, %v3294
        %v3296 = vpop.f32.mrb[0].mxu0
        %3297 = vdwg.mxu0
        %3298 = vmatprep.subr.mxu0 %v327
        %3299 = vmatpush1.xpose.msra.mxu0 %v326
        %3300 = vmatprep.subr.mxu0 %v383
        %3301 = vmatpush1.xpose.msra.mxu0 %v382
        %3302 = vmatprep.subr.mxu0 %v439
        %3303 = vmatpush1.xpose.msra.mxu0 %v438
        %3304 = vmatprep.subr.mxu0 %v495
        %3305 = vmatpush1.xpose.msra.mxu0 %v494
        %3306 = vmatprep.subr.mxu0 %v551
        %3307 = vmatpush1.xpose.msra.mxu0 %v550
        %3308 = vmatprep.subr.mxu0 %v607
        %3309 = vmatpush1.xpose.msra.mxu0 %v606
        %3310 = vmatprep.subr.mxu0 %v663
        %3311 = vmatpush1.xpose.msra.mxu0 %v662
        %3312 = vmatprep.subr.mxu0 %v719
        %3313 = vmatpush1.xpose.msra.mxu0 %v718
        %3314 = vmatprep.subr.mxu0 %v775
        %3315 = vmatpush1.xpose.msra.mxu0 %v774
        %3316 = vmatprep.subr.mxu0 %v831
        %3317 = vmatpush1.xpose.msra.mxu0 %v830
        %3318 = vmatprep.subr.mxu0 %v887
        %3319 = vmatpush1.xpose.msra.mxu0 %v886
        %3320 = vmatprep.subr.mxu0 %v943
        %3321 = vmatpush1.xpose.msra.mxu0 %v942
        %3322 = vmatprep.subr.mxu0 %v999
        %3323 = vmatpush1.xpose.msra.mxu0 %v998
        %3324 = vmatprep.subr.mxu0 %v1055
        %3325 = vmatpush1.xpose.msra.mxu0 %v1054
        %3326 = vmatprep.subr.mxu0 %v1111
        %3327 = vmatpush1.xpose.msra.mxu0 %v1110
        %3328 = vmatprep.subr.mxu0 %v1167
        %3329 = vmatpush1.xpose.msra.mxu0 %v1166
        %3330 = vmatprep.subr.mxu0 0.0
        %3331 = vmatpush1.xpose.msra.mxu0 0.0
        %3332 = vmatprep.subr.mxu0 0.0
        %3333 = vmatpush1.xpose.msra.mxu0 0.0
        %3334 = vmatprep.subr.mxu0 0.0
        %3335 = vmatpush1.xpose.msra.mxu0 0.0
        %3336 = vmatprep.subr.mxu0 0.0
        %3337 = vmatpush1.xpose.msra.mxu0 0.0
        %3338 = vmatprep.subr.mxu0 0.0
        %3339 = vmatpush1.xpose.msra.mxu0 0.0
        %3340 = vmatprep.subr.mxu0 0.0
        %3341 = vmatpush1.xpose.msra.mxu0 0.0
        %3342 = vmatprep.subr.mxu0 0.0
        %3343 = vmatpush1.xpose.msra.mxu0 0.0
        %3344 = vmatprep.subr.mxu0 0.0
        %3345 = vmatpush1.xpose.msra.mxu0 0.0
        %3346 = vmatprep.subr.mxu0 0.0
        %3347 = vmatpush1.xpose.msra.mxu0 0.0
        %3348 = vmatprep.subr.mxu0 0.0
        %3349 = vmatpush1.xpose.msra.mxu0 0.0
        %3350 = vmatprep.subr.mxu0 0.0
        %3351 = vmatpush1.xpose.msra.mxu0 0.0
        %3352 = vmatprep.subr.mxu0 0.0
        %3353 = vmatpush1.xpose.msra.mxu0 0.0
        %3354 = vmatprep.subr.mxu0 0.0
        %3355 = vmatpush1.xpose.msra.mxu0 0.0
        %3356 = vmatprep.subr.mxu0 0.0
        %3357 = vmatpush1.xpose.msra.mxu0 0.0
        %3358 = vmatprep.subr.mxu0 0.0
        %3359 = vmatpush1.xpose.msra.mxu0 0.0
        %3360 = vmatprep.subr.mxu0 0.0
        %3361 = vmatpush1.xpose.msra.mxu0 0.0
        %3362 = vmatprep.mubr.f32.mxu0 %v1420
        %3363 = vmatmul.mubr.f32.gmra.mrb[0].mxu0 %v1412
        %v3364 = vpop.f32.mrb[0].mxu0
        %v3365 = vadd.f32 %v3295, %v3364
        %v3366 = vpop.f32.mrb[0].mxu0
        %3367 = vdwg.mxu0
        %3368 = vmatprep.subr.mxu0 %v329
        %3369 = vmatpush1.xpose.msra.mxu0 %v328
        %3370 = vmatprep.subr.mxu0 %v385
        %3371 = vmatpush1.xpose.msra.mxu0 %v384
        %3372 = vmatprep.subr.mxu0 %v441
        %3373 = vmatpush1.xpose.msra.mxu0 %v440
        %3374 = vmatprep.subr.mxu0 %v497
        %3375 = vmatpush1.xpose.msra.mxu0 %v496
        %3376 = vmatprep.subr.mxu0 %v553
        %3377 = vmatpush1.xpose.msra.mxu0 %v552
        %3378 = vmatprep.subr.mxu0 %v609
        %3379 = vmatpush1.xpose.msra.mxu0 %v608
        %3380 = vmatprep.subr.mxu0 %v665
        %3381 = vmatpush1.xpose.msra.mxu0 %v664
        %3382 = vmatprep.subr.mxu0 %v721
        %3383 = vmatpush1.xpose.msra.mxu0 %v720
        %3384 = vmatprep.subr.mxu0 %v777
        %3385 = vmatpush1.xpose.msra.mxu0 %v776
        %3386 = vmatprep.subr.mxu0 %v833
        %3387 = vmatpush1.xpose.msra.mxu0 %v832
        %3388 = vmatprep.subr.mxu0 %v889
        %3389 = vmatpush1.xpose.msra.mxu0 %v888
        %3390 = vmatprep.subr.mxu0 %v945
        %3391 = vmatpush1.xpose.msra.mxu0 %v944
        %3392 = vmatprep.subr.mxu0 %v1001
        %3393 = vmatpush1.xpose.msra.mxu0 %v1000
        %3394 = vmatprep.subr.mxu0 %v1057
        %3395 = vmatpush1.xpose.msra.mxu0 %v1056
        %3396 = vmatprep.subr.mxu0 %v1113
        %3397 = vmatpush1.xpose.msra.mxu0 %v1112
        %3398 = vmatprep.subr.mxu0 %v1169
        %3399 = vmatpush1.xpose.msra.mxu0 %v1168
        %3400 = vmatprep.subr.mxu0 0.0
        %3401 = vmatpush1.xpose.msra.mxu0 0.0
        %3402 = vmatprep.subr.mxu0 0.0
        %3403 = vmatpush1.xpose.msra.mxu0 0.0
        %3404 = vmatprep.subr.mxu0 0.0
        %3405 = vmatpush1.xpose.msra.mxu0 0.0
        %3406 = vmatprep.subr.mxu0 0.0
        %3407 = vmatpush1.xpose.msra.mxu0 0.0
        %3408 = vmatprep.subr.mxu0 0.0
        %3409 = vmatpush1.xpose.msra.mxu0 0.0
        %3410 = vmatprep.subr.mxu0 0.0
        %3411 = vmatpush1.xpose.msra.mxu0 0.0
        %3412 = vmatprep.subr.mxu0 0.0
        %3413 = vmatpush1.xpose.msra.mxu0 0.0
        %3414 = vmatprep.subr.mxu0 0.0
        %3415 = vmatpush1.xpose.msra.mxu0 0.0
        %3416 = vmatprep.subr.mxu0 0.0
        %3417 = vmatpush1.xpose.msra.mxu0 0.0
        %3418 = vmatprep.subr.mxu0 0.0
        %3419 = vmatpush1.xpose.msra.mxu0 0.0
        %3420 = vmatprep.subr.mxu0 0.0
        %3421 = vmatpush1.xpose.msra.mxu0 0.0
        %3422 = vmatprep.subr.mxu0 0.0
        %3423 = vmatpush1.xpose.msra.mxu0 0.0
        %3424 = vmatprep.subr.mxu0 0.0
        %3425 = vmatpush1.xpose.msra.mxu0 0.0
        %3426 = vmatprep.subr.mxu0 0.0
        %3427 = vmatpush1.xpose.msra.mxu0 0.0
        %3428 = vmatprep.subr.mxu0 0.0
        %3429 = vmatpush1.xpose.msra.mxu0 0.0
        %3430 = vmatprep.subr.mxu0 0.0
        %3431 = vmatpush1.xpose.msra.mxu0 0.0
        %3432 = vmatprep.mubr.f32.mxu0 %v1421
        %3433 = vmatmul.mubr.f32.gmra.mrb[0].mxu0 %v1419
        %v3434 = vpop.f32.mrb[0].mxu0
        %v3435 = vadd.f32 %v3365, %v3434
        %v3436 = vpop.f32.mrb[0].mxu0
        %3437 = vdwg.mxu0
        %v3438 = vadd.f32 %v259, %v3435
        %3439 = vst [vmem:[#allocation2] sm:$0x3] %v3438
        %p3440 = scmp.eq.s32.totalorder %s20, 13
        // Predicated region
        $region49: #{simple_cnn_forward.5} parent=39 // pred_check
          %p3441 = pneg %p3440
        $region50: #{simple_cnn_forward.5} parent=39 // pred_check_branch
          %3443 = sbr.rel (%p3441) target = $region52
        $region51: #{simple_cnn_forward.5} parent=39 // pred_region
          %v3444 = vld [vmem:[#allocation2] sm:$0x3]
          %v3445 = vld [vmem:[%s2] sm:$0x1]
          %v3447 = vlaneseq
          %v3448 = vshrl.u32 %v3447, 7
          %v3449 = vsub.s32 0, %v3448
          %v3450 = vrot.slane %v3445, %v3449
          %v3452 = vadd.f32 %v3444, %v3450
          %v3453 = vmax.f32 %v3452, 0.0
          %v3454 = vld [vmem:[%s3] sm:$0xff]
          %v3455 = vld [vmem:[%s3 + $0x8] sm:$0x3]
          %v3456 = vld [vmem:[%s4] sm:$0x1]
          %v3458 = vlaneseq
          %v3459 = vshrl.u32 %v3458, 7
          %v3460 = vsub.s32 0, %v3459
          %v3461 = vrot.slane %v3456, %v3460
          %3463 = vmatprep.subr.mxu0 0.0
          %3464 = vmatpush1.xpose.msra.mxu0 %v3454
          %3465 = vmatprep.subr.mxu0 0.0
          %3466 = vmatpush1.xpose.msra.mxu0 %v3455
          %3467 = vmatprep.subr.mxu0 0.0
          %3468 = vmatpush1.xpose.msra.mxu0 0.0
          %3469 = vmatprep.subr.mxu0 0.0
          %3470 = vmatpush1.xpose.msra.mxu0 0.0
          %3471 = vmatprep.subr.mxu0 0.0
          %3472 = vmatpush1.xpose.msra.mxu0 0.0
          %3473 = vmatprep.subr.mxu0 0.0
          %3474 = vmatpush1.xpose.msra.mxu0 0.0
          %3475 = vmatprep.subr.mxu0 0.0
          %3476 = vmatpush1.xpose.msra.mxu0 0.0
          %3477 = vmatprep.subr.mxu0 0.0
          %3478 = vmatpush1.xpose.msra.mxu0 0.0
          %3479 = vmatprep.subr.mxu0 0.0
          %3480 = vmatpush1.xpose.msra.mxu0 0.0
          %3481 = vmatprep.subr.mxu0 0.0
          %3482 = vmatpush1.xpose.msra.mxu0 0.0
          %3483 = vmatprep.subr.mxu0 0.0
          %3484 = vmatpush1.xpose.msra.mxu0 0.0
          %3485 = vmatprep.subr.mxu0 0.0
          %3486 = vmatpush1.xpose.msra.mxu0 0.0
          %3487 = vmatprep.subr.mxu0 0.0
          %3488 = vmatpush1.xpose.msra.mxu0 0.0
          %3489 = vmatprep.subr.mxu0 0.0
          %3490 = vmatpush1.xpose.msra.mxu0 0.0
          %3491 = vmatprep.subr.mxu0 0.0
          %3492 = vmatpush1.xpose.msra.mxu0 0.0
          %3493 = vmatprep.subr.mxu0 0.0
          %3494 = vmatpush1.xpose.msra.mxu0 0.0
          %3495 = vmatprep.subr.mxu0 0.0
          %3496 = vmatpush1.xpose.msra.mxu0 0.0
          %3497 = vmatprep.subr.mxu0 0.0
          %3498 = vmatpush1.xpose.msra.mxu0 0.0
          %3499 = vmatprep.subr.mxu0 0.0
          %3500 = vmatpush1.xpose.msra.mxu0 0.0
          %3501 = vmatprep.subr.mxu0 0.0
          %3502 = vmatpush1.xpose.msra.mxu0 0.0
          %3503 = vmatprep.subr.mxu0 0.0
          %3504 = vmatpush1.xpose.msra.mxu0 0.0
          %3505 = vmatprep.subr.mxu0 0.0
          %3506 = vmatpush1.xpose.msra.mxu0 0.0
          %3507 = vmatprep.subr.mxu0 0.0
          %3508 = vmatpush1.xpose.msra.mxu0 0.0
          %3509 = vmatprep.subr.mxu0 0.0
          %3510 = vmatpush1.xpose.msra.mxu0 0.0
          %3511 = vmatprep.subr.mxu0 0.0
          %3512 = vmatpush1.xpose.msra.mxu0 0.0
          %3513 = vmatprep.subr.mxu0 0.0
          %3514 = vmatpush1.xpose.msra.mxu0 0.0
          %3515 = vmatprep.subr.mxu0 0.0
          %3516 = vmatpush1.xpose.msra.mxu0 0.0
          %3517 = vmatprep.subr.mxu0 0.0
          %3518 = vmatpush1.xpose.msra.mxu0 0.0
          %3519 = vmatprep.subr.mxu0 0.0
          %3520 = vmatpush1.xpose.msra.mxu0 0.0
          %3521 = vmatprep.subr.mxu0 0.0
          %3522 = vmatpush1.xpose.msra.mxu0 0.0
          %3523 = vmatprep.subr.mxu0 0.0
          %3524 = vmatpush1.xpose.msra.mxu0 0.0
          %3525 = vmatprep.subr.mxu0 0.0
          %3526 = vmatpush1.xpose.msra.mxu0 0.0
          %3527 = vmatprep.mubr.f32.mxu0 0.0
          %3528 = vmatmul.mubr.f32.gmra.mrb[0].mxu0 %v3453
          %v3529 = vpop.f32.mrb[0].mxu0
          %v3530 = vadd.f32 %v3461, %v3529
          %v3531 = vpop.f32.mrb[0].mxu0
          %3532 = vdwg.mxu0
          %vm3533 = vcmask 74752
          %3534 = vst.msk [vmem:[#allocation6] sm:$0x3] %vm3533, %v3530
        $region52: #{simple_cnn_forward.5} parent=39 // pred_fallthru
          _
        // Predicated region
        $region53: #{simple_cnn_forward.5} parent=39 // pred_check
          %p3535 = pneg %p148
        $region54: #{simple_cnn_forward.5} parent=39 // pred_check_branch
          %3537 = sbr.rel (%p3535) target = $region56
        $region55: #{simple_cnn_forward.5} parent=39 // pred_region
          %s3539 = ssub.s32 32, 32
          %3540 = vsyncadd [#allocation5], %s3539
          %s3542 = sshll.u32 [#allocation6], 4
          %s3543 = int_to_ptr.vmem [resolvable:$true] %s3542
          %3545 = dma.vmem_to_hbm [thread:$0]  %s3543, 32, %s5, [#allocation5]
        $region56: #{simple_cnn_forward.5} parent=39 // pred_fallthru
          _
        // Predicated region
        $region57: #{simple_cnn_forward.5} parent=39 // pred_check
          %p3546 = pneg %p148
        $region58: #{simple_cnn_forward.5} parent=39 // pred_check_branch
          %3548 = sbr.rel (%p3546) target = $region60
        $region59: #{simple_cnn_forward.5} parent=39 // pred_region
          %3549 = dma.done [#allocation5], 32
        $region60: #{simple_cnn_forward.5} parent=39 // pred_fallthru
          _
      $region40: #{simple_cnn_forward.5} parent=5 // pred_fallthru
        _
      %p3550 = scmp.le.s32.totalorder 2, %s15
      // Predicated region
      $region61: #{simple_cnn_forward.5} parent=5 // pred_check
        %p3551 = pneg %p3550
      $region62: #{simple_cnn_forward.5} parent=5 // pred_check_branch
        %3553 = sbr.rel (%p3551) target = $region64
      $region63: #{simple_cnn_forward.5} parent=5 // pred_region
        %s3554 = ssub.s32 %s15, 2
      $region64: #{simple_cnn_forward.5} parent=5 // pred_fallthru
        _
    $region6: #{simple_cnn_forward.5} parent=1 // loop_footer
      %s19 = sadd.s32 1, %s15
    $region7: #{simple_cnn_forward.5} parent=1 // loop_footer_branch
      %14 = sbr.rel target = $region3
    $region8: #{simple_cnn_forward.5} parent=1 // loop_exit
      _
    %3555 = vsyncpa [#allocation4], 1
    %s3556 = scalar_lea.sflag [#allocation4], 1
    %3557 = vsyncpa %s3556, 1
    %3558 = vsyncpa [#allocation5], 1
    %s3559 = scalar_lea.sflag [#allocation5], 1
    %3560 = vsyncpa %s3559, 1

</llo_original>
